<compile_context>
chip_gen: v7x
topology: tpu7x:2x2x1
jax: 0.10.0
libtpu: 0.0.40
codegen_flags: <defaults>
</compile_context>

<pallas_src>
import functools
import numpy as np

import jax
import jax.numpy as jnp
from jax.experimental import pallas as pl
from jax.experimental.pallas import tpu as pltpu

EPS = 1e-5


def _round_up(x, m):
    return (x + m - 1) // m * m


# ------------------------------- Pallas kernel ------------------------------- #

def _conv3x3x3(h, w_ref, m_ref, taps):
    """3x3x3 conv (padding=1, stride=1) of h (Cin, M) via 27 shift+mask taps.

    w_ref: (27, Cout, Cin) VMEM ref (tap-major, kd/kh/kw row-major).
    m_ref: (27, M) VMEM ref of per-tap boundary masks (1.0 inside, 0.0 outside).
    Returns (Cout, M) f32.
    """
    cout = w_ref.shape[1]
    m = h.shape[1]
    acc = jnp.zeros((cout, m), jnp.float32)
    for t, off in enumerate(taps):
        # shifted[:, i] = h[:, i + off]  (circular; wrap is masked to zero below)
        shifted = h if off == 0 else pltpu.roll(h, shift=(-off) % m, axis=1)
        tap = shifted * m_ref[t:t + 1, :]                    # zero-padding mask
        acc = acc + jnp.dot(w_ref[t], tap, preferred_element_type=jnp.float32)
    return acc


def _block_kernel(x_ref, s1_ref, b1_ref, w1_ref, s2_ref, b2_ref, w2_ref, m_ref,
                  o_ref, *, taps):
    x = x_ref[0]                                              # (Cp, M) f32
    h1 = jnp.maximum(x * s1_ref[...] + b1_ref[...], 0.0)      # bn1 + relu (fused)
    out1 = _conv3x3x3(h1, w1_ref, m_ref, taps)                # conv1 (stays on-chip)
    h2 = jnp.maximum(out1 * s2_ref[...] + b2_ref[...], 0.0)   # bn2 + relu (fused)
    out2 = _conv3x3x3(h2, w2_ref, m_ref, taps)                # conv2
    o_ref[0] = (out2 + x).astype(o_ref.dtype)                 # residual epilogue


# ------------------------------ wrapper / glue ------------------------------- #

def fold_bn(gamma, beta, mean, var):
    scale = gamma / jnp.sqrt(var + EPS)
    shift = beta - mean * scale
    return scale, shift


def _pad_ch_vec(v, cp):
    c = v.shape[0]
    return jnp.pad(v, (0, cp - c)).reshape(cp, 1).astype(jnp.float32)


def _prep_weight(w, cp):
    # w: (3,3,3, Cin, Cout) DHWIO -> (27, Cout_p, Cin_p), tap-major (kd, kh, kw)
    kin, kout = w.shape[3], w.shape[4]
    w27 = jnp.transpose(w.reshape(27, kin, kout), (0, 2, 1))
    return jnp.pad(w27, ((0, 0), (0, cp - kout), (0, cp - kin))).astype(jnp.float32)


def _taps_and_masks(d, h, w):
    """Static flat-index offsets + validity masks for the 27 taps (padding=1)."""
    dd, hh, ww = np.meshgrid(np.arange(d), np.arange(h), np.arange(w), indexing="ij")
    dd, hh, ww = dd.ravel(), hh.ravel(), ww.ravel()
    taps, masks = [], []
    for kd in (-1, 0, 1):
        for kh in (-1, 0, 1):
            for kw in (-1, 0, 1):
                taps.append(kd * h * w + kh * w + kw)
                valid = ((dd + kd >= 0) & (dd + kd < d) &
                         (hh + kh >= 0) & (hh + kh < h) &
                         (ww + kw >= 0) & (ww + kw < w))
                masks.append(valid.astype(np.float32))
    return tuple(taps), jnp.asarray(np.stack(masks))          # (27, D*H*W)


def pre_act_basic_block(x_ncdhw, params):
    """Pallas implementation of PreActivationBasicBlock.forward (stride=1)."""
    n, c, d, h, w = x_ncdhw.shape
    m = d * h * w
    cout = params["w1"].shape[-1]
    assert cout == c, "stride=1 / downsample=None path requires inplanes == planes"
    cp = _round_up(c, 8)

    # NCDHW -> (N, Cp, M): channels on sublanes, flat spatial on lanes.
    x2d = jnp.pad(x_ncdhw.reshape(n, c, m).astype(jnp.float32),
                  ((0, 0), (0, cp - c), (0, 0)))

    s1, b1 = fold_bn(params["gamma1"], params["beta1"], params["mean1"], params["var1"])
    s2, b2 = fold_bn(params["gamma2"], params["beta2"], params["mean2"], params["var2"])
    taps, masks = _taps_and_masks(d, h, w)

    kernel = functools.partial(_block_kernel, taps=taps)
    out = pl.pallas_call(
        kernel,
        out_shape=jax.ShapeDtypeStruct((n, cp, m), jnp.float32),
        grid=(n,),
        in_specs=[
            pl.BlockSpec((1, cp, m), lambda i: (i, 0, 0)),     # x (read once)
            pl.BlockSpec((cp, 1), lambda i: (0, 0)),           # bn1 scale
            pl.BlockSpec((cp, 1), lambda i: (0, 0)),           # bn1 shift
            pl.BlockSpec((27, cp, cp), lambda i: (0, 0, 0)),   # conv1 weight
            pl.BlockSpec((cp, 1), lambda i: (0, 0)),           # bn2 scale
            pl.BlockSpec((cp, 1), lambda i: (0, 0)),           # bn2 shift
            pl.BlockSpec((27, cp, cp), lambda i: (0, 0, 0)),   # conv2 weight
            pl.BlockSpec((27, m), lambda i: (0, 0)),           # boundary masks
        ],
        out_specs=pl.BlockSpec((1, cp, m), lambda i: (i, 0, 0)),
        compiler_params=pltpu.CompilerParams(dimension_semantics=("parallel",)),
    )(x2d,
      _pad_ch_vec(s1, cp), _pad_ch_vec(b1, cp), _prep_weight(params["w1"], cp),
      _pad_ch_vec(s2, cp), _pad_ch_vec(b2, cp), _prep_weight(params["w2"], cp),
      masks)

    return out[:, :c, :].reshape(n, c, d, h, w)


# ------------------------------ pure-JAX reference --------------------------- #

def ref_forward(x_ncdhw, params):
    x = jnp.transpose(x_ncdhw, (0, 2, 3, 4, 1)).astype(jnp.float32)

    def bn_relu(hh, g, b, mu, v):
        s = g / jnp.sqrt(v + EPS)
        return jnp.maximum(hh * s + (b - mu * s), 0.0)

    dn = jax.lax.conv_dimension_numbers(
        x.shape, params["w1"].shape, ("NDHWC", "DHWIO", "NDHWC"))
    hh = bn_relu(x, params["gamma1"], params["beta1"], params["mean1"], params["var1"])
    out = jax.lax.conv_general_dilated(hh, params["w1"], (1, 1, 1), "SAME",
                                       dimension_numbers=dn)
    hh = bn_relu(out, params["gamma2"], params["beta2"], params["mean2"], params["var2"])
    out = jax.lax.conv_general_dilated(hh, params["w2"], (1, 1, 1), "SAME",
                                       dimension_numbers=dn)
    out = out + x
    return jnp.transpose(out, (0, 4, 1, 2, 3))


# ------------------------------------ main ----------------------------------- #

if __name__ == "__main__":
    N, C, D, H, W = 2, 4, 8, 8, 8        # inplanes == planes == 4, stride=1
    key = jax.random.PRNGKey(0)
    keys = jax.random.split(key, 12)

    x = jax.random.normal(keys[0], (N, C, D, H, W), jnp.float32)

    params = {
        # conv weights stored as (kD, kH, kW, Cin, Cout) == DHWIO
        "w1": 0.1 * jax.random.normal(keys[1], (3, 3, 3, C, C), jnp.float32),
        "w2": 0.1 * jax.random.normal(keys[2], (3, 3, 3, C, C), jnp.float32),
        "gamma1": jax.random.uniform(keys[3], (C,), jnp.float32, 0.5, 1.5),
        "beta1": 0.1 * jax.random.normal(keys[4], (C,), jnp.float32),
        "mean1": 0.1 * jax.random.normal(keys[5], (C,), jnp.float32),
        "var1": jax.random.uniform(keys[6], (C,), jnp.float32, 0.5, 1.5),
        "gamma2": jax.random.uniform(keys[7], (C,), jnp.float32, 0.5, 1.5),
        "beta2": 0.1 * jax.random.normal(keys[8], (C,), jnp.float32),
        "mean2": 0.1 * jax.random.normal(keys[9], (C,), jnp.float32),
        "var2": jax.random.uniform(keys[10], (C,), jnp.float32, 0.5, 1.5),
    }

    out = jax.jit(pre_act_basic_block)(x, params)
    out = jax.block_until_ready(out)

    ref = jax.block_until_ready(ref_forward(x, params))
    np.testing.assert_allclose(np.asarray(out), np.asarray(ref), rtol=1e-3, atol=1e-3)

    assert out.shape == (N, C, D, H, W) and out.dtype == jnp.float32
    print("KERNEL_OK")
</pallas_src>

<mosaic_0001>
module attributes {stable_mosaic.version = 11 : i64} {
  func.func @_block_kernel(%arg0: i32, %arg1: memref<1x8x512xf32, #tpu.memory_space<vmem>>, %arg2: memref<8x1xf32, #tpu.memory_space<vmem>>, %arg3: memref<8x1xf32, #tpu.memory_space<vmem>>, %arg4: memref<27x8x8xf32, #tpu.memory_space<vmem>>, %arg5: memref<8x1xf32, #tpu.memory_space<vmem>>, %arg6: memref<8x1xf32, #tpu.memory_space<vmem>>, %arg7: memref<27x8x8xf32, #tpu.memory_space<vmem>>, %arg8: memref<27x512xf32, #tpu.memory_space<vmem>>, %arg9: memref<1x8x512xf32, #tpu.memory_space<vmem>>) attributes {dimension_semantics = [#tpu.dimension_semantics<parallel>], iteration_bounds = array<i64: 2>, scalar_prefetch = 0 : i64, scratch_operands = 0 : i64, tpu.core_type = #tpu.core_type<tc>, window_params = [{transform_indices = @transform_0, window_bounds = array<i64: 1, 8, 512>}, {pipeline_mode = #tpu.pipeline_mode<synchronous>, transform_indices = @transform_1, window_bounds = array<i64: 8, 1>}, {pipeline_mode = #tpu.pipeline_mode<synchronous>, transform_indices = @transform_2, window_bounds = array<i64: 8, 1>}, {pipeline_mode = #tpu.pipeline_mode<synchronous>, transform_indices = @transform_3, window_bounds = array<i64: 27, 8, 8>}, {pipeline_mode = #tpu.pipeline_mode<synchronous>, transform_indices = @transform_4, window_bounds = array<i64: 8, 1>}, {pipeline_mode = #tpu.pipeline_mode<synchronous>, transform_indices = @transform_5, window_bounds = array<i64: 8, 1>}, {pipeline_mode = #tpu.pipeline_mode<synchronous>, transform_indices = @transform_6, window_bounds = array<i64: 27, 8, 8>}, {pipeline_mode = #tpu.pipeline_mode<synchronous>, transform_indices = @transform_7, window_bounds = array<i64: 27, 512>}, {transform_indices = @transform_8, window_bounds = array<i64: 1, 8, 512>}]} {
    %c0 = arith.constant 0 : index
    %c0_0 = arith.constant 0 : index
    %c0_1 = arith.constant 0 : index
    %0 = vector.load %arg1[%c0, %c0_0, %c0_1] : memref<1x8x512xf32, #tpu.memory_space<vmem>>, vector<1x8x512xf32>
    %1 = vector.shape_cast %0 : vector<1x8x512xf32> to vector<8x512xf32>
    %c0_2 = arith.constant 0 : index
    %c0_3 = arith.constant 0 : index
    %2 = vector.load %arg2[%c0_2, %c0_3] : memref<8x1xf32, #tpu.memory_space<vmem>>, vector<8x1xf32>
    %3 = vector.broadcast %2 : vector<8x1xf32> to vector<8x512xf32>
    %4 = arith.mulf %1, %3 : vector<8x512xf32>
    %c0_4 = arith.constant 0 : index
    %c0_5 = arith.constant 0 : index
    %5 = vector.load %arg3[%c0_4, %c0_5] : memref<8x1xf32, #tpu.memory_space<vmem>>, vector<8x1xf32>
    %6 = vector.broadcast %5 : vector<8x1xf32> to vector<8x512xf32>
    %7 = arith.addf %4, %6 : vector<8x512xf32>
    %cst = arith.constant 0.000000e+00 : f32
    %8 = vector.broadcast %cst : f32 to vector<8x512xf32>
    %9 = arith.maximumf %7, %8 : vector<8x512xf32>
    %cst_6 = arith.constant 0.000000e+00 : f32
    %10 = vector.broadcast %cst_6 : f32 to vector<8x512xf32>
    %c73_i32 = arith.constant 73 : i32
    %11 = tpu.dynamic_rotate %9 by %c73_i32 dim 1 : vector<8x512xf32>, i32 -> vector<8x512xf32>
    %c0_7 = arith.constant 0 : index
    %c0_8 = arith.constant 0 : index
    %12 = vector.load %arg8[%c0_7, %c0_8] : memref<27x512xf32, #tpu.memory_space<vmem>>, vector<1x512xf32>
    %13 = vector.broadcast %12 : vector<1x512xf32> to vector<8x512xf32>
    %14 = arith.mulf %11, %13 : vector<8x512xf32>
    %c0_9 = arith.constant 0 : index
    %c0_10 = arith.constant 0 : index
    %c0_11 = arith.constant 0 : index
    %15 = vector.load %arg4[%c0_9, %c0_10, %c0_11] : memref<27x8x8xf32, #tpu.memory_space<vmem>>, vector<1x8x8xf32>
    %16 = vector.shape_cast %15 : vector<1x8x8xf32> to vector<8x8xf32>
    %cst_12 = arith.constant dense<0.000000e+00> : vector<8x512xf32>
    %17 = tpu.matmul %16, %14, %cst_12 {dimension_numbers = #tpu.dot_dimension_numbers<[1], [0], [0], [1], [0, 0, 1, 1], [], []>} : vector<8x8xf32>, vector<8x512xf32>, vector<8x512xf32> -> vector<8x512xf32>
    %18 = arith.addf %10, %17 : vector<8x512xf32>
    %c72_i32 = arith.constant 72 : i32
    %19 = tpu.dynamic_rotate %9 by %c72_i32 dim 1 : vector<8x512xf32>, i32 -> vector<8x512xf32>
    %c1 = arith.constant 1 : index
    %c0_13 = arith.constant 0 : index
    %20 = vector.load %arg8[%c1, %c0_13] : memref<27x512xf32, #tpu.memory_space<vmem>>, vector<1x512xf32>
    %21 = vector.broadcast %20 : vector<1x512xf32> to vector<8x512xf32>
    %22 = arith.mulf %19, %21 : vector<8x512xf32>
    %c1_14 = arith.constant 1 : index
    %c0_15 = arith.constant 0 : index
    %c0_16 = arith.constant 0 : index
    %23 = vector.load %arg4[%c1_14, %c0_15, %c0_16] : memref<27x8x8xf32, #tpu.memory_space<vmem>>, vector<1x8x8xf32>
    %24 = vector.shape_cast %23 : vector<1x8x8xf32> to vector<8x8xf32>
    %cst_17 = arith.constant dense<0.000000e+00> : vector<8x512xf32>
    %25 = tpu.matmul %24, %22, %cst_17 {dimension_numbers = #tpu.dot_dimension_numbers<[1], [0], [0], [1], [0, 0, 1, 1], [], []>} : vector<8x8xf32>, vector<8x512xf32>, vector<8x512xf32> -> vector<8x512xf32>
    %26 = arith.addf %18, %25 : vector<8x512xf32>
    %c71_i32 = arith.constant 71 : i32
    %27 = tpu.dynamic_rotate %9 by %c71_i32 dim 1 : vector<8x512xf32>, i32 -> vector<8x512xf32>
    %c2 = arith.constant 2 : index
    %c0_18 = arith.constant 0 : index
    %28 = vector.load %arg8[%c2, %c0_18] : memref<27x512xf32, #tpu.memory_space<vmem>>, vector<1x512xf32>
    %29 = vector.broadcast %28 : vector<1x512xf32> to vector<8x512xf32>
    %30 = arith.mulf %27, %29 : vector<8x512xf32>
    %c2_19 = arith.constant 2 : index
    %c0_20 = arith.constant 0 : index
    %c0_21 = arith.constant 0 : index
    %31 = vector.load %arg4[%c2_19, %c0_20, %c0_21] : memref<27x8x8xf32, #tpu.memory_space<vmem>>, vector<1x8x8xf32>
    %32 = vector.shape_cast %31 : vector<1x8x8xf32> to vector<8x8xf32>
    %cst_22 = arith.constant dense<0.000000e+00> : vector<8x512xf32>
    %33 = tpu.matmul %32, %30, %cst_22 {dimension_numbers = #tpu.dot_dimension_numbers<[1], [0], [0], [1], [0, 0, 1, 1], [], []>} : vector<8x8xf32>, vector<8x512xf32>, vector<8x512xf32> -> vector<8x512xf32>
    %34 = arith.addf %26, %33 : vector<8x512xf32>
    %c65_i32 = arith.constant 65 : i32
    %35 = tpu.dynamic_rotate %9 by %c65_i32 dim 1 : vector<8x512xf32>, i32 -> vector<8x512xf32>
    %c3 = arith.constant 3 : index
    %c0_23 = arith.constant 0 : index
    %36 = vector.load %arg8[%c3, %c0_23] : memref<27x512xf32, #tpu.memory_space<vmem>>, vector<1x512xf32>
    %37 = vector.broadcast %36 : vector<1x512xf32> to vector<8x512xf32>
    %38 = arith.mulf %35, %37 : vector<8x512xf32>
    %c3_24 = arith.constant 3 : index
    %c0_25 = arith.constant 0 : index
    %c0_26 = arith.constant 0 : index
    %39 = vector.load %arg4[%c3_24, %c0_25, %c0_26] : memref<27x8x8xf32, #tpu.memory_space<vmem>>, vector<1x8x8xf32>
    %40 = vector.shape_cast %39 : vector<1x8x8xf32> to vector<8x8xf32>
    %cst_27 = arith.constant dense<0.000000e+00> : vector<8x512xf32>
    %41 = tpu.matmul %40, %38, %cst_27 {dimension_numbers = #tpu.dot_dimension_numbers<[1], [0], [0], [1], [0, 0, 1, 1], [], []>} : vector<8x8xf32>, vector<8x512xf32>, vector<8x512xf32> -> vector<8x512xf32>
    %42 = arith.addf %34, %41 : vector<8x512xf32>
    %c64_i32 = arith.constant 64 : i32
    %43 = tpu.dynamic_rotate %9 by %c64_i32 dim 1 : vector<8x512xf32>, i32 -> vector<8x512xf32>
    %c4 = arith.constant 4 : index
    %c0_28 = arith.constant 0 : index
    %44 = vector.load %arg8[%c4, %c0_28] : memref<27x512xf32, #tpu.memory_space<vmem>>, vector<1x512xf32>
    %45 = vector.broadcast %44 : vector<1x512xf32> to vector<8x512xf32>
    %46 = arith.mulf %43, %45 : vector<8x512xf32>
    %c4_29 = arith.constant 4 : index
    %c0_30 = arith.constant 0 : index
    %c0_31 = arith.constant 0 : index
    %47 = vector.load %arg4[%c4_29, %c0_30, %c0_31] : memref<27x8x8xf32, #tpu.memory_space<vmem>>, vector<1x8x8xf32>
    %48 = vector.shape_cast %47 : vector<1x8x8xf32> to vector<8x8xf32>
    %cst_32 = arith.constant dense<0.000000e+00> : vector<8x512xf32>
    %49 = tpu.matmul %48, %46, %cst_32 {dimension_numbers = #tpu.dot_dimension_numbers<[1], [0], [0], [1], [0, 0, 1, 1], [], []>} : vector<8x8xf32>, vector<8x512xf32>, vector<8x512xf32> -> vector<8x512xf32>
    %50 = arith.addf %42, %49 : vector<8x512xf32>
    %c63_i32 = arith.constant 63 : i32
    %51 = tpu.dynamic_rotate %9 by %c63_i32 dim 1 : vector<8x512xf32>, i32 -> vector<8x512xf32>
    %c5 = arith.constant 5 : index
    %c0_33 = arith.constant 0 : index
    %52 = vector.load %arg8[%c5, %c0_33] : memref<27x512xf32, #tpu.memory_space<vmem>>, vector<1x512xf32>
    %53 = vector.broadcast %52 : vector<1x512xf32> to vector<8x512xf32>
    %54 = arith.mulf %51, %53 : vector<8x512xf32>
    %c5_34 = arith.constant 5 : index
    %c0_35 = arith.constant 0 : index
    %c0_36 = arith.constant 0 : index
    %55 = vector.load %arg4[%c5_34, %c0_35, %c0_36] : memref<27x8x8xf32, #tpu.memory_space<vmem>>, vector<1x8x8xf32>
    %56 = vector.shape_cast %55 : vector<1x8x8xf32> to vector<8x8xf32>
    %cst_37 = arith.constant dense<0.000000e+00> : vector<8x512xf32>
    %57 = tpu.matmul %56, %54, %cst_37 {dimension_numbers = #tpu.dot_dimension_numbers<[1], [0], [0], [1], [0, 0, 1, 1], [], []>} : vector<8x8xf32>, vector<8x512xf32>, vector<8x512xf32> -> vector<8x512xf32>
    %58 = arith.addf %50, %57 : vector<8x512xf32>
    %c57_i32 = arith.constant 57 : i32
    %59 = tpu.dynamic_rotate %9 by %c57_i32 dim 1 : vector<8x512xf32>, i32 -> vector<8x512xf32>
    %c6 = arith.constant 6 : index
    %c0_38 = arith.constant 0 : index
    %60 = vector.load %arg8[%c6, %c0_38] : memref<27x512xf32, #tpu.memory_space<vmem>>, vector<1x512xf32>
    %61 = vector.broadcast %60 : vector<1x512xf32> to vector<8x512xf32>
    %62 = arith.mulf %59, %61 : vector<8x512xf32>
    %c6_39 = arith.constant 6 : index
    %c0_40 = arith.constant 0 : index
    %c0_41 = arith.constant 0 : index
    %63 = vector.load %arg4[%c6_39, %c0_40, %c0_41] : memref<27x8x8xf32, #tpu.memory_space<vmem>>, vector<1x8x8xf32>
    %64 = vector.shape_cast %63 : vector<1x8x8xf32> to vector<8x8xf32>
    %cst_42 = arith.constant dense<0.000000e+00> : vector<8x512xf32>
    %65 = tpu.matmul %64, %62, %cst_42 {dimension_numbers = #tpu.dot_dimension_numbers<[1], [0], [0], [1], [0, 0, 1, 1], [], []>} : vector<8x8xf32>, vector<8x512xf32>, vector<8x512xf32> -> vector<8x512xf32>
    %66 = arith.addf %58, %65 : vector<8x512xf32>
    %c56_i32 = arith.constant 56 : i32
    %67 = tpu.dynamic_rotate %9 by %c56_i32 dim 1 : vector<8x512xf32>, i32 -> vector<8x512xf32>
    %c7 = arith.constant 7 : index
    %c0_43 = arith.constant 0 : index
    %68 = vector.load %arg8[%c7, %c0_43] : memref<27x512xf32, #tpu.memory_space<vmem>>, vector<1x512xf32>
    %69 = vector.broadcast %68 : vector<1x512xf32> to vector<8x512xf32>
    %70 = arith.mulf %67, %69 : vector<8x512xf32>
    %c7_44 = arith.constant 7 : index
    %c0_45 = arith.constant 0 : index
    %c0_46 = arith.constant 0 : index
    %71 = vector.load %arg4[%c7_44, %c0_45, %c0_46] : memref<27x8x8xf32, #tpu.memory_space<vmem>>, vector<1x8x8xf32>
    %72 = vector.shape_cast %71 : vector<1x8x8xf32> to vector<8x8xf32>
    %cst_47 = arith.constant dense<0.000000e+00> : vector<8x512xf32>
    %73 = tpu.matmul %72, %70, %cst_47 {dimension_numbers = #tpu.dot_dimension_numbers<[1], [0], [0], [1], [0, 0, 1, 1], [], []>} : vector<8x8xf32>, vector<8x512xf32>, vector<8x512xf32> -> vector<8x512xf32>
    %74 = arith.addf %66, %73 : vector<8x512xf32>
    %c55_i32 = arith.constant 55 : i32
    %75 = tpu.dynamic_rotate %9 by %c55_i32 dim 1 : vector<8x512xf32>, i32 -> vector<8x512xf32>
    %c8 = arith.constant 8 : index
    %c0_48 = arith.constant 0 : index
    %76 = vector.load %arg8[%c8, %c0_48] : memref<27x512xf32, #tpu.memory_space<vmem>>, vector<1x512xf32>
    %77 = vector.broadcast %76 : vector<1x512xf32> to vector<8x512xf32>
    %78 = arith.mulf %75, %77 : vector<8x512xf32>
    %c8_49 = arith.constant 8 : index
    %c0_50 = arith.constant 0 : index
    %c0_51 = arith.constant 0 : index
    %79 = vector.load %arg4[%c8_49, %c0_50, %c0_51] : memref<27x8x8xf32, #tpu.memory_space<vmem>>, vector<1x8x8xf32>
    %80 = vector.shape_cast %79 : vector<1x8x8xf32> to vector<8x8xf32>
    %cst_52 = arith.constant dense<0.000000e+00> : vector<8x512xf32>
    %81 = tpu.matmul %80, %78, %cst_52 {dimension_numbers = #tpu.dot_dimension_numbers<[1], [0], [0], [1], [0, 0, 1, 1], [], []>} : vector<8x8xf32>, vector<8x512xf32>, vector<8x512xf32> -> vector<8x512xf32>
    %82 = arith.addf %74, %81 : vector<8x512xf32>
    %c9_i32 = arith.constant 9 : i32
    %83 = tpu.dynamic_rotate %9 by %c9_i32 dim 1 : vector<8x512xf32>, i32 -> vector<8x512xf32>
    %c9 = arith.constant 9 : index
    %c0_53 = arith.constant 0 : index
    %84 = vector.load %arg8[%c9, %c0_53] : memref<27x512xf32, #tpu.memory_space<vmem>>, vector<1x512xf32>
    %85 = vector.broadcast %84 : vector<1x512xf32> to vector<8x512xf32>
    %86 = arith.mulf %83, %85 : vector<8x512xf32>
    %c9_54 = arith.constant 9 : index
    %c0_55 = arith.constant 0 : index
    %c0_56 = arith.constant 0 : index
    %87 = vector.load %arg4[%c9_54, %c0_55, %c0_56] : memref<27x8x8xf32, #tpu.memory_space<vmem>>, vector<1x8x8xf32>
    %88 = vector.shape_cast %87 : vector<1x8x8xf32> to vector<8x8xf32>
    %cst_57 = arith.constant dense<0.000000e+00> : vector<8x512xf32>
    %89 = tpu.matmul %88, %86, %cst_57 {dimension_numbers = #tpu.dot_dimension_numbers<[1], [0], [0], [1], [0, 0, 1, 1], [], []>} : vector<8x8xf32>, vector<8x512xf32>, vector<8x512xf32> -> vector<8x512xf32>
    %90 = arith.addf %82, %89 : vector<8x512xf32>
    %c8_i32 = arith.constant 8 : i32
    %91 = tpu.dynamic_rotate %9 by %c8_i32 dim 1 : vector<8x512xf32>, i32 -> vector<8x512xf32>
    %c10 = arith.constant 10 : index
    %c0_58 = arith.constant 0 : index
    %92 = vector.load %arg8[%c10, %c0_58] : memref<27x512xf32, #tpu.memory_space<vmem>>, vector<1x512xf32>
    %93 = vector.broadcast %92 : vector<1x512xf32> to vector<8x512xf32>
    %94 = arith.mulf %91, %93 : vector<8x512xf32>
    %c10_59 = arith.constant 10 : index
    %c0_60 = arith.constant 0 : index
    %c0_61 = arith.constant 0 : index
    %95 = vector.load %arg4[%c10_59, %c0_60, %c0_61] : memref<27x8x8xf32, #tpu.memory_space<vmem>>, vector<1x8x8xf32>
    %96 = vector.shape_cast %95 : vector<1x8x8xf32> to vector<8x8xf32>
    %cst_62 = arith.constant dense<0.000000e+00> : vector<8x512xf32>
    %97 = tpu.matmul %96, %94, %cst_62 {dimension_numbers = #tpu.dot_dimension_numbers<[1], [0], [0], [1], [0, 0, 1, 1], [], []>} : vector<8x8xf32>, vector<8x512xf32>, vector<8x512xf32> -> vector<8x512xf32>
    %98 = arith.addf %90, %97 : vector<8x512xf32>
    %c7_i32 = arith.constant 7 : i32
    %99 = tpu.dynamic_rotate %9 by %c7_i32 dim 1 : vector<8x512xf32>, i32 -> vector<8x512xf32>
    %c11 = arith.constant 11 : index
    %c0_63 = arith.constant 0 : index
    %100 = vector.load %arg8[%c11, %c0_63] : memref<27x512xf32, #tpu.memory_space<vmem>>, vector<1x512xf32>
    %101 = vector.broadcast %100 : vector<1x512xf32> to vector<8x512xf32>
    %102 = arith.mulf %99, %101 : vector<8x512xf32>
    %c11_64 = arith.constant 11 : index
    %c0_65 = arith.constant 0 : index
    %c0_66 = arith.constant 0 : index
    %103 = vector.load %arg4[%c11_64, %c0_65, %c0_66] : memref<27x8x8xf32, #tpu.memory_space<vmem>>, vector<1x8x8xf32>
    %104 = vector.shape_cast %103 : vector<1x8x8xf32> to vector<8x8xf32>
    %cst_67 = arith.constant dense<0.000000e+00> : vector<8x512xf32>
    %105 = tpu.matmul %104, %102, %cst_67 {dimension_numbers = #tpu.dot_dimension_numbers<[1], [0], [0], [1], [0, 0, 1, 1], [], []>} : vector<8x8xf32>, vector<8x512xf32>, vector<8x512xf32> -> vector<8x512xf32>
    %106 = arith.addf %98, %105 : vector<8x512xf32>
    %c1_i32 = arith.constant 1 : i32
    %107 = tpu.dynamic_rotate %9 by %c1_i32 dim 1 : vector<8x512xf32>, i32 -> vector<8x512xf32>
    %c12 = arith.constant 12 : index
    %c0_68 = arith.constant 0 : index
    %108 = vector.load %arg8[%c12, %c0_68] : memref<27x512xf32, #tpu.memory_space<vmem>>, vector<1x512xf32>
    %109 = vector.broadcast %108 : vector<1x512xf32> to vector<8x512xf32>
    %110 = arith.mulf %107, %109 : vector<8x512xf32>
    %c12_69 = arith.constant 12 : index
    %c0_70 = arith.constant 0 : index
    %c0_71 = arith.constant 0 : index
    %111 = vector.load %arg4[%c12_69, %c0_70, %c0_71] : memref<27x8x8xf32, #tpu.memory_space<vmem>>, vector<1x8x8xf32>
    %112 = vector.shape_cast %111 : vector<1x8x8xf32> to vector<8x8xf32>
    %cst_72 = arith.constant dense<0.000000e+00> : vector<8x512xf32>
    %113 = tpu.matmul %112, %110, %cst_72 {dimension_numbers = #tpu.dot_dimension_numbers<[1], [0], [0], [1], [0, 0, 1, 1], [], []>} : vector<8x8xf32>, vector<8x512xf32>, vector<8x512xf32> -> vector<8x512xf32>
    %114 = arith.addf %106, %113 : vector<8x512xf32>
    %c13 = arith.constant 13 : index
    %c0_73 = arith.constant 0 : index
    %115 = vector.load %arg8[%c13, %c0_73] : memref<27x512xf32, #tpu.memory_space<vmem>>, vector<1x512xf32>
    %116 = vector.broadcast %115 : vector<1x512xf32> to vector<8x512xf32>
    %117 = arith.mulf %9, %116 : vector<8x512xf32>
    %c13_74 = arith.constant 13 : index
    %c0_75 = arith.constant 0 : index
    %c0_76 = arith.constant 0 : index
    %118 = vector.load %arg4[%c13_74, %c0_75, %c0_76] : memref<27x8x8xf32, #tpu.memory_space<vmem>>, vector<1x8x8xf32>
    %119 = vector.shape_cast %118 : vector<1x8x8xf32> to vector<8x8xf32>
    %cst_77 = arith.constant dense<0.000000e+00> : vector<8x512xf32>
    %120 = tpu.matmul %119, %117, %cst_77 {dimension_numbers = #tpu.dot_dimension_numbers<[1], [0], [0], [1], [0, 0, 1, 1], [], []>} : vector<8x8xf32>, vector<8x512xf32>, vector<8x512xf32> -> vector<8x512xf32>
    %121 = arith.addf %114, %120 : vector<8x512xf32>
    %c511_i32 = arith.constant 511 : i32
    %122 = tpu.dynamic_rotate %9 by %c511_i32 dim 1 : vector<8x512xf32>, i32 -> vector<8x512xf32>
    %c14 = arith.constant 14 : index
    %c0_78 = arith.constant 0 : index
    %123 = vector.load %arg8[%c14, %c0_78] : memref<27x512xf32, #tpu.memory_space<vmem>>, vector<1x512xf32>
    %124 = vector.broadcast %123 : vector<1x512xf32> to vector<8x512xf32>
    %125 = arith.mulf %122, %124 : vector<8x512xf32>
    %c14_79 = arith.constant 14 : index
    %c0_80 = arith.constant 0 : index
    %c0_81 = arith.constant 0 : index
    %126 = vector.load %arg4[%c14_79, %c0_80, %c0_81] : memref<27x8x8xf32, #tpu.memory_space<vmem>>, vector<1x8x8xf32>
    %127 = vector.shape_cast %126 : vector<1x8x8xf32> to vector<8x8xf32>
    %cst_82 = arith.constant dense<0.000000e+00> : vector<8x512xf32>
    %128 = tpu.matmul %127, %125, %cst_82 {dimension_numbers = #tpu.dot_dimension_numbers<[1], [0], [0], [1], [0, 0, 1, 1], [], []>} : vector<8x8xf32>, vector<8x512xf32>, vector<8x512xf32> -> vector<8x512xf32>
    %129 = arith.addf %121, %128 : vector<8x512xf32>
    %c505_i32 = arith.constant 505 : i32
    %130 = tpu.dynamic_rotate %9 by %c505_i32 dim 1 : vector<8x512xf32>, i32 -> vector<8x512xf32>
    %c15 = arith.constant 15 : index
    %c0_83 = arith.constant 0 : index
    %131 = vector.load %arg8[%c15, %c0_83] : memref<27x512xf32, #tpu.memory_space<vmem>>, vector<1x512xf32>
    %132 = vector.broadcast %131 : vector<1x512xf32> to vector<8x512xf32>
    %133 = arith.mulf %130, %132 : vector<8x512xf32>
    %c15_84 = arith.constant 15 : index
    %c0_85 = arith.constant 0 : index
    %c0_86 = arith.constant 0 : index
    %134 = vector.load %arg4[%c15_84, %c0_85, %c0_86] : memref<27x8x8xf32, #tpu.memory_space<vmem>>, vector<1x8x8xf32>
    %135 = vector.shape_cast %134 : vector<1x8x8xf32> to vector<8x8xf32>
    %cst_87 = arith.constant dense<0.000000e+00> : vector<8x512xf32>
    %136 = tpu.matmul %135, %133, %cst_87 {dimension_numbers = #tpu.dot_dimension_numbers<[1], [0], [0], [1], [0, 0, 1, 1], [], []>} : vector<8x8xf32>, vector<8x512xf32>, vector<8x512xf32> -> vector<8x512xf32>
    %137 = arith.addf %129, %136 : vector<8x512xf32>
    %c504_i32 = arith.constant 504 : i32
    %138 = tpu.dynamic_rotate %9 by %c504_i32 dim 1 : vector<8x512xf32>, i32 -> vector<8x512xf32>
    %c16 = arith.constant 16 : index
    %c0_88 = arith.constant 0 : index
    %139 = vector.load %arg8[%c16, %c0_88] : memref<27x512xf32, #tpu.memory_space<vmem>>, vector<1x512xf32>
    %140 = vector.broadcast %139 : vector<1x512xf32> to vector<8x512xf32>
    %141 = arith.mulf %138, %140 : vector<8x512xf32>
    %c16_89 = arith.constant 16 : index
    %c0_90 = arith.constant 0 : index
    %c0_91 = arith.constant 0 : index
    %142 = vector.load %arg4[%c16_89, %c0_90, %c0_91] : memref<27x8x8xf32, #tpu.memory_space<vmem>>, vector<1x8x8xf32>
    %143 = vector.shape_cast %142 : vector<1x8x8xf32> to vector<8x8xf32>
    %cst_92 = arith.constant dense<0.000000e+00> : vector<8x512xf32>
    %144 = tpu.matmul %143, %141, %cst_92 {dimension_numbers = #tpu.dot_dimension_numbers<[1], [0], [0], [1], [0, 0, 1, 1], [], []>} : vector<8x8xf32>, vector<8x512xf32>, vector<8x512xf32> -> vector<8x512xf32>
    %145 = arith.addf %137, %144 : vector<8x512xf32>
    %c503_i32 = arith.constant 503 : i32
    %146 = tpu.dynamic_rotate %9 by %c503_i32 dim 1 : vector<8x512xf32>, i32 -> vector<8x512xf32>
    %c17 = arith.constant 17 : index
    %c0_93 = arith.constant 0 : index
    %147 = vector.load %arg8[%c17, %c0_93] : memref<27x512xf32, #tpu.memory_space<vmem>>, vector<1x512xf32>
    %148 = vector.broadcast %147 : vector<1x512xf32> to vector<8x512xf32>
    %149 = arith.mulf %146, %148 : vector<8x512xf32>
    %c17_94 = arith.constant 17 : index
    %c0_95 = arith.constant 0 : index
    %c0_96 = arith.constant 0 : index
    %150 = vector.load %arg4[%c17_94, %c0_95, %c0_96] : memref<27x8x8xf32, #tpu.memory_space<vmem>>, vector<1x8x8xf32>
    %151 = vector.shape_cast %150 : vector<1x8x8xf32> to vector<8x8xf32>
    %cst_97 = arith.constant dense<0.000000e+00> : vector<8x512xf32>
    %152 = tpu.matmul %151, %149, %cst_97 {dimension_numbers = #tpu.dot_dimension_numbers<[1], [0], [0], [1], [0, 0, 1, 1], [], []>} : vector<8x8xf32>, vector<8x512xf32>, vector<8x512xf32> -> vector<8x512xf32>
    %153 = arith.addf %145, %152 : vector<8x512xf32>
    %c457_i32 = arith.constant 457 : i32
    %154 = tpu.dynamic_rotate %9 by %c457_i32 dim 1 : vector<8x512xf32>, i32 -> vector<8x512xf32>
    %c18 = arith.constant 18 : index
    %c0_98 = arith.constant 0 : index
    %155 = vector.load %arg8[%c18, %c0_98] : memref<27x512xf32, #tpu.memory_space<vmem>>, vector<1x512xf32>
    %156 = vector.broadcast %155 : vector<1x512xf32> to vector<8x512xf32>
    %157 = arith.mulf %154, %156 : vector<8x512xf32>
    %c18_99 = arith.constant 18 : index
    %c0_100 = arith.constant 0 : index
    %c0_101 = arith.constant 0 : index
    %158 = vector.load %arg4[%c18_99, %c0_100, %c0_101] : memref<27x8x8xf32, #tpu.memory_space<vmem>>, vector<1x8x8xf32>
    %159 = vector.shape_cast %158 : vector<1x8x8xf32> to vector<8x8xf32>
    %cst_102 = arith.constant dense<0.000000e+00> : vector<8x512xf32>
    %160 = tpu.matmul %159, %157, %cst_102 {dimension_numbers = #tpu.dot_dimension_numbers<[1], [0], [0], [1], [0, 0, 1, 1], [], []>} : vector<8x8xf32>, vector<8x512xf32>, vector<8x512xf32> -> vector<8x512xf32>
    %161 = arith.addf %153, %160 : vector<8x512xf32>
    %c456_i32 = arith.constant 456 : i32
    %162 = tpu.dynamic_rotate %9 by %c456_i32 dim 1 : vector<8x512xf32>, i32 -> vector<8x512xf32>
    %c19 = arith.constant 19 : index
    %c0_103 = arith.constant 0 : index
    %163 = vector.load %arg8[%c19, %c0_103] : memref<27x512xf32, #tpu.memory_space<vmem>>, vector<1x512xf32>
    %164 = vector.broadcast %163 : vector<1x512xf32> to vector<8x512xf32>
    %165 = arith.mulf %162, %164 : vector<8x512xf32>
    %c19_104 = arith.constant 19 : index
    %c0_105 = arith.constant 0 : index
    %c0_106 = arith.constant 0 : index
    %166 = vector.load %arg4[%c19_104, %c0_105, %c0_106] : memref<27x8x8xf32, #tpu.memory_space<vmem>>, vector<1x8x8xf32>
    %167 = vector.shape_cast %166 : vector<1x8x8xf32> to vector<8x8xf32>
    %cst_107 = arith.constant dense<0.000000e+00> : vector<8x512xf32>
    %168 = tpu.matmul %167, %165, %cst_107 {dimension_numbers = #tpu.dot_dimension_numbers<[1], [0], [0], [1], [0, 0, 1, 1], [], []>} : vector<8x8xf32>, vector<8x512xf32>, vector<8x512xf32> -> vector<8x512xf32>
    %169 = arith.addf %161, %168 : vector<8x512xf32>
    %c455_i32 = arith.constant 455 : i32
    %170 = tpu.dynamic_rotate %9 by %c455_i32 dim 1 : vector<8x512xf32>, i32 -> vector<8x512xf32>
    %c20 = arith.constant 20 : index
    %c0_108 = arith.constant 0 : index
    %171 = vector.load %arg8[%c20, %c0_108] : memref<27x512xf32, #tpu.memory_space<vmem>>, vector<1x512xf32>
    %172 = vector.broadcast %171 : vector<1x512xf32> to vector<8x512xf32>
    %173 = arith.mulf %170, %172 : vector<8x512xf32>
    %c20_109 = arith.constant 20 : index
    %c0_110 = arith.constant 0 : index
    %c0_111 = arith.constant 0 : index
    %174 = vector.load %arg4[%c20_109, %c0_110, %c0_111] : memref<27x8x8xf32, #tpu.memory_space<vmem>>, vector<1x8x8xf32>
    %175 = vector.shape_cast %174 : vector<1x8x8xf32> to vector<8x8xf32>
    %cst_112 = arith.constant dense<0.000000e+00> : vector<8x512xf32>
    %176 = tpu.matmul %175, %173, %cst_112 {dimension_numbers = #tpu.dot_dimension_numbers<[1], [0], [0], [1], [0, 0, 1, 1], [], []>} : vector<8x8xf32>, vector<8x512xf32>, vector<8x512xf32> -> vector<8x512xf32>
    %177 = arith.addf %169, %176 : vector<8x512xf32>
    %c449_i32 = arith.constant 449 : i32
    %178 = tpu.dynamic_rotate %9 by %c449_i32 dim 1 : vector<8x512xf32>, i32 -> vector<8x512xf32>
    %c21 = arith.constant 21 : index
    %c0_113 = arith.constant 0 : index
    %179 = vector.load %arg8[%c21, %c0_113] : memref<27x512xf32, #tpu.memory_space<vmem>>, vector<1x512xf32>
    %180 = vector.broadcast %179 : vector<1x512xf32> to vector<8x512xf32>
    %181 = arith.mulf %178, %180 : vector<8x512xf32>
    %c21_114 = arith.constant 21 : index
    %c0_115 = arith.constant 0 : index
    %c0_116 = arith.constant 0 : index
    %182 = vector.load %arg4[%c21_114, %c0_115, %c0_116] : memref<27x8x8xf32, #tpu.memory_space<vmem>>, vector<1x8x8xf32>
    %183 = vector.shape_cast %182 : vector<1x8x8xf32> to vector<8x8xf32>
    %cst_117 = arith.constant dense<0.000000e+00> : vector<8x512xf32>
    %184 = tpu.matmul %183, %181, %cst_117 {dimension_numbers = #tpu.dot_dimension_numbers<[1], [0], [0], [1], [0, 0, 1, 1], [], []>} : vector<8x8xf32>, vector<8x512xf32>, vector<8x512xf32> -> vector<8x512xf32>
    %185 = arith.addf %177, %184 : vector<8x512xf32>
    %c448_i32 = arith.constant 448 : i32
    %186 = tpu.dynamic_rotate %9 by %c448_i32 dim 1 : vector<8x512xf32>, i32 -> vector<8x512xf32>
    %c22 = arith.constant 22 : index
    %c0_118 = arith.constant 0 : index
    %187 = vector.load %arg8[%c22, %c0_118] : memref<27x512xf32, #tpu.memory_space<vmem>>, vector<1x512xf32>
    %188 = vector.broadcast %187 : vector<1x512xf32> to vector<8x512xf32>
    %189 = arith.mulf %186, %188 : vector<8x512xf32>
    %c22_119 = arith.constant 22 : index
    %c0_120 = arith.constant 0 : index
    %c0_121 = arith.constant 0 : index
    %190 = vector.load %arg4[%c22_119, %c0_120, %c0_121] : memref<27x8x8xf32, #tpu.memory_space<vmem>>, vector<1x8x8xf32>
    %191 = vector.shape_cast %190 : vector<1x8x8xf32> to vector<8x8xf32>
    %cst_122 = arith.constant dense<0.000000e+00> : vector<8x512xf32>
    %192 = tpu.matmul %191, %189, %cst_122 {dimension_numbers = #tpu.dot_dimension_numbers<[1], [0], [0], [1], [0, 0, 1, 1], [], []>} : vector<8x8xf32>, vector<8x512xf32>, vector<8x512xf32> -> vector<8x512xf32>
    %193 = arith.addf %185, %192 : vector<8x512xf32>
    %c447_i32 = arith.constant 447 : i32
    %194 = tpu.dynamic_rotate %9 by %c447_i32 dim 1 : vector<8x512xf32>, i32 -> vector<8x512xf32>
    %c23 = arith.constant 23 : index
    %c0_123 = arith.constant 0 : index
    %195 = vector.load %arg8[%c23, %c0_123] : memref<27x512xf32, #tpu.memory_space<vmem>>, vector<1x512xf32>
    %196 = vector.broadcast %195 : vector<1x512xf32> to vector<8x512xf32>
    %197 = arith.mulf %194, %196 : vector<8x512xf32>
    %c23_124 = arith.constant 23 : index
    %c0_125 = arith.constant 0 : index
    %c0_126 = arith.constant 0 : index
    %198 = vector.load %arg4[%c23_124, %c0_125, %c0_126] : memref<27x8x8xf32, #tpu.memory_space<vmem>>, vector<1x8x8xf32>
    %199 = vector.shape_cast %198 : vector<1x8x8xf32> to vector<8x8xf32>
    %cst_127 = arith.constant dense<0.000000e+00> : vector<8x512xf32>
    %200 = tpu.matmul %199, %197, %cst_127 {dimension_numbers = #tpu.dot_dimension_numbers<[1], [0], [0], [1], [0, 0, 1, 1], [], []>} : vector<8x8xf32>, vector<8x512xf32>, vector<8x512xf32> -> vector<8x512xf32>
    %201 = arith.addf %193, %200 : vector<8x512xf32>
    %c441_i32 = arith.constant 441 : i32
    %202 = tpu.dynamic_rotate %9 by %c441_i32 dim 1 : vector<8x512xf32>, i32 -> vector<8x512xf32>
    %c24 = arith.constant 24 : index
    %c0_128 = arith.constant 0 : index
    %203 = vector.load %arg8[%c24, %c0_128] : memref<27x512xf32, #tpu.memory_space<vmem>>, vector<1x512xf32>
    %204 = vector.broadcast %203 : vector<1x512xf32> to vector<8x512xf32>
    %205 = arith.mulf %202, %204 : vector<8x512xf32>
    %c24_129 = arith.constant 24 : index
    %c0_130 = arith.constant 0 : index
    %c0_131 = arith.constant 0 : index
    %206 = vector.load %arg4[%c24_129, %c0_130, %c0_131] : memref<27x8x8xf32, #tpu.memory_space<vmem>>, vector<1x8x8xf32>
    %207 = vector.shape_cast %206 : vector<1x8x8xf32> to vector<8x8xf32>
    %cst_132 = arith.constant dense<0.000000e+00> : vector<8x512xf32>
    %208 = tpu.matmul %207, %205, %cst_132 {dimension_numbers = #tpu.dot_dimension_numbers<[1], [0], [0], [1], [0, 0, 1, 1], [], []>} : vector<8x8xf32>, vector<8x512xf32>, vector<8x512xf32> -> vector<8x512xf32>
    %209 = arith.addf %201, %208 : vector<8x512xf32>
    %c440_i32 = arith.constant 440 : i32
    %210 = tpu.dynamic_rotate %9 by %c440_i32 dim 1 : vector<8x512xf32>, i32 -> vector<8x512xf32>
    %c25 = arith.constant 25 : index
    %c0_133 = arith.constant 0 : index
    %211 = vector.load %arg8[%c25, %c0_133] : memref<27x512xf32, #tpu.memory_space<vmem>>, vector<1x512xf32>
    %212 = vector.broadcast %211 : vector<1x512xf32> to vector<8x512xf32>
    %213 = arith.mulf %210, %212 : vector<8x512xf32>
    %c25_134 = arith.constant 25 : index
    %c0_135 = arith.constant 0 : index
    %c0_136 = arith.constant 0 : index
    %214 = vector.load %arg4[%c25_134, %c0_135, %c0_136] : memref<27x8x8xf32, #tpu.memory_space<vmem>>, vector<1x8x8xf32>
    %215 = vector.shape_cast %214 : vector<1x8x8xf32> to vector<8x8xf32>
    %cst_137 = arith.constant dense<0.000000e+00> : vector<8x512xf32>
    %216 = tpu.matmul %215, %213, %cst_137 {dimension_numbers = #tpu.dot_dimension_numbers<[1], [0], [0], [1], [0, 0, 1, 1], [], []>} : vector<8x8xf32>, vector<8x512xf32>, vector<8x512xf32> -> vector<8x512xf32>
    %217 = arith.addf %209, %216 : vector<8x512xf32>
    %c439_i32 = arith.constant 439 : i32
    %218 = tpu.dynamic_rotate %9 by %c439_i32 dim 1 : vector<8x512xf32>, i32 -> vector<8x512xf32>
    %c26 = arith.constant 26 : index
    %c0_138 = arith.constant 0 : index
    %219 = vector.load %arg8[%c26, %c0_138] : memref<27x512xf32, #tpu.memory_space<vmem>>, vector<1x512xf32>
    %220 = vector.broadcast %219 : vector<1x512xf32> to vector<8x512xf32>
    %221 = arith.mulf %218, %220 : vector<8x512xf32>
    %c26_139 = arith.constant 26 : index
    %c0_140 = arith.constant 0 : index
    %c0_141 = arith.constant 0 : index
    %222 = vector.load %arg4[%c26_139, %c0_140, %c0_141] : memref<27x8x8xf32, #tpu.memory_space<vmem>>, vector<1x8x8xf32>
    %223 = vector.shape_cast %222 : vector<1x8x8xf32> to vector<8x8xf32>
    %cst_142 = arith.constant dense<0.000000e+00> : vector<8x512xf32>
    %224 = tpu.matmul %223, %221, %cst_142 {dimension_numbers = #tpu.dot_dimension_numbers<[1], [0], [0], [1], [0, 0, 1, 1], [], []>} : vector<8x8xf32>, vector<8x512xf32>, vector<8x512xf32> -> vector<8x512xf32>
    %225 = arith.addf %217, %224 : vector<8x512xf32>
    %c0_143 = arith.constant 0 : index
    %c0_144 = arith.constant 0 : index
    %226 = vector.load %arg5[%c0_143, %c0_144] : memref<8x1xf32, #tpu.memory_space<vmem>>, vector<8x1xf32>
    %227 = vector.broadcast %226 : vector<8x1xf32> to vector<8x512xf32>
    %228 = arith.mulf %225, %227 : vector<8x512xf32>
    %c0_145 = arith.constant 0 : index
    %c0_146 = arith.constant 0 : index
    %229 = vector.load %arg6[%c0_145, %c0_146] : memref<8x1xf32, #tpu.memory_space<vmem>>, vector<8x1xf32>
    %230 = vector.broadcast %229 : vector<8x1xf32> to vector<8x512xf32>
    %231 = arith.addf %228, %230 : vector<8x512xf32>
    %cst_147 = arith.constant 0.000000e+00 : f32
    %232 = vector.broadcast %cst_147 : f32 to vector<8x512xf32>
    %233 = arith.maximumf %231, %232 : vector<8x512xf32>
    %cst_148 = arith.constant 0.000000e+00 : f32
    %234 = vector.broadcast %cst_148 : f32 to vector<8x512xf32>
    %c73_i32_149 = arith.constant 73 : i32
    %235 = tpu.dynamic_rotate %233 by %c73_i32_149 dim 1 : vector<8x512xf32>, i32 -> vector<8x512xf32>
    %c0_150 = arith.constant 0 : index
    %c0_151 = arith.constant 0 : index
    %236 = vector.load %arg8[%c0_150, %c0_151] : memref<27x512xf32, #tpu.memory_space<vmem>>, vector<1x512xf32>
    %237 = vector.broadcast %236 : vector<1x512xf32> to vector<8x512xf32>
    %238 = arith.mulf %235, %237 : vector<8x512xf32>
    %c0_152 = arith.constant 0 : index
    %c0_153 = arith.constant 0 : index
    %c0_154 = arith.constant 0 : index
    %239 = vector.load %arg7[%c0_152, %c0_153, %c0_154] : memref<27x8x8xf32, #tpu.memory_space<vmem>>, vector<1x8x8xf32>
    %240 = vector.shape_cast %239 : vector<1x8x8xf32> to vector<8x8xf32>
    %cst_155 = arith.constant dense<0.000000e+00> : vector<8x512xf32>
    %241 = tpu.matmul %240, %238, %cst_155 {dimension_numbers = #tpu.dot_dimension_numbers<[1], [0], [0], [1], [0, 0, 1, 1], [], []>} : vector<8x8xf32>, vector<8x512xf32>, vector<8x512xf32> -> vector<8x512xf32>
    %242 = arith.addf %234, %241 : vector<8x512xf32>
    %c72_i32_156 = arith.constant 72 : i32
    %243 = tpu.dynamic_rotate %233 by %c72_i32_156 dim 1 : vector<8x512xf32>, i32 -> vector<8x512xf32>
    %c1_157 = arith.constant 1 : index
    %c0_158 = arith.constant 0 : index
    %244 = vector.load %arg8[%c1_157, %c0_158] : memref<27x512xf32, #tpu.memory_space<vmem>>, vector<1x512xf32>
    %245 = vector.broadcast %244 : vector<1x512xf32> to vector<8x512xf32>
    %246 = arith.mulf %243, %245 : vector<8x512xf32>
    %c1_159 = arith.constant 1 : index
    %c0_160 = arith.constant 0 : index
    %c0_161 = arith.constant 0 : index
    %247 = vector.load %arg7[%c1_159, %c0_160, %c0_161] : memref<27x8x8xf32, #tpu.memory_space<vmem>>, vector<1x8x8xf32>
    %248 = vector.shape_cast %247 : vector<1x8x8xf32> to vector<8x8xf32>
    %cst_162 = arith.constant dense<0.000000e+00> : vector<8x512xf32>
    %249 = tpu.matmul %248, %246, %cst_162 {dimension_numbers = #tpu.dot_dimension_numbers<[1], [0], [0], [1], [0, 0, 1, 1], [], []>} : vector<8x8xf32>, vector<8x512xf32>, vector<8x512xf32> -> vector<8x512xf32>
    %250 = arith.addf %242, %249 : vector<8x512xf32>
    %c71_i32_163 = arith.constant 71 : i32
    %251 = tpu.dynamic_rotate %233 by %c71_i32_163 dim 1 : vector<8x512xf32>, i32 -> vector<8x512xf32>
    %c2_164 = arith.constant 2 : index
    %c0_165 = arith.constant 0 : index
    %252 = vector.load %arg8[%c2_164, %c0_165] : memref<27x512xf32, #tpu.memory_space<vmem>>, vector<1x512xf32>
    %253 = vector.broadcast %252 : vector<1x512xf32> to vector<8x512xf32>
    %254 = arith.mulf %251, %253 : vector<8x512xf32>
    %c2_166 = arith.constant 2 : index
    %c0_167 = arith.constant 0 : index
    %c0_168 = arith.constant 0 : index
    %255 = vector.load %arg7[%c2_166, %c0_167, %c0_168] : memref<27x8x8xf32, #tpu.memory_space<vmem>>, vector<1x8x8xf32>
    %256 = vector.shape_cast %255 : vector<1x8x8xf32> to vector<8x8xf32>
    %cst_169 = arith.constant dense<0.000000e+00> : vector<8x512xf32>
    %257 = tpu.matmul %256, %254, %cst_169 {dimension_numbers = #tpu.dot_dimension_numbers<[1], [0], [0], [1], [0, 0, 1, 1], [], []>} : vector<8x8xf32>, vector<8x512xf32>, vector<8x512xf32> -> vector<8x512xf32>
    %258 = arith.addf %250, %257 : vector<8x512xf32>
    %c65_i32_170 = arith.constant 65 : i32
    %259 = tpu.dynamic_rotate %233 by %c65_i32_170 dim 1 : vector<8x512xf32>, i32 -> vector<8x512xf32>
    %c3_171 = arith.constant 3 : index
    %c0_172 = arith.constant 0 : index
    %260 = vector.load %arg8[%c3_171, %c0_172] : memref<27x512xf32, #tpu.memory_space<vmem>>, vector<1x512xf32>
    %261 = vector.broadcast %260 : vector<1x512xf32> to vector<8x512xf32>
    %262 = arith.mulf %259, %261 : vector<8x512xf32>
    %c3_173 = arith.constant 3 : index
    %c0_174 = arith.constant 0 : index
    %c0_175 = arith.constant 0 : index
    %263 = vector.load %arg7[%c3_173, %c0_174, %c0_175] : memref<27x8x8xf32, #tpu.memory_space<vmem>>, vector<1x8x8xf32>
    %264 = vector.shape_cast %263 : vector<1x8x8xf32> to vector<8x8xf32>
    %cst_176 = arith.constant dense<0.000000e+00> : vector<8x512xf32>
    %265 = tpu.matmul %264, %262, %cst_176 {dimension_numbers = #tpu.dot_dimension_numbers<[1], [0], [0], [1], [0, 0, 1, 1], [], []>} : vector<8x8xf32>, vector<8x512xf32>, vector<8x512xf32> -> vector<8x512xf32>
    %266 = arith.addf %258, %265 : vector<8x512xf32>
    %c64_i32_177 = arith.constant 64 : i32
    %267 = tpu.dynamic_rotate %233 by %c64_i32_177 dim 1 : vector<8x512xf32>, i32 -> vector<8x512xf32>
    %c4_178 = arith.constant 4 : index
    %c0_179 = arith.constant 0 : index
    %268 = vector.load %arg8[%c4_178, %c0_179] : memref<27x512xf32, #tpu.memory_space<vmem>>, vector<1x512xf32>
    %269 = vector.broadcast %268 : vector<1x512xf32> to vector<8x512xf32>
    %270 = arith.mulf %267, %269 : vector<8x512xf32>
    %c4_180 = arith.constant 4 : index
    %c0_181 = arith.constant 0 : index
    %c0_182 = arith.constant 0 : index
    %271 = vector.load %arg7[%c4_180, %c0_181, %c0_182] : memref<27x8x8xf32, #tpu.memory_space<vmem>>, vector<1x8x8xf32>
    %272 = vector.shape_cast %271 : vector<1x8x8xf32> to vector<8x8xf32>
    %cst_183 = arith.constant dense<0.000000e+00> : vector<8x512xf32>
    %273 = tpu.matmul %272, %270, %cst_183 {dimension_numbers = #tpu.dot_dimension_numbers<[1], [0], [0], [1], [0, 0, 1, 1], [], []>} : vector<8x8xf32>, vector<8x512xf32>, vector<8x512xf32> -> vector<8x512xf32>
    %274 = arith.addf %266, %273 : vector<8x512xf32>
    %c63_i32_184 = arith.constant 63 : i32
    %275 = tpu.dynamic_rotate %233 by %c63_i32_184 dim 1 : vector<8x512xf32>, i32 -> vector<8x512xf32>
    %c5_185 = arith.constant 5 : index
    %c0_186 = arith.constant 0 : index
    %276 = vector.load %arg8[%c5_185, %c0_186] : memref<27x512xf32, #tpu.memory_space<vmem>>, vector<1x512xf32>
    %277 = vector.broadcast %276 : vector<1x512xf32> to vector<8x512xf32>
    %278 = arith.mulf %275, %277 : vector<8x512xf32>
    %c5_187 = arith.constant 5 : index
    %c0_188 = arith.constant 0 : index
    %c0_189 = arith.constant 0 : index
    %279 = vector.load %arg7[%c5_187, %c0_188, %c0_189] : memref<27x8x8xf32, #tpu.memory_space<vmem>>, vector<1x8x8xf32>
    %280 = vector.shape_cast %279 : vector<1x8x8xf32> to vector<8x8xf32>
    %cst_190 = arith.constant dense<0.000000e+00> : vector<8x512xf32>
    %281 = tpu.matmul %280, %278, %cst_190 {dimension_numbers = #tpu.dot_dimension_numbers<[1], [0], [0], [1], [0, 0, 1, 1], [], []>} : vector<8x8xf32>, vector<8x512xf32>, vector<8x512xf32> -> vector<8x512xf32>
    %282 = arith.addf %274, %281 : vector<8x512xf32>
    %c57_i32_191 = arith.constant 57 : i32
    %283 = tpu.dynamic_rotate %233 by %c57_i32_191 dim 1 : vector<8x512xf32>, i32 -> vector<8x512xf32>
    %c6_192 = arith.constant 6 : index
    %c0_193 = arith.constant 0 : index
    %284 = vector.load %arg8[%c6_192, %c0_193] : memref<27x512xf32, #tpu.memory_space<vmem>>, vector<1x512xf32>
    %285 = vector.broadcast %284 : vector<1x512xf32> to vector<8x512xf32>
    %286 = arith.mulf %283, %285 : vector<8x512xf32>
    %c6_194 = arith.constant 6 : index
    %c0_195 = arith.constant 0 : index
    %c0_196 = arith.constant 0 : index
    %287 = vector.load %arg7[%c6_194, %c0_195, %c0_196] : memref<27x8x8xf32, #tpu.memory_space<vmem>>, vector<1x8x8xf32>
    %288 = vector.shape_cast %287 : vector<1x8x8xf32> to vector<8x8xf32>
    %cst_197 = arith.constant dense<0.000000e+00> : vector<8x512xf32>
    %289 = tpu.matmul %288, %286, %cst_197 {dimension_numbers = #tpu.dot_dimension_numbers<[1], [0], [0], [1], [0, 0, 1, 1], [], []>} : vector<8x8xf32>, vector<8x512xf32>, vector<8x512xf32> -> vector<8x512xf32>
    %290 = arith.addf %282, %289 : vector<8x512xf32>
    %c56_i32_198 = arith.constant 56 : i32
    %291 = tpu.dynamic_rotate %233 by %c56_i32_198 dim 1 : vector<8x512xf32>, i32 -> vector<8x512xf32>
    %c7_199 = arith.constant 7 : index
    %c0_200 = arith.constant 0 : index
    %292 = vector.load %arg8[%c7_199, %c0_200] : memref<27x512xf32, #tpu.memory_space<vmem>>, vector<1x512xf32>
    %293 = vector.broadcast %292 : vector<1x512xf32> to vector<8x512xf32>
    %294 = arith.mulf %291, %293 : vector<8x512xf32>
    %c7_201 = arith.constant 7 : index
    %c0_202 = arith.constant 0 : index
    %c0_203 = arith.constant 0 : index
    %295 = vector.load %arg7[%c7_201, %c0_202, %c0_203] : memref<27x8x8xf32, #tpu.memory_space<vmem>>, vector<1x8x8xf32>
    %296 = vector.shape_cast %295 : vector<1x8x8xf32> to vector<8x8xf32>
    %cst_204 = arith.constant dense<0.000000e+00> : vector<8x512xf32>
    %297 = tpu.matmul %296, %294, %cst_204 {dimension_numbers = #tpu.dot_dimension_numbers<[1], [0], [0], [1], [0, 0, 1, 1], [], []>} : vector<8x8xf32>, vector<8x512xf32>, vector<8x512xf32> -> vector<8x512xf32>
    %298 = arith.addf %290, %297 : vector<8x512xf32>
    %c55_i32_205 = arith.constant 55 : i32
    %299 = tpu.dynamic_rotate %233 by %c55_i32_205 dim 1 : vector<8x512xf32>, i32 -> vector<8x512xf32>
    %c8_206 = arith.constant 8 : index
    %c0_207 = arith.constant 0 : index
    %300 = vector.load %arg8[%c8_206, %c0_207] : memref<27x512xf32, #tpu.memory_space<vmem>>, vector<1x512xf32>
    %301 = vector.broadcast %300 : vector<1x512xf32> to vector<8x512xf32>
    %302 = arith.mulf %299, %301 : vector<8x512xf32>
    %c8_208 = arith.constant 8 : index
    %c0_209 = arith.constant 0 : index
    %c0_210 = arith.constant 0 : index
    %303 = vector.load %arg7[%c8_208, %c0_209, %c0_210] : memref<27x8x8xf32, #tpu.memory_space<vmem>>, vector<1x8x8xf32>
    %304 = vector.shape_cast %303 : vector<1x8x8xf32> to vector<8x8xf32>
    %cst_211 = arith.constant dense<0.000000e+00> : vector<8x512xf32>
    %305 = tpu.matmul %304, %302, %cst_211 {dimension_numbers = #tpu.dot_dimension_numbers<[1], [0], [0], [1], [0, 0, 1, 1], [], []>} : vector<8x8xf32>, vector<8x512xf32>, vector<8x512xf32> -> vector<8x512xf32>
    %306 = arith.addf %298, %305 : vector<8x512xf32>
    %c9_i32_212 = arith.constant 9 : i32
    %307 = tpu.dynamic_rotate %233 by %c9_i32_212 dim 1 : vector<8x512xf32>, i32 -> vector<8x512xf32>
    %c9_213 = arith.constant 9 : index
    %c0_214 = arith.constant 0 : index
    %308 = vector.load %arg8[%c9_213, %c0_214] : memref<27x512xf32, #tpu.memory_space<vmem>>, vector<1x512xf32>
    %309 = vector.broadcast %308 : vector<1x512xf32> to vector<8x512xf32>
    %310 = arith.mulf %307, %309 : vector<8x512xf32>
    %c9_215 = arith.constant 9 : index
    %c0_216 = arith.constant 0 : index
    %c0_217 = arith.constant 0 : index
    %311 = vector.load %arg7[%c9_215, %c0_216, %c0_217] : memref<27x8x8xf32, #tpu.memory_space<vmem>>, vector<1x8x8xf32>
    %312 = vector.shape_cast %311 : vector<1x8x8xf32> to vector<8x8xf32>
    %cst_218 = arith.constant dense<0.000000e+00> : vector<8x512xf32>
    %313 = tpu.matmul %312, %310, %cst_218 {dimension_numbers = #tpu.dot_dimension_numbers<[1], [0], [0], [1], [0, 0, 1, 1], [], []>} : vector<8x8xf32>, vector<8x512xf32>, vector<8x512xf32> -> vector<8x512xf32>
    %314 = arith.addf %306, %313 : vector<8x512xf32>
    %c8_i32_219 = arith.constant 8 : i32
    %315 = tpu.dynamic_rotate %233 by %c8_i32_219 dim 1 : vector<8x512xf32>, i32 -> vector<8x512xf32>
    %c10_220 = arith.constant 10 : index
    %c0_221 = arith.constant 0 : index
    %316 = vector.load %arg8[%c10_220, %c0_221] : memref<27x512xf32, #tpu.memory_space<vmem>>, vector<1x512xf32>
    %317 = vector.broadcast %316 : vector<1x512xf32> to vector<8x512xf32>
    %318 = arith.mulf %315, %317 : vector<8x512xf32>
    %c10_222 = arith.constant 10 : index
    %c0_223 = arith.constant 0 : index
    %c0_224 = arith.constant 0 : index
    %319 = vector.load %arg7[%c10_222, %c0_223, %c0_224] : memref<27x8x8xf32, #tpu.memory_space<vmem>>, vector<1x8x8xf32>
    %320 = vector.shape_cast %319 : vector<1x8x8xf32> to vector<8x8xf32>
    %cst_225 = arith.constant dense<0.000000e+00> : vector<8x512xf32>
    %321 = tpu.matmul %320, %318, %cst_225 {dimension_numbers = #tpu.dot_dimension_numbers<[1], [0], [0], [1], [0, 0, 1, 1], [], []>} : vector<8x8xf32>, vector<8x512xf32>, vector<8x512xf32> -> vector<8x512xf32>
    %322 = arith.addf %314, %321 : vector<8x512xf32>
    %c7_i32_226 = arith.constant 7 : i32
    %323 = tpu.dynamic_rotate %233 by %c7_i32_226 dim 1 : vector<8x512xf32>, i32 -> vector<8x512xf32>
    %c11_227 = arith.constant 11 : index
    %c0_228 = arith.constant 0 : index
    %324 = vector.load %arg8[%c11_227, %c0_228] : memref<27x512xf32, #tpu.memory_space<vmem>>, vector<1x512xf32>
    %325 = vector.broadcast %324 : vector<1x512xf32> to vector<8x512xf32>
    %326 = arith.mulf %323, %325 : vector<8x512xf32>
    %c11_229 = arith.constant 11 : index
    %c0_230 = arith.constant 0 : index
    %c0_231 = arith.constant 0 : index
    %327 = vector.load %arg7[%c11_229, %c0_230, %c0_231] : memref<27x8x8xf32, #tpu.memory_space<vmem>>, vector<1x8x8xf32>
    %328 = vector.shape_cast %327 : vector<1x8x8xf32> to vector<8x8xf32>
    %cst_232 = arith.constant dense<0.000000e+00> : vector<8x512xf32>
    %329 = tpu.matmul %328, %326, %cst_232 {dimension_numbers = #tpu.dot_dimension_numbers<[1], [0], [0], [1], [0, 0, 1, 1], [], []>} : vector<8x8xf32>, vector<8x512xf32>, vector<8x512xf32> -> vector<8x512xf32>
    %330 = arith.addf %322, %329 : vector<8x512xf32>
    %c1_i32_233 = arith.constant 1 : i32
    %331 = tpu.dynamic_rotate %233 by %c1_i32_233 dim 1 : vector<8x512xf32>, i32 -> vector<8x512xf32>
    %c12_234 = arith.constant 12 : index
    %c0_235 = arith.constant 0 : index
    %332 = vector.load %arg8[%c12_234, %c0_235] : memref<27x512xf32, #tpu.memory_space<vmem>>, vector<1x512xf32>
    %333 = vector.broadcast %332 : vector<1x512xf32> to vector<8x512xf32>
    %334 = arith.mulf %331, %333 : vector<8x512xf32>
    %c12_236 = arith.constant 12 : index
    %c0_237 = arith.constant 0 : index
    %c0_238 = arith.constant 0 : index
    %335 = vector.load %arg7[%c12_236, %c0_237, %c0_238] : memref<27x8x8xf32, #tpu.memory_space<vmem>>, vector<1x8x8xf32>
    %336 = vector.shape_cast %335 : vector<1x8x8xf32> to vector<8x8xf32>
    %cst_239 = arith.constant dense<0.000000e+00> : vector<8x512xf32>
    %337 = tpu.matmul %336, %334, %cst_239 {dimension_numbers = #tpu.dot_dimension_numbers<[1], [0], [0], [1], [0, 0, 1, 1], [], []>} : vector<8x8xf32>, vector<8x512xf32>, vector<8x512xf32> -> vector<8x512xf32>
    %338 = arith.addf %330, %337 : vector<8x512xf32>
    %c13_240 = arith.constant 13 : index
    %c0_241 = arith.constant 0 : index
    %339 = vector.load %arg8[%c13_240, %c0_241] : memref<27x512xf32, #tpu.memory_space<vmem>>, vector<1x512xf32>
    %340 = vector.broadcast %339 : vector<1x512xf32> to vector<8x512xf32>
    %341 = arith.mulf %233, %340 : vector<8x512xf32>
    %c13_242 = arith.constant 13 : index
    %c0_243 = arith.constant 0 : index
    %c0_244 = arith.constant 0 : index
    %342 = vector.load %arg7[%c13_242, %c0_243, %c0_244] : memref<27x8x8xf32, #tpu.memory_space<vmem>>, vector<1x8x8xf32>
    %343 = vector.shape_cast %342 : vector<1x8x8xf32> to vector<8x8xf32>
    %cst_245 = arith.constant dense<0.000000e+00> : vector<8x512xf32>
    %344 = tpu.matmul %343, %341, %cst_245 {dimension_numbers = #tpu.dot_dimension_numbers<[1], [0], [0], [1], [0, 0, 1, 1], [], []>} : vector<8x8xf32>, vector<8x512xf32>, vector<8x512xf32> -> vector<8x512xf32>
    %345 = arith.addf %338, %344 : vector<8x512xf32>
    %c511_i32_246 = arith.constant 511 : i32
    %346 = tpu.dynamic_rotate %233 by %c511_i32_246 dim 1 : vector<8x512xf32>, i32 -> vector<8x512xf32>
    %c14_247 = arith.constant 14 : index
    %c0_248 = arith.constant 0 : index
    %347 = vector.load %arg8[%c14_247, %c0_248] : memref<27x512xf32, #tpu.memory_space<vmem>>, vector<1x512xf32>
    %348 = vector.broadcast %347 : vector<1x512xf32> to vector<8x512xf32>
    %349 = arith.mulf %346, %348 : vector<8x512xf32>
    %c14_249 = arith.constant 14 : index
    %c0_250 = arith.constant 0 : index
    %c0_251 = arith.constant 0 : index
    %350 = vector.load %arg7[%c14_249, %c0_250, %c0_251] : memref<27x8x8xf32, #tpu.memory_space<vmem>>, vector<1x8x8xf32>
    %351 = vector.shape_cast %350 : vector<1x8x8xf32> to vector<8x8xf32>
    %cst_252 = arith.constant dense<0.000000e+00> : vector<8x512xf32>
    %352 = tpu.matmul %351, %349, %cst_252 {dimension_numbers = #tpu.dot_dimension_numbers<[1], [0], [0], [1], [0, 0, 1, 1], [], []>} : vector<8x8xf32>, vector<8x512xf32>, vector<8x512xf32> -> vector<8x512xf32>
    %353 = arith.addf %345, %352 : vector<8x512xf32>
    %c505_i32_253 = arith.constant 505 : i32
    %354 = tpu.dynamic_rotate %233 by %c505_i32_253 dim 1 : vector<8x512xf32>, i32 -> vector<8x512xf32>
    %c15_254 = arith.constant 15 : index
    %c0_255 = arith.constant 0 : index
    %355 = vector.load %arg8[%c15_254, %c0_255] : memref<27x512xf32, #tpu.memory_space<vmem>>, vector<1x512xf32>
    %356 = vector.broadcast %355 : vector<1x512xf32> to vector<8x512xf32>
    %357 = arith.mulf %354, %356 : vector<8x512xf32>
    %c15_256 = arith.constant 15 : index
    %c0_257 = arith.constant 0 : index
    %c0_258 = arith.constant 0 : index
    %358 = vector.load %arg7[%c15_256, %c0_257, %c0_258] : memref<27x8x8xf32, #tpu.memory_space<vmem>>, vector<1x8x8xf32>
    %359 = vector.shape_cast %358 : vector<1x8x8xf32> to vector<8x8xf32>
    %cst_259 = arith.constant dense<0.000000e+00> : vector<8x512xf32>
    %360 = tpu.matmul %359, %357, %cst_259 {dimension_numbers = #tpu.dot_dimension_numbers<[1], [0], [0], [1], [0, 0, 1, 1], [], []>} : vector<8x8xf32>, vector<8x512xf32>, vector<8x512xf32> -> vector<8x512xf32>
    %361 = arith.addf %353, %360 : vector<8x512xf32>
    %c504_i32_260 = arith.constant 504 : i32
    %362 = tpu.dynamic_rotate %233 by %c504_i32_260 dim 1 : vector<8x512xf32>, i32 -> vector<8x512xf32>
    %c16_261 = arith.constant 16 : index
    %c0_262 = arith.constant 0 : index
    %363 = vector.load %arg8[%c16_261, %c0_262] : memref<27x512xf32, #tpu.memory_space<vmem>>, vector<1x512xf32>
    %364 = vector.broadcast %363 : vector<1x512xf32> to vector<8x512xf32>
    %365 = arith.mulf %362, %364 : vector<8x512xf32>
    %c16_263 = arith.constant 16 : index
    %c0_264 = arith.constant 0 : index
    %c0_265 = arith.constant 0 : index
    %366 = vector.load %arg7[%c16_263, %c0_264, %c0_265] : memref<27x8x8xf32, #tpu.memory_space<vmem>>, vector<1x8x8xf32>
    %367 = vector.shape_cast %366 : vector<1x8x8xf32> to vector<8x8xf32>
    %cst_266 = arith.constant dense<0.000000e+00> : vector<8x512xf32>
    %368 = tpu.matmul %367, %365, %cst_266 {dimension_numbers = #tpu.dot_dimension_numbers<[1], [0], [0], [1], [0, 0, 1, 1], [], []>} : vector<8x8xf32>, vector<8x512xf32>, vector<8x512xf32> -> vector<8x512xf32>
    %369 = arith.addf %361, %368 : vector<8x512xf32>
    %c503_i32_267 = arith.constant 503 : i32
    %370 = tpu.dynamic_rotate %233 by %c503_i32_267 dim 1 : vector<8x512xf32>, i32 -> vector<8x512xf32>
    %c17_268 = arith.constant 17 : index
    %c0_269 = arith.constant 0 : index
    %371 = vector.load %arg8[%c17_268, %c0_269] : memref<27x512xf32, #tpu.memory_space<vmem>>, vector<1x512xf32>
    %372 = vector.broadcast %371 : vector<1x512xf32> to vector<8x512xf32>
    %373 = arith.mulf %370, %372 : vector<8x512xf32>
    %c17_270 = arith.constant 17 : index
    %c0_271 = arith.constant 0 : index
    %c0_272 = arith.constant 0 : index
    %374 = vector.load %arg7[%c17_270, %c0_271, %c0_272] : memref<27x8x8xf32, #tpu.memory_space<vmem>>, vector<1x8x8xf32>
    %375 = vector.shape_cast %374 : vector<1x8x8xf32> to vector<8x8xf32>
    %cst_273 = arith.constant dense<0.000000e+00> : vector<8x512xf32>
    %376 = tpu.matmul %375, %373, %cst_273 {dimension_numbers = #tpu.dot_dimension_numbers<[1], [0], [0], [1], [0, 0, 1, 1], [], []>} : vector<8x8xf32>, vector<8x512xf32>, vector<8x512xf32> -> vector<8x512xf32>
    %377 = arith.addf %369, %376 : vector<8x512xf32>
    %c457_i32_274 = arith.constant 457 : i32
    %378 = tpu.dynamic_rotate %233 by %c457_i32_274 dim 1 : vector<8x512xf32>, i32 -> vector<8x512xf32>
    %c18_275 = arith.constant 18 : index
    %c0_276 = arith.constant 0 : index
    %379 = vector.load %arg8[%c18_275, %c0_276] : memref<27x512xf32, #tpu.memory_space<vmem>>, vector<1x512xf32>
    %380 = vector.broadcast %379 : vector<1x512xf32> to vector<8x512xf32>
    %381 = arith.mulf %378, %380 : vector<8x512xf32>
    %c18_277 = arith.constant 18 : index
    %c0_278 = arith.constant 0 : index
    %c0_279 = arith.constant 0 : index
    %382 = vector.load %arg7[%c18_277, %c0_278, %c0_279] : memref<27x8x8xf32, #tpu.memory_space<vmem>>, vector<1x8x8xf32>
    %383 = vector.shape_cast %382 : vector<1x8x8xf32> to vector<8x8xf32>
    %cst_280 = arith.constant dense<0.000000e+00> : vector<8x512xf32>
    %384 = tpu.matmul %383, %381, %cst_280 {dimension_numbers = #tpu.dot_dimension_numbers<[1], [0], [0], [1], [0, 0, 1, 1], [], []>} : vector<8x8xf32>, vector<8x512xf32>, vector<8x512xf32> -> vector<8x512xf32>
    %385 = arith.addf %377, %384 : vector<8x512xf32>
    %c456_i32_281 = arith.constant 456 : i32
    %386 = tpu.dynamic_rotate %233 by %c456_i32_281 dim 1 : vector<8x512xf32>, i32 -> vector<8x512xf32>
    %c19_282 = arith.constant 19 : index
    %c0_283 = arith.constant 0 : index
    %387 = vector.load %arg8[%c19_282, %c0_283] : memref<27x512xf32, #tpu.memory_space<vmem>>, vector<1x512xf32>
    %388 = vector.broadcast %387 : vector<1x512xf32> to vector<8x512xf32>
    %389 = arith.mulf %386, %388 : vector<8x512xf32>
    %c19_284 = arith.constant 19 : index
    %c0_285 = arith.constant 0 : index
    %c0_286 = arith.constant 0 : index
    %390 = vector.load %arg7[%c19_284, %c0_285, %c0_286] : memref<27x8x8xf32, #tpu.memory_space<vmem>>, vector<1x8x8xf32>
    %391 = vector.shape_cast %390 : vector<1x8x8xf32> to vector<8x8xf32>
    %cst_287 = arith.constant dense<0.000000e+00> : vector<8x512xf32>
    %392 = tpu.matmul %391, %389, %cst_287 {dimension_numbers = #tpu.dot_dimension_numbers<[1], [0], [0], [1], [0, 0, 1, 1], [], []>} : vector<8x8xf32>, vector<8x512xf32>, vector<8x512xf32> -> vector<8x512xf32>
    %393 = arith.addf %385, %392 : vector<8x512xf32>
    %c455_i32_288 = arith.constant 455 : i32
    %394 = tpu.dynamic_rotate %233 by %c455_i32_288 dim 1 : vector<8x512xf32>, i32 -> vector<8x512xf32>
    %c20_289 = arith.constant 20 : index
    %c0_290 = arith.constant 0 : index
    %395 = vector.load %arg8[%c20_289, %c0_290] : memref<27x512xf32, #tpu.memory_space<vmem>>, vector<1x512xf32>
    %396 = vector.broadcast %395 : vector<1x512xf32> to vector<8x512xf32>
    %397 = arith.mulf %394, %396 : vector<8x512xf32>
    %c20_291 = arith.constant 20 : index
    %c0_292 = arith.constant 0 : index
    %c0_293 = arith.constant 0 : index
    %398 = vector.load %arg7[%c20_291, %c0_292, %c0_293] : memref<27x8x8xf32, #tpu.memory_space<vmem>>, vector<1x8x8xf32>
    %399 = vector.shape_cast %398 : vector<1x8x8xf32> to vector<8x8xf32>
    %cst_294 = arith.constant dense<0.000000e+00> : vector<8x512xf32>
    %400 = tpu.matmul %399, %397, %cst_294 {dimension_numbers = #tpu.dot_dimension_numbers<[1], [0], [0], [1], [0, 0, 1, 1], [], []>} : vector<8x8xf32>, vector<8x512xf32>, vector<8x512xf32> -> vector<8x512xf32>
    %401 = arith.addf %393, %400 : vector<8x512xf32>
    %c449_i32_295 = arith.constant 449 : i32
    %402 = tpu.dynamic_rotate %233 by %c449_i32_295 dim 1 : vector<8x512xf32>, i32 -> vector<8x512xf32>
    %c21_296 = arith.constant 21 : index
    %c0_297 = arith.constant 0 : index
    %403 = vector.load %arg8[%c21_296, %c0_297] : memref<27x512xf32, #tpu.memory_space<vmem>>, vector<1x512xf32>
    %404 = vector.broadcast %403 : vector<1x512xf32> to vector<8x512xf32>
    %405 = arith.mulf %402, %404 : vector<8x512xf32>
    %c21_298 = arith.constant 21 : index
    %c0_299 = arith.constant 0 : index
    %c0_300 = arith.constant 0 : index
    %406 = vector.load %arg7[%c21_298, %c0_299, %c0_300] : memref<27x8x8xf32, #tpu.memory_space<vmem>>, vector<1x8x8xf32>
    %407 = vector.shape_cast %406 : vector<1x8x8xf32> to vector<8x8xf32>
    %cst_301 = arith.constant dense<0.000000e+00> : vector<8x512xf32>
    %408 = tpu.matmul %407, %405, %cst_301 {dimension_numbers = #tpu.dot_dimension_numbers<[1], [0], [0], [1], [0, 0, 1, 1], [], []>} : vector<8x8xf32>, vector<8x512xf32>, vector<8x512xf32> -> vector<8x512xf32>
    %409 = arith.addf %401, %408 : vector<8x512xf32>
    %c448_i32_302 = arith.constant 448 : i32
    %410 = tpu.dynamic_rotate %233 by %c448_i32_302 dim 1 : vector<8x512xf32>, i32 -> vector<8x512xf32>
    %c22_303 = arith.constant 22 : index
    %c0_304 = arith.constant 0 : index
    %411 = vector.load %arg8[%c22_303, %c0_304] : memref<27x512xf32, #tpu.memory_space<vmem>>, vector<1x512xf32>
    %412 = vector.broadcast %411 : vector<1x512xf32> to vector<8x512xf32>
    %413 = arith.mulf %410, %412 : vector<8x512xf32>
    %c22_305 = arith.constant 22 : index
    %c0_306 = arith.constant 0 : index
    %c0_307 = arith.constant 0 : index
    %414 = vector.load %arg7[%c22_305, %c0_306, %c0_307] : memref<27x8x8xf32, #tpu.memory_space<vmem>>, vector<1x8x8xf32>
    %415 = vector.shape_cast %414 : vector<1x8x8xf32> to vector<8x8xf32>
    %cst_308 = arith.constant dense<0.000000e+00> : vector<8x512xf32>
    %416 = tpu.matmul %415, %413, %cst_308 {dimension_numbers = #tpu.dot_dimension_numbers<[1], [0], [0], [1], [0, 0, 1, 1], [], []>} : vector<8x8xf32>, vector<8x512xf32>, vector<8x512xf32> -> vector<8x512xf32>
    %417 = arith.addf %409, %416 : vector<8x512xf32>
    %c447_i32_309 = arith.constant 447 : i32
    %418 = tpu.dynamic_rotate %233 by %c447_i32_309 dim 1 : vector<8x512xf32>, i32 -> vector<8x512xf32>
    %c23_310 = arith.constant 23 : index
    %c0_311 = arith.constant 0 : index
    %419 = vector.load %arg8[%c23_310, %c0_311] : memref<27x512xf32, #tpu.memory_space<vmem>>, vector<1x512xf32>
    %420 = vector.broadcast %419 : vector<1x512xf32> to vector<8x512xf32>
    %421 = arith.mulf %418, %420 : vector<8x512xf32>
    %c23_312 = arith.constant 23 : index
    %c0_313 = arith.constant 0 : index
    %c0_314 = arith.constant 0 : index
    %422 = vector.load %arg7[%c23_312, %c0_313, %c0_314] : memref<27x8x8xf32, #tpu.memory_space<vmem>>, vector<1x8x8xf32>
    %423 = vector.shape_cast %422 : vector<1x8x8xf32> to vector<8x8xf32>
    %cst_315 = arith.constant dense<0.000000e+00> : vector<8x512xf32>
    %424 = tpu.matmul %423, %421, %cst_315 {dimension_numbers = #tpu.dot_dimension_numbers<[1], [0], [0], [1], [0, 0, 1, 1], [], []>} : vector<8x8xf32>, vector<8x512xf32>, vector<8x512xf32> -> vector<8x512xf32>
    %425 = arith.addf %417, %424 : vector<8x512xf32>
    %c441_i32_316 = arith.constant 441 : i32
    %426 = tpu.dynamic_rotate %233 by %c441_i32_316 dim 1 : vector<8x512xf32>, i32 -> vector<8x512xf32>
    %c24_317 = arith.constant 24 : index
    %c0_318 = arith.constant 0 : index
    %427 = vector.load %arg8[%c24_317, %c0_318] : memref<27x512xf32, #tpu.memory_space<vmem>>, vector<1x512xf32>
    %428 = vector.broadcast %427 : vector<1x512xf32> to vector<8x512xf32>
    %429 = arith.mulf %426, %428 : vector<8x512xf32>
    %c24_319 = arith.constant 24 : index
    %c0_320 = arith.constant 0 : index
    %c0_321 = arith.constant 0 : index
    %430 = vector.load %arg7[%c24_319, %c0_320, %c0_321] : memref<27x8x8xf32, #tpu.memory_space<vmem>>, vector<1x8x8xf32>
    %431 = vector.shape_cast %430 : vector<1x8x8xf32> to vector<8x8xf32>
    %cst_322 = arith.constant dense<0.000000e+00> : vector<8x512xf32>
    %432 = tpu.matmul %431, %429, %cst_322 {dimension_numbers = #tpu.dot_dimension_numbers<[1], [0], [0], [1], [0, 0, 1, 1], [], []>} : vector<8x8xf32>, vector<8x512xf32>, vector<8x512xf32> -> vector<8x512xf32>
    %433 = arith.addf %425, %432 : vector<8x512xf32>
    %c440_i32_323 = arith.constant 440 : i32
    %434 = tpu.dynamic_rotate %233 by %c440_i32_323 dim 1 : vector<8x512xf32>, i32 -> vector<8x512xf32>
    %c25_324 = arith.constant 25 : index
    %c0_325 = arith.constant 0 : index
    %435 = vector.load %arg8[%c25_324, %c0_325] : memref<27x512xf32, #tpu.memory_space<vmem>>, vector<1x512xf32>
    %436 = vector.broadcast %435 : vector<1x512xf32> to vector<8x512xf32>
    %437 = arith.mulf %434, %436 : vector<8x512xf32>
    %c25_326 = arith.constant 25 : index
    %c0_327 = arith.constant 0 : index
    %c0_328 = arith.constant 0 : index
    %438 = vector.load %arg7[%c25_326, %c0_327, %c0_328] : memref<27x8x8xf32, #tpu.memory_space<vmem>>, vector<1x8x8xf32>
    %439 = vector.shape_cast %438 : vector<1x8x8xf32> to vector<8x8xf32>
    %cst_329 = arith.constant dense<0.000000e+00> : vector<8x512xf32>
    %440 = tpu.matmul %439, %437, %cst_329 {dimension_numbers = #tpu.dot_dimension_numbers<[1], [0], [0], [1], [0, 0, 1, 1], [], []>} : vector<8x8xf32>, vector<8x512xf32>, vector<8x512xf32> -> vector<8x512xf32>
    %441 = arith.addf %433, %440 : vector<8x512xf32>
    %c439_i32_330 = arith.constant 439 : i32
    %442 = tpu.dynamic_rotate %233 by %c439_i32_330 dim 1 : vector<8x512xf32>, i32 -> vector<8x512xf32>
    %c26_331 = arith.constant 26 : index
    %c0_332 = arith.constant 0 : index
    %443 = vector.load %arg8[%c26_331, %c0_332] : memref<27x512xf32, #tpu.memory_space<vmem>>, vector<1x512xf32>
    %444 = vector.broadcast %443 : vector<1x512xf32> to vector<8x512xf32>
    %445 = arith.mulf %442, %444 : vector<8x512xf32>
    %c26_333 = arith.constant 26 : index
    %c0_334 = arith.constant 0 : index
    %c0_335 = arith.constant 0 : index
    %446 = vector.load %arg7[%c26_333, %c0_334, %c0_335] : memref<27x8x8xf32, #tpu.memory_space<vmem>>, vector<1x8x8xf32>
    %447 = vector.shape_cast %446 : vector<1x8x8xf32> to vector<8x8xf32>
    %cst_336 = arith.constant dense<0.000000e+00> : vector<8x512xf32>
    %448 = tpu.matmul %447, %445, %cst_336 {dimension_numbers = #tpu.dot_dimension_numbers<[1], [0], [0], [1], [0, 0, 1, 1], [], []>} : vector<8x8xf32>, vector<8x512xf32>, vector<8x512xf32> -> vector<8x512xf32>
    %449 = arith.addf %441, %448 : vector<8x512xf32>
    %450 = arith.addf %449, %1 : vector<8x512xf32>
    %c0_337 = arith.constant 0 : index
    %c0_338 = arith.constant 0 : index
    %c0_339 = arith.constant 0 : index
    %451 = vector.load %arg9[%c0_337, %c0_338, %c0_339] : memref<1x8x512xf32, #tpu.memory_space<vmem>>, vector<1x8x512xf32>
    %452 = vector.shape_cast %451 : vector<1x8x512xf32> to vector<8x512xf32>
    %453 = vector.shape_cast %450 : vector<8x512xf32> to vector<1x8x512xf32>
    tpu.vector_store %arg9[%c0_337, %c0_338, %c0_339], %453 {strides = array<i32>} : memref<1x8x512xf32, #tpu.memory_space<vmem>>, vector<1x8x512xf32>,
    return
  }
  func.func @transform_0(%arg0: i32) -> (i32, i32, i32) {
    %c0_i32 = arith.constant 0 : i32
    %c0_i32_0 = arith.constant 0 : i32
    %c0_i32_1 = arith.constant 0 : i32
    return %arg0, %c0_i32, %c0_i32_0 : i32, i32, i32
  }
  func.func @transform_1(%arg0: i32) -> (i32, i32) {
    %c0_i32 = arith.constant 0 : i32
    %c0_i32_0 = arith.constant 0 : i32
    %c0_i32_1 = arith.constant 0 : i32
    return %c0_i32, %c0_i32_0 : i32, i32
  }
  func.func @transform_2(%arg0: i32) -> (i32, i32) {
    %c0_i32 = arith.constant 0 : i32
    %c0_i32_0 = arith.constant 0 : i32
    %c0_i32_1 = arith.constant 0 : i32
    return %c0_i32, %c0_i32_0 : i32, i32
  }
  func.func @transform_3(%arg0: i32) -> (i32, i32, i32) {
    %c0_i32 = arith.constant 0 : i32
    %c0_i32_0 = arith.constant 0 : i32
    %c0_i32_1 = arith.constant 0 : i32
    %c0_i32_2 = arith.constant 0 : i32
    return %c0_i32, %c0_i32_0, %c0_i32_1 : i32, i32, i32
  }
  func.func @transform_4(%arg0: i32) -> (i32, i32) {
    %c0_i32 = arith.constant 0 : i32
    %c0_i32_0 = arith.constant 0 : i32
    %c0_i32_1 = arith.constant 0 : i32
    return %c0_i32, %c0_i32_0 : i32, i32
  }
  func.func @transform_5(%arg0: i32) -> (i32, i32) {
    %c0_i32 = arith.constant 0 : i32
    %c0_i32_0 = arith.constant 0 : i32
    %c0_i32_1 = arith.constant 0 : i32
    return %c0_i32, %c0_i32_0 : i32, i32
  }
  func.func @transform_6(%arg0: i32) -> (i32, i32, i32) {
    %c0_i32 = arith.constant 0 : i32
    %c0_i32_0 = arith.constant 0 : i32
    %c0_i32_1 = arith.constant 0 : i32
    %c0_i32_2 = arith.constant 0 : i32
    return %c0_i32, %c0_i32_0, %c0_i32_1 : i32, i32, i32
  }
  func.func @transform_7(%arg0: i32) -> (i32, i32) {
    %c0_i32 = arith.constant 0 : i32
    %c0_i32_0 = arith.constant 0 : i32
    %c0_i32_1 = arith.constant 0 : i32
    return %c0_i32, %c0_i32_0 : i32, i32
  }
  func.func @transform_8(%arg0: i32) -> (i32, i32, i32) {
    %c0_i32 = arith.constant 0 : i32
    %c0_i32_0 = arith.constant 0 : i32
    %c0_i32_1 = arith.constant 0 : i32
    return %arg0, %c0_i32, %c0_i32_0 : i32, i32, i32
  }
}

</mosaic_0001>

<llo_original>
// kernel: pre_act_basic_block.1
$region0: #{pre_act_basic_block.1}
  #allocation0 [shape = 'u32[]', space=smem, size = 0x4, offset = 0x4, fixed_abs, tag = 'smem constant byte address 0x4 - core index']
  #allocation1 [shape = 'u32[144,128]{1,0:T(1,128)}', space=vmem, size = 0x12000, scoped, tag = 'internal scratch']
  %s0 = inlined_call_operand.vmem [shape: f32[2,8,512], index: 0, kind: input, shape index: {}]
  %s1 = inlined_call_operand.vmem [shape: f32[8,1], index: 1, kind: input, shape index: {}]
  %s2 = inlined_call_operand.vmem [shape: f32[8,1], index: 2, kind: input, shape index: {}]
  %s3 = inlined_call_operand.vmem [shape: f32[27,8,8], index: 3, kind: input, shape index: {}]
  %s4 = inlined_call_operand.vmem [shape: f32[8,1], index: 4, kind: input, shape index: {}]
  %s5 = inlined_call_operand.vmem [shape: f32[8,1], index: 5, kind: input, shape index: {}]
  %s6 = inlined_call_operand.vmem [shape: f32[27,8,8], index: 6, kind: input, shape index: {}]
  %s7 = inlined_call_operand.vmem [shape: f32[27,512], index: 7, kind: input, shape index: {}]
  %s8 = inlined_call_operand.vmem [shape: f32[2,8,512], index: 8, kind: output, shape index: {}]
  %s9 = sld [smem:[#allocation0]]
  $region65: #{pre_act_basic_block.1} parent=0
    _
  %s11 = ssub.s32 1, %s9
  %s12 = scalar_select 0, %s11, %s9
  loop: start=0, step=1, limit=4
  $region2: #{pre_act_basic_block.1} parent=0 // loop_pre_header
    _
  $region3: #{pre_act_basic_block.1} parent=0 // loop_header
    %s14 = sphi 0, %s18
    %p15 = scmp.ge.s32.totalorder %s14, 4
    %s24 = sphi 0, %s26
    %s27 = sphi 0, %s24
    %s28 = sphi 0, %s27
    %s44 = sphi 0, %s28
    %s48 = sphi 0, %s48
    %s50 = sphi 0, %s48
    %s51 = sphi 0, %s50
    %s65 = sphi 0, %s51
    %s69 = sphi 0, %s69
    %s71 = sphi 0, %s69
    %s72 = sphi 0, %s71
    %s86 = sphi 0, %s72
    %s90 = sphi 0, %s90
    %s92 = sphi 0, %s90
    %s93 = sphi 0, %s92
    %s107 = sphi 0, %s93
    %s111 = sphi 0, %s111
    %s113 = sphi 0, %s111
    %s114 = sphi 0, %s113
    %s128 = sphi 0, %s114
    %s132 = sphi 0, %s132
    %s134 = sphi 0, %s132
    %s135 = sphi 0, %s134
    %s149 = sphi 0, %s135
    %s153 = sphi 0, %s153
    %s155 = sphi 0, %s153
    %s156 = sphi 0, %s155
    %s170 = sphi 0, %s156
    %s174 = sphi 0, %s174
    %s176 = sphi 0, %s174
    %s177 = sphi 0, %s176
    %s191 = sphi 0, %s177
    %s197 = sphi 0, %s199
    %s200 = sphi 0, %s197
    %s201 = sphi 0, %s200
    %s217 = sphi 0, %s201
  $region4: #{pre_act_basic_block.1} parent=0 // loop_header_branch
    %17 = sbr.rel (%p15) target = $region8
  $region5: #{pre_act_basic_block.1} parent=0 // loop_body
    %s19 = ssub.s32 %s14, 1
    %s20 = ssub.s32 %s14, 2
    %s21 = sadd.s32 %s14, 1
    %s22 = ssub.s32 %s14, %s21
    %p23 = scmp.eq.s32.totalorder %s22, 0
    %s25 = sadd.s32 %s24, 1
    %s26 = scalar_select %p23, %s24, %s25
    %p29 = pneg %p23
    %p30 = scmp.eq.s32.totalorder %s14, 1
    %p31 = por %p29, %p30
    %p32 = scmp.ne.s32.totalorder %s24, %s27
    %p33 = scmp.eq.s32.totalorder %s14, 0
    %p34 = por %p32, %p33
    %p35 = scmp.ne.s32.totalorder %s24, %s27
    %p36 = scmp.eq.s32.totalorder %s19, 1
    %p37 = por %p35, %p36
    %p38 = scmp.ne.s32.totalorder %s27, %s28
    %p39 = scmp.eq.s32.totalorder %s19, 0
    %p40 = por %p38, %p39
    %p41 = scmp.ne.s32.totalorder %s27, %s28
    %p42 = scmp.eq.s32.totalorder %s20, 1
    %p43 = por %p41, %p42
    %p45 = scmp.ne.s32.totalorder %s28, %s44
    %p46 = scmp.eq.s32.totalorder %s20, 0
    %p47 = por %p45, %p46
    %s49 = sadd.s32 %s48, 1
    %p52 = scmp.eq.s32.totalorder %s14, 1
    %p53 = scmp.ne.s32.totalorder %s48, %s50
    %p54 = scmp.eq.s32.totalorder %s14, 0
    %p55 = por %p53, %p54
    %p56 = scmp.ne.s32.totalorder %s48, %s50
    %p57 = scmp.eq.s32.totalorder %s19, 1
    %p58 = por %p56, %p57
    %p59 = scmp.ne.s32.totalorder %s50, %s51
    %p60 = scmp.eq.s32.totalorder %s19, 0
    %p61 = por %p59, %p60
    %p62 = scmp.ne.s32.totalorder %s50, %s51
    %p63 = scmp.eq.s32.totalorder %s20, 1
    %p64 = por %p62, %p63
    %p66 = scmp.ne.s32.totalorder %s51, %s65
    %p67 = scmp.eq.s32.totalorder %s20, 0
    %p68 = por %p66, %p67
    %s70 = sadd.s32 %s69, 1
    %p73 = scmp.eq.s32.totalorder %s14, 1
    %p74 = scmp.ne.s32.totalorder %s69, %s71
    %p75 = scmp.eq.s32.totalorder %s14, 0
    %p76 = por %p74, %p75
    %p77 = scmp.ne.s32.totalorder %s69, %s71
    %p78 = scmp.eq.s32.totalorder %s19, 1
    %p79 = por %p77, %p78
    %p80 = scmp.ne.s32.totalorder %s71, %s72
    %p81 = scmp.eq.s32.totalorder %s19, 0
    %p82 = por %p80, %p81
    %p83 = scmp.ne.s32.totalorder %s71, %s72
    %p84 = scmp.eq.s32.totalorder %s20, 1
    %p85 = por %p83, %p84
    %p87 = scmp.ne.s32.totalorder %s72, %s86
    %p88 = scmp.eq.s32.totalorder %s20, 0
    %p89 = por %p87, %p88
    %s91 = sadd.s32 %s90, 1
    %p94 = scmp.eq.s32.totalorder %s14, 1
    %p95 = scmp.ne.s32.totalorder %s90, %s92
    %p96 = scmp.eq.s32.totalorder %s14, 0
    %p97 = por %p95, %p96
    %p98 = scmp.ne.s32.totalorder %s90, %s92
    %p99 = scmp.eq.s32.totalorder %s19, 1
    %p100 = por %p98, %p99
    %p101 = scmp.ne.s32.totalorder %s92, %s93
    %p102 = scmp.eq.s32.totalorder %s19, 0
    %p103 = por %p101, %p102
    %p104 = scmp.ne.s32.totalorder %s92, %s93
    %p105 = scmp.eq.s32.totalorder %s20, 1
    %p106 = por %p104, %p105
    %p108 = scmp.ne.s32.totalorder %s93, %s107
    %p109 = scmp.eq.s32.totalorder %s20, 0
    %p110 = por %p108, %p109
    %s112 = sadd.s32 %s111, 1
    %p115 = scmp.eq.s32.totalorder %s14, 1
    %p116 = scmp.ne.s32.totalorder %s111, %s113
    %p117 = scmp.eq.s32.totalorder %s14, 0
    %p118 = por %p116, %p117
    %p119 = scmp.ne.s32.totalorder %s111, %s113
    %p120 = scmp.eq.s32.totalorder %s19, 1
    %p121 = por %p119, %p120
    %p122 = scmp.ne.s32.totalorder %s113, %s114
    %p123 = scmp.eq.s32.totalorder %s19, 0
    %p124 = por %p122, %p123
    %p125 = scmp.ne.s32.totalorder %s113, %s114
    %p126 = scmp.eq.s32.totalorder %s20, 1
    %p127 = por %p125, %p126
    %p129 = scmp.ne.s32.totalorder %s114, %s128
    %p130 = scmp.eq.s32.totalorder %s20, 0
    %p131 = por %p129, %p130
    %s133 = sadd.s32 %s132, 1
    %p136 = scmp.eq.s32.totalorder %s14, 1
    %p137 = scmp.ne.s32.totalorder %s132, %s134
    %p138 = scmp.eq.s32.totalorder %s14, 0
    %p139 = por %p137, %p138
    %p140 = scmp.ne.s32.totalorder %s132, %s134
    %p141 = scmp.eq.s32.totalorder %s19, 1
    %p142 = por %p140, %p141
    %p143 = scmp.ne.s32.totalorder %s134, %s135
    %p144 = scmp.eq.s32.totalorder %s19, 0
    %p145 = por %p143, %p144
    %p146 = scmp.ne.s32.totalorder %s134, %s135
    %p147 = scmp.eq.s32.totalorder %s20, 1
    %p148 = por %p146, %p147
    %p150 = scmp.ne.s32.totalorder %s135, %s149
    %p151 = scmp.eq.s32.totalorder %s20, 0
    %p152 = por %p150, %p151
    %s154 = sadd.s32 %s153, 1
    %p157 = scmp.eq.s32.totalorder %s14, 1
    %p158 = scmp.ne.s32.totalorder %s153, %s155
    %p159 = scmp.eq.s32.totalorder %s14, 0
    %p160 = por %p158, %p159
    %p161 = scmp.ne.s32.totalorder %s153, %s155
    %p162 = scmp.eq.s32.totalorder %s19, 1
    %p163 = por %p161, %p162
    %p164 = scmp.ne.s32.totalorder %s155, %s156
    %p165 = scmp.eq.s32.totalorder %s19, 0
    %p166 = por %p164, %p165
    %p167 = scmp.ne.s32.totalorder %s155, %s156
    %p168 = scmp.eq.s32.totalorder %s20, 1
    %p169 = por %p167, %p168
    %p171 = scmp.ne.s32.totalorder %s156, %s170
    %p172 = scmp.eq.s32.totalorder %s20, 0
    %p173 = por %p171, %p172
    %s175 = sadd.s32 %s174, 1
    %p178 = scmp.eq.s32.totalorder %s14, 1
    %p179 = scmp.ne.s32.totalorder %s174, %s176
    %p180 = scmp.eq.s32.totalorder %s14, 0
    %p181 = por %p179, %p180
    %p182 = scmp.ne.s32.totalorder %s174, %s176
    %p183 = scmp.eq.s32.totalorder %s19, 1
    %p184 = por %p182, %p183
    %p185 = scmp.ne.s32.totalorder %s176, %s177
    %p186 = scmp.eq.s32.totalorder %s19, 0
    %p187 = por %p185, %p186
    %p188 = scmp.ne.s32.totalorder %s176, %s177
    %p189 = scmp.eq.s32.totalorder %s20, 1
    %p190 = por %p188, %p189
    %p192 = scmp.ne.s32.totalorder %s177, %s191
    %p193 = scmp.eq.s32.totalorder %s20, 0
    %p194 = por %p192, %p193
    %s195 = ssub.s32 %s14, %s21
    %p196 = scmp.eq.s32.totalorder %s195, 0
    %s198 = sadd.s32 %s197, 1
    %s199 = scalar_select %p196, %s197, %s198
    %p202 = pneg %p196
    %p203 = scmp.eq.s32.totalorder %s14, 1
    %p204 = por %p202, %p203
    %p205 = scmp.ne.s32.totalorder %s197, %s200
    %p206 = scmp.eq.s32.totalorder %s14, 0
    %p207 = por %p205, %p206
    %p208 = scmp.ne.s32.totalorder %s197, %s200
    %p209 = scmp.eq.s32.totalorder %s19, 1
    %p210 = por %p208, %p209
    %p211 = scmp.ne.s32.totalorder %s200, %s201
    %p212 = scmp.eq.s32.totalorder %s19, 0
    %p213 = por %p211, %p212
    %p214 = scmp.ne.s32.totalorder %s200, %s201
    %p215 = scmp.eq.s32.totalorder %s20, 1
    %p216 = por %p214, %p215
    %p218 = scmp.ne.s32.totalorder %s201, %s217
    %p219 = scmp.eq.s32.totalorder %s20, 0
    %p220 = por %p218, %p219
    %p221 = scmp.le.s32.totalorder 1, %s14
    %p222 = scmp.lt.s32.totalorder %s14, 3
    %p223 = pnand %p221, %p222
    %p224 = pneg %p223
    // Predicated region
    $region9: #{pre_act_basic_block.1} parent=5 // pred_check
      _
    $region10: #{pre_act_basic_block.1} parent=5 // pred_check_branch
      %226 = sbr.rel (%p223) target = $region12
    $region11: #{pre_act_basic_block.1} parent=5 // pred_region
      %s227 = ssub.s32 %s14, 1
      // Predicated region
      $region13: #{pre_act_basic_block.1} parent=11 // pred_check
        %p228 = pneg %p61
      $region14: #{pre_act_basic_block.1} parent=11 // pred_check_branch
        %230 = sbr.rel (%p228) target = $region16
      $region15: #{pre_act_basic_block.1} parent=11 // pred_region
        _
      $region16: #{pre_act_basic_block.1} parent=11 // pred_fallthru
        _
      // Predicated region
      $region17: #{pre_act_basic_block.1} parent=11 // pred_check
        %p231 = pneg %p82
      $region18: #{pre_act_basic_block.1} parent=11 // pred_check_branch
        %233 = sbr.rel (%p231) target = $region20
      $region19: #{pre_act_basic_block.1} parent=11 // pred_region
        _
      $region20: #{pre_act_basic_block.1} parent=11 // pred_fallthru
        _
      // Predicated region
      $region21: #{pre_act_basic_block.1} parent=11 // pred_check
        %p234 = pneg %p103
      $region22: #{pre_act_basic_block.1} parent=11 // pred_check_branch
        %236 = sbr.rel (%p234) target = $region24
      $region23: #{pre_act_basic_block.1} parent=11 // pred_region
        _
      $region24: #{pre_act_basic_block.1} parent=11 // pred_fallthru
        _
      // Predicated region
      $region25: #{pre_act_basic_block.1} parent=11 // pred_check
        %p237 = pneg %p124
      $region26: #{pre_act_basic_block.1} parent=11 // pred_check_branch
        %239 = sbr.rel (%p237) target = $region28
      $region27: #{pre_act_basic_block.1} parent=11 // pred_region
        _
      $region28: #{pre_act_basic_block.1} parent=11 // pred_fallthru
        _
      // Predicated region
      $region29: #{pre_act_basic_block.1} parent=11 // pred_check
        %p240 = pneg %p145
      $region30: #{pre_act_basic_block.1} parent=11 // pred_check_branch
        %242 = sbr.rel (%p240) target = $region32
      $region31: #{pre_act_basic_block.1} parent=11 // pred_region
        _
      $region32: #{pre_act_basic_block.1} parent=11 // pred_fallthru
        _
      // Predicated region
      $region33: #{pre_act_basic_block.1} parent=11 // pred_check
        %p243 = pneg %p166
      $region34: #{pre_act_basic_block.1} parent=11 // pred_check_branch
        %245 = sbr.rel (%p243) target = $region36
      $region35: #{pre_act_basic_block.1} parent=11 // pred_region
        _
      $region36: #{pre_act_basic_block.1} parent=11 // pred_fallthru
        _
      // Predicated region
      $region37: #{pre_act_basic_block.1} parent=11 // pred_check
        %p246 = pneg %p187
      $region38: #{pre_act_basic_block.1} parent=11 // pred_check_branch
        %248 = sbr.rel (%p246) target = $region40
      $region39: #{pre_act_basic_block.1} parent=11 // pred_region
        _
      $region40: #{pre_act_basic_block.1} parent=11 // pred_fallthru
        _
    $region12: #{pre_act_basic_block.1} parent=5 // pred_fallthru
      _
    %p249 = scmp.lt.s32.totalorder %s14, 2
    // Predicated region
    $region41: #{pre_act_basic_block.1} parent=5 // pred_check
      %p250 = pneg %p249
    $region42: #{pre_act_basic_block.1} parent=5 // pred_check_branch
      %252 = sbr.rel (%p250) target = $region44
    $region43: #{pre_act_basic_block.1} parent=5 // pred_region
      // Predicated region
      $region45: #{pre_act_basic_block.1} parent=43 // pred_check
        %p253 = pneg %p34
      $region46: #{pre_act_basic_block.1} parent=43 // pred_check_branch
        %255 = sbr.rel (%p253) target = $region48
      $region47: #{pre_act_basic_block.1} parent=43 // pred_region
        %p256 = scmp.lt.s32.totalorder %s14, 1
        %s257 = scalar_select %p256, %s14, 1
        %s258 = smul.addr %s257, 4
        %s259 = smul.addr %s258, 8
        %s260 = scalar_lea.vmem %s0, %s259
      $region48: #{pre_act_basic_block.1} parent=43 // pred_fallthru
        _
    $region44: #{pre_act_basic_block.1} parent=5 // pred_fallthru
      _
    %p261 = scmp.le.s32.totalorder 1, %s14
    %p262 = scmp.lt.s32.totalorder %s14, 3
    %p263 = pnand %p261, %p262
    %p264 = pneg %p263
    // Predicated region
    $region49: #{pre_act_basic_block.1} parent=5 // pred_check
      _
    $region50: #{pre_act_basic_block.1} parent=5 // pred_check_branch
      %266 = sbr.rel (%p263) target = $region52
    $region51: #{pre_act_basic_block.1} parent=5 // pred_region
      %s267 = ssub.s32 %s14, 1
      %p268 = scmp.lt.s32.totalorder %s19, 1
      %s269 = scalar_select %p268, %s19, 1
      %s270 = smul.addr %s269, 4
      %s271 = smul.addr %s270, 8
      %s272 = scalar_lea.vmem %s0, %s271
      %p273 = pneg %p40
      %p274 = pneg %p37
      %p275 = pneg %p61
      %p276 = pneg %p58
      %p277 = pneg %p82
      %p278 = pneg %p79
      %p279 = pneg %p103
      %p280 = pneg %p100
      %p281 = pneg %p124
      %p282 = pneg %p121
      %p283 = pneg %p145
      %p284 = pneg %p142
      %p285 = pneg %p166
      %p286 = pneg %p163
      %p287 = pneg %p187
      %p288 = pneg %p184
      %p289 = pneg %p213
      %p290 = pneg %p210
      %p291 = scmp.lt.s32.totalorder %s19, 1
      %s292 = scalar_select %p291, %s19, 1
      %s293 = smul.addr %s292, 4
      %s294 = smul.addr %s293, 8
      %s295 = scalar_lea.vmem %s8, %s294
      %p296 = scmp.lt.s32.totalorder %s19, 1
      %s297 = scalar_select %p296, %s19, 1
      %s298 = smul.addr %s297, 4
      %s299 = smul.addr %s298, 8
      %s300 = scalar_lea.vmem %s0, %s299
      %p301 = scmp.lt.s32.totalorder %s19, 1
      %s302 = scalar_select %p301, %s19, 1
      %s303 = smul.addr %s302, 4
      %s304 = smul.addr %s303, 8
      %s305 = scalar_lea.vmem %s8, %s304
      %v306 = vld [vmem:[%s300] sm:$0xff]
      %v307 = vld [vmem:[%s300 + $0x8] sm:$0xff]
      %v308 = vld [vmem:[%s300 + $0x10] sm:$0xff]
      %v309 = vld [vmem:[%s300 + $0x18] sm:$0xff]
      %v310 = vld [vmem:[%s1] sm:$0xff]
      %312 = vset.pattern.permute.xlu0 0
      %313 = vperm.xlu0 %312, %v310
      %v314 = vpop.permute.xlu0 %313
      %v316 = vmul.f32 %v306, %v314
      %v317 = vmul.f32 %v307, %v314
      %v318 = vmul.f32 %v308, %v314
      %v319 = vmul.f32 %v309, %v314
      %v320 = vld [vmem:[%s2] sm:$0xff]
      %322 = vset.pattern.permute.xlu0 0
      %323 = vperm.xlu0 %322, %v320
      %v324 = vpop.permute.xlu0 %323
      %v326 = vadd.f32 %v316, %v324
      %v327 = vadd.f32 %v317, %v324
      %v328 = vadd.f32 %v318, %v324
      %v329 = vadd.f32 %v319, %v324
      %v330 = vmax.f32 %v326, 0.0
      %v331 = vmax.f32 %v327, 0.0
      %v332 = vmax.f32 %v328, 0.0
      %v333 = vmax.f32 %v329, 0.0
      %334 = vrot.lane.b32.xlu0 %v330, 73
      %v335 = vpop.permute.xlu0 %334
      %336 = vrot.lane.b32.xlu0 %v331, 73
      %v337 = vpop.permute.xlu0 %336
      %338 = vrot.lane.b32.xlu0 %v332, 73
      %v339 = vpop.permute.xlu0 %338
      %340 = vrot.lane.b32.xlu0 %v333, 73
      %v341 = vpop.permute.xlu0 %340
      %v342 = vlaneseq
      %v343 = vand.u32 %v342, 127
      %vm344 = vcmp.lt.s32.totalorder %v343, 73
      %v345 = vsel %vm344, %v339, %v341
      %v346 = vsel %vm344, %v337, %v339
      %v347 = vsel %vm344, %v335, %v337
      %v348 = vsel %vm344, %v341, %v335
      %v349 = vld [vmem:[%s7] ss:$8 sm:$0xf]
      %v351 = vlaneseq
      %v352 = vshrl.u32 %v351, 7
      %v353 = vsub.s32 0, %v352
      %v354 = vrot.slane %v349, %v353
      %v355 = vlaneseq
      %v356 = vshrl.u32 %v355, 7
      %v357 = vsub.s32 1, %v356
      %v358 = vrot.slane %v349, %v357
      %v359 = vlaneseq
      %v360 = vshrl.u32 %v359, 7
      %v361 = vsub.s32 2, %v360
      %v362 = vrot.slane %v349, %v361
      %v363 = vlaneseq
      %v364 = vshrl.u32 %v363, 7
      %v365 = vsub.s32 3, %v364
      %v366 = vrot.slane %v349, %v365
      %v371 = vmul.f32 %v348, %v354
      %v372 = vmul.f32 %v347, %v358
      %v373 = vmul.f32 %v346, %v362
      %v374 = vmul.f32 %v345, %v366
      %v375 = vld [vmem:[%s3] sm:$0xff]
      %376 = vrot.lane.b32.xlu0 %v330, 72
      %v377 = vpop.permute.xlu0 %376
      %378 = vrot.lane.b32.xlu0 %v331, 72
      %v379 = vpop.permute.xlu0 %378
      %380 = vrot.lane.b32.xlu0 %v332, 72
      %v381 = vpop.permute.xlu0 %380
      %382 = vrot.lane.b32.xlu0 %v333, 72
      %v383 = vpop.permute.xlu0 %382
      %vm384 = vcmp.lt.s32.totalorder %v343, 72
      %v385 = vsel %vm384, %v381, %v383
      %v386 = vsel %vm384, %v379, %v381
      %v387 = vsel %vm384, %v377, %v379
      %v388 = vsel %vm384, %v383, %v377
      %s389 = scalar_lea.vmem %s7, 1
      %v390 = vld [vmem:[%s389] ss:$8 sm:$0xf]
      %v392 = vlaneseq
      %v393 = vshrl.u32 %v392, 7
      %v394 = vsub.s32 0, %v393
      %v395 = vrot.slane %v390, %v394
      %v396 = vlaneseq
      %v397 = vshrl.u32 %v396, 7
      %v398 = vsub.s32 1, %v397
      %v399 = vrot.slane %v390, %v398
      %v400 = vlaneseq
      %v401 = vshrl.u32 %v400, 7
      %v402 = vsub.s32 2, %v401
      %v403 = vrot.slane %v390, %v402
      %v404 = vlaneseq
      %v405 = vshrl.u32 %v404, 7
      %v406 = vsub.s32 3, %v405
      %v407 = vrot.slane %v390, %v406
      %v412 = vmul.f32 %v388, %v395
      %v413 = vmul.f32 %v387, %v399
      %v414 = vmul.f32 %v386, %v403
      %v415 = vmul.f32 %v385, %v407
      %s416 = scalar_lea.vmem %s3, 8
      %v417 = vld [vmem:[%s416] sm:$0xff]
      %vm418 = vcmask 64512
      %v420 = vsel %vm418, %v417, 0
      %422 = vmatprep.subr.mxu0 %v413
      %423 = vmatpush1.msra.mxu0 %v412
      %424 = vmatprep.subr.mxu0 0.0
      %425 = vmatpush1.msra.mxu0 0.0
      %426 = vmatprep.subr.mxu0 0.0
      %427 = vmatpush1.msra.mxu0 0.0
      %428 = vmatprep.subr.mxu0 0.0
      %429 = vmatpush1.msra.mxu0 0.0
      %430 = vmatprep.subr.mxu0 0.0
      %431 = vmatpush1.msra.mxu0 0.0
      %432 = vmatprep.subr.mxu0 0.0
      %433 = vmatpush1.msra.mxu0 0.0
      %434 = vmatprep.subr.mxu0 0.0
      %435 = vmatpush1.msra.mxu0 0.0
      %436 = vmatprep.subr.mxu0 0.0
      %437 = vmatpush1.msra.mxu0 0.0
      %438 = vmatprep.subr.mxu0 0.0
      %439 = vmatpush1.msra.mxu0 0.0
      %440 = vmatprep.subr.mxu0 0.0
      %441 = vmatpush1.msra.mxu0 0.0
      %442 = vmatprep.subr.mxu0 0.0
      %443 = vmatpush1.msra.mxu0 0.0
      %444 = vmatprep.subr.mxu0 0.0
      %445 = vmatpush1.msra.mxu0 0.0
      %446 = vmatprep.subr.mxu0 0.0
      %447 = vmatpush1.msra.mxu0 0.0
      %448 = vmatprep.subr.mxu0 0.0
      %449 = vmatpush1.msra.mxu0 0.0
      %450 = vmatprep.subr.mxu0 0.0
      %451 = vmatpush1.msra.mxu0 0.0
      %452 = vmatprep.subr.mxu0 0.0
      %453 = vmatpush1.msra.mxu0 0.0
      %454 = vmatprep.subr.mxu0 0.0
      %455 = vmatpush1.msra.mxu0 0.0
      %456 = vmatprep.subr.mxu0 0.0
      %457 = vmatpush1.msra.mxu0 0.0
      %458 = vmatprep.subr.mxu0 0.0
      %459 = vmatpush1.msra.mxu0 0.0
      %460 = vmatprep.subr.mxu0 0.0
      %461 = vmatpush1.msra.mxu0 0.0
      %462 = vmatprep.subr.mxu0 0.0
      %463 = vmatpush1.msra.mxu0 0.0
      %464 = vmatprep.subr.mxu0 0.0
      %465 = vmatpush1.msra.mxu0 0.0
      %466 = vmatprep.subr.mxu0 0.0
      %467 = vmatpush1.msra.mxu0 0.0
      %468 = vmatprep.subr.mxu0 0.0
      %469 = vmatpush1.msra.mxu0 0.0
      %470 = vmatprep.subr.mxu0 0.0
      %471 = vmatpush1.msra.mxu0 0.0
      %472 = vmatprep.subr.mxu0 0.0
      %473 = vmatpush1.msra.mxu0 0.0
      %474 = vmatprep.subr.mxu0 0.0
      %475 = vmatpush1.msra.mxu0 0.0
      %476 = vmatprep.subr.mxu0 0.0
      %477 = vmatpush1.msra.mxu0 0.0
      %478 = vmatprep.subr.mxu0 0.0
      %479 = vmatpush1.msra.mxu0 0.0
      %480 = vmatprep.subr.mxu0 0.0
      %481 = vmatpush1.msra.mxu0 0.0
      %482 = vmatprep.subr.mxu0 0.0
      %483 = vmatpush1.msra.mxu0 0.0
      %484 = vmatprep.subr.mxu0 0.0
      %485 = vmatpush1.msra.mxu0 0.0
      %486 = vmatprep.mubr.f32.mxu0 0.0
      %487 = vmatmul.mubr.f32.gmra.mrb[0].mxu0 %v420
      %v488 = vpop.f32.mrb[0].mxu0
      %v489 = vadd.f32 0.0, %v488
      %v490 = vpop.f32.mrb[0].mxu0
      %v491 = vadd.f32 0.0, %v490
      %492 = vdwg.mxu0
      %493 = vmatprep.subr.mxu0 %v415
      %494 = vmatpush1.msra.mxu0 %v414
      %495 = vmatprep.subr.mxu0 0.0
      %496 = vmatpush1.msra.mxu0 0.0
      %497 = vmatprep.subr.mxu0 0.0
      %498 = vmatpush1.msra.mxu0 0.0
      %499 = vmatprep.subr.mxu0 0.0
      %500 = vmatpush1.msra.mxu0 0.0
      %501 = vmatprep.subr.mxu0 0.0
      %502 = vmatpush1.msra.mxu0 0.0
      %503 = vmatprep.subr.mxu0 0.0
      %504 = vmatpush1.msra.mxu0 0.0
      %505 = vmatprep.subr.mxu0 0.0
      %506 = vmatpush1.msra.mxu0 0.0
      %507 = vmatprep.subr.mxu0 0.0
      %508 = vmatpush1.msra.mxu0 0.0
      %509 = vmatprep.subr.mxu0 0.0
      %510 = vmatpush1.msra.mxu0 0.0
      %511 = vmatprep.subr.mxu0 0.0
      %512 = vmatpush1.msra.mxu0 0.0
      %513 = vmatprep.subr.mxu0 0.0
      %514 = vmatpush1.msra.mxu0 0.0
      %515 = vmatprep.subr.mxu0 0.0
      %516 = vmatpush1.msra.mxu0 0.0
      %517 = vmatprep.subr.mxu0 0.0
      %518 = vmatpush1.msra.mxu0 0.0
      %519 = vmatprep.subr.mxu0 0.0
      %520 = vmatpush1.msra.mxu0 0.0
      %521 = vmatprep.subr.mxu0 0.0
      %522 = vmatpush1.msra.mxu0 0.0
      %523 = vmatprep.subr.mxu0 0.0
      %524 = vmatpush1.msra.mxu0 0.0
      %525 = vmatprep.subr.mxu0 0.0
      %526 = vmatpush1.msra.mxu0 0.0
      %527 = vmatprep.subr.mxu0 0.0
      %528 = vmatpush1.msra.mxu0 0.0
      %529 = vmatprep.subr.mxu0 0.0
      %530 = vmatpush1.msra.mxu0 0.0
      %531 = vmatprep.subr.mxu0 0.0
      %532 = vmatpush1.msra.mxu0 0.0
      %533 = vmatprep.subr.mxu0 0.0
      %534 = vmatpush1.msra.mxu0 0.0
      %535 = vmatprep.subr.mxu0 0.0
      %536 = vmatpush1.msra.mxu0 0.0
      %537 = vmatprep.subr.mxu0 0.0
      %538 = vmatpush1.msra.mxu0 0.0
      %539 = vmatprep.subr.mxu0 0.0
      %540 = vmatpush1.msra.mxu0 0.0
      %541 = vmatprep.subr.mxu0 0.0
      %542 = vmatpush1.msra.mxu0 0.0
      %543 = vmatprep.subr.mxu0 0.0
      %544 = vmatpush1.msra.mxu0 0.0
      %545 = vmatprep.subr.mxu0 0.0
      %546 = vmatpush1.msra.mxu0 0.0
      %547 = vmatprep.subr.mxu0 0.0
      %548 = vmatpush1.msra.mxu0 0.0
      %549 = vmatprep.subr.mxu0 0.0
      %550 = vmatpush1.msra.mxu0 0.0
      %551 = vmatprep.subr.mxu0 0.0
      %552 = vmatpush1.msra.mxu0 0.0
      %553 = vmatprep.subr.mxu0 0.0
      %554 = vmatpush1.msra.mxu0 0.0
      %555 = vmatprep.subr.mxu0 0.0
      %556 = vmatpush1.msra.mxu0 0.0
      %557 = vmatprep.mubr.f32.mxu0 0.0
      %558 = vmatmul.mubr.f32.gmra.mrb[0].mxu0 %v420
      %v559 = vpop.f32.mrb[0].mxu0
      %v560 = vadd.f32 0.0, %v559
      %v561 = vpop.f32.mrb[0].mxu0
      %v562 = vadd.f32 0.0, %v561
      %563 = vdwg.mxu0
      %v565 = vsel %vm418, %v375, 0
      %567 = vmatprep.subr.mxu0 %v372
      %568 = vmatpush1.msra.mxu0 %v371
      %569 = vmatprep.subr.mxu0 0.0
      %570 = vmatpush1.msra.mxu0 0.0
      %571 = vmatprep.subr.mxu0 0.0
      %572 = vmatpush1.msra.mxu0 0.0
      %573 = vmatprep.subr.mxu0 0.0
      %574 = vmatpush1.msra.mxu0 0.0
      %575 = vmatprep.subr.mxu0 0.0
      %576 = vmatpush1.msra.mxu0 0.0
      %577 = vmatprep.subr.mxu0 0.0
      %578 = vmatpush1.msra.mxu0 0.0
      %579 = vmatprep.subr.mxu0 0.0
      %580 = vmatpush1.msra.mxu0 0.0
      %581 = vmatprep.subr.mxu0 0.0
      %582 = vmatpush1.msra.mxu0 0.0
      %583 = vmatprep.subr.mxu0 0.0
      %584 = vmatpush1.msra.mxu0 0.0
      %585 = vmatprep.subr.mxu0 0.0
      %586 = vmatpush1.msra.mxu0 0.0
      %587 = vmatprep.subr.mxu0 0.0
      %588 = vmatpush1.msra.mxu0 0.0
      %589 = vmatprep.subr.mxu0 0.0
      %590 = vmatpush1.msra.mxu0 0.0
      %591 = vmatprep.subr.mxu0 0.0
      %592 = vmatpush1.msra.mxu0 0.0
      %593 = vmatprep.subr.mxu0 0.0
      %594 = vmatpush1.msra.mxu0 0.0
      %595 = vmatprep.subr.mxu0 0.0
      %596 = vmatpush1.msra.mxu0 0.0
      %597 = vmatprep.subr.mxu0 0.0
      %598 = vmatpush1.msra.mxu0 0.0
      %599 = vmatprep.subr.mxu0 0.0
      %600 = vmatpush1.msra.mxu0 0.0
      %601 = vmatprep.subr.mxu0 0.0
      %602 = vmatpush1.msra.mxu0 0.0
      %603 = vmatprep.subr.mxu0 0.0
      %604 = vmatpush1.msra.mxu0 0.0
      %605 = vmatprep.subr.mxu0 0.0
      %606 = vmatpush1.msra.mxu0 0.0
      %607 = vmatprep.subr.mxu0 0.0
      %608 = vmatpush1.msra.mxu0 0.0
      %609 = vmatprep.subr.mxu0 0.0
      %610 = vmatpush1.msra.mxu0 0.0
      %611 = vmatprep.subr.mxu0 0.0
      %612 = vmatpush1.msra.mxu0 0.0
      %613 = vmatprep.subr.mxu0 0.0
      %614 = vmatpush1.msra.mxu0 0.0
      %615 = vmatprep.subr.mxu0 0.0
      %616 = vmatpush1.msra.mxu0 0.0
      %617 = vmatprep.subr.mxu0 0.0
      %618 = vmatpush1.msra.mxu0 0.0
      %619 = vmatprep.subr.mxu0 0.0
      %620 = vmatpush1.msra.mxu0 0.0
      %621 = vmatprep.subr.mxu0 0.0
      %622 = vmatpush1.msra.mxu0 0.0
      %623 = vmatprep.subr.mxu0 0.0
      %624 = vmatpush1.msra.mxu0 0.0
      %625 = vmatprep.subr.mxu0 0.0
      %626 = vmatpush1.msra.mxu0 0.0
      %627 = vmatprep.subr.mxu0 0.0
      %628 = vmatpush1.msra.mxu0 0.0
      %629 = vmatprep.subr.mxu0 0.0
      %630 = vmatpush1.msra.mxu0 0.0
      %631 = vmatprep.mubr.f32.mxu0 0.0
      %632 = vmatmul.mubr.f32.gmra.mrb[0].mxu0 %v565
      %v633 = vpop.f32.mrb[0].mxu0
      %v634 = vadd.f32 %v489, %v633
      %v635 = vpop.f32.mrb[0].mxu0
      %v636 = vadd.f32 %v491, %v635
      %637 = vdwg.mxu0
      %638 = vmatprep.subr.mxu0 %v374
      %639 = vmatpush1.msra.mxu0 %v373
      %640 = vmatprep.subr.mxu0 0.0
      %641 = vmatpush1.msra.mxu0 0.0
      %642 = vmatprep.subr.mxu0 0.0
      %643 = vmatpush1.msra.mxu0 0.0
      %644 = vmatprep.subr.mxu0 0.0
      %645 = vmatpush1.msra.mxu0 0.0
      %646 = vmatprep.subr.mxu0 0.0
      %647 = vmatpush1.msra.mxu0 0.0
      %648 = vmatprep.subr.mxu0 0.0
      %649 = vmatpush1.msra.mxu0 0.0
      %650 = vmatprep.subr.mxu0 0.0
      %651 = vmatpush1.msra.mxu0 0.0
      %652 = vmatprep.subr.mxu0 0.0
      %653 = vmatpush1.msra.mxu0 0.0
      %654 = vmatprep.subr.mxu0 0.0
      %655 = vmatpush1.msra.mxu0 0.0
      %656 = vmatprep.subr.mxu0 0.0
      %657 = vmatpush1.msra.mxu0 0.0
      %658 = vmatprep.subr.mxu0 0.0
      %659 = vmatpush1.msra.mxu0 0.0
      %660 = vmatprep.subr.mxu0 0.0
      %661 = vmatpush1.msra.mxu0 0.0
      %662 = vmatprep.subr.mxu0 0.0
      %663 = vmatpush1.msra.mxu0 0.0
      %664 = vmatprep.subr.mxu0 0.0
      %665 = vmatpush1.msra.mxu0 0.0
      %666 = vmatprep.subr.mxu0 0.0
      %667 = vmatpush1.msra.mxu0 0.0
      %668 = vmatprep.subr.mxu0 0.0
      %669 = vmatpush1.msra.mxu0 0.0
      %670 = vmatprep.subr.mxu0 0.0
      %671 = vmatpush1.msra.mxu0 0.0
      %672 = vmatprep.subr.mxu0 0.0
      %673 = vmatpush1.msra.mxu0 0.0
      %674 = vmatprep.subr.mxu0 0.0
      %675 = vmatpush1.msra.mxu0 0.0
      %676 = vmatprep.subr.mxu0 0.0
      %677 = vmatpush1.msra.mxu0 0.0
      %678 = vmatprep.subr.mxu0 0.0
      %679 = vmatpush1.msra.mxu0 0.0
      %680 = vmatprep.subr.mxu0 0.0
      %681 = vmatpush1.msra.mxu0 0.0
      %682 = vmatprep.subr.mxu0 0.0
      %683 = vmatpush1.msra.mxu0 0.0
      %684 = vmatprep.subr.mxu0 0.0
      %685 = vmatpush1.msra.mxu0 0.0
      %686 = vmatprep.subr.mxu0 0.0
      %687 = vmatpush1.msra.mxu0 0.0
      %688 = vmatprep.subr.mxu0 0.0
      %689 = vmatpush1.msra.mxu0 0.0
      %690 = vmatprep.subr.mxu0 0.0
      %691 = vmatpush1.msra.mxu0 0.0
      %692 = vmatprep.subr.mxu0 0.0
      %693 = vmatpush1.msra.mxu0 0.0
      %694 = vmatprep.subr.mxu0 0.0
      %695 = vmatpush1.msra.mxu0 0.0
      %696 = vmatprep.subr.mxu0 0.0
      %697 = vmatpush1.msra.mxu0 0.0
      %698 = vmatprep.subr.mxu0 0.0
      %699 = vmatpush1.msra.mxu0 0.0
      %700 = vmatprep.subr.mxu0 0.0
      %701 = vmatpush1.msra.mxu0 0.0
      %702 = vmatprep.mubr.f32.mxu0 0.0
      %703 = vmatmul.mubr.f32.gmra.mrb[0].mxu0 %v565
      %v704 = vpop.f32.mrb[0].mxu0
      %v705 = vadd.f32 %v560, %v704
      %v706 = vpop.f32.mrb[0].mxu0
      %v707 = vadd.f32 %v562, %v706
      %708 = vdwg.mxu0
      %709 = vrot.lane.b32.xlu0 %v330, 71
      %v710 = vpop.permute.xlu0 %709
      %711 = vrot.lane.b32.xlu0 %v331, 71
      %v712 = vpop.permute.xlu0 %711
      %713 = vrot.lane.b32.xlu0 %v332, 71
      %v714 = vpop.permute.xlu0 %713
      %715 = vrot.lane.b32.xlu0 %v333, 71
      %v716 = vpop.permute.xlu0 %715
      %vm717 = vcmp.lt.s32.totalorder %v343, 71
      %v718 = vsel %vm717, %v714, %v716
      %v719 = vsel %vm717, %v712, %v714
      %v720 = vsel %vm717, %v710, %v712
      %v721 = vsel %vm717, %v716, %v710
      %s722 = scalar_lea.vmem %s7, 2
      %v723 = vld [vmem:[%s722] ss:$8 sm:$0xf]
      %v725 = vlaneseq
      %v726 = vshrl.u32 %v725, 7
      %v727 = vsub.s32 0, %v726
      %v728 = vrot.slane %v723, %v727
      %v729 = vlaneseq
      %v730 = vshrl.u32 %v729, 7
      %v731 = vsub.s32 1, %v730
      %v732 = vrot.slane %v723, %v731
      %v733 = vlaneseq
      %v734 = vshrl.u32 %v733, 7
      %v735 = vsub.s32 2, %v734
      %v736 = vrot.slane %v723, %v735
      %v737 = vlaneseq
      %v738 = vshrl.u32 %v737, 7
      %v739 = vsub.s32 3, %v738
      %v740 = vrot.slane %v723, %v739
      %v745 = vmul.f32 %v721, %v728
      %v746 = vmul.f32 %v720, %v732
      %v747 = vmul.f32 %v719, %v736
      %v748 = vmul.f32 %v718, %v740
      %s749 = scalar_lea.vmem %s3, 16
      %v750 = vld [vmem:[%s749] sm:$0xff]
      %v752 = vsel %vm418, %v750, 0
      %754 = vmatprep.subr.mxu0 %v746
      %755 = vmatpush1.msra.mxu0 %v745
      %756 = vmatprep.subr.mxu0 0.0
      %757 = vmatpush1.msra.mxu0 0.0
      %758 = vmatprep.subr.mxu0 0.0
      %759 = vmatpush1.msra.mxu0 0.0
      %760 = vmatprep.subr.mxu0 0.0
      %761 = vmatpush1.msra.mxu0 0.0
      %762 = vmatprep.subr.mxu0 0.0
      %763 = vmatpush1.msra.mxu0 0.0
      %764 = vmatprep.subr.mxu0 0.0
      %765 = vmatpush1.msra.mxu0 0.0
      %766 = vmatprep.subr.mxu0 0.0
      %767 = vmatpush1.msra.mxu0 0.0
      %768 = vmatprep.subr.mxu0 0.0
      %769 = vmatpush1.msra.mxu0 0.0
      %770 = vmatprep.subr.mxu0 0.0
      %771 = vmatpush1.msra.mxu0 0.0
      %772 = vmatprep.subr.mxu0 0.0
      %773 = vmatpush1.msra.mxu0 0.0
      %774 = vmatprep.subr.mxu0 0.0
      %775 = vmatpush1.msra.mxu0 0.0
      %776 = vmatprep.subr.mxu0 0.0
      %777 = vmatpush1.msra.mxu0 0.0
      %778 = vmatprep.subr.mxu0 0.0
      %779 = vmatpush1.msra.mxu0 0.0
      %780 = vmatprep.subr.mxu0 0.0
      %781 = vmatpush1.msra.mxu0 0.0
      %782 = vmatprep.subr.mxu0 0.0
      %783 = vmatpush1.msra.mxu0 0.0
      %784 = vmatprep.subr.mxu0 0.0
      %785 = vmatpush1.msra.mxu0 0.0
      %786 = vmatprep.subr.mxu0 0.0
      %787 = vmatpush1.msra.mxu0 0.0
      %788 = vmatprep.subr.mxu0 0.0
      %789 = vmatpush1.msra.mxu0 0.0
      %790 = vmatprep.subr.mxu0 0.0
      %791 = vmatpush1.msra.mxu0 0.0
      %792 = vmatprep.subr.mxu0 0.0
      %793 = vmatpush1.msra.mxu0 0.0
      %794 = vmatprep.subr.mxu0 0.0
      %795 = vmatpush1.msra.mxu0 0.0
      %796 = vmatprep.subr.mxu0 0.0
      %797 = vmatpush1.msra.mxu0 0.0
      %798 = vmatprep.subr.mxu0 0.0
      %799 = vmatpush1.msra.mxu0 0.0
      %800 = vmatprep.subr.mxu0 0.0
      %801 = vmatpush1.msra.mxu0 0.0
      %802 = vmatprep.subr.mxu0 0.0
      %803 = vmatpush1.msra.mxu0 0.0
      %804 = vmatprep.subr.mxu0 0.0
      %805 = vmatpush1.msra.mxu0 0.0
      %806 = vmatprep.subr.mxu0 0.0
      %807 = vmatpush1.msra.mxu0 0.0
      %808 = vmatprep.subr.mxu0 0.0
      %809 = vmatpush1.msra.mxu0 0.0
      %810 = vmatprep.subr.mxu0 0.0
      %811 = vmatpush1.msra.mxu0 0.0
      %812 = vmatprep.subr.mxu0 0.0
      %813 = vmatpush1.msra.mxu0 0.0
      %814 = vmatprep.subr.mxu0 0.0
      %815 = vmatpush1.msra.mxu0 0.0
      %816 = vmatprep.subr.mxu0 0.0
      %817 = vmatpush1.msra.mxu0 0.0
      %818 = vmatprep.mubr.f32.mxu0 0.0
      %819 = vmatmul.mubr.f32.gmra.mrb[0].mxu0 %v752
      %v820 = vpop.f32.mrb[0].mxu0
      %v821 = vadd.f32 0.0, %v820
      %v822 = vpop.f32.mrb[0].mxu0
      %v823 = vadd.f32 0.0, %v822
      %824 = vdwg.mxu0
      %825 = vmatprep.subr.mxu0 %v748
      %826 = vmatpush1.msra.mxu0 %v747
      %827 = vmatprep.subr.mxu0 0.0
      %828 = vmatpush1.msra.mxu0 0.0
      %829 = vmatprep.subr.mxu0 0.0
      %830 = vmatpush1.msra.mxu0 0.0
      %831 = vmatprep.subr.mxu0 0.0
      %832 = vmatpush1.msra.mxu0 0.0
      %833 = vmatprep.subr.mxu0 0.0
      %834 = vmatpush1.msra.mxu0 0.0
      %835 = vmatprep.subr.mxu0 0.0
      %836 = vmatpush1.msra.mxu0 0.0
      %837 = vmatprep.subr.mxu0 0.0
      %838 = vmatpush1.msra.mxu0 0.0
      %839 = vmatprep.subr.mxu0 0.0
      %840 = vmatpush1.msra.mxu0 0.0
      %841 = vmatprep.subr.mxu0 0.0
      %842 = vmatpush1.msra.mxu0 0.0
      %843 = vmatprep.subr.mxu0 0.0
      %844 = vmatpush1.msra.mxu0 0.0
      %845 = vmatprep.subr.mxu0 0.0
      %846 = vmatpush1.msra.mxu0 0.0
      %847 = vmatprep.subr.mxu0 0.0
      %848 = vmatpush1.msra.mxu0 0.0
      %849 = vmatprep.subr.mxu0 0.0
      %850 = vmatpush1.msra.mxu0 0.0
      %851 = vmatprep.subr.mxu0 0.0
      %852 = vmatpush1.msra.mxu0 0.0
      %853 = vmatprep.subr.mxu0 0.0
      %854 = vmatpush1.msra.mxu0 0.0
      %855 = vmatprep.subr.mxu0 0.0
      %856 = vmatpush1.msra.mxu0 0.0
      %857 = vmatprep.subr.mxu0 0.0
      %858 = vmatpush1.msra.mxu0 0.0
      %859 = vmatprep.subr.mxu0 0.0
      %860 = vmatpush1.msra.mxu0 0.0
      %861 = vmatprep.subr.mxu0 0.0
      %862 = vmatpush1.msra.mxu0 0.0
      %863 = vmatprep.subr.mxu0 0.0
      %864 = vmatpush1.msra.mxu0 0.0
      %865 = vmatprep.subr.mxu0 0.0
      %866 = vmatpush1.msra.mxu0 0.0
      %867 = vmatprep.subr.mxu0 0.0
      %868 = vmatpush1.msra.mxu0 0.0
      %869 = vmatprep.subr.mxu0 0.0
      %870 = vmatpush1.msra.mxu0 0.0
      %871 = vmatprep.subr.mxu0 0.0
      %872 = vmatpush1.msra.mxu0 0.0
      %873 = vmatprep.subr.mxu0 0.0
      %874 = vmatpush1.msra.mxu0 0.0
      %875 = vmatprep.subr.mxu0 0.0
      %876 = vmatpush1.msra.mxu0 0.0
      %877 = vmatprep.subr.mxu0 0.0
      %878 = vmatpush1.msra.mxu0 0.0
      %879 = vmatprep.subr.mxu0 0.0
      %880 = vmatpush1.msra.mxu0 0.0
      %881 = vmatprep.subr.mxu0 0.0
      %882 = vmatpush1.msra.mxu0 0.0
      %883 = vmatprep.subr.mxu0 0.0
      %884 = vmatpush1.msra.mxu0 0.0
      %885 = vmatprep.subr.mxu0 0.0
      %886 = vmatpush1.msra.mxu0 0.0
      %887 = vmatprep.subr.mxu0 0.0
      %888 = vmatpush1.msra.mxu0 0.0
      %889 = vmatprep.mubr.f32.mxu0 0.0
      %890 = vmatmul.mubr.f32.gmra.mrb[0].mxu0 %v752
      %v891 = vpop.f32.mrb[0].mxu0
      %v892 = vadd.f32 0.0, %v891
      %v893 = vpop.f32.mrb[0].mxu0
      %v894 = vadd.f32 0.0, %v893
      %895 = vdwg.mxu0
      %v896 = vadd.f32 %v634, %v821
      %v897 = vadd.f32 %v636, %v823
      %v898 = vadd.f32 %v705, %v892
      %v899 = vadd.f32 %v707, %v894
      %900 = vrot.lane.b32.xlu0 %v330, 65
      %v901 = vpop.permute.xlu0 %900
      %902 = vrot.lane.b32.xlu0 %v331, 65
      %v903 = vpop.permute.xlu0 %902
      %904 = vrot.lane.b32.xlu0 %v332, 65
      %v905 = vpop.permute.xlu0 %904
      %906 = vrot.lane.b32.xlu0 %v333, 65
      %v907 = vpop.permute.xlu0 %906
      %vm908 = vcmp.lt.s32.totalorder %v343, 65
      %v909 = vsel %vm908, %v905, %v907
      %v910 = vsel %vm908, %v903, %v905
      %v911 = vsel %vm908, %v901, %v903
      %v912 = vsel %vm908, %v907, %v901
      %s913 = scalar_lea.vmem %s7, 3
      %v914 = vld [vmem:[%s913] ss:$8 sm:$0xf]
      %v916 = vlaneseq
      %v917 = vshrl.u32 %v916, 7
      %v918 = vsub.s32 0, %v917
      %v919 = vrot.slane %v914, %v918
      %v920 = vlaneseq
      %v921 = vshrl.u32 %v920, 7
      %v922 = vsub.s32 1, %v921
      %v923 = vrot.slane %v914, %v922
      %v924 = vlaneseq
      %v925 = vshrl.u32 %v924, 7
      %v926 = vsub.s32 2, %v925
      %v927 = vrot.slane %v914, %v926
      %v928 = vlaneseq
      %v929 = vshrl.u32 %v928, 7
      %v930 = vsub.s32 3, %v929
      %v931 = vrot.slane %v914, %v930
      %v936 = vmul.f32 %v912, %v919
      %v937 = vmul.f32 %v911, %v923
      %v938 = vmul.f32 %v910, %v927
      %v939 = vmul.f32 %v909, %v931
      %s940 = scalar_lea.vmem %s3, 24
      %v941 = vld [vmem:[%s940] sm:$0xff]
      %v943 = vsel %vm418, %v941, 0
      %945 = vmatprep.subr.mxu0 %v937
      %946 = vmatpush1.msra.mxu0 %v936
      %947 = vmatprep.subr.mxu0 0.0
      %948 = vmatpush1.msra.mxu0 0.0
      %949 = vmatprep.subr.mxu0 0.0
      %950 = vmatpush1.msra.mxu0 0.0
      %951 = vmatprep.subr.mxu0 0.0
      %952 = vmatpush1.msra.mxu0 0.0
      %953 = vmatprep.subr.mxu0 0.0
      %954 = vmatpush1.msra.mxu0 0.0
      %955 = vmatprep.subr.mxu0 0.0
      %956 = vmatpush1.msra.mxu0 0.0
      %957 = vmatprep.subr.mxu0 0.0
      %958 = vmatpush1.msra.mxu0 0.0
      %959 = vmatprep.subr.mxu0 0.0
      %960 = vmatpush1.msra.mxu0 0.0
      %961 = vmatprep.subr.mxu0 0.0
      %962 = vmatpush1.msra.mxu0 0.0
      %963 = vmatprep.subr.mxu0 0.0
      %964 = vmatpush1.msra.mxu0 0.0
      %965 = vmatprep.subr.mxu0 0.0
      %966 = vmatpush1.msra.mxu0 0.0
      %967 = vmatprep.subr.mxu0 0.0
      %968 = vmatpush1.msra.mxu0 0.0
      %969 = vmatprep.subr.mxu0 0.0
      %970 = vmatpush1.msra.mxu0 0.0
      %971 = vmatprep.subr.mxu0 0.0
      %972 = vmatpush1.msra.mxu0 0.0
      %973 = vmatprep.subr.mxu0 0.0
      %974 = vmatpush1.msra.mxu0 0.0
      %975 = vmatprep.subr.mxu0 0.0
      %976 = vmatpush1.msra.mxu0 0.0
      %977 = vmatprep.subr.mxu0 0.0
      %978 = vmatpush1.msra.mxu0 0.0
      %979 = vmatprep.subr.mxu0 0.0
      %980 = vmatpush1.msra.mxu0 0.0
      %981 = vmatprep.subr.mxu0 0.0
      %982 = vmatpush1.msra.mxu0 0.0
      %983 = vmatprep.subr.mxu0 0.0
      %984 = vmatpush1.msra.mxu0 0.0
      %985 = vmatprep.subr.mxu0 0.0
      %986 = vmatpush1.msra.mxu0 0.0
      %987 = vmatprep.subr.mxu0 0.0
      %988 = vmatpush1.msra.mxu0 0.0
      %989 = vmatprep.subr.mxu0 0.0
      %990 = vmatpush1.msra.mxu0 0.0
      %991 = vmatprep.subr.mxu0 0.0
      %992 = vmatpush1.msra.mxu0 0.0
      %993 = vmatprep.subr.mxu0 0.0
      %994 = vmatpush1.msra.mxu0 0.0
      %995 = vmatprep.subr.mxu0 0.0
      %996 = vmatpush1.msra.mxu0 0.0
      %997 = vmatprep.subr.mxu0 0.0
      %998 = vmatpush1.msra.mxu0 0.0
      %999 = vmatprep.subr.mxu0 0.0
      %1000 = vmatpush1.msra.mxu0 0.0
      %1001 = vmatprep.subr.mxu0 0.0
      %1002 = vmatpush1.msra.mxu0 0.0
      %1003 = vmatprep.subr.mxu0 0.0
      %1004 = vmatpush1.msra.mxu0 0.0
      %1005 = vmatprep.subr.mxu0 0.0
      %1006 = vmatpush1.msra.mxu0 0.0
      %1007 = vmatprep.subr.mxu0 0.0
      %1008 = vmatpush1.msra.mxu0 0.0
      %1009 = vmatprep.mubr.f32.mxu0 0.0
      %1010 = vmatmul.mubr.f32.gmra.mrb[0].mxu0 %v943
      %v1011 = vpop.f32.mrb[0].mxu0
      %v1012 = vadd.f32 0.0, %v1011
      %v1013 = vpop.f32.mrb[0].mxu0
      %v1014 = vadd.f32 0.0, %v1013
      %1015 = vdwg.mxu0
      %1016 = vmatprep.subr.mxu0 %v939
      %1017 = vmatpush1.msra.mxu0 %v938
      %1018 = vmatprep.subr.mxu0 0.0
      %1019 = vmatpush1.msra.mxu0 0.0
      %1020 = vmatprep.subr.mxu0 0.0
      %1021 = vmatpush1.msra.mxu0 0.0
      %1022 = vmatprep.subr.mxu0 0.0
      %1023 = vmatpush1.msra.mxu0 0.0
      %1024 = vmatprep.subr.mxu0 0.0
      %1025 = vmatpush1.msra.mxu0 0.0
      %1026 = vmatprep.subr.mxu0 0.0
      %1027 = vmatpush1.msra.mxu0 0.0
      %1028 = vmatprep.subr.mxu0 0.0
      %1029 = vmatpush1.msra.mxu0 0.0
      %1030 = vmatprep.subr.mxu0 0.0
      %1031 = vmatpush1.msra.mxu0 0.0
      %1032 = vmatprep.subr.mxu0 0.0
      %1033 = vmatpush1.msra.mxu0 0.0
      %1034 = vmatprep.subr.mxu0 0.0
      %1035 = vmatpush1.msra.mxu0 0.0
      %1036 = vmatprep.subr.mxu0 0.0
      %1037 = vmatpush1.msra.mxu0 0.0
      %1038 = vmatprep.subr.mxu0 0.0
      %1039 = vmatpush1.msra.mxu0 0.0
      %1040 = vmatprep.subr.mxu0 0.0
      %1041 = vmatpush1.msra.mxu0 0.0
      %1042 = vmatprep.subr.mxu0 0.0
      %1043 = vmatpush1.msra.mxu0 0.0
      %1044 = vmatprep.subr.mxu0 0.0
      %1045 = vmatpush1.msra.mxu0 0.0
      %1046 = vmatprep.subr.mxu0 0.0
      %1047 = vmatpush1.msra.mxu0 0.0
      %1048 = vmatprep.subr.mxu0 0.0
      %1049 = vmatpush1.msra.mxu0 0.0
      %1050 = vmatprep.subr.mxu0 0.0
      %1051 = vmatpush1.msra.mxu0 0.0
      %1052 = vmatprep.subr.mxu0 0.0
      %1053 = vmatpush1.msra.mxu0 0.0
      %1054 = vmatprep.subr.mxu0 0.0
      %1055 = vmatpush1.msra.mxu0 0.0
      %1056 = vmatprep.subr.mxu0 0.0
      %1057 = vmatpush1.msra.mxu0 0.0
      %1058 = vmatprep.subr.mxu0 0.0
      %1059 = vmatpush1.msra.mxu0 0.0
      %1060 = vmatprep.subr.mxu0 0.0
      %1061 = vmatpush1.msra.mxu0 0.0
      %1062 = vmatprep.subr.mxu0 0.0
      %1063 = vmatpush1.msra.mxu0 0.0
      %1064 = vmatprep.subr.mxu0 0.0
      %1065 = vmatpush1.msra.mxu0 0.0
      %1066 = vmatprep.subr.mxu0 0.0
      %1067 = vmatpush1.msra.mxu0 0.0
      %1068 = vmatprep.subr.mxu0 0.0
      %1069 = vmatpush1.msra.mxu0 0.0
      %1070 = vmatprep.subr.mxu0 0.0
      %1071 = vmatpush1.msra.mxu0 0.0
      %1072 = vmatprep.subr.mxu0 0.0
      %1073 = vmatpush1.msra.mxu0 0.0
      %1074 = vmatprep.subr.mxu0 0.0
      %1075 = vmatpush1.msra.mxu0 0.0
      %1076 = vmatprep.subr.mxu0 0.0
      %1077 = vmatpush1.msra.mxu0 0.0
      %1078 = vmatprep.subr.mxu0 0.0
      %1079 = vmatpush1.msra.mxu0 0.0
      %1080 = vmatprep.mubr.f32.mxu0 0.0
      %1081 = vmatmul.mubr.f32.gmra.mrb[0].mxu0 %v943
      %v1082 = vpop.f32.mrb[0].mxu0
      %v1083 = vadd.f32 0.0, %v1082
      %v1084 = vpop.f32.mrb[0].mxu0
      %v1085 = vadd.f32 0.0, %v1084
      %1086 = vdwg.mxu0
      %v1087 = vadd.f32 %v896, %v1012
      %v1088 = vadd.f32 %v897, %v1014
      %v1089 = vadd.f32 %v898, %v1083
      %v1090 = vadd.f32 %v899, %v1085
      %1091 = vrot.lane.b32.xlu0 %v330, 64
      %v1092 = vpop.permute.xlu0 %1091
      %1093 = vrot.lane.b32.xlu0 %v331, 64
      %v1094 = vpop.permute.xlu0 %1093
      %1095 = vrot.lane.b32.xlu0 %v332, 64
      %v1096 = vpop.permute.xlu0 %1095
      %1097 = vrot.lane.b32.xlu0 %v333, 64
      %v1098 = vpop.permute.xlu0 %1097
      %vm1099 = vcmp.lt.s32.totalorder %v343, 64
      %v1100 = vsel %vm1099, %v1096, %v1098
      %v1101 = vsel %vm1099, %v1094, %v1096
      %v1102 = vsel %vm1099, %v1092, %v1094
      %v1103 = vsel %vm1099, %v1098, %v1092
      %s1104 = scalar_lea.vmem %s7, 4
      %v1105 = vld [vmem:[%s1104] ss:$8 sm:$0xf]
      %v1107 = vlaneseq
      %v1108 = vshrl.u32 %v1107, 7
      %v1109 = vsub.s32 0, %v1108
      %v1110 = vrot.slane %v1105, %v1109
      %v1111 = vlaneseq
      %v1112 = vshrl.u32 %v1111, 7
      %v1113 = vsub.s32 1, %v1112
      %v1114 = vrot.slane %v1105, %v1113
      %v1115 = vlaneseq
      %v1116 = vshrl.u32 %v1115, 7
      %v1117 = vsub.s32 2, %v1116
      %v1118 = vrot.slane %v1105, %v1117
      %v1119 = vlaneseq
      %v1120 = vshrl.u32 %v1119, 7
      %v1121 = vsub.s32 3, %v1120
      %v1122 = vrot.slane %v1105, %v1121
      %v1127 = vmul.f32 %v1103, %v1110
      %v1128 = vmul.f32 %v1102, %v1114
      %v1129 = vmul.f32 %v1101, %v1118
      %v1130 = vmul.f32 %v1100, %v1122
      %s1131 = scalar_lea.vmem %s3, 32
      %v1132 = vld [vmem:[%s1131] sm:$0xff]
      %v1134 = vsel %vm418, %v1132, 0
      %1136 = vmatprep.subr.mxu0 %v1128
      %1137 = vmatpush1.msra.mxu0 %v1127
      %1138 = vmatprep.subr.mxu0 0.0
      %1139 = vmatpush1.msra.mxu0 0.0
      %1140 = vmatprep.subr.mxu0 0.0
      %1141 = vmatpush1.msra.mxu0 0.0
      %1142 = vmatprep.subr.mxu0 0.0
      %1143 = vmatpush1.msra.mxu0 0.0
      %1144 = vmatprep.subr.mxu0 0.0
      %1145 = vmatpush1.msra.mxu0 0.0
      %1146 = vmatprep.subr.mxu0 0.0
      %1147 = vmatpush1.msra.mxu0 0.0
      %1148 = vmatprep.subr.mxu0 0.0
      %1149 = vmatpush1.msra.mxu0 0.0
      %1150 = vmatprep.subr.mxu0 0.0
      %1151 = vmatpush1.msra.mxu0 0.0
      %1152 = vmatprep.subr.mxu0 0.0
      %1153 = vmatpush1.msra.mxu0 0.0
      %1154 = vmatprep.subr.mxu0 0.0
      %1155 = vmatpush1.msra.mxu0 0.0
      %1156 = vmatprep.subr.mxu0 0.0
      %1157 = vmatpush1.msra.mxu0 0.0
      %1158 = vmatprep.subr.mxu0 0.0
      %1159 = vmatpush1.msra.mxu0 0.0
      %1160 = vmatprep.subr.mxu0 0.0
      %1161 = vmatpush1.msra.mxu0 0.0
      %1162 = vmatprep.subr.mxu0 0.0
      %1163 = vmatpush1.msra.mxu0 0.0
      %1164 = vmatprep.subr.mxu0 0.0
      %1165 = vmatpush1.msra.mxu0 0.0
      %1166 = vmatprep.subr.mxu0 0.0
      %1167 = vmatpush1.msra.mxu0 0.0
      %1168 = vmatprep.subr.mxu0 0.0
      %1169 = vmatpush1.msra.mxu0 0.0
      %1170 = vmatprep.subr.mxu0 0.0
      %1171 = vmatpush1.msra.mxu0 0.0
      %1172 = vmatprep.subr.mxu0 0.0
      %1173 = vmatpush1.msra.mxu0 0.0
      %1174 = vmatprep.subr.mxu0 0.0
      %1175 = vmatpush1.msra.mxu0 0.0
      %1176 = vmatprep.subr.mxu0 0.0
      %1177 = vmatpush1.msra.mxu0 0.0
      %1178 = vmatprep.subr.mxu0 0.0
      %1179 = vmatpush1.msra.mxu0 0.0
      %1180 = vmatprep.subr.mxu0 0.0
      %1181 = vmatpush1.msra.mxu0 0.0
      %1182 = vmatprep.subr.mxu0 0.0
      %1183 = vmatpush1.msra.mxu0 0.0
      %1184 = vmatprep.subr.mxu0 0.0
      %1185 = vmatpush1.msra.mxu0 0.0
      %1186 = vmatprep.subr.mxu0 0.0
      %1187 = vmatpush1.msra.mxu0 0.0
      %1188 = vmatprep.subr.mxu0 0.0
      %1189 = vmatpush1.msra.mxu0 0.0
      %1190 = vmatprep.subr.mxu0 0.0
      %1191 = vmatpush1.msra.mxu0 0.0
      %1192 = vmatprep.subr.mxu0 0.0
      %1193 = vmatpush1.msra.mxu0 0.0
      %1194 = vmatprep.subr.mxu0 0.0
      %1195 = vmatpush1.msra.mxu0 0.0
      %1196 = vmatprep.subr.mxu0 0.0
      %1197 = vmatpush1.msra.mxu0 0.0
      %1198 = vmatprep.subr.mxu0 0.0
      %1199 = vmatpush1.msra.mxu0 0.0
      %1200 = vmatprep.mubr.f32.mxu0 0.0
      %1201 = vmatmul.mubr.f32.gmra.mrb[0].mxu0 %v1134
      %v1202 = vpop.f32.mrb[0].mxu0
      %v1203 = vadd.f32 0.0, %v1202
      %v1204 = vpop.f32.mrb[0].mxu0
      %v1205 = vadd.f32 0.0, %v1204
      %1206 = vdwg.mxu0
      %1207 = vmatprep.subr.mxu0 %v1130
      %1208 = vmatpush1.msra.mxu0 %v1129
      %1209 = vmatprep.subr.mxu0 0.0
      %1210 = vmatpush1.msra.mxu0 0.0
      %1211 = vmatprep.subr.mxu0 0.0
      %1212 = vmatpush1.msra.mxu0 0.0
      %1213 = vmatprep.subr.mxu0 0.0
      %1214 = vmatpush1.msra.mxu0 0.0
      %1215 = vmatprep.subr.mxu0 0.0
      %1216 = vmatpush1.msra.mxu0 0.0
      %1217 = vmatprep.subr.mxu0 0.0
      %1218 = vmatpush1.msra.mxu0 0.0
      %1219 = vmatprep.subr.mxu0 0.0
      %1220 = vmatpush1.msra.mxu0 0.0
      %1221 = vmatprep.subr.mxu0 0.0
      %1222 = vmatpush1.msra.mxu0 0.0
      %1223 = vmatprep.subr.mxu0 0.0
      %1224 = vmatpush1.msra.mxu0 0.0
      %1225 = vmatprep.subr.mxu0 0.0
      %1226 = vmatpush1.msra.mxu0 0.0
      %1227 = vmatprep.subr.mxu0 0.0
      %1228 = vmatpush1.msra.mxu0 0.0
      %1229 = vmatprep.subr.mxu0 0.0
      %1230 = vmatpush1.msra.mxu0 0.0
      %1231 = vmatprep.subr.mxu0 0.0
      %1232 = vmatpush1.msra.mxu0 0.0
      %1233 = vmatprep.subr.mxu0 0.0
      %1234 = vmatpush1.msra.mxu0 0.0
      %1235 = vmatprep.subr.mxu0 0.0
      %1236 = vmatpush1.msra.mxu0 0.0
      %1237 = vmatprep.subr.mxu0 0.0
      %1238 = vmatpush1.msra.mxu0 0.0
      %1239 = vmatprep.subr.mxu0 0.0
      %1240 = vmatpush1.msra.mxu0 0.0
      %1241 = vmatprep.subr.mxu0 0.0
      %1242 = vmatpush1.msra.mxu0 0.0
      %1243 = vmatprep.subr.mxu0 0.0
      %1244 = vmatpush1.msra.mxu0 0.0
      %1245 = vmatprep.subr.mxu0 0.0
      %1246 = vmatpush1.msra.mxu0 0.0
      %1247 = vmatprep.subr.mxu0 0.0
      %1248 = vmatpush1.msra.mxu0 0.0
      %1249 = vmatprep.subr.mxu0 0.0
      %1250 = vmatpush1.msra.mxu0 0.0
      %1251 = vmatprep.subr.mxu0 0.0
      %1252 = vmatpush1.msra.mxu0 0.0
      %1253 = vmatprep.subr.mxu0 0.0
      %1254 = vmatpush1.msra.mxu0 0.0
      %1255 = vmatprep.subr.mxu0 0.0
      %1256 = vmatpush1.msra.mxu0 0.0
      %1257 = vmatprep.subr.mxu0 0.0
      %1258 = vmatpush1.msra.mxu0 0.0
      %1259 = vmatprep.subr.mxu0 0.0
      %1260 = vmatpush1.msra.mxu0 0.0
      %1261 = vmatprep.subr.mxu0 0.0
      %1262 = vmatpush1.msra.mxu0 0.0
      %1263 = vmatprep.subr.mxu0 0.0
      %1264 = vmatpush1.msra.mxu0 0.0
      %1265 = vmatprep.subr.mxu0 0.0
      %1266 = vmatpush1.msra.mxu0 0.0
      %1267 = vmatprep.subr.mxu0 0.0
      %1268 = vmatpush1.msra.mxu0 0.0
      %1269 = vmatprep.subr.mxu0 0.0
      %1270 = vmatpush1.msra.mxu0 0.0
      %1271 = vmatprep.mubr.f32.mxu0 0.0
      %1272 = vmatmul.mubr.f32.gmra.mrb[0].mxu0 %v1134
      %v1273 = vpop.f32.mrb[0].mxu0
      %v1274 = vadd.f32 0.0, %v1273
      %v1275 = vpop.f32.mrb[0].mxu0
      %v1276 = vadd.f32 0.0, %v1275
      %1277 = vdwg.mxu0
      %v1278 = vadd.f32 %v1087, %v1203
      %v1279 = vadd.f32 %v1088, %v1205
      %v1280 = vadd.f32 %v1089, %v1274
      %v1281 = vadd.f32 %v1090, %v1276
      %1282 = vrot.lane.b32.xlu0 %v330, 63
      %v1283 = vpop.permute.xlu0 %1282
      %1284 = vrot.lane.b32.xlu0 %v331, 63
      %v1285 = vpop.permute.xlu0 %1284
      %1286 = vrot.lane.b32.xlu0 %v332, 63
      %v1287 = vpop.permute.xlu0 %1286
      %1288 = vrot.lane.b32.xlu0 %v333, 63
      %v1289 = vpop.permute.xlu0 %1288
      %vm1290 = vcmp.lt.s32.totalorder %v343, 63
      %v1291 = vsel %vm1290, %v1287, %v1289
      %v1292 = vsel %vm1290, %v1285, %v1287
      %v1293 = vsel %vm1290, %v1283, %v1285
      %v1294 = vsel %vm1290, %v1289, %v1283
      %s1295 = scalar_lea.vmem %s7, 5
      %v1296 = vld [vmem:[%s1295] ss:$8 sm:$0xf]
      %v1298 = vlaneseq
      %v1299 = vshrl.u32 %v1298, 7
      %v1300 = vsub.s32 0, %v1299
      %v1301 = vrot.slane %v1296, %v1300
      %v1302 = vlaneseq
      %v1303 = vshrl.u32 %v1302, 7
      %v1304 = vsub.s32 1, %v1303
      %v1305 = vrot.slane %v1296, %v1304
      %v1306 = vlaneseq
      %v1307 = vshrl.u32 %v1306, 7
      %v1308 = vsub.s32 2, %v1307
      %v1309 = vrot.slane %v1296, %v1308
      %v1310 = vlaneseq
      %v1311 = vshrl.u32 %v1310, 7
      %v1312 = vsub.s32 3, %v1311
      %v1313 = vrot.slane %v1296, %v1312
      %v1318 = vmul.f32 %v1294, %v1301
      %v1319 = vmul.f32 %v1293, %v1305
      %v1320 = vmul.f32 %v1292, %v1309
      %v1321 = vmul.f32 %v1291, %v1313
      %s1322 = scalar_lea.vmem %s3, 40
      %v1323 = vld [vmem:[%s1322] sm:$0xff]
      %v1325 = vsel %vm418, %v1323, 0
      %1327 = vmatprep.subr.mxu0 %v1319
      %1328 = vmatpush1.msra.mxu0 %v1318
      %1329 = vmatprep.subr.mxu0 0.0
      %1330 = vmatpush1.msra.mxu0 0.0
      %1331 = vmatprep.subr.mxu0 0.0
      %1332 = vmatpush1.msra.mxu0 0.0
      %1333 = vmatprep.subr.mxu0 0.0
      %1334 = vmatpush1.msra.mxu0 0.0
      %1335 = vmatprep.subr.mxu0 0.0
      %1336 = vmatpush1.msra.mxu0 0.0
      %1337 = vmatprep.subr.mxu0 0.0
      %1338 = vmatpush1.msra.mxu0 0.0
      %1339 = vmatprep.subr.mxu0 0.0
      %1340 = vmatpush1.msra.mxu0 0.0
      %1341 = vmatprep.subr.mxu0 0.0
      %1342 = vmatpush1.msra.mxu0 0.0
      %1343 = vmatprep.subr.mxu0 0.0
      %1344 = vmatpush1.msra.mxu0 0.0
      %1345 = vmatprep.subr.mxu0 0.0
      %1346 = vmatpush1.msra.mxu0 0.0
      %1347 = vmatprep.subr.mxu0 0.0
      %1348 = vmatpush1.msra.mxu0 0.0
      %1349 = vmatprep.subr.mxu0 0.0
      %1350 = vmatpush1.msra.mxu0 0.0
      %1351 = vmatprep.subr.mxu0 0.0
      %1352 = vmatpush1.msra.mxu0 0.0
      %1353 = vmatprep.subr.mxu0 0.0
      %1354 = vmatpush1.msra.mxu0 0.0
      %1355 = vmatprep.subr.mxu0 0.0
      %1356 = vmatpush1.msra.mxu0 0.0
      %1357 = vmatprep.subr.mxu0 0.0
      %1358 = vmatpush1.msra.mxu0 0.0
      %1359 = vmatprep.subr.mxu0 0.0
      %1360 = vmatpush1.msra.mxu0 0.0
      %1361 = vmatprep.subr.mxu0 0.0
      %1362 = vmatpush1.msra.mxu0 0.0
      %1363 = vmatprep.subr.mxu0 0.0
      %1364 = vmatpush1.msra.mxu0 0.0
      %1365 = vmatprep.subr.mxu0 0.0
      %1366 = vmatpush1.msra.mxu0 0.0
      %1367 = vmatprep.subr.mxu0 0.0
      %1368 = vmatpush1.msra.mxu0 0.0
      %1369 = vmatprep.subr.mxu0 0.0
      %1370 = vmatpush1.msra.mxu0 0.0
      %1371 = vmatprep.subr.mxu0 0.0
      %1372 = vmatpush1.msra.mxu0 0.0
      %1373 = vmatprep.subr.mxu0 0.0
      %1374 = vmatpush1.msra.mxu0 0.0
      %1375 = vmatprep.subr.mxu0 0.0
      %1376 = vmatpush1.msra.mxu0 0.0
      %1377 = vmatprep.subr.mxu0 0.0
      %1378 = vmatpush1.msra.mxu0 0.0
      %1379 = vmatprep.subr.mxu0 0.0
      %1380 = vmatpush1.msra.mxu0 0.0
      %1381 = vmatprep.subr.mxu0 0.0
      %1382 = vmatpush1.msra.mxu0 0.0
      %1383 = vmatprep.subr.mxu0 0.0
      %1384 = vmatpush1.msra.mxu0 0.0
      %1385 = vmatprep.subr.mxu0 0.0
      %1386 = vmatpush1.msra.mxu0 0.0
      %1387 = vmatprep.subr.mxu0 0.0
      %1388 = vmatpush1.msra.mxu0 0.0
      %1389 = vmatprep.subr.mxu0 0.0
      %1390 = vmatpush1.msra.mxu0 0.0
      %1391 = vmatprep.mubr.f32.mxu0 0.0
      %1392 = vmatmul.mubr.f32.gmra.mrb[0].mxu0 %v1325
      %v1393 = vpop.f32.mrb[0].mxu0
      %v1394 = vadd.f32 0.0, %v1393
      %v1395 = vpop.f32.mrb[0].mxu0
      %v1396 = vadd.f32 0.0, %v1395
      %1397 = vdwg.mxu0
      %1398 = vmatprep.subr.mxu0 %v1321
      %1399 = vmatpush1.msra.mxu0 %v1320
      %1400 = vmatprep.subr.mxu0 0.0
      %1401 = vmatpush1.msra.mxu0 0.0
      %1402 = vmatprep.subr.mxu0 0.0
      %1403 = vmatpush1.msra.mxu0 0.0
      %1404 = vmatprep.subr.mxu0 0.0
      %1405 = vmatpush1.msra.mxu0 0.0
      %1406 = vmatprep.subr.mxu0 0.0
      %1407 = vmatpush1.msra.mxu0 0.0
      %1408 = vmatprep.subr.mxu0 0.0
      %1409 = vmatpush1.msra.mxu0 0.0
      %1410 = vmatprep.subr.mxu0 0.0
      %1411 = vmatpush1.msra.mxu0 0.0
      %1412 = vmatprep.subr.mxu0 0.0
      %1413 = vmatpush1.msra.mxu0 0.0
      %1414 = vmatprep.subr.mxu0 0.0
      %1415 = vmatpush1.msra.mxu0 0.0
      %1416 = vmatprep.subr.mxu0 0.0
      %1417 = vmatpush1.msra.mxu0 0.0
      %1418 = vmatprep.subr.mxu0 0.0
      %1419 = vmatpush1.msra.mxu0 0.0
      %1420 = vmatprep.subr.mxu0 0.0
      %1421 = vmatpush1.msra.mxu0 0.0
      %1422 = vmatprep.subr.mxu0 0.0
      %1423 = vmatpush1.msra.mxu0 0.0
      %1424 = vmatprep.subr.mxu0 0.0
      %1425 = vmatpush1.msra.mxu0 0.0
      %1426 = vmatprep.subr.mxu0 0.0
      %1427 = vmatpush1.msra.mxu0 0.0
      %1428 = vmatprep.subr.mxu0 0.0
      %1429 = vmatpush1.msra.mxu0 0.0
      %1430 = vmatprep.subr.mxu0 0.0
      %1431 = vmatpush1.msra.mxu0 0.0
      %1432 = vmatprep.subr.mxu0 0.0
      %1433 = vmatpush1.msra.mxu0 0.0
      %1434 = vmatprep.subr.mxu0 0.0
      %1435 = vmatpush1.msra.mxu0 0.0
      %1436 = vmatprep.subr.mxu0 0.0
      %1437 = vmatpush1.msra.mxu0 0.0
      %1438 = vmatprep.subr.mxu0 0.0
      %1439 = vmatpush1.msra.mxu0 0.0
      %1440 = vmatprep.subr.mxu0 0.0
      %1441 = vmatpush1.msra.mxu0 0.0
      %1442 = vmatprep.subr.mxu0 0.0
      %1443 = vmatpush1.msra.mxu0 0.0
      %1444 = vmatprep.subr.mxu0 0.0
      %1445 = vmatpush1.msra.mxu0 0.0
      %1446 = vmatprep.subr.mxu0 0.0
      %1447 = vmatpush1.msra.mxu0 0.0
      %1448 = vmatprep.subr.mxu0 0.0
      %1449 = vmatpush1.msra.mxu0 0.0
      %1450 = vmatprep.subr.mxu0 0.0
      %1451 = vmatpush1.msra.mxu0 0.0
      %1452 = vmatprep.subr.mxu0 0.0
      %1453 = vmatpush1.msra.mxu0 0.0
      %1454 = vmatprep.subr.mxu0 0.0
      %1455 = vmatpush1.msra.mxu0 0.0
      %1456 = vmatprep.subr.mxu0 0.0
      %1457 = vmatpush1.msra.mxu0 0.0
      %1458 = vmatprep.subr.mxu0 0.0
      %1459 = vmatpush1.msra.mxu0 0.0
      %1460 = vmatprep.subr.mxu0 0.0
      %1461 = vmatpush1.msra.mxu0 0.0
      %1462 = vmatprep.mubr.f32.mxu0 0.0
      %1463 = vmatmul.mubr.f32.gmra.mrb[0].mxu0 %v1325
      %v1464 = vpop.f32.mrb[0].mxu0
      %v1465 = vadd.f32 0.0, %v1464
      %v1466 = vpop.f32.mrb[0].mxu0
      %v1467 = vadd.f32 0.0, %v1466
      %1468 = vdwg.mxu0
      %v1469 = vadd.f32 %v1278, %v1394
      %v1470 = vadd.f32 %v1279, %v1396
      %v1471 = vadd.f32 %v1280, %v1465
      %v1472 = vadd.f32 %v1281, %v1467
      %1473 = vrot.lane.b32.xlu0 %v330, 57
      %v1474 = vpop.permute.xlu0 %1473
      %1475 = vrot.lane.b32.xlu0 %v331, 57
      %v1476 = vpop.permute.xlu0 %1475
      %1477 = vrot.lane.b32.xlu0 %v332, 57
      %v1478 = vpop.permute.xlu0 %1477
      %1479 = vrot.lane.b32.xlu0 %v333, 57
      %v1480 = vpop.permute.xlu0 %1479
      %vm1481 = vcmp.lt.s32.totalorder %v343, 57
      %v1482 = vsel %vm1481, %v1478, %v1480
      %v1483 = vsel %vm1481, %v1476, %v1478
      %v1484 = vsel %vm1481, %v1474, %v1476
      %v1485 = vsel %vm1481, %v1480, %v1474
      %s1486 = scalar_lea.vmem %s7, 6
      %v1487 = vld [vmem:[%s1486] ss:$8 sm:$0xf]
      %v1489 = vlaneseq
      %v1490 = vshrl.u32 %v1489, 7
      %v1491 = vsub.s32 0, %v1490
      %v1492 = vrot.slane %v1487, %v1491
      %v1493 = vlaneseq
      %v1494 = vshrl.u32 %v1493, 7
      %v1495 = vsub.s32 1, %v1494
      %v1496 = vrot.slane %v1487, %v1495
      %v1497 = vlaneseq
      %v1498 = vshrl.u32 %v1497, 7
      %v1499 = vsub.s32 2, %v1498
      %v1500 = vrot.slane %v1487, %v1499
      %v1501 = vlaneseq
      %v1502 = vshrl.u32 %v1501, 7
      %v1503 = vsub.s32 3, %v1502
      %v1504 = vrot.slane %v1487, %v1503
      %v1509 = vmul.f32 %v1485, %v1492
      %v1510 = vmul.f32 %v1484, %v1496
      %v1511 = vmul.f32 %v1483, %v1500
      %v1512 = vmul.f32 %v1482, %v1504
      %s1513 = scalar_lea.vmem %s3, 48
      %v1514 = vld [vmem:[%s1513] sm:$0xff]
      %v1516 = vsel %vm418, %v1514, 0
      %1518 = vmatprep.subr.mxu0 %v1510
      %1519 = vmatpush1.msra.mxu0 %v1509
      %1520 = vmatprep.subr.mxu0 0.0
      %1521 = vmatpush1.msra.mxu0 0.0
      %1522 = vmatprep.subr.mxu0 0.0
      %1523 = vmatpush1.msra.mxu0 0.0
      %1524 = vmatprep.subr.mxu0 0.0
      %1525 = vmatpush1.msra.mxu0 0.0
      %1526 = vmatprep.subr.mxu0 0.0
      %1527 = vmatpush1.msra.mxu0 0.0
      %1528 = vmatprep.subr.mxu0 0.0
      %1529 = vmatpush1.msra.mxu0 0.0
      %1530 = vmatprep.subr.mxu0 0.0
      %1531 = vmatpush1.msra.mxu0 0.0
      %1532 = vmatprep.subr.mxu0 0.0
      %1533 = vmatpush1.msra.mxu0 0.0
      %1534 = vmatprep.subr.mxu0 0.0
      %1535 = vmatpush1.msra.mxu0 0.0
      %1536 = vmatprep.subr.mxu0 0.0
      %1537 = vmatpush1.msra.mxu0 0.0
      %1538 = vmatprep.subr.mxu0 0.0
      %1539 = vmatpush1.msra.mxu0 0.0
      %1540 = vmatprep.subr.mxu0 0.0
      %1541 = vmatpush1.msra.mxu0 0.0
      %1542 = vmatprep.subr.mxu0 0.0
      %1543 = vmatpush1.msra.mxu0 0.0
      %1544 = vmatprep.subr.mxu0 0.0
      %1545 = vmatpush1.msra.mxu0 0.0
      %1546 = vmatprep.subr.mxu0 0.0
      %1547 = vmatpush1.msra.mxu0 0.0
      %1548 = vmatprep.subr.mxu0 0.0
      %1549 = vmatpush1.msra.mxu0 0.0
      %1550 = vmatprep.subr.mxu0 0.0
      %1551 = vmatpush1.msra.mxu0 0.0
      %1552 = vmatprep.subr.mxu0 0.0
      %1553 = vmatpush1.msra.mxu0 0.0
      %1554 = vmatprep.subr.mxu0 0.0
      %1555 = vmatpush1.msra.mxu0 0.0
      %1556 = vmatprep.subr.mxu0 0.0
      %1557 = vmatpush1.msra.mxu0 0.0
      %1558 = vmatprep.subr.mxu0 0.0
      %1559 = vmatpush1.msra.mxu0 0.0
      %1560 = vmatprep.subr.mxu0 0.0
      %1561 = vmatpush1.msra.mxu0 0.0
      %1562 = vmatprep.subr.mxu0 0.0
      %1563 = vmatpush1.msra.mxu0 0.0
      %1564 = vmatprep.subr.mxu0 0.0
      %1565 = vmatpush1.msra.mxu0 0.0
      %1566 = vmatprep.subr.mxu0 0.0
      %1567 = vmatpush1.msra.mxu0 0.0
      %1568 = vmatprep.subr.mxu0 0.0
      %1569 = vmatpush1.msra.mxu0 0.0
      %1570 = vmatprep.subr.mxu0 0.0
      %1571 = vmatpush1.msra.mxu0 0.0
      %1572 = vmatprep.subr.mxu0 0.0
      %1573 = vmatpush1.msra.mxu0 0.0
      %1574 = vmatprep.subr.mxu0 0.0
      %1575 = vmatpush1.msra.mxu0 0.0
      %1576 = vmatprep.subr.mxu0 0.0
      %1577 = vmatpush1.msra.mxu0 0.0
      %1578 = vmatprep.subr.mxu0 0.0
      %1579 = vmatpush1.msra.mxu0 0.0
      %1580 = vmatprep.subr.mxu0 0.0
      %1581 = vmatpush1.msra.mxu0 0.0
      %1582 = vmatprep.mubr.f32.mxu0 0.0
      %1583 = vmatmul.mubr.f32.gmra.mrb[0].mxu0 %v1516
      %v1584 = vpop.f32.mrb[0].mxu0
      %v1585 = vadd.f32 0.0, %v1584
      %v1586 = vpop.f32.mrb[0].mxu0
      %v1587 = vadd.f32 0.0, %v1586
      %1588 = vdwg.mxu0
      %1589 = vmatprep.subr.mxu0 %v1512
      %1590 = vmatpush1.msra.mxu0 %v1511
      %1591 = vmatprep.subr.mxu0 0.0
      %1592 = vmatpush1.msra.mxu0 0.0
      %1593 = vmatprep.subr.mxu0 0.0
      %1594 = vmatpush1.msra.mxu0 0.0
      %1595 = vmatprep.subr.mxu0 0.0
      %1596 = vmatpush1.msra.mxu0 0.0
      %1597 = vmatprep.subr.mxu0 0.0
      %1598 = vmatpush1.msra.mxu0 0.0
      %1599 = vmatprep.subr.mxu0 0.0
      %1600 = vmatpush1.msra.mxu0 0.0
      %1601 = vmatprep.subr.mxu0 0.0
      %1602 = vmatpush1.msra.mxu0 0.0
      %1603 = vmatprep.subr.mxu0 0.0
      %1604 = vmatpush1.msra.mxu0 0.0
      %1605 = vmatprep.subr.mxu0 0.0
      %1606 = vmatpush1.msra.mxu0 0.0
      %1607 = vmatprep.subr.mxu0 0.0
      %1608 = vmatpush1.msra.mxu0 0.0
      %1609 = vmatprep.subr.mxu0 0.0
      %1610 = vmatpush1.msra.mxu0 0.0
      %1611 = vmatprep.subr.mxu0 0.0
      %1612 = vmatpush1.msra.mxu0 0.0
      %1613 = vmatprep.subr.mxu0 0.0
      %1614 = vmatpush1.msra.mxu0 0.0
      %1615 = vmatprep.subr.mxu0 0.0
      %1616 = vmatpush1.msra.mxu0 0.0
      %1617 = vmatprep.subr.mxu0 0.0
      %1618 = vmatpush1.msra.mxu0 0.0
      %1619 = vmatprep.subr.mxu0 0.0
      %1620 = vmatpush1.msra.mxu0 0.0
      %1621 = vmatprep.subr.mxu0 0.0
      %1622 = vmatpush1.msra.mxu0 0.0
      %1623 = vmatprep.subr.mxu0 0.0
      %1624 = vmatpush1.msra.mxu0 0.0
      %1625 = vmatprep.subr.mxu0 0.0
      %1626 = vmatpush1.msra.mxu0 0.0
      %1627 = vmatprep.subr.mxu0 0.0
      %1628 = vmatpush1.msra.mxu0 0.0
      %1629 = vmatprep.subr.mxu0 0.0
      %1630 = vmatpush1.msra.mxu0 0.0
      %1631 = vmatprep.subr.mxu0 0.0
      %1632 = vmatpush1.msra.mxu0 0.0
      %1633 = vmatprep.subr.mxu0 0.0
      %1634 = vmatpush1.msra.mxu0 0.0
      %1635 = vmatprep.subr.mxu0 0.0
      %1636 = vmatpush1.msra.mxu0 0.0
      %1637 = vmatprep.subr.mxu0 0.0
      %1638 = vmatpush1.msra.mxu0 0.0
      %1639 = vmatprep.subr.mxu0 0.0
      %1640 = vmatpush1.msra.mxu0 0.0
      %1641 = vmatprep.subr.mxu0 0.0
      %1642 = vmatpush1.msra.mxu0 0.0
      %1643 = vmatprep.subr.mxu0 0.0
      %1644 = vmatpush1.msra.mxu0 0.0
      %1645 = vmatprep.subr.mxu0 0.0
      %1646 = vmatpush1.msra.mxu0 0.0
      %1647 = vmatprep.subr.mxu0 0.0
      %1648 = vmatpush1.msra.mxu0 0.0
      %1649 = vmatprep.subr.mxu0 0.0
      %1650 = vmatpush1.msra.mxu0 0.0
      %1651 = vmatprep.subr.mxu0 0.0
      %1652 = vmatpush1.msra.mxu0 0.0
      %1653 = vmatprep.mubr.f32.mxu0 0.0
      %1654 = vmatmul.mubr.f32.gmra.mrb[0].mxu0 %v1516
      %v1655 = vpop.f32.mrb[0].mxu0
      %v1656 = vadd.f32 0.0, %v1655
      %v1657 = vpop.f32.mrb[0].mxu0
      %v1658 = vadd.f32 0.0, %v1657
      %1659 = vdwg.mxu0
      %v1660 = vadd.f32 %v1469, %v1585
      %v1661 = vadd.f32 %v1470, %v1587
      %v1662 = vadd.f32 %v1471, %v1656
      %v1663 = vadd.f32 %v1472, %v1658
      %1664 = vrot.lane.b32.xlu0 %v330, 56
      %v1665 = vpop.permute.xlu0 %1664
      %1666 = vrot.lane.b32.xlu0 %v331, 56
      %v1667 = vpop.permute.xlu0 %1666
      %1668 = vrot.lane.b32.xlu0 %v332, 56
      %v1669 = vpop.permute.xlu0 %1668
      %1670 = vrot.lane.b32.xlu0 %v333, 56
      %v1671 = vpop.permute.xlu0 %1670
      %vm1672 = vcmp.lt.s32.totalorder %v343, 56
      %v1673 = vsel %vm1672, %v1669, %v1671
      %v1674 = vsel %vm1672, %v1667, %v1669
      %v1675 = vsel %vm1672, %v1665, %v1667
      %v1676 = vsel %vm1672, %v1671, %v1665
      %s1677 = scalar_lea.vmem %s7, 7
      %v1678 = vld [vmem:[%s1677] ss:$8 sm:$0xf]
      %v1680 = vlaneseq
      %v1681 = vshrl.u32 %v1680, 7
      %v1682 = vsub.s32 0, %v1681
      %v1683 = vrot.slane %v1678, %v1682
      %v1684 = vlaneseq
      %v1685 = vshrl.u32 %v1684, 7
      %v1686 = vsub.s32 1, %v1685
      %v1687 = vrot.slane %v1678, %v1686
      %v1688 = vlaneseq
      %v1689 = vshrl.u32 %v1688, 7
      %v1690 = vsub.s32 2, %v1689
      %v1691 = vrot.slane %v1678, %v1690
      %v1692 = vlaneseq
      %v1693 = vshrl.u32 %v1692, 7
      %v1694 = vsub.s32 3, %v1693
      %v1695 = vrot.slane %v1678, %v1694
      %v1700 = vmul.f32 %v1676, %v1683
      %v1701 = vmul.f32 %v1675, %v1687
      %v1702 = vmul.f32 %v1674, %v1691
      %v1703 = vmul.f32 %v1673, %v1695
      %s1704 = scalar_lea.vmem %s3, 56
      %v1705 = vld [vmem:[%s1704] sm:$0xff]
      %v1707 = vsel %vm418, %v1705, 0
      %1709 = vmatprep.subr.mxu0 %v1701
      %1710 = vmatpush1.msra.mxu0 %v1700
      %1711 = vmatprep.subr.mxu0 0.0
      %1712 = vmatpush1.msra.mxu0 0.0
      %1713 = vmatprep.subr.mxu0 0.0
      %1714 = vmatpush1.msra.mxu0 0.0
      %1715 = vmatprep.subr.mxu0 0.0
      %1716 = vmatpush1.msra.mxu0 0.0
      %1717 = vmatprep.subr.mxu0 0.0
      %1718 = vmatpush1.msra.mxu0 0.0
      %1719 = vmatprep.subr.mxu0 0.0
      %1720 = vmatpush1.msra.mxu0 0.0
      %1721 = vmatprep.subr.mxu0 0.0
      %1722 = vmatpush1.msra.mxu0 0.0
      %1723 = vmatprep.subr.mxu0 0.0
      %1724 = vmatpush1.msra.mxu0 0.0
      %1725 = vmatprep.subr.mxu0 0.0
      %1726 = vmatpush1.msra.mxu0 0.0
      %1727 = vmatprep.subr.mxu0 0.0
      %1728 = vmatpush1.msra.mxu0 0.0
      %1729 = vmatprep.subr.mxu0 0.0
      %1730 = vmatpush1.msra.mxu0 0.0
      %1731 = vmatprep.subr.mxu0 0.0
      %1732 = vmatpush1.msra.mxu0 0.0
      %1733 = vmatprep.subr.mxu0 0.0
      %1734 = vmatpush1.msra.mxu0 0.0
      %1735 = vmatprep.subr.mxu0 0.0
      %1736 = vmatpush1.msra.mxu0 0.0
      %1737 = vmatprep.subr.mxu0 0.0
      %1738 = vmatpush1.msra.mxu0 0.0
      %1739 = vmatprep.subr.mxu0 0.0
      %1740 = vmatpush1.msra.mxu0 0.0
      %1741 = vmatprep.subr.mxu0 0.0
      %1742 = vmatpush1.msra.mxu0 0.0
      %1743 = vmatprep.subr.mxu0 0.0
      %1744 = vmatpush1.msra.mxu0 0.0
      %1745 = vmatprep.subr.mxu0 0.0
      %1746 = vmatpush1.msra.mxu0 0.0
      %1747 = vmatprep.subr.mxu0 0.0
      %1748 = vmatpush1.msra.mxu0 0.0
      %1749 = vmatprep.subr.mxu0 0.0
      %1750 = vmatpush1.msra.mxu0 0.0
      %1751 = vmatprep.subr.mxu0 0.0
      %1752 = vmatpush1.msra.mxu0 0.0
      %1753 = vmatprep.subr.mxu0 0.0
      %1754 = vmatpush1.msra.mxu0 0.0
      %1755 = vmatprep.subr.mxu0 0.0
      %1756 = vmatpush1.msra.mxu0 0.0
      %1757 = vmatprep.subr.mxu0 0.0
      %1758 = vmatpush1.msra.mxu0 0.0
      %1759 = vmatprep.subr.mxu0 0.0
      %1760 = vmatpush1.msra.mxu0 0.0
      %1761 = vmatprep.subr.mxu0 0.0
      %1762 = vmatpush1.msra.mxu0 0.0
      %1763 = vmatprep.subr.mxu0 0.0
      %1764 = vmatpush1.msra.mxu0 0.0
      %1765 = vmatprep.subr.mxu0 0.0
      %1766 = vmatpush1.msra.mxu0 0.0
      %1767 = vmatprep.subr.mxu0 0.0
      %1768 = vmatpush1.msra.mxu0 0.0
      %1769 = vmatprep.subr.mxu0 0.0
      %1770 = vmatpush1.msra.mxu0 0.0
      %1771 = vmatprep.subr.mxu0 0.0
      %1772 = vmatpush1.msra.mxu0 0.0
      %1773 = vmatprep.mubr.f32.mxu0 0.0
      %1774 = vmatmul.mubr.f32.gmra.mrb[0].mxu0 %v1707
      %v1775 = vpop.f32.mrb[0].mxu0
      %v1776 = vadd.f32 0.0, %v1775
      %v1777 = vpop.f32.mrb[0].mxu0
      %v1778 = vadd.f32 0.0, %v1777
      %1779 = vdwg.mxu0
      %1780 = vmatprep.subr.mxu0 %v1703
      %1781 = vmatpush1.msra.mxu0 %v1702
      %1782 = vmatprep.subr.mxu0 0.0
      %1783 = vmatpush1.msra.mxu0 0.0
      %1784 = vmatprep.subr.mxu0 0.0
      %1785 = vmatpush1.msra.mxu0 0.0
      %1786 = vmatprep.subr.mxu0 0.0
      %1787 = vmatpush1.msra.mxu0 0.0
      %1788 = vmatprep.subr.mxu0 0.0
      %1789 = vmatpush1.msra.mxu0 0.0
      %1790 = vmatprep.subr.mxu0 0.0
      %1791 = vmatpush1.msra.mxu0 0.0
      %1792 = vmatprep.subr.mxu0 0.0
      %1793 = vmatpush1.msra.mxu0 0.0
      %1794 = vmatprep.subr.mxu0 0.0
      %1795 = vmatpush1.msra.mxu0 0.0
      %1796 = vmatprep.subr.mxu0 0.0
      %1797 = vmatpush1.msra.mxu0 0.0
      %1798 = vmatprep.subr.mxu0 0.0
      %1799 = vmatpush1.msra.mxu0 0.0
      %1800 = vmatprep.subr.mxu0 0.0
      %1801 = vmatpush1.msra.mxu0 0.0
      %1802 = vmatprep.subr.mxu0 0.0
      %1803 = vmatpush1.msra.mxu0 0.0
      %1804 = vmatprep.subr.mxu0 0.0
      %1805 = vmatpush1.msra.mxu0 0.0
      %1806 = vmatprep.subr.mxu0 0.0
      %1807 = vmatpush1.msra.mxu0 0.0
      %1808 = vmatprep.subr.mxu0 0.0
      %1809 = vmatpush1.msra.mxu0 0.0
      %1810 = vmatprep.subr.mxu0 0.0
      %1811 = vmatpush1.msra.mxu0 0.0
      %1812 = vmatprep.subr.mxu0 0.0
      %1813 = vmatpush1.msra.mxu0 0.0
      %1814 = vmatprep.subr.mxu0 0.0
      %1815 = vmatpush1.msra.mxu0 0.0
      %1816 = vmatprep.subr.mxu0 0.0
      %1817 = vmatpush1.msra.mxu0 0.0
      %1818 = vmatprep.subr.mxu0 0.0
      %1819 = vmatpush1.msra.mxu0 0.0
      %1820 = vmatprep.subr.mxu0 0.0
      %1821 = vmatpush1.msra.mxu0 0.0
      %1822 = vmatprep.subr.mxu0 0.0
      %1823 = vmatpush1.msra.mxu0 0.0
      %1824 = vmatprep.subr.mxu0 0.0
      %1825 = vmatpush1.msra.mxu0 0.0
      %1826 = vmatprep.subr.mxu0 0.0
      %1827 = vmatpush1.msra.mxu0 0.0
      %1828 = vmatprep.subr.mxu0 0.0
      %1829 = vmatpush1.msra.mxu0 0.0
      %1830 = vmatprep.subr.mxu0 0.0
      %1831 = vmatpush1.msra.mxu0 0.0
      %1832 = vmatprep.subr.mxu0 0.0
      %1833 = vmatpush1.msra.mxu0 0.0
      %1834 = vmatprep.subr.mxu0 0.0
      %1835 = vmatpush1.msra.mxu0 0.0
      %1836 = vmatprep.subr.mxu0 0.0
      %1837 = vmatpush1.msra.mxu0 0.0
      %1838 = vmatprep.subr.mxu0 0.0
      %1839 = vmatpush1.msra.mxu0 0.0
      %1840 = vmatprep.subr.mxu0 0.0
      %1841 = vmatpush1.msra.mxu0 0.0
      %1842 = vmatprep.subr.mxu0 0.0
      %1843 = vmatpush1.msra.mxu0 0.0
      %1844 = vmatprep.mubr.f32.mxu0 0.0
      %1845 = vmatmul.mubr.f32.gmra.mrb[0].mxu0 %v1707
      %v1846 = vpop.f32.mrb[0].mxu0
      %v1847 = vadd.f32 0.0, %v1846
      %v1848 = vpop.f32.mrb[0].mxu0
      %v1849 = vadd.f32 0.0, %v1848
      %1850 = vdwg.mxu0
      %v1851 = vadd.f32 %v1660, %v1776
      %v1852 = vadd.f32 %v1661, %v1778
      %v1853 = vadd.f32 %v1662, %v1847
      %v1854 = vadd.f32 %v1663, %v1849
      %1855 = vrot.lane.b32.xlu0 %v330, 55
      %v1856 = vpop.permute.xlu0 %1855
      %1857 = vrot.lane.b32.xlu0 %v331, 55
      %v1858 = vpop.permute.xlu0 %1857
      %1859 = vrot.lane.b32.xlu0 %v332, 55
      %v1860 = vpop.permute.xlu0 %1859
      %1861 = vrot.lane.b32.xlu0 %v333, 55
      %v1862 = vpop.permute.xlu0 %1861
      %vm1863 = vcmp.lt.s32.totalorder %v343, 55
      %v1864 = vsel %vm1863, %v1860, %v1862
      %v1865 = vsel %vm1863, %v1858, %v1860
      %v1866 = vsel %vm1863, %v1856, %v1858
      %v1867 = vsel %vm1863, %v1862, %v1856
      %s1868 = scalar_lea.vmem %s7, 32
      %v1869 = vld [vmem:[%s1868] ss:$8 sm:$0xf]
      %v1871 = vlaneseq
      %v1872 = vshrl.u32 %v1871, 7
      %v1873 = vsub.s32 0, %v1872
      %v1874 = vrot.slane %v1869, %v1873
      %v1875 = vlaneseq
      %v1876 = vshrl.u32 %v1875, 7
      %v1877 = vsub.s32 1, %v1876
      %v1878 = vrot.slane %v1869, %v1877
      %v1879 = vlaneseq
      %v1880 = vshrl.u32 %v1879, 7
      %v1881 = vsub.s32 2, %v1880
      %v1882 = vrot.slane %v1869, %v1881
      %v1883 = vlaneseq
      %v1884 = vshrl.u32 %v1883, 7
      %v1885 = vsub.s32 3, %v1884
      %v1886 = vrot.slane %v1869, %v1885
      %v1891 = vmul.f32 %v1867, %v1874
      %v1892 = vmul.f32 %v1866, %v1878
      %v1893 = vmul.f32 %v1865, %v1882
      %v1894 = vmul.f32 %v1864, %v1886
      %s1895 = scalar_lea.vmem %s3, 64
      %v1896 = vld [vmem:[%s1895] sm:$0xff]
      %v1898 = vsel %vm418, %v1896, 0
      %1900 = vmatprep.subr.mxu0 %v1892
      %1901 = vmatpush1.msra.mxu0 %v1891
      %1902 = vmatprep.subr.mxu0 0.0
      %1903 = vmatpush1.msra.mxu0 0.0
      %1904 = vmatprep.subr.mxu0 0.0
      %1905 = vmatpush1.msra.mxu0 0.0
      %1906 = vmatprep.subr.mxu0 0.0
      %1907 = vmatpush1.msra.mxu0 0.0
      %1908 = vmatprep.subr.mxu0 0.0
      %1909 = vmatpush1.msra.mxu0 0.0
      %1910 = vmatprep.subr.mxu0 0.0
      %1911 = vmatpush1.msra.mxu0 0.0
      %1912 = vmatprep.subr.mxu0 0.0
      %1913 = vmatpush1.msra.mxu0 0.0
      %1914 = vmatprep.subr.mxu0 0.0
      %1915 = vmatpush1.msra.mxu0 0.0
      %1916 = vmatprep.subr.mxu0 0.0
      %1917 = vmatpush1.msra.mxu0 0.0
      %1918 = vmatprep.subr.mxu0 0.0
      %1919 = vmatpush1.msra.mxu0 0.0
      %1920 = vmatprep.subr.mxu0 0.0
      %1921 = vmatpush1.msra.mxu0 0.0
      %1922 = vmatprep.subr.mxu0 0.0
      %1923 = vmatpush1.msra.mxu0 0.0
      %1924 = vmatprep.subr.mxu0 0.0
      %1925 = vmatpush1.msra.mxu0 0.0
      %1926 = vmatprep.subr.mxu0 0.0
      %1927 = vmatpush1.msra.mxu0 0.0
      %1928 = vmatprep.subr.mxu0 0.0
      %1929 = vmatpush1.msra.mxu0 0.0
      %1930 = vmatprep.subr.mxu0 0.0
      %1931 = vmatpush1.msra.mxu0 0.0
      %1932 = vmatprep.subr.mxu0 0.0
      %1933 = vmatpush1.msra.mxu0 0.0
      %1934 = vmatprep.subr.mxu0 0.0
      %1935 = vmatpush1.msra.mxu0 0.0
      %1936 = vmatprep.subr.mxu0 0.0
      %1937 = vmatpush1.msra.mxu0 0.0
      %1938 = vmatprep.subr.mxu0 0.0
      %1939 = vmatpush1.msra.mxu0 0.0
      %1940 = vmatprep.subr.mxu0 0.0
      %1941 = vmatpush1.msra.mxu0 0.0
      %1942 = vmatprep.subr.mxu0 0.0
      %1943 = vmatpush1.msra.mxu0 0.0
      %1944 = vmatprep.subr.mxu0 0.0
      %1945 = vmatpush1.msra.mxu0 0.0
      %1946 = vmatprep.subr.mxu0 0.0
      %1947 = vmatpush1.msra.mxu0 0.0
      %1948 = vmatprep.subr.mxu0 0.0
      %1949 = vmatpush1.msra.mxu0 0.0
      %1950 = vmatprep.subr.mxu0 0.0
      %1951 = vmatpush1.msra.mxu0 0.0
      %1952 = vmatprep.subr.mxu0 0.0
      %1953 = vmatpush1.msra.mxu0 0.0
      %1954 = vmatprep.subr.mxu0 0.0
      %1955 = vmatpush1.msra.mxu0 0.0
      %1956 = vmatprep.subr.mxu0 0.0
      %1957 = vmatpush1.msra.mxu0 0.0
      %1958 = vmatprep.subr.mxu0 0.0
      %1959 = vmatpush1.msra.mxu0 0.0
      %1960 = vmatprep.subr.mxu0 0.0
      %1961 = vmatpush1.msra.mxu0 0.0
      %1962 = vmatprep.subr.mxu0 0.0
      %1963 = vmatpush1.msra.mxu0 0.0
      %1964 = vmatprep.mubr.f32.mxu0 0.0
      %1965 = vmatmul.mubr.f32.gmra.mrb[0].mxu0 %v1898
      %v1966 = vpop.f32.mrb[0].mxu0
      %v1967 = vadd.f32 0.0, %v1966
      %v1968 = vpop.f32.mrb[0].mxu0
      %v1969 = vadd.f32 0.0, %v1968
      %1970 = vdwg.mxu0
      %1971 = vmatprep.subr.mxu0 %v1894
      %1972 = vmatpush1.msra.mxu0 %v1893
      %1973 = vmatprep.subr.mxu0 0.0
      %1974 = vmatpush1.msra.mxu0 0.0
      %1975 = vmatprep.subr.mxu0 0.0
      %1976 = vmatpush1.msra.mxu0 0.0
      %1977 = vmatprep.subr.mxu0 0.0
      %1978 = vmatpush1.msra.mxu0 0.0
      %1979 = vmatprep.subr.mxu0 0.0
      %1980 = vmatpush1.msra.mxu0 0.0
      %1981 = vmatprep.subr.mxu0 0.0
      %1982 = vmatpush1.msra.mxu0 0.0
      %1983 = vmatprep.subr.mxu0 0.0
      %1984 = vmatpush1.msra.mxu0 0.0
      %1985 = vmatprep.subr.mxu0 0.0
      %1986 = vmatpush1.msra.mxu0 0.0
      %1987 = vmatprep.subr.mxu0 0.0
      %1988 = vmatpush1.msra.mxu0 0.0
      %1989 = vmatprep.subr.mxu0 0.0
      %1990 = vmatpush1.msra.mxu0 0.0
      %1991 = vmatprep.subr.mxu0 0.0
      %1992 = vmatpush1.msra.mxu0 0.0
      %1993 = vmatprep.subr.mxu0 0.0
      %1994 = vmatpush1.msra.mxu0 0.0
      %1995 = vmatprep.subr.mxu0 0.0
      %1996 = vmatpush1.msra.mxu0 0.0
      %1997 = vmatprep.subr.mxu0 0.0
      %1998 = vmatpush1.msra.mxu0 0.0
      %1999 = vmatprep.subr.mxu0 0.0
      %2000 = vmatpush1.msra.mxu0 0.0
      %2001 = vmatprep.subr.mxu0 0.0
      %2002 = vmatpush1.msra.mxu0 0.0
      %2003 = vmatprep.subr.mxu0 0.0
      %2004 = vmatpush1.msra.mxu0 0.0
      %2005 = vmatprep.subr.mxu0 0.0
      %2006 = vmatpush1.msra.mxu0 0.0
      %2007 = vmatprep.subr.mxu0 0.0
      %2008 = vmatpush1.msra.mxu0 0.0
      %2009 = vmatprep.subr.mxu0 0.0
      %2010 = vmatpush1.msra.mxu0 0.0
      %2011 = vmatprep.subr.mxu0 0.0
      %2012 = vmatpush1.msra.mxu0 0.0
      %2013 = vmatprep.subr.mxu0 0.0
      %2014 = vmatpush1.msra.mxu0 0.0
      %2015 = vmatprep.subr.mxu0 0.0
      %2016 = vmatpush1.msra.mxu0 0.0
      %2017 = vmatprep.subr.mxu0 0.0
      %2018 = vmatpush1.msra.mxu0 0.0
      %2019 = vmatprep.subr.mxu0 0.0
      %2020 = vmatpush1.msra.mxu0 0.0
      %2021 = vmatprep.subr.mxu0 0.0
      %2022 = vmatpush1.msra.mxu0 0.0
      %2023 = vmatprep.subr.mxu0 0.0
      %2024 = vmatpush1.msra.mxu0 0.0
      %2025 = vmatprep.subr.mxu0 0.0
      %2026 = vmatpush1.msra.mxu0 0.0
      %2027 = vmatprep.subr.mxu0 0.0
      %2028 = vmatpush1.msra.mxu0 0.0
      %2029 = vmatprep.subr.mxu0 0.0
      %2030 = vmatpush1.msra.mxu0 0.0
      %2031 = vmatprep.subr.mxu0 0.0
      %2032 = vmatpush1.msra.mxu0 0.0
      %2033 = vmatprep.subr.mxu0 0.0
      %2034 = vmatpush1.msra.mxu0 0.0
      %2035 = vmatprep.mubr.f32.mxu0 0.0
      %2036 = vmatmul.mubr.f32.gmra.mrb[0].mxu0 %v1898
      %v2037 = vpop.f32.mrb[0].mxu0
      %v2038 = vadd.f32 0.0, %v2037
      %v2039 = vpop.f32.mrb[0].mxu0
      %v2040 = vadd.f32 0.0, %v2039
      %2041 = vdwg.mxu0
      %v2042 = vadd.f32 %v1851, %v1967
      %v2043 = vadd.f32 %v1852, %v1969
      %v2044 = vadd.f32 %v1853, %v2038
      %v2045 = vadd.f32 %v1854, %v2040
      %2046 = vrot.lane.b32.xlu0 %v330, 9
      %v2047 = vpop.permute.xlu0 %2046
      %2048 = vrot.lane.b32.xlu0 %v331, 9
      %v2049 = vpop.permute.xlu0 %2048
      %2050 = vrot.lane.b32.xlu0 %v332, 9
      %v2051 = vpop.permute.xlu0 %2050
      %2052 = vrot.lane.b32.xlu0 %v333, 9
      %v2053 = vpop.permute.xlu0 %2052
      %vm2054 = vcmp.lt.s32.totalorder %v343, 9
      %v2055 = vsel %vm2054, %v2051, %v2053
      %v2056 = vsel %vm2054, %v2049, %v2051
      %v2057 = vsel %vm2054, %v2047, %v2049
      %v2058 = vsel %vm2054, %v2053, %v2047
      %s2059 = scalar_lea.vmem %s7, 33
      %v2060 = vld [vmem:[%s2059] ss:$8 sm:$0xf]
      %v2062 = vlaneseq
      %v2063 = vshrl.u32 %v2062, 7
      %v2064 = vsub.s32 0, %v2063
      %v2065 = vrot.slane %v2060, %v2064
      %v2066 = vlaneseq
      %v2067 = vshrl.u32 %v2066, 7
      %v2068 = vsub.s32 1, %v2067
      %v2069 = vrot.slane %v2060, %v2068
      %v2070 = vlaneseq
      %v2071 = vshrl.u32 %v2070, 7
      %v2072 = vsub.s32 2, %v2071
      %v2073 = vrot.slane %v2060, %v2072
      %v2074 = vlaneseq
      %v2075 = vshrl.u32 %v2074, 7
      %v2076 = vsub.s32 3, %v2075
      %v2077 = vrot.slane %v2060, %v2076
      %v2082 = vmul.f32 %v2058, %v2065
      %v2083 = vmul.f32 %v2057, %v2069
      %v2084 = vmul.f32 %v2056, %v2073
      %v2085 = vmul.f32 %v2055, %v2077
      %s2086 = scalar_lea.vmem %s3, 72
      %v2087 = vld [vmem:[%s2086] sm:$0xff]
      %v2089 = vsel %vm418, %v2087, 0
      %2091 = vmatprep.subr.mxu0 %v2083
      %2092 = vmatpush1.msra.mxu0 %v2082
      %2093 = vmatprep.subr.mxu0 0.0
      %2094 = vmatpush1.msra.mxu0 0.0
      %2095 = vmatprep.subr.mxu0 0.0
      %2096 = vmatpush1.msra.mxu0 0.0
      %2097 = vmatprep.subr.mxu0 0.0
      %2098 = vmatpush1.msra.mxu0 0.0
      %2099 = vmatprep.subr.mxu0 0.0
      %2100 = vmatpush1.msra.mxu0 0.0
      %2101 = vmatprep.subr.mxu0 0.0
      %2102 = vmatpush1.msra.mxu0 0.0
      %2103 = vmatprep.subr.mxu0 0.0
      %2104 = vmatpush1.msra.mxu0 0.0
      %2105 = vmatprep.subr.mxu0 0.0
      %2106 = vmatpush1.msra.mxu0 0.0
      %2107 = vmatprep.subr.mxu0 0.0
      %2108 = vmatpush1.msra.mxu0 0.0
      %2109 = vmatprep.subr.mxu0 0.0
      %2110 = vmatpush1.msra.mxu0 0.0
      %2111 = vmatprep.subr.mxu0 0.0
      %2112 = vmatpush1.msra.mxu0 0.0
      %2113 = vmatprep.subr.mxu0 0.0
      %2114 = vmatpush1.msra.mxu0 0.0
      %2115 = vmatprep.subr.mxu0 0.0
      %2116 = vmatpush1.msra.mxu0 0.0
      %2117 = vmatprep.subr.mxu0 0.0
      %2118 = vmatpush1.msra.mxu0 0.0
      %2119 = vmatprep.subr.mxu0 0.0
      %2120 = vmatpush1.msra.mxu0 0.0
      %2121 = vmatprep.subr.mxu0 0.0
      %2122 = vmatpush1.msra.mxu0 0.0
      %2123 = vmatprep.subr.mxu0 0.0
      %2124 = vmatpush1.msra.mxu0 0.0
      %2125 = vmatprep.subr.mxu0 0.0
      %2126 = vmatpush1.msra.mxu0 0.0
      %2127 = vmatprep.subr.mxu0 0.0
      %2128 = vmatpush1.msra.mxu0 0.0
      %2129 = vmatprep.subr.mxu0 0.0
      %2130 = vmatpush1.msra.mxu0 0.0
      %2131 = vmatprep.subr.mxu0 0.0
      %2132 = vmatpush1.msra.mxu0 0.0
      %2133 = vmatprep.subr.mxu0 0.0
      %2134 = vmatpush1.msra.mxu0 0.0
      %2135 = vmatprep.subr.mxu0 0.0
      %2136 = vmatpush1.msra.mxu0 0.0
      %2137 = vmatprep.subr.mxu0 0.0
      %2138 = vmatpush1.msra.mxu0 0.0
      %2139 = vmatprep.subr.mxu0 0.0
      %2140 = vmatpush1.msra.mxu0 0.0
      %2141 = vmatprep.subr.mxu0 0.0
      %2142 = vmatpush1.msra.mxu0 0.0
      %2143 = vmatprep.subr.mxu0 0.0
      %2144 = vmatpush1.msra.mxu0 0.0
      %2145 = vmatprep.subr.mxu0 0.0
      %2146 = vmatpush1.msra.mxu0 0.0
      %2147 = vmatprep.subr.mxu0 0.0
      %2148 = vmatpush1.msra.mxu0 0.0
      %2149 = vmatprep.subr.mxu0 0.0
      %2150 = vmatpush1.msra.mxu0 0.0
      %2151 = vmatprep.subr.mxu0 0.0
      %2152 = vmatpush1.msra.mxu0 0.0
      %2153 = vmatprep.subr.mxu0 0.0
      %2154 = vmatpush1.msra.mxu0 0.0
      %2155 = vmatprep.mubr.f32.mxu0 0.0
      %2156 = vmatmul.mubr.f32.gmra.mrb[0].mxu0 %v2089
      %v2157 = vpop.f32.mrb[0].mxu0
      %v2158 = vadd.f32 0.0, %v2157
      %v2159 = vpop.f32.mrb[0].mxu0
      %v2160 = vadd.f32 0.0, %v2159
      %2161 = vdwg.mxu0
      %2162 = vmatprep.subr.mxu0 %v2085
      %2163 = vmatpush1.msra.mxu0 %v2084
      %2164 = vmatprep.subr.mxu0 0.0
      %2165 = vmatpush1.msra.mxu0 0.0
      %2166 = vmatprep.subr.mxu0 0.0
      %2167 = vmatpush1.msra.mxu0 0.0
      %2168 = vmatprep.subr.mxu0 0.0
      %2169 = vmatpush1.msra.mxu0 0.0
      %2170 = vmatprep.subr.mxu0 0.0
      %2171 = vmatpush1.msra.mxu0 0.0
      %2172 = vmatprep.subr.mxu0 0.0
      %2173 = vmatpush1.msra.mxu0 0.0
      %2174 = vmatprep.subr.mxu0 0.0
      %2175 = vmatpush1.msra.mxu0 0.0
      %2176 = vmatprep.subr.mxu0 0.0
      %2177 = vmatpush1.msra.mxu0 0.0
      %2178 = vmatprep.subr.mxu0 0.0
      %2179 = vmatpush1.msra.mxu0 0.0
      %2180 = vmatprep.subr.mxu0 0.0
      %2181 = vmatpush1.msra.mxu0 0.0
      %2182 = vmatprep.subr.mxu0 0.0
      %2183 = vmatpush1.msra.mxu0 0.0
      %2184 = vmatprep.subr.mxu0 0.0
      %2185 = vmatpush1.msra.mxu0 0.0
      %2186 = vmatprep.subr.mxu0 0.0
      %2187 = vmatpush1.msra.mxu0 0.0
      %2188 = vmatprep.subr.mxu0 0.0
      %2189 = vmatpush1.msra.mxu0 0.0
      %2190 = vmatprep.subr.mxu0 0.0
      %2191 = vmatpush1.msra.mxu0 0.0
      %2192 = vmatprep.subr.mxu0 0.0
      %2193 = vmatpush1.msra.mxu0 0.0
      %2194 = vmatprep.subr.mxu0 0.0
      %2195 = vmatpush1.msra.mxu0 0.0
      %2196 = vmatprep.subr.mxu0 0.0
      %2197 = vmatpush1.msra.mxu0 0.0
      %2198 = vmatprep.subr.mxu0 0.0
      %2199 = vmatpush1.msra.mxu0 0.0
      %2200 = vmatprep.subr.mxu0 0.0
      %2201 = vmatpush1.msra.mxu0 0.0
      %2202 = vmatprep.subr.mxu0 0.0
      %2203 = vmatpush1.msra.mxu0 0.0
      %2204 = vmatprep.subr.mxu0 0.0
      %2205 = vmatpush1.msra.mxu0 0.0
      %2206 = vmatprep.subr.mxu0 0.0
      %2207 = vmatpush1.msra.mxu0 0.0
      %2208 = vmatprep.subr.mxu0 0.0
      %2209 = vmatpush1.msra.mxu0 0.0
      %2210 = vmatprep.subr.mxu0 0.0
      %2211 = vmatpush1.msra.mxu0 0.0
      %2212 = vmatprep.subr.mxu0 0.0
      %2213 = vmatpush1.msra.mxu0 0.0
      %2214 = vmatprep.subr.mxu0 0.0
      %2215 = vmatpush1.msra.mxu0 0.0
      %2216 = vmatprep.subr.mxu0 0.0
      %2217 = vmatpush1.msra.mxu0 0.0
      %2218 = vmatprep.subr.mxu0 0.0
      %2219 = vmatpush1.msra.mxu0 0.0
      %2220 = vmatprep.subr.mxu0 0.0
      %2221 = vmatpush1.msra.mxu0 0.0
      %2222 = vmatprep.subr.mxu0 0.0
      %2223 = vmatpush1.msra.mxu0 0.0
      %2224 = vmatprep.subr.mxu0 0.0
      %2225 = vmatpush1.msra.mxu0 0.0
      %2226 = vmatprep.mubr.f32.mxu0 0.0
      %2227 = vmatmul.mubr.f32.gmra.mrb[0].mxu0 %v2089
      %v2228 = vpop.f32.mrb[0].mxu0
      %v2229 = vadd.f32 0.0, %v2228
      %v2230 = vpop.f32.mrb[0].mxu0
      %v2231 = vadd.f32 0.0, %v2230
      %2232 = vdwg.mxu0
      %v2233 = vadd.f32 %v2042, %v2158
      %v2234 = vadd.f32 %v2043, %v2160
      %v2235 = vadd.f32 %v2044, %v2229
      %v2236 = vadd.f32 %v2045, %v2231
      %2237 = vrot.lane.b32.xlu0 %v330, 8
      %v2238 = vpop.permute.xlu0 %2237
      %2239 = vrot.lane.b32.xlu0 %v331, 8
      %v2240 = vpop.permute.xlu0 %2239
      %2241 = vrot.lane.b32.xlu0 %v332, 8
      %v2242 = vpop.permute.xlu0 %2241
      %2243 = vrot.lane.b32.xlu0 %v333, 8
      %v2244 = vpop.permute.xlu0 %2243
      %vm2245 = vcmp.lt.s32.totalorder %v343, 8
      %v2246 = vsel %vm2245, %v2242, %v2244
      %v2247 = vsel %vm2245, %v2240, %v2242
      %v2248 = vsel %vm2245, %v2238, %v2240
      %v2249 = vsel %vm2245, %v2244, %v2238
      %s2250 = scalar_lea.vmem %s7, 34
      %v2251 = vld [vmem:[%s2250] ss:$8 sm:$0xf]
      %v2253 = vlaneseq
      %v2254 = vshrl.u32 %v2253, 7
      %v2255 = vsub.s32 0, %v2254
      %v2256 = vrot.slane %v2251, %v2255
      %v2257 = vlaneseq
      %v2258 = vshrl.u32 %v2257, 7
      %v2259 = vsub.s32 1, %v2258
      %v2260 = vrot.slane %v2251, %v2259
      %v2261 = vlaneseq
      %v2262 = vshrl.u32 %v2261, 7
      %v2263 = vsub.s32 2, %v2262
      %v2264 = vrot.slane %v2251, %v2263
      %v2265 = vlaneseq
      %v2266 = vshrl.u32 %v2265, 7
      %v2267 = vsub.s32 3, %v2266
      %v2268 = vrot.slane %v2251, %v2267
      %v2273 = vmul.f32 %v2249, %v2256
      %v2274 = vmul.f32 %v2248, %v2260
      %v2275 = vmul.f32 %v2247, %v2264
      %v2276 = vmul.f32 %v2246, %v2268
      %s2277 = scalar_lea.vmem %s3, 80
      %v2278 = vld [vmem:[%s2277] sm:$0xff]
      %v2280 = vsel %vm418, %v2278, 0
      %2282 = vmatprep.subr.mxu0 %v2274
      %2283 = vmatpush1.msra.mxu0 %v2273
      %2284 = vmatprep.subr.mxu0 0.0
      %2285 = vmatpush1.msra.mxu0 0.0
      %2286 = vmatprep.subr.mxu0 0.0
      %2287 = vmatpush1.msra.mxu0 0.0
      %2288 = vmatprep.subr.mxu0 0.0
      %2289 = vmatpush1.msra.mxu0 0.0
      %2290 = vmatprep.subr.mxu0 0.0
      %2291 = vmatpush1.msra.mxu0 0.0
      %2292 = vmatprep.subr.mxu0 0.0
      %2293 = vmatpush1.msra.mxu0 0.0
      %2294 = vmatprep.subr.mxu0 0.0
      %2295 = vmatpush1.msra.mxu0 0.0
      %2296 = vmatprep.subr.mxu0 0.0
      %2297 = vmatpush1.msra.mxu0 0.0
      %2298 = vmatprep.subr.mxu0 0.0
      %2299 = vmatpush1.msra.mxu0 0.0
      %2300 = vmatprep.subr.mxu0 0.0
      %2301 = vmatpush1.msra.mxu0 0.0
      %2302 = vmatprep.subr.mxu0 0.0
      %2303 = vmatpush1.msra.mxu0 0.0
      %2304 = vmatprep.subr.mxu0 0.0
      %2305 = vmatpush1.msra.mxu0 0.0
      %2306 = vmatprep.subr.mxu0 0.0
      %2307 = vmatpush1.msra.mxu0 0.0
      %2308 = vmatprep.subr.mxu0 0.0
      %2309 = vmatpush1.msra.mxu0 0.0
      %2310 = vmatprep.subr.mxu0 0.0
      %2311 = vmatpush1.msra.mxu0 0.0
      %2312 = vmatprep.subr.mxu0 0.0
      %2313 = vmatpush1.msra.mxu0 0.0
      %2314 = vmatprep.subr.mxu0 0.0
      %2315 = vmatpush1.msra.mxu0 0.0
      %2316 = vmatprep.subr.mxu0 0.0
      %2317 = vmatpush1.msra.mxu0 0.0
      %2318 = vmatprep.subr.mxu0 0.0
      %2319 = vmatpush1.msra.mxu0 0.0
      %2320 = vmatprep.subr.mxu0 0.0
      %2321 = vmatpush1.msra.mxu0 0.0
      %2322 = vmatprep.subr.mxu0 0.0
      %2323 = vmatpush1.msra.mxu0 0.0
      %2324 = vmatprep.subr.mxu0 0.0
      %2325 = vmatpush1.msra.mxu0 0.0
      %2326 = vmatprep.subr.mxu0 0.0
      %2327 = vmatpush1.msra.mxu0 0.0
      %2328 = vmatprep.subr.mxu0 0.0
      %2329 = vmatpush1.msra.mxu0 0.0
      %2330 = vmatprep.subr.mxu0 0.0
      %2331 = vmatpush1.msra.mxu0 0.0
      %2332 = vmatprep.subr.mxu0 0.0
      %2333 = vmatpush1.msra.mxu0 0.0
      %2334 = vmatprep.subr.mxu0 0.0
      %2335 = vmatpush1.msra.mxu0 0.0
      %2336 = vmatprep.subr.mxu0 0.0
      %2337 = vmatpush1.msra.mxu0 0.0
      %2338 = vmatprep.subr.mxu0 0.0
      %2339 = vmatpush1.msra.mxu0 0.0
      %2340 = vmatprep.subr.mxu0 0.0
      %2341 = vmatpush1.msra.mxu0 0.0
      %2342 = vmatprep.subr.mxu0 0.0
      %2343 = vmatpush1.msra.mxu0 0.0
      %2344 = vmatprep.subr.mxu0 0.0
      %2345 = vmatpush1.msra.mxu0 0.0
      %2346 = vmatprep.mubr.f32.mxu0 0.0
      %2347 = vmatmul.mubr.f32.gmra.mrb[0].mxu0 %v2280
      %v2348 = vpop.f32.mrb[0].mxu0
      %v2349 = vadd.f32 0.0, %v2348
      %v2350 = vpop.f32.mrb[0].mxu0
      %v2351 = vadd.f32 0.0, %v2350
      %2352 = vdwg.mxu0
      %2353 = vmatprep.subr.mxu0 %v2276
      %2354 = vmatpush1.msra.mxu0 %v2275
      %2355 = vmatprep.subr.mxu0 0.0
      %2356 = vmatpush1.msra.mxu0 0.0
      %2357 = vmatprep.subr.mxu0 0.0
      %2358 = vmatpush1.msra.mxu0 0.0
      %2359 = vmatprep.subr.mxu0 0.0
      %2360 = vmatpush1.msra.mxu0 0.0
      %2361 = vmatprep.subr.mxu0 0.0
      %2362 = vmatpush1.msra.mxu0 0.0
      %2363 = vmatprep.subr.mxu0 0.0
      %2364 = vmatpush1.msra.mxu0 0.0
      %2365 = vmatprep.subr.mxu0 0.0
      %2366 = vmatpush1.msra.mxu0 0.0
      %2367 = vmatprep.subr.mxu0 0.0
      %2368 = vmatpush1.msra.mxu0 0.0
      %2369 = vmatprep.subr.mxu0 0.0
      %2370 = vmatpush1.msra.mxu0 0.0
      %2371 = vmatprep.subr.mxu0 0.0
      %2372 = vmatpush1.msra.mxu0 0.0
      %2373 = vmatprep.subr.mxu0 0.0
      %2374 = vmatpush1.msra.mxu0 0.0
      %2375 = vmatprep.subr.mxu0 0.0
      %2376 = vmatpush1.msra.mxu0 0.0
      %2377 = vmatprep.subr.mxu0 0.0
      %2378 = vmatpush1.msra.mxu0 0.0
      %2379 = vmatprep.subr.mxu0 0.0
      %2380 = vmatpush1.msra.mxu0 0.0
      %2381 = vmatprep.subr.mxu0 0.0
      %2382 = vmatpush1.msra.mxu0 0.0
      %2383 = vmatprep.subr.mxu0 0.0
      %2384 = vmatpush1.msra.mxu0 0.0
      %2385 = vmatprep.subr.mxu0 0.0
      %2386 = vmatpush1.msra.mxu0 0.0
      %2387 = vmatprep.subr.mxu0 0.0
      %2388 = vmatpush1.msra.mxu0 0.0
      %2389 = vmatprep.subr.mxu0 0.0
      %2390 = vmatpush1.msra.mxu0 0.0
      %2391 = vmatprep.subr.mxu0 0.0
      %2392 = vmatpush1.msra.mxu0 0.0
      %2393 = vmatprep.subr.mxu0 0.0
      %2394 = vmatpush1.msra.mxu0 0.0
      %2395 = vmatprep.subr.mxu0 0.0
      %2396 = vmatpush1.msra.mxu0 0.0
      %2397 = vmatprep.subr.mxu0 0.0
      %2398 = vmatpush1.msra.mxu0 0.0
      %2399 = vmatprep.subr.mxu0 0.0
      %2400 = vmatpush1.msra.mxu0 0.0
      %2401 = vmatprep.subr.mxu0 0.0
      %2402 = vmatpush1.msra.mxu0 0.0
      %2403 = vmatprep.subr.mxu0 0.0
      %2404 = vmatpush1.msra.mxu0 0.0
      %2405 = vmatprep.subr.mxu0 0.0
      %2406 = vmatpush1.msra.mxu0 0.0
      %2407 = vmatprep.subr.mxu0 0.0
      %2408 = vmatpush1.msra.mxu0 0.0
      %2409 = vmatprep.subr.mxu0 0.0
      %2410 = vmatpush1.msra.mxu0 0.0
      %2411 = vmatprep.subr.mxu0 0.0
      %2412 = vmatpush1.msra.mxu0 0.0
      %2413 = vmatprep.subr.mxu0 0.0
      %2414 = vmatpush1.msra.mxu0 0.0
      %2415 = vmatprep.subr.mxu0 0.0
      %2416 = vmatpush1.msra.mxu0 0.0
      %2417 = vmatprep.mubr.f32.mxu0 0.0
      %2418 = vmatmul.mubr.f32.gmra.mrb[0].mxu0 %v2280
      %v2419 = vpop.f32.mrb[0].mxu0
      %v2420 = vadd.f32 0.0, %v2419
      %v2421 = vpop.f32.mrb[0].mxu0
      %v2422 = vadd.f32 0.0, %v2421
      %2423 = vdwg.mxu0
      %v2424 = vadd.f32 %v2233, %v2349
      %v2425 = vadd.f32 %v2234, %v2351
      %v2426 = vadd.f32 %v2235, %v2420
      %v2427 = vadd.f32 %v2236, %v2422
      %2428 = vrot.lane.b32.xlu0 %v330, 7
      %v2429 = vpop.permute.xlu0 %2428
      %2430 = vrot.lane.b32.xlu0 %v331, 7
      %v2431 = vpop.permute.xlu0 %2430
      %2432 = vrot.lane.b32.xlu0 %v332, 7
      %v2433 = vpop.permute.xlu0 %2432
      %2434 = vrot.lane.b32.xlu0 %v333, 7
      %v2435 = vpop.permute.xlu0 %2434
      %vm2436 = vcmp.lt.s32.totalorder %v343, 7
      %v2437 = vsel %vm2436, %v2433, %v2435
      %v2438 = vsel %vm2436, %v2431, %v2433
      %v2439 = vsel %vm2436, %v2429, %v2431
      %v2440 = vsel %vm2436, %v2435, %v2429
      %s2441 = scalar_lea.vmem %s7, 35
      %v2442 = vld [vmem:[%s2441] ss:$8 sm:$0xf]
      %v2444 = vlaneseq
      %v2445 = vshrl.u32 %v2444, 7
      %v2446 = vsub.s32 0, %v2445
      %v2447 = vrot.slane %v2442, %v2446
      %v2448 = vlaneseq
      %v2449 = vshrl.u32 %v2448, 7
      %v2450 = vsub.s32 1, %v2449
      %v2451 = vrot.slane %v2442, %v2450
      %v2452 = vlaneseq
      %v2453 = vshrl.u32 %v2452, 7
      %v2454 = vsub.s32 2, %v2453
      %v2455 = vrot.slane %v2442, %v2454
      %v2456 = vlaneseq
      %v2457 = vshrl.u32 %v2456, 7
      %v2458 = vsub.s32 3, %v2457
      %v2459 = vrot.slane %v2442, %v2458
      %v2464 = vmul.f32 %v2440, %v2447
      %v2465 = vmul.f32 %v2439, %v2451
      %v2466 = vmul.f32 %v2438, %v2455
      %v2467 = vmul.f32 %v2437, %v2459
      %s2468 = scalar_lea.vmem %s3, 88
      %v2469 = vld [vmem:[%s2468] sm:$0xff]
      %v2471 = vsel %vm418, %v2469, 0
      %2473 = vmatprep.subr.mxu0 %v2465
      %2474 = vmatpush1.msra.mxu0 %v2464
      %2475 = vmatprep.subr.mxu0 0.0
      %2476 = vmatpush1.msra.mxu0 0.0
      %2477 = vmatprep.subr.mxu0 0.0
      %2478 = vmatpush1.msra.mxu0 0.0
      %2479 = vmatprep.subr.mxu0 0.0
      %2480 = vmatpush1.msra.mxu0 0.0
      %2481 = vmatprep.subr.mxu0 0.0
      %2482 = vmatpush1.msra.mxu0 0.0
      %2483 = vmatprep.subr.mxu0 0.0
      %2484 = vmatpush1.msra.mxu0 0.0
      %2485 = vmatprep.subr.mxu0 0.0
      %2486 = vmatpush1.msra.mxu0 0.0
      %2487 = vmatprep.subr.mxu0 0.0
      %2488 = vmatpush1.msra.mxu0 0.0
      %2489 = vmatprep.subr.mxu0 0.0
      %2490 = vmatpush1.msra.mxu0 0.0
      %2491 = vmatprep.subr.mxu0 0.0
      %2492 = vmatpush1.msra.mxu0 0.0
      %2493 = vmatprep.subr.mxu0 0.0
      %2494 = vmatpush1.msra.mxu0 0.0
      %2495 = vmatprep.subr.mxu0 0.0
      %2496 = vmatpush1.msra.mxu0 0.0
      %2497 = vmatprep.subr.mxu0 0.0
      %2498 = vmatpush1.msra.mxu0 0.0
      %2499 = vmatprep.subr.mxu0 0.0
      %2500 = vmatpush1.msra.mxu0 0.0
      %2501 = vmatprep.subr.mxu0 0.0
      %2502 = vmatpush1.msra.mxu0 0.0
      %2503 = vmatprep.subr.mxu0 0.0
      %2504 = vmatpush1.msra.mxu0 0.0
      %2505 = vmatprep.subr.mxu0 0.0
      %2506 = vmatpush1.msra.mxu0 0.0
      %2507 = vmatprep.subr.mxu0 0.0
      %2508 = vmatpush1.msra.mxu0 0.0
      %2509 = vmatprep.subr.mxu0 0.0
      %2510 = vmatpush1.msra.mxu0 0.0
      %2511 = vmatprep.subr.mxu0 0.0
      %2512 = vmatpush1.msra.mxu0 0.0
      %2513 = vmatprep.subr.mxu0 0.0
      %2514 = vmatpush1.msra.mxu0 0.0
      %2515 = vmatprep.subr.mxu0 0.0
      %2516 = vmatpush1.msra.mxu0 0.0
      %2517 = vmatprep.subr.mxu0 0.0
      %2518 = vmatpush1.msra.mxu0 0.0
      %2519 = vmatprep.subr.mxu0 0.0
      %2520 = vmatpush1.msra.mxu0 0.0
      %2521 = vmatprep.subr.mxu0 0.0
      %2522 = vmatpush1.msra.mxu0 0.0
      %2523 = vmatprep.subr.mxu0 0.0
      %2524 = vmatpush1.msra.mxu0 0.0
      %2525 = vmatprep.subr.mxu0 0.0
      %2526 = vmatpush1.msra.mxu0 0.0
      %2527 = vmatprep.subr.mxu0 0.0
      %2528 = vmatpush1.msra.mxu0 0.0
      %2529 = vmatprep.subr.mxu0 0.0
      %2530 = vmatpush1.msra.mxu0 0.0
      %2531 = vmatprep.subr.mxu0 0.0
      %2532 = vmatpush1.msra.mxu0 0.0
      %2533 = vmatprep.subr.mxu0 0.0
      %2534 = vmatpush1.msra.mxu0 0.0
      %2535 = vmatprep.subr.mxu0 0.0
      %2536 = vmatpush1.msra.mxu0 0.0
      %2537 = vmatprep.mubr.f32.mxu0 0.0
      %2538 = vmatmul.mubr.f32.gmra.mrb[0].mxu0 %v2471
      %v2539 = vpop.f32.mrb[0].mxu0
      %v2540 = vadd.f32 0.0, %v2539
      %v2541 = vpop.f32.mrb[0].mxu0
      %v2542 = vadd.f32 0.0, %v2541
      %2543 = vdwg.mxu0
      %2544 = vmatprep.subr.mxu0 %v2467
      %2545 = vmatpush1.msra.mxu0 %v2466
      %2546 = vmatprep.subr.mxu0 0.0
      %2547 = vmatpush1.msra.mxu0 0.0
      %2548 = vmatprep.subr.mxu0 0.0
      %2549 = vmatpush1.msra.mxu0 0.0
      %2550 = vmatprep.subr.mxu0 0.0
      %2551 = vmatpush1.msra.mxu0 0.0
      %2552 = vmatprep.subr.mxu0 0.0
      %2553 = vmatpush1.msra.mxu0 0.0
      %2554 = vmatprep.subr.mxu0 0.0
      %2555 = vmatpush1.msra.mxu0 0.0
      %2556 = vmatprep.subr.mxu0 0.0
      %2557 = vmatpush1.msra.mxu0 0.0
      %2558 = vmatprep.subr.mxu0 0.0
      %2559 = vmatpush1.msra.mxu0 0.0
      %2560 = vmatprep.subr.mxu0 0.0
      %2561 = vmatpush1.msra.mxu0 0.0
      %2562 = vmatprep.subr.mxu0 0.0
      %2563 = vmatpush1.msra.mxu0 0.0
      %2564 = vmatprep.subr.mxu0 0.0
      %2565 = vmatpush1.msra.mxu0 0.0
      %2566 = vmatprep.subr.mxu0 0.0
      %2567 = vmatpush1.msra.mxu0 0.0
      %2568 = vmatprep.subr.mxu0 0.0
      %2569 = vmatpush1.msra.mxu0 0.0
      %2570 = vmatprep.subr.mxu0 0.0
      %2571 = vmatpush1.msra.mxu0 0.0
      %2572 = vmatprep.subr.mxu0 0.0
      %2573 = vmatpush1.msra.mxu0 0.0
      %2574 = vmatprep.subr.mxu0 0.0
      %2575 = vmatpush1.msra.mxu0 0.0
      %2576 = vmatprep.subr.mxu0 0.0
      %2577 = vmatpush1.msra.mxu0 0.0
      %2578 = vmatprep.subr.mxu0 0.0
      %2579 = vmatpush1.msra.mxu0 0.0
      %2580 = vmatprep.subr.mxu0 0.0
      %2581 = vmatpush1.msra.mxu0 0.0
      %2582 = vmatprep.subr.mxu0 0.0
      %2583 = vmatpush1.msra.mxu0 0.0
      %2584 = vmatprep.subr.mxu0 0.0
      %2585 = vmatpush1.msra.mxu0 0.0
      %2586 = vmatprep.subr.mxu0 0.0
      %2587 = vmatpush1.msra.mxu0 0.0
      %2588 = vmatprep.subr.mxu0 0.0
      %2589 = vmatpush1.msra.mxu0 0.0
      %2590 = vmatprep.subr.mxu0 0.0
      %2591 = vmatpush1.msra.mxu0 0.0
      %2592 = vmatprep.subr.mxu0 0.0
      %2593 = vmatpush1.msra.mxu0 0.0
      %2594 = vmatprep.subr.mxu0 0.0
      %2595 = vmatpush1.msra.mxu0 0.0
      %2596 = vmatprep.subr.mxu0 0.0
      %2597 = vmatpush1.msra.mxu0 0.0
      %2598 = vmatprep.subr.mxu0 0.0
      %2599 = vmatpush1.msra.mxu0 0.0
      %2600 = vmatprep.subr.mxu0 0.0
      %2601 = vmatpush1.msra.mxu0 0.0
      %2602 = vmatprep.subr.mxu0 0.0
      %2603 = vmatpush1.msra.mxu0 0.0
      %2604 = vmatprep.subr.mxu0 0.0
      %2605 = vmatpush1.msra.mxu0 0.0
      %2606 = vmatprep.subr.mxu0 0.0
      %2607 = vmatpush1.msra.mxu0 0.0
      %2608 = vmatprep.mubr.f32.mxu0 0.0
      %2609 = vmatmul.mubr.f32.gmra.mrb[0].mxu0 %v2471
      %v2610 = vpop.f32.mrb[0].mxu0
      %v2611 = vadd.f32 0.0, %v2610
      %v2612 = vpop.f32.mrb[0].mxu0
      %v2613 = vadd.f32 0.0, %v2612
      %2614 = vdwg.mxu0
      %v2615 = vadd.f32 %v2424, %v2540
      %v2616 = vadd.f32 %v2425, %v2542
      %v2617 = vadd.f32 %v2426, %v2611
      %v2618 = vadd.f32 %v2427, %v2613
      %2619 = vrot.lane.b32.xlu0 %v330, 1
      %v2620 = vpop.permute.xlu0 %2619
      %2621 = vrot.lane.b32.xlu0 %v331, 1
      %v2622 = vpop.permute.xlu0 %2621
      %2623 = vrot.lane.b32.xlu0 %v332, 1
      %v2624 = vpop.permute.xlu0 %2623
      %2625 = vrot.lane.b32.xlu0 %v333, 1
      %v2626 = vpop.permute.xlu0 %2625
      %vm2627 = vcmp.lt.s32.totalorder %v343, 1
      %v2628 = vsel %vm2627, %v2624, %v2626
      %v2629 = vsel %vm2627, %v2622, %v2624
      %v2630 = vsel %vm2627, %v2620, %v2622
      %v2631 = vsel %vm2627, %v2626, %v2620
      %s2632 = scalar_lea.vmem %s7, 36
      %v2633 = vld [vmem:[%s2632] ss:$8 sm:$0xf]
      %v2635 = vlaneseq
      %v2636 = vshrl.u32 %v2635, 7
      %v2637 = vsub.s32 0, %v2636
      %v2638 = vrot.slane %v2633, %v2637
      %v2639 = vlaneseq
      %v2640 = vshrl.u32 %v2639, 7
      %v2641 = vsub.s32 1, %v2640
      %v2642 = vrot.slane %v2633, %v2641
      %v2643 = vlaneseq
      %v2644 = vshrl.u32 %v2643, 7
      %v2645 = vsub.s32 2, %v2644
      %v2646 = vrot.slane %v2633, %v2645
      %v2647 = vlaneseq
      %v2648 = vshrl.u32 %v2647, 7
      %v2649 = vsub.s32 3, %v2648
      %v2650 = vrot.slane %v2633, %v2649
      %v2655 = vmul.f32 %v2631, %v2638
      %v2656 = vmul.f32 %v2630, %v2642
      %v2657 = vmul.f32 %v2629, %v2646
      %v2658 = vmul.f32 %v2628, %v2650
      %s2659 = scalar_lea.vmem %s3, 96
      %v2660 = vld [vmem:[%s2659] sm:$0xff]
      %v2662 = vsel %vm418, %v2660, 0
      %2664 = vmatprep.subr.mxu0 %v2656
      %2665 = vmatpush1.msra.mxu0 %v2655
      %2666 = vmatprep.subr.mxu0 0.0
      %2667 = vmatpush1.msra.mxu0 0.0
      %2668 = vmatprep.subr.mxu0 0.0
      %2669 = vmatpush1.msra.mxu0 0.0
      %2670 = vmatprep.subr.mxu0 0.0
      %2671 = vmatpush1.msra.mxu0 0.0
      %2672 = vmatprep.subr.mxu0 0.0
      %2673 = vmatpush1.msra.mxu0 0.0
      %2674 = vmatprep.subr.mxu0 0.0
      %2675 = vmatpush1.msra.mxu0 0.0
      %2676 = vmatprep.subr.mxu0 0.0
      %2677 = vmatpush1.msra.mxu0 0.0
      %2678 = vmatprep.subr.mxu0 0.0
      %2679 = vmatpush1.msra.mxu0 0.0
      %2680 = vmatprep.subr.mxu0 0.0
      %2681 = vmatpush1.msra.mxu0 0.0
      %2682 = vmatprep.subr.mxu0 0.0
      %2683 = vmatpush1.msra.mxu0 0.0
      %2684 = vmatprep.subr.mxu0 0.0
      %2685 = vmatpush1.msra.mxu0 0.0
      %2686 = vmatprep.subr.mxu0 0.0
      %2687 = vmatpush1.msra.mxu0 0.0
      %2688 = vmatprep.subr.mxu0 0.0
      %2689 = vmatpush1.msra.mxu0 0.0
      %2690 = vmatprep.subr.mxu0 0.0
      %2691 = vmatpush1.msra.mxu0 0.0
      %2692 = vmatprep.subr.mxu0 0.0
      %2693 = vmatpush1.msra.mxu0 0.0
      %2694 = vmatprep.subr.mxu0 0.0
      %2695 = vmatpush1.msra.mxu0 0.0
      %2696 = vmatprep.subr.mxu0 0.0
      %2697 = vmatpush1.msra.mxu0 0.0
      %2698 = vmatprep.subr.mxu0 0.0
      %2699 = vmatpush1.msra.mxu0 0.0
      %2700 = vmatprep.subr.mxu0 0.0
      %2701 = vmatpush1.msra.mxu0 0.0
      %2702 = vmatprep.subr.mxu0 0.0
      %2703 = vmatpush1.msra.mxu0 0.0
      %2704 = vmatprep.subr.mxu0 0.0
      %2705 = vmatpush1.msra.mxu0 0.0
      %2706 = vmatprep.subr.mxu0 0.0
      %2707 = vmatpush1.msra.mxu0 0.0
      %2708 = vmatprep.subr.mxu0 0.0
      %2709 = vmatpush1.msra.mxu0 0.0
      %2710 = vmatprep.subr.mxu0 0.0
      %2711 = vmatpush1.msra.mxu0 0.0
      %2712 = vmatprep.subr.mxu0 0.0
      %2713 = vmatpush1.msra.mxu0 0.0
      %2714 = vmatprep.subr.mxu0 0.0
      %2715 = vmatpush1.msra.mxu0 0.0
      %2716 = vmatprep.subr.mxu0 0.0
      %2717 = vmatpush1.msra.mxu0 0.0
      %2718 = vmatprep.subr.mxu0 0.0
      %2719 = vmatpush1.msra.mxu0 0.0
      %2720 = vmatprep.subr.mxu0 0.0
      %2721 = vmatpush1.msra.mxu0 0.0
      %2722 = vmatprep.subr.mxu0 0.0
      %2723 = vmatpush1.msra.mxu0 0.0
      %2724 = vmatprep.subr.mxu0 0.0
      %2725 = vmatpush1.msra.mxu0 0.0
      %2726 = vmatprep.subr.mxu0 0.0
      %2727 = vmatpush1.msra.mxu0 0.0
      %2728 = vmatprep.mubr.f32.mxu0 0.0
      %2729 = vmatmul.mubr.f32.gmra.mrb[0].mxu0 %v2662
      %v2730 = vpop.f32.mrb[0].mxu0
      %v2731 = vadd.f32 0.0, %v2730
      %v2732 = vpop.f32.mrb[0].mxu0
      %v2733 = vadd.f32 0.0, %v2732
      %2734 = vdwg.mxu0
      %2735 = vmatprep.subr.mxu0 %v2658
      %2736 = vmatpush1.msra.mxu0 %v2657
      %2737 = vmatprep.subr.mxu0 0.0
      %2738 = vmatpush1.msra.mxu0 0.0
      %2739 = vmatprep.subr.mxu0 0.0
      %2740 = vmatpush1.msra.mxu0 0.0
      %2741 = vmatprep.subr.mxu0 0.0
      %2742 = vmatpush1.msra.mxu0 0.0
      %2743 = vmatprep.subr.mxu0 0.0
      %2744 = vmatpush1.msra.mxu0 0.0
      %2745 = vmatprep.subr.mxu0 0.0
      %2746 = vmatpush1.msra.mxu0 0.0
      %2747 = vmatprep.subr.mxu0 0.0
      %2748 = vmatpush1.msra.mxu0 0.0
      %2749 = vmatprep.subr.mxu0 0.0
      %2750 = vmatpush1.msra.mxu0 0.0
      %2751 = vmatprep.subr.mxu0 0.0
      %2752 = vmatpush1.msra.mxu0 0.0
      %2753 = vmatprep.subr.mxu0 0.0
      %2754 = vmatpush1.msra.mxu0 0.0
      %2755 = vmatprep.subr.mxu0 0.0
      %2756 = vmatpush1.msra.mxu0 0.0
      %2757 = vmatprep.subr.mxu0 0.0
      %2758 = vmatpush1.msra.mxu0 0.0
      %2759 = vmatprep.subr.mxu0 0.0
      %2760 = vmatpush1.msra.mxu0 0.0
      %2761 = vmatprep.subr.mxu0 0.0
      %2762 = vmatpush1.msra.mxu0 0.0
      %2763 = vmatprep.subr.mxu0 0.0
      %2764 = vmatpush1.msra.mxu0 0.0
      %2765 = vmatprep.subr.mxu0 0.0
      %2766 = vmatpush1.msra.mxu0 0.0
      %2767 = vmatprep.subr.mxu0 0.0
      %2768 = vmatpush1.msra.mxu0 0.0
      %2769 = vmatprep.subr.mxu0 0.0
      %2770 = vmatpush1.msra.mxu0 0.0
      %2771 = vmatprep.subr.mxu0 0.0
      %2772 = vmatpush1.msra.mxu0 0.0
      %2773 = vmatprep.subr.mxu0 0.0
      %2774 = vmatpush1.msra.mxu0 0.0
      %2775 = vmatprep.subr.mxu0 0.0
      %2776 = vmatpush1.msra.mxu0 0.0
      %2777 = vmatprep.subr.mxu0 0.0
      %2778 = vmatpush1.msra.mxu0 0.0
      %2779 = vmatprep.subr.mxu0 0.0
      %2780 = vmatpush1.msra.mxu0 0.0
      %2781 = vmatprep.subr.mxu0 0.0
      %2782 = vmatpush1.msra.mxu0 0.0
      %2783 = vmatprep.subr.mxu0 0.0
      %2784 = vmatpush1.msra.mxu0 0.0
      %2785 = vmatprep.subr.mxu0 0.0
      %2786 = vmatpush1.msra.mxu0 0.0
      %2787 = vmatprep.subr.mxu0 0.0
      %2788 = vmatpush1.msra.mxu0 0.0
      %2789 = vmatprep.subr.mxu0 0.0
      %2790 = vmatpush1.msra.mxu0 0.0
      %2791 = vmatprep.subr.mxu0 0.0
      %2792 = vmatpush1.msra.mxu0 0.0
      %2793 = vmatprep.subr.mxu0 0.0
      %2794 = vmatpush1.msra.mxu0 0.0
      %2795 = vmatprep.subr.mxu0 0.0
      %2796 = vmatpush1.msra.mxu0 0.0
      %2797 = vmatprep.subr.mxu0 0.0
      %2798 = vmatpush1.msra.mxu0 0.0
      %2799 = vmatprep.mubr.f32.mxu0 0.0
      %2800 = vmatmul.mubr.f32.gmra.mrb[0].mxu0 %v2662
      %v2801 = vpop.f32.mrb[0].mxu0
      %v2802 = vadd.f32 0.0, %v2801
      %v2803 = vpop.f32.mrb[0].mxu0
      %v2804 = vadd.f32 0.0, %v2803
      %2805 = vdwg.mxu0
      %v2806 = vadd.f32 %v2615, %v2731
      %v2807 = vadd.f32 %v2616, %v2733
      %v2808 = vadd.f32 %v2617, %v2802
      %v2809 = vadd.f32 %v2618, %v2804
      %s2810 = scalar_lea.vmem %s7, 37
      %v2811 = vld [vmem:[%s2810] ss:$8 sm:$0xf]
      %v2813 = vlaneseq
      %v2814 = vshrl.u32 %v2813, 7
      %v2815 = vsub.s32 0, %v2814
      %v2816 = vrot.slane %v2811, %v2815
      %v2817 = vlaneseq
      %v2818 = vshrl.u32 %v2817, 7
      %v2819 = vsub.s32 1, %v2818
      %v2820 = vrot.slane %v2811, %v2819
      %v2821 = vlaneseq
      %v2822 = vshrl.u32 %v2821, 7
      %v2823 = vsub.s32 2, %v2822
      %v2824 = vrot.slane %v2811, %v2823
      %v2825 = vlaneseq
      %v2826 = vshrl.u32 %v2825, 7
      %v2827 = vsub.s32 3, %v2826
      %v2828 = vrot.slane %v2811, %v2827
      %v2833 = vmul.f32 %v330, %v2816
      %v2834 = vmul.f32 %v331, %v2820
      %v2835 = vmul.f32 %v332, %v2824
      %v2836 = vmul.f32 %v333, %v2828
      %s2837 = scalar_lea.vmem %s3, 104
      %v2838 = vld [vmem:[%s2837] sm:$0xff]
      %v2840 = vsel %vm418, %v2838, 0
      %2842 = vmatprep.subr.mxu0 %v2834
      %2843 = vmatpush1.msra.mxu0 %v2833
      %2844 = vmatprep.subr.mxu0 0.0
      %2845 = vmatpush1.msra.mxu0 0.0
      %2846 = vmatprep.subr.mxu0 0.0
      %2847 = vmatpush1.msra.mxu0 0.0
      %2848 = vmatprep.subr.mxu0 0.0
      %2849 = vmatpush1.msra.mxu0 0.0
      %2850 = vmatprep.subr.mxu0 0.0
      %2851 = vmatpush1.msra.mxu0 0.0
      %2852 = vmatprep.subr.mxu0 0.0
      %2853 = vmatpush1.msra.mxu0 0.0
      %2854 = vmatprep.subr.mxu0 0.0
      %2855 = vmatpush1.msra.mxu0 0.0
      %2856 = vmatprep.subr.mxu0 0.0
      %2857 = vmatpush1.msra.mxu0 0.0
      %2858 = vmatprep.subr.mxu0 0.0
      %2859 = vmatpush1.msra.mxu0 0.0
      %2860 = vmatprep.subr.mxu0 0.0
      %2861 = vmatpush1.msra.mxu0 0.0
      %2862 = vmatprep.subr.mxu0 0.0
      %2863 = vmatpush1.msra.mxu0 0.0
      %2864 = vmatprep.subr.mxu0 0.0
      %2865 = vmatpush1.msra.mxu0 0.0
      %2866 = vmatprep.subr.mxu0 0.0
      %2867 = vmatpush1.msra.mxu0 0.0
      %2868 = vmatprep.subr.mxu0 0.0
      %2869 = vmatpush1.msra.mxu0 0.0
      %2870 = vmatprep.subr.mxu0 0.0
      %2871 = vmatpush1.msra.mxu0 0.0
      %2872 = vmatprep.subr.mxu0 0.0
      %2873 = vmatpush1.msra.mxu0 0.0
      %2874 = vmatprep.subr.mxu0 0.0
      %2875 = vmatpush1.msra.mxu0 0.0
      %2876 = vmatprep.subr.mxu0 0.0
      %2877 = vmatpush1.msra.mxu0 0.0
      %2878 = vmatprep.subr.mxu0 0.0
      %2879 = vmatpush1.msra.mxu0 0.0
      %2880 = vmatprep.subr.mxu0 0.0
      %2881 = vmatpush1.msra.mxu0 0.0
      %2882 = vmatprep.subr.mxu0 0.0
      %2883 = vmatpush1.msra.mxu0 0.0
      %2884 = vmatprep.subr.mxu0 0.0
      %2885 = vmatpush1.msra.mxu0 0.0
      %2886 = vmatprep.subr.mxu0 0.0
      %2887 = vmatpush1.msra.mxu0 0.0
      %2888 = vmatprep.subr.mxu0 0.0
      %2889 = vmatpush1.msra.mxu0 0.0
      %2890 = vmatprep.subr.mxu0 0.0
      %2891 = vmatpush1.msra.mxu0 0.0
      %2892 = vmatprep.subr.mxu0 0.0
      %2893 = vmatpush1.msra.mxu0 0.0
      %2894 = vmatprep.subr.mxu0 0.0
      %2895 = vmatpush1.msra.mxu0 0.0
      %2896 = vmatprep.subr.mxu0 0.0
      %2897 = vmatpush1.msra.mxu0 0.0
      %2898 = vmatprep.subr.mxu0 0.0
      %2899 = vmatpush1.msra.mxu0 0.0
      %2900 = vmatprep.subr.mxu0 0.0
      %2901 = vmatpush1.msra.mxu0 0.0
      %2902 = vmatprep.subr.mxu0 0.0
      %2903 = vmatpush1.msra.mxu0 0.0
      %2904 = vmatprep.subr.mxu0 0.0
      %2905 = vmatpush1.msra.mxu0 0.0
      %2906 = vmatprep.mubr.f32.mxu0 0.0
      %2907 = vmatmul.mubr.f32.gmra.mrb[0].mxu0 %v2840
      %v2908 = vpop.f32.mrb[0].mxu0
      %v2909 = vadd.f32 0.0, %v2908
      %v2910 = vpop.f32.mrb[0].mxu0
      %v2911 = vadd.f32 0.0, %v2910
      %2912 = vdwg.mxu0
      %2913 = vmatprep.subr.mxu0 %v2836
      %2914 = vmatpush1.msra.mxu0 %v2835
      %2915 = vmatprep.subr.mxu0 0.0
      %2916 = vmatpush1.msra.mxu0 0.0
      %2917 = vmatprep.subr.mxu0 0.0
      %2918 = vmatpush1.msra.mxu0 0.0
      %2919 = vmatprep.subr.mxu0 0.0
      %2920 = vmatpush1.msra.mxu0 0.0
      %2921 = vmatprep.subr.mxu0 0.0
      %2922 = vmatpush1.msra.mxu0 0.0
      %2923 = vmatprep.subr.mxu0 0.0
      %2924 = vmatpush1.msra.mxu0 0.0
      %2925 = vmatprep.subr.mxu0 0.0
      %2926 = vmatpush1.msra.mxu0 0.0
      %2927 = vmatprep.subr.mxu0 0.0
      %2928 = vmatpush1.msra.mxu0 0.0
      %2929 = vmatprep.subr.mxu0 0.0
      %2930 = vmatpush1.msra.mxu0 0.0
      %2931 = vmatprep.subr.mxu0 0.0
      %2932 = vmatpush1.msra.mxu0 0.0
      %2933 = vmatprep.subr.mxu0 0.0
      %2934 = vmatpush1.msra.mxu0 0.0
      %2935 = vmatprep.subr.mxu0 0.0
      %2936 = vmatpush1.msra.mxu0 0.0
      %2937 = vmatprep.subr.mxu0 0.0
      %2938 = vmatpush1.msra.mxu0 0.0
      %2939 = vmatprep.subr.mxu0 0.0
      %2940 = vmatpush1.msra.mxu0 0.0
      %2941 = vmatprep.subr.mxu0 0.0
      %2942 = vmatpush1.msra.mxu0 0.0
      %2943 = vmatprep.subr.mxu0 0.0
      %2944 = vmatpush1.msra.mxu0 0.0
      %2945 = vmatprep.subr.mxu0 0.0
      %2946 = vmatpush1.msra.mxu0 0.0
      %2947 = vmatprep.subr.mxu0 0.0
      %2948 = vmatpush1.msra.mxu0 0.0
      %2949 = vmatprep.subr.mxu0 0.0
      %2950 = vmatpush1.msra.mxu0 0.0
      %2951 = vmatprep.subr.mxu0 0.0
      %2952 = vmatpush1.msra.mxu0 0.0
      %2953 = vmatprep.subr.mxu0 0.0
      %2954 = vmatpush1.msra.mxu0 0.0
      %2955 = vmatprep.subr.mxu0 0.0
      %2956 = vmatpush1.msra.mxu0 0.0
      %2957 = vmatprep.subr.mxu0 0.0
      %2958 = vmatpush1.msra.mxu0 0.0
      %2959 = vmatprep.subr.mxu0 0.0
      %2960 = vmatpush1.msra.mxu0 0.0
      %2961 = vmatprep.subr.mxu0 0.0
      %2962 = vmatpush1.msra.mxu0 0.0
      %2963 = vmatprep.subr.mxu0 0.0
      %2964 = vmatpush1.msra.mxu0 0.0
      %2965 = vmatprep.subr.mxu0 0.0
      %2966 = vmatpush1.msra.mxu0 0.0
      %2967 = vmatprep.subr.mxu0 0.0
      %2968 = vmatpush1.msra.mxu0 0.0
      %2969 = vmatprep.subr.mxu0 0.0
      %2970 = vmatpush1.msra.mxu0 0.0
      %2971 = vmatprep.subr.mxu0 0.0
      %2972 = vmatpush1.msra.mxu0 0.0
      %2973 = vmatprep.subr.mxu0 0.0
      %2974 = vmatpush1.msra.mxu0 0.0
      %2975 = vmatprep.subr.mxu0 0.0
      %2976 = vmatpush1.msra.mxu0 0.0
      %2977 = vmatprep.mubr.f32.mxu0 0.0
      %2978 = vmatmul.mubr.f32.gmra.mrb[0].mxu0 %v2840
      %v2979 = vpop.f32.mrb[0].mxu0
      %v2980 = vadd.f32 0.0, %v2979
      %v2981 = vpop.f32.mrb[0].mxu0
      %v2982 = vadd.f32 0.0, %v2981
      %2983 = vdwg.mxu0
      %v2984 = vadd.f32 %v2806, %v2909
      %v2985 = vadd.f32 %v2807, %v2911
      %v2986 = vadd.f32 %v2808, %v2980
      %v2987 = vadd.f32 %v2809, %v2982
      %2988 = vrot.lane.b32.xlu0 %v330, 127
      %v2989 = vpop.permute.xlu0 %2988
      %2990 = vrot.lane.b32.xlu0 %v331, 127
      %v2991 = vpop.permute.xlu0 %2990
      %2992 = vrot.lane.b32.xlu0 %v332, 127
      %v2993 = vpop.permute.xlu0 %2992
      %2994 = vrot.lane.b32.xlu0 %v333, 127
      %v2995 = vpop.permute.xlu0 %2994
      %vm2996 = vcmp.lt.s32.totalorder %v343, 127
      %v2997 = vsel %vm2996, %v2993, %v2995
      %v2998 = vsel %vm2996, %v2991, %v2993
      %v2999 = vsel %vm2996, %v2989, %v2991
      %v3000 = vsel %vm2996, %v2995, %v2989
      %s3001 = scalar_lea.vmem %s7, 38
      %v3002 = vld [vmem:[%s3001] ss:$8 sm:$0xf]
      %v3004 = vlaneseq
      %v3005 = vshrl.u32 %v3004, 7
      %v3006 = vsub.s32 0, %v3005
      %v3007 = vrot.slane %v3002, %v3006
      %v3008 = vlaneseq
      %v3009 = vshrl.u32 %v3008, 7
      %v3010 = vsub.s32 1, %v3009
      %v3011 = vrot.slane %v3002, %v3010
      %v3012 = vlaneseq
      %v3013 = vshrl.u32 %v3012, 7
      %v3014 = vsub.s32 2, %v3013
      %v3015 = vrot.slane %v3002, %v3014
      %v3016 = vlaneseq
      %v3017 = vshrl.u32 %v3016, 7
      %v3018 = vsub.s32 3, %v3017
      %v3019 = vrot.slane %v3002, %v3018
      %v3024 = vmul.f32 %v2999, %v3007
      %v3025 = vmul.f32 %v2998, %v3011
      %v3026 = vmul.f32 %v2997, %v3015
      %v3027 = vmul.f32 %v3000, %v3019
      %s3028 = scalar_lea.vmem %s3, 112
      %v3029 = vld [vmem:[%s3028] sm:$0xff]
      %v3031 = vsel %vm418, %v3029, 0
      %3033 = vmatprep.subr.mxu0 %v3025
      %3034 = vmatpush1.msra.mxu0 %v3024
      %3035 = vmatprep.subr.mxu0 0.0
      %3036 = vmatpush1.msra.mxu0 0.0
      %3037 = vmatprep.subr.mxu0 0.0
      %3038 = vmatpush1.msra.mxu0 0.0
      %3039 = vmatprep.subr.mxu0 0.0
      %3040 = vmatpush1.msra.mxu0 0.0
      %3041 = vmatprep.subr.mxu0 0.0
      %3042 = vmatpush1.msra.mxu0 0.0
      %3043 = vmatprep.subr.mxu0 0.0
      %3044 = vmatpush1.msra.mxu0 0.0
      %3045 = vmatprep.subr.mxu0 0.0
      %3046 = vmatpush1.msra.mxu0 0.0
      %3047 = vmatprep.subr.mxu0 0.0
      %3048 = vmatpush1.msra.mxu0 0.0
      %3049 = vmatprep.subr.mxu0 0.0
      %3050 = vmatpush1.msra.mxu0 0.0
      %3051 = vmatprep.subr.mxu0 0.0
      %3052 = vmatpush1.msra.mxu0 0.0
      %3053 = vmatprep.subr.mxu0 0.0
      %3054 = vmatpush1.msra.mxu0 0.0
      %3055 = vmatprep.subr.mxu0 0.0
      %3056 = vmatpush1.msra.mxu0 0.0
      %3057 = vmatprep.subr.mxu0 0.0
      %3058 = vmatpush1.msra.mxu0 0.0
      %3059 = vmatprep.subr.mxu0 0.0
      %3060 = vmatpush1.msra.mxu0 0.0
      %3061 = vmatprep.subr.mxu0 0.0
      %3062 = vmatpush1.msra.mxu0 0.0
      %3063 = vmatprep.subr.mxu0 0.0
      %3064 = vmatpush1.msra.mxu0 0.0
      %3065 = vmatprep.subr.mxu0 0.0
      %3066 = vmatpush1.msra.mxu0 0.0
      %3067 = vmatprep.subr.mxu0 0.0
      %3068 = vmatpush1.msra.mxu0 0.0
      %3069 = vmatprep.subr.mxu0 0.0
      %3070 = vmatpush1.msra.mxu0 0.0
      %3071 = vmatprep.subr.mxu0 0.0
      %3072 = vmatpush1.msra.mxu0 0.0
      %3073 = vmatprep.subr.mxu0 0.0
      %3074 = vmatpush1.msra.mxu0 0.0
      %3075 = vmatprep.subr.mxu0 0.0
      %3076 = vmatpush1.msra.mxu0 0.0
      %3077 = vmatprep.subr.mxu0 0.0
      %3078 = vmatpush1.msra.mxu0 0.0
      %3079 = vmatprep.subr.mxu0 0.0
      %3080 = vmatpush1.msra.mxu0 0.0
      %3081 = vmatprep.subr.mxu0 0.0
      %3082 = vmatpush1.msra.mxu0 0.0
      %3083 = vmatprep.subr.mxu0 0.0
      %3084 = vmatpush1.msra.mxu0 0.0
      %3085 = vmatprep.subr.mxu0 0.0
      %3086 = vmatpush1.msra.mxu0 0.0
      %3087 = vmatprep.subr.mxu0 0.0
      %3088 = vmatpush1.msra.mxu0 0.0
      %3089 = vmatprep.subr.mxu0 0.0
      %3090 = vmatpush1.msra.mxu0 0.0
      %3091 = vmatprep.subr.mxu0 0.0
      %3092 = vmatpush1.msra.mxu0 0.0
      %3093 = vmatprep.subr.mxu0 0.0
      %3094 = vmatpush1.msra.mxu0 0.0
      %3095 = vmatprep.subr.mxu0 0.0
      %3096 = vmatpush1.msra.mxu0 0.0
      %3097 = vmatprep.mubr.f32.mxu0 0.0
      %3098 = vmatmul.mubr.f32.gmra.mrb[0].mxu0 %v3031
      %v3099 = vpop.f32.mrb[0].mxu0
      %v3100 = vadd.f32 0.0, %v3099
      %v3101 = vpop.f32.mrb[0].mxu0
      %v3102 = vadd.f32 0.0, %v3101
      %3103 = vdwg.mxu0
      %3104 = vmatprep.subr.mxu0 %v3027
      %3105 = vmatpush1.msra.mxu0 %v3026
      %3106 = vmatprep.subr.mxu0 0.0
      %3107 = vmatpush1.msra.mxu0 0.0
      %3108 = vmatprep.subr.mxu0 0.0
      %3109 = vmatpush1.msra.mxu0 0.0
      %3110 = vmatprep.subr.mxu0 0.0
      %3111 = vmatpush1.msra.mxu0 0.0
      %3112 = vmatprep.subr.mxu0 0.0
      %3113 = vmatpush1.msra.mxu0 0.0
      %3114 = vmatprep.subr.mxu0 0.0
      %3115 = vmatpush1.msra.mxu0 0.0
      %3116 = vmatprep.subr.mxu0 0.0
      %3117 = vmatpush1.msra.mxu0 0.0
      %3118 = vmatprep.subr.mxu0 0.0
      %3119 = vmatpush1.msra.mxu0 0.0
      %3120 = vmatprep.subr.mxu0 0.0
      %3121 = vmatpush1.msra.mxu0 0.0
      %3122 = vmatprep.subr.mxu0 0.0
      %3123 = vmatpush1.msra.mxu0 0.0
      %3124 = vmatprep.subr.mxu0 0.0
      %3125 = vmatpush1.msra.mxu0 0.0
      %3126 = vmatprep.subr.mxu0 0.0
      %3127 = vmatpush1.msra.mxu0 0.0
      %3128 = vmatprep.subr.mxu0 0.0
      %3129 = vmatpush1.msra.mxu0 0.0
      %3130 = vmatprep.subr.mxu0 0.0
      %3131 = vmatpush1.msra.mxu0 0.0
      %3132 = vmatprep.subr.mxu0 0.0
      %3133 = vmatpush1.msra.mxu0 0.0
      %3134 = vmatprep.subr.mxu0 0.0
      %3135 = vmatpush1.msra.mxu0 0.0
      %3136 = vmatprep.subr.mxu0 0.0
      %3137 = vmatpush1.msra.mxu0 0.0
      %3138 = vmatprep.subr.mxu0 0.0
      %3139 = vmatpush1.msra.mxu0 0.0
      %3140 = vmatprep.subr.mxu0 0.0
      %3141 = vmatpush1.msra.mxu0 0.0
      %3142 = vmatprep.subr.mxu0 0.0
      %3143 = vmatpush1.msra.mxu0 0.0
      %3144 = vmatprep.subr.mxu0 0.0
      %3145 = vmatpush1.msra.mxu0 0.0
      %3146 = vmatprep.subr.mxu0 0.0
      %3147 = vmatpush1.msra.mxu0 0.0
      %3148 = vmatprep.subr.mxu0 0.0
      %3149 = vmatpush1.msra.mxu0 0.0
      %3150 = vmatprep.subr.mxu0 0.0
      %3151 = vmatpush1.msra.mxu0 0.0
      %3152 = vmatprep.subr.mxu0 0.0
      %3153 = vmatpush1.msra.mxu0 0.0
      %3154 = vmatprep.subr.mxu0 0.0
      %3155 = vmatpush1.msra.mxu0 0.0
      %3156 = vmatprep.subr.mxu0 0.0
      %3157 = vmatpush1.msra.mxu0 0.0
      %3158 = vmatprep.subr.mxu0 0.0
      %3159 = vmatpush1.msra.mxu0 0.0
      %3160 = vmatprep.subr.mxu0 0.0
      %3161 = vmatpush1.msra.mxu0 0.0
      %3162 = vmatprep.subr.mxu0 0.0
      %3163 = vmatpush1.msra.mxu0 0.0
      %3164 = vmatprep.subr.mxu0 0.0
      %3165 = vmatpush1.msra.mxu0 0.0
      %3166 = vmatprep.subr.mxu0 0.0
      %3167 = vmatpush1.msra.mxu0 0.0
      %3168 = vmatprep.mubr.f32.mxu0 0.0
      %3169 = vmatmul.mubr.f32.gmra.mrb[0].mxu0 %v3031
      %v3170 = vpop.f32.mrb[0].mxu0
      %v3171 = vadd.f32 0.0, %v3170
      %v3172 = vpop.f32.mrb[0].mxu0
      %v3173 = vadd.f32 0.0, %v3172
      %3174 = vdwg.mxu0
      %v3175 = vadd.f32 %v2984, %v3100
      %v3176 = vadd.f32 %v2985, %v3102
      %v3177 = vadd.f32 %v2986, %v3171
      %v3178 = vadd.f32 %v2987, %v3173
      %3179 = vrot.lane.b32.xlu0 %v330, 121
      %v3180 = vpop.permute.xlu0 %3179
      %3181 = vrot.lane.b32.xlu0 %v331, 121
      %v3182 = vpop.permute.xlu0 %3181
      %3183 = vrot.lane.b32.xlu0 %v332, 121
      %v3184 = vpop.permute.xlu0 %3183
      %3185 = vrot.lane.b32.xlu0 %v333, 121
      %v3186 = vpop.permute.xlu0 %3185
      %vm3187 = vcmp.lt.s32.totalorder %v343, 121
      %v3188 = vsel %vm3187, %v3184, %v3186
      %v3189 = vsel %vm3187, %v3182, %v3184
      %v3190 = vsel %vm3187, %v3180, %v3182
      %v3191 = vsel %vm3187, %v3186, %v3180
      %s3192 = scalar_lea.vmem %s7, 39
      %v3193 = vld [vmem:[%s3192] ss:$8 sm:$0xf]
      %v3195 = vlaneseq
      %v3196 = vshrl.u32 %v3195, 7
      %v3197 = vsub.s32 0, %v3196
      %v3198 = vrot.slane %v3193, %v3197
      %v3199 = vlaneseq
      %v3200 = vshrl.u32 %v3199, 7
      %v3201 = vsub.s32 1, %v3200
      %v3202 = vrot.slane %v3193, %v3201
      %v3203 = vlaneseq
      %v3204 = vshrl.u32 %v3203, 7
      %v3205 = vsub.s32 2, %v3204
      %v3206 = vrot.slane %v3193, %v3205
      %v3207 = vlaneseq
      %v3208 = vshrl.u32 %v3207, 7
      %v3209 = vsub.s32 3, %v3208
      %v3210 = vrot.slane %v3193, %v3209
      %v3215 = vmul.f32 %v3190, %v3198
      %v3216 = vmul.f32 %v3189, %v3202
      %v3217 = vmul.f32 %v3188, %v3206
      %v3218 = vmul.f32 %v3191, %v3210
      %s3219 = scalar_lea.vmem %s3, 120
      %v3220 = vld [vmem:[%s3219] sm:$0xff]
      %v3222 = vsel %vm418, %v3220, 0
      %3224 = vmatprep.subr.mxu0 %v3216
      %3225 = vmatpush1.msra.mxu0 %v3215
      %3226 = vmatprep.subr.mxu0 0.0
      %3227 = vmatpush1.msra.mxu0 0.0
      %3228 = vmatprep.subr.mxu0 0.0
      %3229 = vmatpush1.msra.mxu0 0.0
      %3230 = vmatprep.subr.mxu0 0.0
      %3231 = vmatpush1.msra.mxu0 0.0
      %3232 = vmatprep.subr.mxu0 0.0
      %3233 = vmatpush1.msra.mxu0 0.0
      %3234 = vmatprep.subr.mxu0 0.0
      %3235 = vmatpush1.msra.mxu0 0.0
      %3236 = vmatprep.subr.mxu0 0.0
      %3237 = vmatpush1.msra.mxu0 0.0
      %3238 = vmatprep.subr.mxu0 0.0
      %3239 = vmatpush1.msra.mxu0 0.0
      %3240 = vmatprep.subr.mxu0 0.0
      %3241 = vmatpush1.msra.mxu0 0.0
      %3242 = vmatprep.subr.mxu0 0.0
      %3243 = vmatpush1.msra.mxu0 0.0
      %3244 = vmatprep.subr.mxu0 0.0
      %3245 = vmatpush1.msra.mxu0 0.0
      %3246 = vmatprep.subr.mxu0 0.0
      %3247 = vmatpush1.msra.mxu0 0.0
      %3248 = vmatprep.subr.mxu0 0.0
      %3249 = vmatpush1.msra.mxu0 0.0
      %3250 = vmatprep.subr.mxu0 0.0
      %3251 = vmatpush1.msra.mxu0 0.0
      %3252 = vmatprep.subr.mxu0 0.0
      %3253 = vmatpush1.msra.mxu0 0.0
      %3254 = vmatprep.subr.mxu0 0.0
      %3255 = vmatpush1.msra.mxu0 0.0
      %3256 = vmatprep.subr.mxu0 0.0
      %3257 = vmatpush1.msra.mxu0 0.0
      %3258 = vmatprep.subr.mxu0 0.0
      %3259 = vmatpush1.msra.mxu0 0.0
      %3260 = vmatprep.subr.mxu0 0.0
      %3261 = vmatpush1.msra.mxu0 0.0
      %3262 = vmatprep.subr.mxu0 0.0
      %3263 = vmatpush1.msra.mxu0 0.0
      %3264 = vmatprep.subr.mxu0 0.0
      %3265 = vmatpush1.msra.mxu0 0.0
      %3266 = vmatprep.subr.mxu0 0.0
      %3267 = vmatpush1.msra.mxu0 0.0
      %3268 = vmatprep.subr.mxu0 0.0
      %3269 = vmatpush1.msra.mxu0 0.0
      %3270 = vmatprep.subr.mxu0 0.0
      %3271 = vmatpush1.msra.mxu0 0.0
      %3272 = vmatprep.subr.mxu0 0.0
      %3273 = vmatpush1.msra.mxu0 0.0
      %3274 = vmatprep.subr.mxu0 0.0
      %3275 = vmatpush1.msra.mxu0 0.0
      %3276 = vmatprep.subr.mxu0 0.0
      %3277 = vmatpush1.msra.mxu0 0.0
      %3278 = vmatprep.subr.mxu0 0.0
      %3279 = vmatpush1.msra.mxu0 0.0
      %3280 = vmatprep.subr.mxu0 0.0
      %3281 = vmatpush1.msra.mxu0 0.0
      %3282 = vmatprep.subr.mxu0 0.0
      %3283 = vmatpush1.msra.mxu0 0.0
      %3284 = vmatprep.subr.mxu0 0.0
      %3285 = vmatpush1.msra.mxu0 0.0
      %3286 = vmatprep.subr.mxu0 0.0
      %3287 = vmatpush1.msra.mxu0 0.0
      %3288 = vmatprep.mubr.f32.mxu0 0.0
      %3289 = vmatmul.mubr.f32.gmra.mrb[0].mxu0 %v3222
      %v3290 = vpop.f32.mrb[0].mxu0
      %v3291 = vadd.f32 0.0, %v3290
      %v3292 = vpop.f32.mrb[0].mxu0
      %v3293 = vadd.f32 0.0, %v3292
      %3294 = vdwg.mxu0
      %3295 = vmatprep.subr.mxu0 %v3218
      %3296 = vmatpush1.msra.mxu0 %v3217
      %3297 = vmatprep.subr.mxu0 0.0
      %3298 = vmatpush1.msra.mxu0 0.0
      %3299 = vmatprep.subr.mxu0 0.0
      %3300 = vmatpush1.msra.mxu0 0.0
      %3301 = vmatprep.subr.mxu0 0.0
      %3302 = vmatpush1.msra.mxu0 0.0
      %3303 = vmatprep.subr.mxu0 0.0
      %3304 = vmatpush1.msra.mxu0 0.0
      %3305 = vmatprep.subr.mxu0 0.0
      %3306 = vmatpush1.msra.mxu0 0.0
      %3307 = vmatprep.subr.mxu0 0.0
      %3308 = vmatpush1.msra.mxu0 0.0
      %3309 = vmatprep.subr.mxu0 0.0
      %3310 = vmatpush1.msra.mxu0 0.0
      %3311 = vmatprep.subr.mxu0 0.0
      %3312 = vmatpush1.msra.mxu0 0.0
      %3313 = vmatprep.subr.mxu0 0.0
      %3314 = vmatpush1.msra.mxu0 0.0
      %3315 = vmatprep.subr.mxu0 0.0
      %3316 = vmatpush1.msra.mxu0 0.0
      %3317 = vmatprep.subr.mxu0 0.0
      %3318 = vmatpush1.msra.mxu0 0.0
      %3319 = vmatprep.subr.mxu0 0.0
      %3320 = vmatpush1.msra.mxu0 0.0
      %3321 = vmatprep.subr.mxu0 0.0
      %3322 = vmatpush1.msra.mxu0 0.0
      %3323 = vmatprep.subr.mxu0 0.0
      %3324 = vmatpush1.msra.mxu0 0.0
      %3325 = vmatprep.subr.mxu0 0.0
      %3326 = vmatpush1.msra.mxu0 0.0
      %3327 = vmatprep.subr.mxu0 0.0
      %3328 = vmatpush1.msra.mxu0 0.0
      %3329 = vmatprep.subr.mxu0 0.0
      %3330 = vmatpush1.msra.mxu0 0.0
      %3331 = vmatprep.subr.mxu0 0.0
      %3332 = vmatpush1.msra.mxu0 0.0
      %3333 = vmatprep.subr.mxu0 0.0
      %3334 = vmatpush1.msra.mxu0 0.0
      %3335 = vmatprep.subr.mxu0 0.0
      %3336 = vmatpush1.msra.mxu0 0.0
      %3337 = vmatprep.subr.mxu0 0.0
      %3338 = vmatpush1.msra.mxu0 0.0
      %3339 = vmatprep.subr.mxu0 0.0
      %3340 = vmatpush1.msra.mxu0 0.0
      %3341 = vmatprep.subr.mxu0 0.0
      %3342 = vmatpush1.msra.mxu0 0.0
      %3343 = vmatprep.subr.mxu0 0.0
      %3344 = vmatpush1.msra.mxu0 0.0
      %3345 = vmatprep.subr.mxu0 0.0
      %3346 = vmatpush1.msra.mxu0 0.0
      %3347 = vmatprep.subr.mxu0 0.0
      %3348 = vmatpush1.msra.mxu0 0.0
      %3349 = vmatprep.subr.mxu0 0.0
      %3350 = vmatpush1.msra.mxu0 0.0
      %3351 = vmatprep.subr.mxu0 0.0
      %3352 = vmatpush1.msra.mxu0 0.0
      %3353 = vmatprep.subr.mxu0 0.0
      %3354 = vmatpush1.msra.mxu0 0.0
      %3355 = vmatprep.subr.mxu0 0.0
      %3356 = vmatpush1.msra.mxu0 0.0
      %3357 = vmatprep.subr.mxu0 0.0
      %3358 = vmatpush1.msra.mxu0 0.0
      %3359 = vmatprep.mubr.f32.mxu0 0.0
      %3360 = vmatmul.mubr.f32.gmra.mrb[0].mxu0 %v3222
      %v3361 = vpop.f32.mrb[0].mxu0
      %v3362 = vadd.f32 0.0, %v3361
      %v3363 = vpop.f32.mrb[0].mxu0
      %v3364 = vadd.f32 0.0, %v3363
      %3365 = vdwg.mxu0
      %v3366 = vadd.f32 %v3175, %v3291
      %v3367 = vadd.f32 %v3176, %v3293
      %v3368 = vadd.f32 %v3177, %v3362
      %v3369 = vadd.f32 %v3178, %v3364
      %3370 = vrot.lane.b32.xlu0 %v330, 120
      %v3371 = vpop.permute.xlu0 %3370
      %3372 = vrot.lane.b32.xlu0 %v331, 120
      %v3373 = vpop.permute.xlu0 %3372
      %3374 = vrot.lane.b32.xlu0 %v332, 120
      %v3375 = vpop.permute.xlu0 %3374
      %3376 = vrot.lane.b32.xlu0 %v333, 120
      %v3377 = vpop.permute.xlu0 %3376
      %vm3378 = vcmp.lt.s32.totalorder %v343, 120
      %v3379 = vsel %vm3378, %v3375, %v3377
      %v3380 = vsel %vm3378, %v3373, %v3375
      %v3381 = vsel %vm3378, %v3371, %v3373
      %v3382 = vsel %vm3378, %v3377, %v3371
      %s3383 = scalar_lea.vmem %s7, 64
      %v3384 = vld [vmem:[%s3383] ss:$8 sm:$0xf]
      %v3386 = vlaneseq
      %v3387 = vshrl.u32 %v3386, 7
      %v3388 = vsub.s32 0, %v3387
      %v3389 = vrot.slane %v3384, %v3388
      %v3390 = vlaneseq
      %v3391 = vshrl.u32 %v3390, 7
      %v3392 = vsub.s32 1, %v3391
      %v3393 = vrot.slane %v3384, %v3392
      %v3394 = vlaneseq
      %v3395 = vshrl.u32 %v3394, 7
      %v3396 = vsub.s32 2, %v3395
      %v3397 = vrot.slane %v3384, %v3396
      %v3398 = vlaneseq
      %v3399 = vshrl.u32 %v3398, 7
      %v3400 = vsub.s32 3, %v3399
      %v3401 = vrot.slane %v3384, %v3400
      %v3406 = vmul.f32 %v3381, %v3389
      %v3407 = vmul.f32 %v3380, %v3393
      %v3408 = vmul.f32 %v3379, %v3397
      %v3409 = vmul.f32 %v3382, %v3401
      %s3410 = scalar_lea.vmem %s3, 128
      %v3411 = vld [vmem:[%s3410] sm:$0xff]
      %v3413 = vsel %vm418, %v3411, 0
      %3415 = vmatprep.subr.mxu0 %v3407
      %3416 = vmatpush1.msra.mxu0 %v3406
      %3417 = vmatprep.subr.mxu0 0.0
      %3418 = vmatpush1.msra.mxu0 0.0
      %3419 = vmatprep.subr.mxu0 0.0
      %3420 = vmatpush1.msra.mxu0 0.0
      %3421 = vmatprep.subr.mxu0 0.0
      %3422 = vmatpush1.msra.mxu0 0.0
      %3423 = vmatprep.subr.mxu0 0.0
      %3424 = vmatpush1.msra.mxu0 0.0
      %3425 = vmatprep.subr.mxu0 0.0
      %3426 = vmatpush1.msra.mxu0 0.0
      %3427 = vmatprep.subr.mxu0 0.0
      %3428 = vmatpush1.msra.mxu0 0.0
      %3429 = vmatprep.subr.mxu0 0.0
      %3430 = vmatpush1.msra.mxu0 0.0
      %3431 = vmatprep.subr.mxu0 0.0
      %3432 = vmatpush1.msra.mxu0 0.0
      %3433 = vmatprep.subr.mxu0 0.0
      %3434 = vmatpush1.msra.mxu0 0.0
      %3435 = vmatprep.subr.mxu0 0.0
      %3436 = vmatpush1.msra.mxu0 0.0
      %3437 = vmatprep.subr.mxu0 0.0
      %3438 = vmatpush1.msra.mxu0 0.0
      %3439 = vmatprep.subr.mxu0 0.0
      %3440 = vmatpush1.msra.mxu0 0.0
      %3441 = vmatprep.subr.mxu0 0.0
      %3442 = vmatpush1.msra.mxu0 0.0
      %3443 = vmatprep.subr.mxu0 0.0
      %3444 = vmatpush1.msra.mxu0 0.0
      %3445 = vmatprep.subr.mxu0 0.0
      %3446 = vmatpush1.msra.mxu0 0.0
      %3447 = vmatprep.subr.mxu0 0.0
      %3448 = vmatpush1.msra.mxu0 0.0
      %3449 = vmatprep.subr.mxu0 0.0
      %3450 = vmatpush1.msra.mxu0 0.0
      %3451 = vmatprep.subr.mxu0 0.0
      %3452 = vmatpush1.msra.mxu0 0.0
      %3453 = vmatprep.subr.mxu0 0.0
      %3454 = vmatpush1.msra.mxu0 0.0
      %3455 = vmatprep.subr.mxu0 0.0
      %3456 = vmatpush1.msra.mxu0 0.0
      %3457 = vmatprep.subr.mxu0 0.0
      %3458 = vmatpush1.msra.mxu0 0.0
      %3459 = vmatprep.subr.mxu0 0.0
      %3460 = vmatpush1.msra.mxu0 0.0
      %3461 = vmatprep.subr.mxu0 0.0
      %3462 = vmatpush1.msra.mxu0 0.0
      %3463 = vmatprep.subr.mxu0 0.0
      %3464 = vmatpush1.msra.mxu0 0.0
      %3465 = vmatprep.subr.mxu0 0.0
      %3466 = vmatpush1.msra.mxu0 0.0
      %3467 = vmatprep.subr.mxu0 0.0
      %3468 = vmatpush1.msra.mxu0 0.0
      %3469 = vmatprep.subr.mxu0 0.0
      %3470 = vmatpush1.msra.mxu0 0.0
      %3471 = vmatprep.subr.mxu0 0.0
      %3472 = vmatpush1.msra.mxu0 0.0
      %3473 = vmatprep.subr.mxu0 0.0
      %3474 = vmatpush1.msra.mxu0 0.0
      %3475 = vmatprep.subr.mxu0 0.0
      %3476 = vmatpush1.msra.mxu0 0.0
      %3477 = vmatprep.subr.mxu0 0.0
      %3478 = vmatpush1.msra.mxu0 0.0
      %3479 = vmatprep.mubr.f32.mxu0 0.0
      %3480 = vmatmul.mubr.f32.gmra.mrb[0].mxu0 %v3413
      %v3481 = vpop.f32.mrb[0].mxu0
      %v3482 = vadd.f32 0.0, %v3481
      %v3483 = vpop.f32.mrb[0].mxu0
      %v3484 = vadd.f32 0.0, %v3483
      %3485 = vdwg.mxu0
      %3486 = vmatprep.subr.mxu0 %v3409
      %3487 = vmatpush1.msra.mxu0 %v3408
      %3488 = vmatprep.subr.mxu0 0.0
      %3489 = vmatpush1.msra.mxu0 0.0
      %3490 = vmatprep.subr.mxu0 0.0
      %3491 = vmatpush1.msra.mxu0 0.0
      %3492 = vmatprep.subr.mxu0 0.0
      %3493 = vmatpush1.msra.mxu0 0.0
      %3494 = vmatprep.subr.mxu0 0.0
      %3495 = vmatpush1.msra.mxu0 0.0
      %3496 = vmatprep.subr.mxu0 0.0
      %3497 = vmatpush1.msra.mxu0 0.0
      %3498 = vmatprep.subr.mxu0 0.0
      %3499 = vmatpush1.msra.mxu0 0.0
      %3500 = vmatprep.subr.mxu0 0.0
      %3501 = vmatpush1.msra.mxu0 0.0
      %3502 = vmatprep.subr.mxu0 0.0
      %3503 = vmatpush1.msra.mxu0 0.0
      %3504 = vmatprep.subr.mxu0 0.0
      %3505 = vmatpush1.msra.mxu0 0.0
      %3506 = vmatprep.subr.mxu0 0.0
      %3507 = vmatpush1.msra.mxu0 0.0
      %3508 = vmatprep.subr.mxu0 0.0
      %3509 = vmatpush1.msra.mxu0 0.0
      %3510 = vmatprep.subr.mxu0 0.0
      %3511 = vmatpush1.msra.mxu0 0.0
      %3512 = vmatprep.subr.mxu0 0.0
      %3513 = vmatpush1.msra.mxu0 0.0
      %3514 = vmatprep.subr.mxu0 0.0
      %3515 = vmatpush1.msra.mxu0 0.0
      %3516 = vmatprep.subr.mxu0 0.0
      %3517 = vmatpush1.msra.mxu0 0.0
      %3518 = vmatprep.subr.mxu0 0.0
      %3519 = vmatpush1.msra.mxu0 0.0
      %3520 = vmatprep.subr.mxu0 0.0
      %3521 = vmatpush1.msra.mxu0 0.0
      %3522 = vmatprep.subr.mxu0 0.0
      %3523 = vmatpush1.msra.mxu0 0.0
      %3524 = vmatprep.subr.mxu0 0.0
      %3525 = vmatpush1.msra.mxu0 0.0
      %3526 = vmatprep.subr.mxu0 0.0
      %3527 = vmatpush1.msra.mxu0 0.0
      %3528 = vmatprep.subr.mxu0 0.0
      %3529 = vmatpush1.msra.mxu0 0.0
      %3530 = vmatprep.subr.mxu0 0.0
      %3531 = vmatpush1.msra.mxu0 0.0
      %3532 = vmatprep.subr.mxu0 0.0
      %3533 = vmatpush1.msra.mxu0 0.0
      %3534 = vmatprep.subr.mxu0 0.0
      %3535 = vmatpush1.msra.mxu0 0.0
      %3536 = vmatprep.subr.mxu0 0.0
      %3537 = vmatpush1.msra.mxu0 0.0
      %3538 = vmatprep.subr.mxu0 0.0
      %3539 = vmatpush1.msra.mxu0 0.0
      %3540 = vmatprep.subr.mxu0 0.0
      %3541 = vmatpush1.msra.mxu0 0.0
      %3542 = vmatprep.subr.mxu0 0.0
      %3543 = vmatpush1.msra.mxu0 0.0
      %3544 = vmatprep.subr.mxu0 0.0
      %3545 = vmatpush1.msra.mxu0 0.0
      %3546 = vmatprep.subr.mxu0 0.0
      %3547 = vmatpush1.msra.mxu0 0.0
      %3548 = vmatprep.subr.mxu0 0.0
      %3549 = vmatpush1.msra.mxu0 0.0
      %3550 = vmatprep.mubr.f32.mxu0 0.0
      %3551 = vmatmul.mubr.f32.gmra.mrb[0].mxu0 %v3413
      %v3552 = vpop.f32.mrb[0].mxu0
      %v3553 = vadd.f32 0.0, %v3552
      %v3554 = vpop.f32.mrb[0].mxu0
      %v3555 = vadd.f32 0.0, %v3554
      %3556 = vdwg.mxu0
      %v3557 = vadd.f32 %v3366, %v3482
      %v3558 = vadd.f32 %v3367, %v3484
      %v3559 = vadd.f32 %v3368, %v3553
      %v3560 = vadd.f32 %v3369, %v3555
      %3561 = vrot.lane.b32.xlu0 %v330, 119
      %v3562 = vpop.permute.xlu0 %3561
      %3563 = vrot.lane.b32.xlu0 %v331, 119
      %v3564 = vpop.permute.xlu0 %3563
      %3565 = vrot.lane.b32.xlu0 %v332, 119
      %v3566 = vpop.permute.xlu0 %3565
      %3567 = vrot.lane.b32.xlu0 %v333, 119
      %v3568 = vpop.permute.xlu0 %3567
      %vm3569 = vcmp.lt.s32.totalorder %v343, 119
      %v3570 = vsel %vm3569, %v3566, %v3568
      %v3571 = vsel %vm3569, %v3564, %v3566
      %v3572 = vsel %vm3569, %v3562, %v3564
      %v3573 = vsel %vm3569, %v3568, %v3562
      %s3574 = scalar_lea.vmem %s7, 65
      %v3575 = vld [vmem:[%s3574] ss:$8 sm:$0xf]
      %v3577 = vlaneseq
      %v3578 = vshrl.u32 %v3577, 7
      %v3579 = vsub.s32 0, %v3578
      %v3580 = vrot.slane %v3575, %v3579
      %v3581 = vlaneseq
      %v3582 = vshrl.u32 %v3581, 7
      %v3583 = vsub.s32 1, %v3582
      %v3584 = vrot.slane %v3575, %v3583
      %v3585 = vlaneseq
      %v3586 = vshrl.u32 %v3585, 7
      %v3587 = vsub.s32 2, %v3586
      %v3588 = vrot.slane %v3575, %v3587
      %v3589 = vlaneseq
      %v3590 = vshrl.u32 %v3589, 7
      %v3591 = vsub.s32 3, %v3590
      %v3592 = vrot.slane %v3575, %v3591
      %v3597 = vmul.f32 %v3572, %v3580
      %v3598 = vmul.f32 %v3571, %v3584
      %v3599 = vmul.f32 %v3570, %v3588
      %v3600 = vmul.f32 %v3573, %v3592
      %s3601 = scalar_lea.vmem %s3, 136
      %v3602 = vld [vmem:[%s3601] sm:$0xff]
      %v3604 = vsel %vm418, %v3602, 0
      %3606 = vmatprep.subr.mxu0 %v3598
      %3607 = vmatpush1.msra.mxu0 %v3597
      %3608 = vmatprep.subr.mxu0 0.0
      %3609 = vmatpush1.msra.mxu0 0.0
      %3610 = vmatprep.subr.mxu0 0.0
      %3611 = vmatpush1.msra.mxu0 0.0
      %3612 = vmatprep.subr.mxu0 0.0
      %3613 = vmatpush1.msra.mxu0 0.0
      %3614 = vmatprep.subr.mxu0 0.0
      %3615 = vmatpush1.msra.mxu0 0.0
      %3616 = vmatprep.subr.mxu0 0.0
      %3617 = vmatpush1.msra.mxu0 0.0
      %3618 = vmatprep.subr.mxu0 0.0
      %3619 = vmatpush1.msra.mxu0 0.0
      %3620 = vmatprep.subr.mxu0 0.0
      %3621 = vmatpush1.msra.mxu0 0.0
      %3622 = vmatprep.subr.mxu0 0.0
      %3623 = vmatpush1.msra.mxu0 0.0
      %3624 = vmatprep.subr.mxu0 0.0
      %3625 = vmatpush1.msra.mxu0 0.0
      %3626 = vmatprep.subr.mxu0 0.0
      %3627 = vmatpush1.msra.mxu0 0.0
      %3628 = vmatprep.subr.mxu0 0.0
      %3629 = vmatpush1.msra.mxu0 0.0
      %3630 = vmatprep.subr.mxu0 0.0
      %3631 = vmatpush1.msra.mxu0 0.0
      %3632 = vmatprep.subr.mxu0 0.0
      %3633 = vmatpush1.msra.mxu0 0.0
      %3634 = vmatprep.subr.mxu0 0.0
      %3635 = vmatpush1.msra.mxu0 0.0
      %3636 = vmatprep.subr.mxu0 0.0
      %3637 = vmatpush1.msra.mxu0 0.0
      %3638 = vmatprep.subr.mxu0 0.0
      %3639 = vmatpush1.msra.mxu0 0.0
      %3640 = vmatprep.subr.mxu0 0.0
      %3641 = vmatpush1.msra.mxu0 0.0
      %3642 = vmatprep.subr.mxu0 0.0
      %3643 = vmatpush1.msra.mxu0 0.0
      %3644 = vmatprep.subr.mxu0 0.0
      %3645 = vmatpush1.msra.mxu0 0.0
      %3646 = vmatprep.subr.mxu0 0.0
      %3647 = vmatpush1.msra.mxu0 0.0
      %3648 = vmatprep.subr.mxu0 0.0
      %3649 = vmatpush1.msra.mxu0 0.0
      %3650 = vmatprep.subr.mxu0 0.0
      %3651 = vmatpush1.msra.mxu0 0.0
      %3652 = vmatprep.subr.mxu0 0.0
      %3653 = vmatpush1.msra.mxu0 0.0
      %3654 = vmatprep.subr.mxu0 0.0
      %3655 = vmatpush1.msra.mxu0 0.0
      %3656 = vmatprep.subr.mxu0 0.0
      %3657 = vmatpush1.msra.mxu0 0.0
      %3658 = vmatprep.subr.mxu0 0.0
      %3659 = vmatpush1.msra.mxu0 0.0
      %3660 = vmatprep.subr.mxu0 0.0
      %3661 = vmatpush1.msra.mxu0 0.0
      %3662 = vmatprep.subr.mxu0 0.0
      %3663 = vmatpush1.msra.mxu0 0.0
      %3664 = vmatprep.subr.mxu0 0.0
      %3665 = vmatpush1.msra.mxu0 0.0
      %3666 = vmatprep.subr.mxu0 0.0
      %3667 = vmatpush1.msra.mxu0 0.0
      %3668 = vmatprep.subr.mxu0 0.0
      %3669 = vmatpush1.msra.mxu0 0.0
      %3670 = vmatprep.mubr.f32.mxu0 0.0
      %3671 = vmatmul.mubr.f32.gmra.mrb[0].mxu0 %v3604
      %v3672 = vpop.f32.mrb[0].mxu0
      %v3673 = vadd.f32 0.0, %v3672
      %v3674 = vpop.f32.mrb[0].mxu0
      %v3675 = vadd.f32 0.0, %v3674
      %3676 = vdwg.mxu0
      %3677 = vmatprep.subr.mxu0 %v3600
      %3678 = vmatpush1.msra.mxu0 %v3599
      %3679 = vmatprep.subr.mxu0 0.0
      %3680 = vmatpush1.msra.mxu0 0.0
      %3681 = vmatprep.subr.mxu0 0.0
      %3682 = vmatpush1.msra.mxu0 0.0
      %3683 = vmatprep.subr.mxu0 0.0
      %3684 = vmatpush1.msra.mxu0 0.0
      %3685 = vmatprep.subr.mxu0 0.0
      %3686 = vmatpush1.msra.mxu0 0.0
      %3687 = vmatprep.subr.mxu0 0.0
      %3688 = vmatpush1.msra.mxu0 0.0
      %3689 = vmatprep.subr.mxu0 0.0
      %3690 = vmatpush1.msra.mxu0 0.0
      %3691 = vmatprep.subr.mxu0 0.0
      %3692 = vmatpush1.msra.mxu0 0.0
      %3693 = vmatprep.subr.mxu0 0.0
      %3694 = vmatpush1.msra.mxu0 0.0
      %3695 = vmatprep.subr.mxu0 0.0
      %3696 = vmatpush1.msra.mxu0 0.0
      %3697 = vmatprep.subr.mxu0 0.0
      %3698 = vmatpush1.msra.mxu0 0.0
      %3699 = vmatprep.subr.mxu0 0.0
      %3700 = vmatpush1.msra.mxu0 0.0
      %3701 = vmatprep.subr.mxu0 0.0
      %3702 = vmatpush1.msra.mxu0 0.0
      %3703 = vmatprep.subr.mxu0 0.0
      %3704 = vmatpush1.msra.mxu0 0.0
      %3705 = vmatprep.subr.mxu0 0.0
      %3706 = vmatpush1.msra.mxu0 0.0
      %3707 = vmatprep.subr.mxu0 0.0
      %3708 = vmatpush1.msra.mxu0 0.0
      %3709 = vmatprep.subr.mxu0 0.0
      %3710 = vmatpush1.msra.mxu0 0.0
      %3711 = vmatprep.subr.mxu0 0.0
      %3712 = vmatpush1.msra.mxu0 0.0
      %3713 = vmatprep.subr.mxu0 0.0
      %3714 = vmatpush1.msra.mxu0 0.0
      %3715 = vmatprep.subr.mxu0 0.0
      %3716 = vmatpush1.msra.mxu0 0.0
      %3717 = vmatprep.subr.mxu0 0.0
      %3718 = vmatpush1.msra.mxu0 0.0
      %3719 = vmatprep.subr.mxu0 0.0
      %3720 = vmatpush1.msra.mxu0 0.0
      %3721 = vmatprep.subr.mxu0 0.0
      %3722 = vmatpush1.msra.mxu0 0.0
      %3723 = vmatprep.subr.mxu0 0.0
      %3724 = vmatpush1.msra.mxu0 0.0
      %3725 = vmatprep.subr.mxu0 0.0
      %3726 = vmatpush1.msra.mxu0 0.0
      %3727 = vmatprep.subr.mxu0 0.0
      %3728 = vmatpush1.msra.mxu0 0.0
      %3729 = vmatprep.subr.mxu0 0.0
      %3730 = vmatpush1.msra.mxu0 0.0
      %3731 = vmatprep.subr.mxu0 0.0
      %3732 = vmatpush1.msra.mxu0 0.0
      %3733 = vmatprep.subr.mxu0 0.0
      %3734 = vmatpush1.msra.mxu0 0.0
      %3735 = vmatprep.subr.mxu0 0.0
      %3736 = vmatpush1.msra.mxu0 0.0
      %3737 = vmatprep.subr.mxu0 0.0
      %3738 = vmatpush1.msra.mxu0 0.0
      %3739 = vmatprep.subr.mxu0 0.0
      %3740 = vmatpush1.msra.mxu0 0.0
      %3741 = vmatprep.mubr.f32.mxu0 0.0
      %3742 = vmatmul.mubr.f32.gmra.mrb[0].mxu0 %v3604
      %v3743 = vpop.f32.mrb[0].mxu0
      %v3744 = vadd.f32 0.0, %v3743
      %v3745 = vpop.f32.mrb[0].mxu0
      %v3746 = vadd.f32 0.0, %v3745
      %3747 = vdwg.mxu0
      %v3748 = vadd.f32 %v3557, %v3673
      %v3749 = vadd.f32 %v3558, %v3675
      %v3750 = vadd.f32 %v3559, %v3744
      %v3751 = vadd.f32 %v3560, %v3746
      %s3752 = scalar_lea.vmem %s7, 66
      %v3753 = vld [vmem:[%s3752] ss:$8 sm:$0xf]
      %v3755 = vlaneseq
      %v3756 = vshrl.u32 %v3755, 7
      %v3757 = vsub.s32 0, %v3756
      %v3758 = vrot.slane %v3753, %v3757
      %v3759 = vlaneseq
      %v3760 = vshrl.u32 %v3759, 7
      %v3761 = vsub.s32 1, %v3760
      %v3762 = vrot.slane %v3753, %v3761
      %v3763 = vlaneseq
      %v3764 = vshrl.u32 %v3763, 7
      %v3765 = vsub.s32 2, %v3764
      %v3766 = vrot.slane %v3753, %v3765
      %v3767 = vlaneseq
      %v3768 = vshrl.u32 %v3767, 7
      %v3769 = vsub.s32 3, %v3768
      %v3770 = vrot.slane %v3753, %v3769
      %v3775 = vmul.f32 %v347, %v3758
      %v3776 = vmul.f32 %v346, %v3762
      %v3777 = vmul.f32 %v345, %v3766
      %v3778 = vmul.f32 %v348, %v3770
      %s3779 = scalar_lea.vmem %s3, 144
      %v3780 = vld [vmem:[%s3779] sm:$0xff]
      %v3782 = vsel %vm418, %v3780, 0
      %3784 = vmatprep.subr.mxu0 %v3776
      %3785 = vmatpush1.msra.mxu0 %v3775
      %3786 = vmatprep.subr.mxu0 0.0
      %3787 = vmatpush1.msra.mxu0 0.0
      %3788 = vmatprep.subr.mxu0 0.0
      %3789 = vmatpush1.msra.mxu0 0.0
      %3790 = vmatprep.subr.mxu0 0.0
      %3791 = vmatpush1.msra.mxu0 0.0
      %3792 = vmatprep.subr.mxu0 0.0
      %3793 = vmatpush1.msra.mxu0 0.0
      %3794 = vmatprep.subr.mxu0 0.0
      %3795 = vmatpush1.msra.mxu0 0.0
      %3796 = vmatprep.subr.mxu0 0.0
      %3797 = vmatpush1.msra.mxu0 0.0
      %3798 = vmatprep.subr.mxu0 0.0
      %3799 = vmatpush1.msra.mxu0 0.0
      %3800 = vmatprep.subr.mxu0 0.0
      %3801 = vmatpush1.msra.mxu0 0.0
      %3802 = vmatprep.subr.mxu0 0.0
      %3803 = vmatpush1.msra.mxu0 0.0
      %3804 = vmatprep.subr.mxu0 0.0
      %3805 = vmatpush1.msra.mxu0 0.0
      %3806 = vmatprep.subr.mxu0 0.0
      %3807 = vmatpush1.msra.mxu0 0.0
      %3808 = vmatprep.subr.mxu0 0.0
      %3809 = vmatpush1.msra.mxu0 0.0
      %3810 = vmatprep.subr.mxu0 0.0
      %3811 = vmatpush1.msra.mxu0 0.0
      %3812 = vmatprep.subr.mxu0 0.0
      %3813 = vmatpush1.msra.mxu0 0.0
      %3814 = vmatprep.subr.mxu0 0.0
      %3815 = vmatpush1.msra.mxu0 0.0
      %3816 = vmatprep.subr.mxu0 0.0
      %3817 = vmatpush1.msra.mxu0 0.0
      %3818 = vmatprep.subr.mxu0 0.0
      %3819 = vmatpush1.msra.mxu0 0.0
      %3820 = vmatprep.subr.mxu0 0.0
      %3821 = vmatpush1.msra.mxu0 0.0
      %3822 = vmatprep.subr.mxu0 0.0
      %3823 = vmatpush1.msra.mxu0 0.0
      %3824 = vmatprep.subr.mxu0 0.0
      %3825 = vmatpush1.msra.mxu0 0.0
      %3826 = vmatprep.subr.mxu0 0.0
      %3827 = vmatpush1.msra.mxu0 0.0
      %3828 = vmatprep.subr.mxu0 0.0
      %3829 = vmatpush1.msra.mxu0 0.0
      %3830 = vmatprep.subr.mxu0 0.0
      %3831 = vmatpush1.msra.mxu0 0.0
      %3832 = vmatprep.subr.mxu0 0.0
      %3833 = vmatpush1.msra.mxu0 0.0
      %3834 = vmatprep.subr.mxu0 0.0
      %3835 = vmatpush1.msra.mxu0 0.0
      %3836 = vmatprep.subr.mxu0 0.0
      %3837 = vmatpush1.msra.mxu0 0.0
      %3838 = vmatprep.subr.mxu0 0.0
      %3839 = vmatpush1.msra.mxu0 0.0
      %3840 = vmatprep.subr.mxu0 0.0
      %3841 = vmatpush1.msra.mxu0 0.0
      %3842 = vmatprep.subr.mxu0 0.0
      %3843 = vmatpush1.msra.mxu0 0.0
      %3844 = vmatprep.subr.mxu0 0.0
      %3845 = vmatpush1.msra.mxu0 0.0
      %3846 = vmatprep.subr.mxu0 0.0
      %3847 = vmatpush1.msra.mxu0 0.0
      %3848 = vmatprep.mubr.f32.mxu0 0.0
      %3849 = vmatmul.mubr.f32.gmra.mrb[0].mxu0 %v3782
      %v3850 = vpop.f32.mrb[0].mxu0
      %v3851 = vadd.f32 0.0, %v3850
      %v3852 = vpop.f32.mrb[0].mxu0
      %v3853 = vadd.f32 0.0, %v3852
      %3854 = vdwg.mxu0
      %3855 = vmatprep.subr.mxu0 %v3778
      %3856 = vmatpush1.msra.mxu0 %v3777
      %3857 = vmatprep.subr.mxu0 0.0
      %3858 = vmatpush1.msra.mxu0 0.0
      %3859 = vmatprep.subr.mxu0 0.0
      %3860 = vmatpush1.msra.mxu0 0.0
      %3861 = vmatprep.subr.mxu0 0.0
      %3862 = vmatpush1.msra.mxu0 0.0
      %3863 = vmatprep.subr.mxu0 0.0
      %3864 = vmatpush1.msra.mxu0 0.0
      %3865 = vmatprep.subr.mxu0 0.0
      %3866 = vmatpush1.msra.mxu0 0.0
      %3867 = vmatprep.subr.mxu0 0.0
      %3868 = vmatpush1.msra.mxu0 0.0
      %3869 = vmatprep.subr.mxu0 0.0
      %3870 = vmatpush1.msra.mxu0 0.0
      %3871 = vmatprep.subr.mxu0 0.0
      %3872 = vmatpush1.msra.mxu0 0.0
      %3873 = vmatprep.subr.mxu0 0.0
      %3874 = vmatpush1.msra.mxu0 0.0
      %3875 = vmatprep.subr.mxu0 0.0
      %3876 = vmatpush1.msra.mxu0 0.0
      %3877 = vmatprep.subr.mxu0 0.0
      %3878 = vmatpush1.msra.mxu0 0.0
      %3879 = vmatprep.subr.mxu0 0.0
      %3880 = vmatpush1.msra.mxu0 0.0
      %3881 = vmatprep.subr.mxu0 0.0
      %3882 = vmatpush1.msra.mxu0 0.0
      %3883 = vmatprep.subr.mxu0 0.0
      %3884 = vmatpush1.msra.mxu0 0.0
      %3885 = vmatprep.subr.mxu0 0.0
      %3886 = vmatpush1.msra.mxu0 0.0
      %3887 = vmatprep.subr.mxu0 0.0
      %3888 = vmatpush1.msra.mxu0 0.0
      %3889 = vmatprep.subr.mxu0 0.0
      %3890 = vmatpush1.msra.mxu0 0.0
      %3891 = vmatprep.subr.mxu0 0.0
      %3892 = vmatpush1.msra.mxu0 0.0
      %3893 = vmatprep.subr.mxu0 0.0
      %3894 = vmatpush1.msra.mxu0 0.0
      %3895 = vmatprep.subr.mxu0 0.0
      %3896 = vmatpush1.msra.mxu0 0.0
      %3897 = vmatprep.subr.mxu0 0.0
      %3898 = vmatpush1.msra.mxu0 0.0
      %3899 = vmatprep.subr.mxu0 0.0
      %3900 = vmatpush1.msra.mxu0 0.0
      %3901 = vmatprep.subr.mxu0 0.0
      %3902 = vmatpush1.msra.mxu0 0.0
      %3903 = vmatprep.subr.mxu0 0.0
      %3904 = vmatpush1.msra.mxu0 0.0
      %3905 = vmatprep.subr.mxu0 0.0
      %3906 = vmatpush1.msra.mxu0 0.0
      %3907 = vmatprep.subr.mxu0 0.0
      %3908 = vmatpush1.msra.mxu0 0.0
      %3909 = vmatprep.subr.mxu0 0.0
      %3910 = vmatpush1.msra.mxu0 0.0
      %3911 = vmatprep.subr.mxu0 0.0
      %3912 = vmatpush1.msra.mxu0 0.0
      %3913 = vmatprep.subr.mxu0 0.0
      %3914 = vmatpush1.msra.mxu0 0.0
      %3915 = vmatprep.subr.mxu0 0.0
      %3916 = vmatpush1.msra.mxu0 0.0
      %3917 = vmatprep.subr.mxu0 0.0
      %3918 = vmatpush1.msra.mxu0 0.0
      %3919 = vmatprep.mubr.f32.mxu0 0.0
      %3920 = vmatmul.mubr.f32.gmra.mrb[0].mxu0 %v3782
      %v3921 = vpop.f32.mrb[0].mxu0
      %v3922 = vadd.f32 0.0, %v3921
      %v3923 = vpop.f32.mrb[0].mxu0
      %v3924 = vadd.f32 0.0, %v3923
      %3925 = vdwg.mxu0
      %v3926 = vadd.f32 %v3748, %v3851
      %v3927 = vadd.f32 %v3749, %v3853
      %v3928 = vadd.f32 %v3750, %v3922
      %v3929 = vadd.f32 %v3751, %v3924
      %s3930 = scalar_lea.vmem %s7, 67
      %v3931 = vld [vmem:[%s3930] ss:$8 sm:$0xf]
      %v3933 = vlaneseq
      %v3934 = vshrl.u32 %v3933, 7
      %v3935 = vsub.s32 0, %v3934
      %v3936 = vrot.slane %v3931, %v3935
      %v3937 = vlaneseq
      %v3938 = vshrl.u32 %v3937, 7
      %v3939 = vsub.s32 1, %v3938
      %v3940 = vrot.slane %v3931, %v3939
      %v3941 = vlaneseq
      %v3942 = vshrl.u32 %v3941, 7
      %v3943 = vsub.s32 2, %v3942
      %v3944 = vrot.slane %v3931, %v3943
      %v3945 = vlaneseq
      %v3946 = vshrl.u32 %v3945, 7
      %v3947 = vsub.s32 3, %v3946
      %v3948 = vrot.slane %v3931, %v3947
      %v3953 = vmul.f32 %v387, %v3936
      %v3954 = vmul.f32 %v386, %v3940
      %v3955 = vmul.f32 %v385, %v3944
      %v3956 = vmul.f32 %v388, %v3948
      %s3957 = scalar_lea.vmem %s3, 152
      %v3958 = vld [vmem:[%s3957] sm:$0xff]
      %v3960 = vsel %vm418, %v3958, 0
      %3962 = vmatprep.subr.mxu0 %v3954
      %3963 = vmatpush1.msra.mxu0 %v3953
      %3964 = vmatprep.subr.mxu0 0.0
      %3965 = vmatpush1.msra.mxu0 0.0
      %3966 = vmatprep.subr.mxu0 0.0
      %3967 = vmatpush1.msra.mxu0 0.0
      %3968 = vmatprep.subr.mxu0 0.0
      %3969 = vmatpush1.msra.mxu0 0.0
      %3970 = vmatprep.subr.mxu0 0.0
      %3971 = vmatpush1.msra.mxu0 0.0
      %3972 = vmatprep.subr.mxu0 0.0
      %3973 = vmatpush1.msra.mxu0 0.0
      %3974 = vmatprep.subr.mxu0 0.0
      %3975 = vmatpush1.msra.mxu0 0.0
      %3976 = vmatprep.subr.mxu0 0.0
      %3977 = vmatpush1.msra.mxu0 0.0
      %3978 = vmatprep.subr.mxu0 0.0
      %3979 = vmatpush1.msra.mxu0 0.0
      %3980 = vmatprep.subr.mxu0 0.0
      %3981 = vmatpush1.msra.mxu0 0.0
      %3982 = vmatprep.subr.mxu0 0.0
      %3983 = vmatpush1.msra.mxu0 0.0
      %3984 = vmatprep.subr.mxu0 0.0
      %3985 = vmatpush1.msra.mxu0 0.0
      %3986 = vmatprep.subr.mxu0 0.0
      %3987 = vmatpush1.msra.mxu0 0.0
      %3988 = vmatprep.subr.mxu0 0.0
      %3989 = vmatpush1.msra.mxu0 0.0
      %3990 = vmatprep.subr.mxu0 0.0
      %3991 = vmatpush1.msra.mxu0 0.0
      %3992 = vmatprep.subr.mxu0 0.0
      %3993 = vmatpush1.msra.mxu0 0.0
      %3994 = vmatprep.subr.mxu0 0.0
      %3995 = vmatpush1.msra.mxu0 0.0
      %3996 = vmatprep.subr.mxu0 0.0
      %3997 = vmatpush1.msra.mxu0 0.0
      %3998 = vmatprep.subr.mxu0 0.0
      %3999 = vmatpush1.msra.mxu0 0.0
      %4000 = vmatprep.subr.mxu0 0.0
      %4001 = vmatpush1.msra.mxu0 0.0
      %4002 = vmatprep.subr.mxu0 0.0
      %4003 = vmatpush1.msra.mxu0 0.0
      %4004 = vmatprep.subr.mxu0 0.0
      %4005 = vmatpush1.msra.mxu0 0.0
      %4006 = vmatprep.subr.mxu0 0.0
      %4007 = vmatpush1.msra.mxu0 0.0
      %4008 = vmatprep.subr.mxu0 0.0
      %4009 = vmatpush1.msra.mxu0 0.0
      %4010 = vmatprep.subr.mxu0 0.0
      %4011 = vmatpush1.msra.mxu0 0.0
      %4012 = vmatprep.subr.mxu0 0.0
      %4013 = vmatpush1.msra.mxu0 0.0
      %4014 = vmatprep.subr.mxu0 0.0
      %4015 = vmatpush1.msra.mxu0 0.0
      %4016 = vmatprep.subr.mxu0 0.0
      %4017 = vmatpush1.msra.mxu0 0.0
      %4018 = vmatprep.subr.mxu0 0.0
      %4019 = vmatpush1.msra.mxu0 0.0
      %4020 = vmatprep.subr.mxu0 0.0
      %4021 = vmatpush1.msra.mxu0 0.0
      %4022 = vmatprep.subr.mxu0 0.0
      %4023 = vmatpush1.msra.mxu0 0.0
      %4024 = vmatprep.subr.mxu0 0.0
      %4025 = vmatpush1.msra.mxu0 0.0
      %4026 = vmatprep.mubr.f32.mxu0 0.0
      %4027 = vmatmul.mubr.f32.gmra.mrb[0].mxu0 %v3960
      %v4028 = vpop.f32.mrb[0].mxu0
      %v4029 = vadd.f32 0.0, %v4028
      %v4030 = vpop.f32.mrb[0].mxu0
      %v4031 = vadd.f32 0.0, %v4030
      %4032 = vdwg.mxu0
      %4033 = vmatprep.subr.mxu0 %v3956
      %4034 = vmatpush1.msra.mxu0 %v3955
      %4035 = vmatprep.subr.mxu0 0.0
      %4036 = vmatpush1.msra.mxu0 0.0
      %4037 = vmatprep.subr.mxu0 0.0
      %4038 = vmatpush1.msra.mxu0 0.0
      %4039 = vmatprep.subr.mxu0 0.0
      %4040 = vmatpush1.msra.mxu0 0.0
      %4041 = vmatprep.subr.mxu0 0.0
      %4042 = vmatpush1.msra.mxu0 0.0
      %4043 = vmatprep.subr.mxu0 0.0
      %4044 = vmatpush1.msra.mxu0 0.0
      %4045 = vmatprep.subr.mxu0 0.0
      %4046 = vmatpush1.msra.mxu0 0.0
      %4047 = vmatprep.subr.mxu0 0.0
      %4048 = vmatpush1.msra.mxu0 0.0
      %4049 = vmatprep.subr.mxu0 0.0
      %4050 = vmatpush1.msra.mxu0 0.0
      %4051 = vmatprep.subr.mxu0 0.0
      %4052 = vmatpush1.msra.mxu0 0.0
      %4053 = vmatprep.subr.mxu0 0.0
      %4054 = vmatpush1.msra.mxu0 0.0
      %4055 = vmatprep.subr.mxu0 0.0
      %4056 = vmatpush1.msra.mxu0 0.0
      %4057 = vmatprep.subr.mxu0 0.0
      %4058 = vmatpush1.msra.mxu0 0.0
      %4059 = vmatprep.subr.mxu0 0.0
      %4060 = vmatpush1.msra.mxu0 0.0
      %4061 = vmatprep.subr.mxu0 0.0
      %4062 = vmatpush1.msra.mxu0 0.0
      %4063 = vmatprep.subr.mxu0 0.0
      %4064 = vmatpush1.msra.mxu0 0.0
      %4065 = vmatprep.subr.mxu0 0.0
      %4066 = vmatpush1.msra.mxu0 0.0
      %4067 = vmatprep.subr.mxu0 0.0
      %4068 = vmatpush1.msra.mxu0 0.0
      %4069 = vmatprep.subr.mxu0 0.0
      %4070 = vmatpush1.msra.mxu0 0.0
      %4071 = vmatprep.subr.mxu0 0.0
      %4072 = vmatpush1.msra.mxu0 0.0
      %4073 = vmatprep.subr.mxu0 0.0
      %4074 = vmatpush1.msra.mxu0 0.0
      %4075 = vmatprep.subr.mxu0 0.0
      %4076 = vmatpush1.msra.mxu0 0.0
      %4077 = vmatprep.subr.mxu0 0.0
      %4078 = vmatpush1.msra.mxu0 0.0
      %4079 = vmatprep.subr.mxu0 0.0
      %4080 = vmatpush1.msra.mxu0 0.0
      %4081 = vmatprep.subr.mxu0 0.0
      %4082 = vmatpush1.msra.mxu0 0.0
      %4083 = vmatprep.subr.mxu0 0.0
      %4084 = vmatpush1.msra.mxu0 0.0
      %4085 = vmatprep.subr.mxu0 0.0
      %4086 = vmatpush1.msra.mxu0 0.0
      %4087 = vmatprep.subr.mxu0 0.0
      %4088 = vmatpush1.msra.mxu0 0.0
      %4089 = vmatprep.subr.mxu0 0.0
      %4090 = vmatpush1.msra.mxu0 0.0
      %4091 = vmatprep.subr.mxu0 0.0
      %4092 = vmatpush1.msra.mxu0 0.0
      %4093 = vmatprep.subr.mxu0 0.0
      %4094 = vmatpush1.msra.mxu0 0.0
      %4095 = vmatprep.subr.mxu0 0.0
      %4096 = vmatpush1.msra.mxu0 0.0
      %4097 = vmatprep.mubr.f32.mxu0 0.0
      %4098 = vmatmul.mubr.f32.gmra.mrb[0].mxu0 %v3960
      %v4099 = vpop.f32.mrb[0].mxu0
      %v4100 = vadd.f32 0.0, %v4099
      %v4101 = vpop.f32.mrb[0].mxu0
      %v4102 = vadd.f32 0.0, %v4101
      %4103 = vdwg.mxu0
      %v4104 = vadd.f32 %v3926, %v4029
      %v4105 = vadd.f32 %v3927, %v4031
      %v4106 = vadd.f32 %v3928, %v4100
      %v4107 = vadd.f32 %v3929, %v4102
      %s4108 = scalar_lea.vmem %s7, 68
      %v4109 = vld [vmem:[%s4108] ss:$8 sm:$0xf]
      %v4111 = vlaneseq
      %v4112 = vshrl.u32 %v4111, 7
      %v4113 = vsub.s32 0, %v4112
      %v4114 = vrot.slane %v4109, %v4113
      %v4115 = vlaneseq
      %v4116 = vshrl.u32 %v4115, 7
      %v4117 = vsub.s32 1, %v4116
      %v4118 = vrot.slane %v4109, %v4117
      %v4119 = vlaneseq
      %v4120 = vshrl.u32 %v4119, 7
      %v4121 = vsub.s32 2, %v4120
      %v4122 = vrot.slane %v4109, %v4121
      %v4123 = vlaneseq
      %v4124 = vshrl.u32 %v4123, 7
      %v4125 = vsub.s32 3, %v4124
      %v4126 = vrot.slane %v4109, %v4125
      %v4131 = vmul.f32 %v720, %v4114
      %v4132 = vmul.f32 %v719, %v4118
      %v4133 = vmul.f32 %v718, %v4122
      %v4134 = vmul.f32 %v721, %v4126
      %s4135 = scalar_lea.vmem %s3, 160
      %v4136 = vld [vmem:[%s4135] sm:$0xff]
      %v4138 = vsel %vm418, %v4136, 0
      %4140 = vmatprep.subr.mxu0 %v4132
      %4141 = vmatpush1.msra.mxu0 %v4131
      %4142 = vmatprep.subr.mxu0 0.0
      %4143 = vmatpush1.msra.mxu0 0.0
      %4144 = vmatprep.subr.mxu0 0.0
      %4145 = vmatpush1.msra.mxu0 0.0
      %4146 = vmatprep.subr.mxu0 0.0
      %4147 = vmatpush1.msra.mxu0 0.0
      %4148 = vmatprep.subr.mxu0 0.0
      %4149 = vmatpush1.msra.mxu0 0.0
      %4150 = vmatprep.subr.mxu0 0.0
      %4151 = vmatpush1.msra.mxu0 0.0
      %4152 = vmatprep.subr.mxu0 0.0
      %4153 = vmatpush1.msra.mxu0 0.0
      %4154 = vmatprep.subr.mxu0 0.0
      %4155 = vmatpush1.msra.mxu0 0.0
      %4156 = vmatprep.subr.mxu0 0.0
      %4157 = vmatpush1.msra.mxu0 0.0
      %4158 = vmatprep.subr.mxu0 0.0
      %4159 = vmatpush1.msra.mxu0 0.0
      %4160 = vmatprep.subr.mxu0 0.0
      %4161 = vmatpush1.msra.mxu0 0.0
      %4162 = vmatprep.subr.mxu0 0.0
      %4163 = vmatpush1.msra.mxu0 0.0
      %4164 = vmatprep.subr.mxu0 0.0
      %4165 = vmatpush1.msra.mxu0 0.0
      %4166 = vmatprep.subr.mxu0 0.0
      %4167 = vmatpush1.msra.mxu0 0.0
      %4168 = vmatprep.subr.mxu0 0.0
      %4169 = vmatpush1.msra.mxu0 0.0
      %4170 = vmatprep.subr.mxu0 0.0
      %4171 = vmatpush1.msra.mxu0 0.0
      %4172 = vmatprep.subr.mxu0 0.0
      %4173 = vmatpush1.msra.mxu0 0.0
      %4174 = vmatprep.subr.mxu0 0.0
      %4175 = vmatpush1.msra.mxu0 0.0
      %4176 = vmatprep.subr.mxu0 0.0
      %4177 = vmatpush1.msra.mxu0 0.0
      %4178 = vmatprep.subr.mxu0 0.0
      %4179 = vmatpush1.msra.mxu0 0.0
      %4180 = vmatprep.subr.mxu0 0.0
      %4181 = vmatpush1.msra.mxu0 0.0
      %4182 = vmatprep.subr.mxu0 0.0
      %4183 = vmatpush1.msra.mxu0 0.0
      %4184 = vmatprep.subr.mxu0 0.0
      %4185 = vmatpush1.msra.mxu0 0.0
      %4186 = vmatprep.subr.mxu0 0.0
      %4187 = vmatpush1.msra.mxu0 0.0
      %4188 = vmatprep.subr.mxu0 0.0
      %4189 = vmatpush1.msra.mxu0 0.0
      %4190 = vmatprep.subr.mxu0 0.0
      %4191 = vmatpush1.msra.mxu0 0.0
      %4192 = vmatprep.subr.mxu0 0.0
      %4193 = vmatpush1.msra.mxu0 0.0
      %4194 = vmatprep.subr.mxu0 0.0
      %4195 = vmatpush1.msra.mxu0 0.0
      %4196 = vmatprep.subr.mxu0 0.0
      %4197 = vmatpush1.msra.mxu0 0.0
      %4198 = vmatprep.subr.mxu0 0.0
      %4199 = vmatpush1.msra.mxu0 0.0
      %4200 = vmatprep.subr.mxu0 0.0
      %4201 = vmatpush1.msra.mxu0 0.0
      %4202 = vmatprep.subr.mxu0 0.0
      %4203 = vmatpush1.msra.mxu0 0.0
      %4204 = vmatprep.mubr.f32.mxu0 0.0
      %4205 = vmatmul.mubr.f32.gmra.mrb[0].mxu0 %v4138
      %v4206 = vpop.f32.mrb[0].mxu0
      %v4207 = vadd.f32 0.0, %v4206
      %v4208 = vpop.f32.mrb[0].mxu0
      %v4209 = vadd.f32 0.0, %v4208
      %4210 = vdwg.mxu0
      %4211 = vmatprep.subr.mxu0 %v4134
      %4212 = vmatpush1.msra.mxu0 %v4133
      %4213 = vmatprep.subr.mxu0 0.0
      %4214 = vmatpush1.msra.mxu0 0.0
      %4215 = vmatprep.subr.mxu0 0.0
      %4216 = vmatpush1.msra.mxu0 0.0
      %4217 = vmatprep.subr.mxu0 0.0
      %4218 = vmatpush1.msra.mxu0 0.0
      %4219 = vmatprep.subr.mxu0 0.0
      %4220 = vmatpush1.msra.mxu0 0.0
      %4221 = vmatprep.subr.mxu0 0.0
      %4222 = vmatpush1.msra.mxu0 0.0
      %4223 = vmatprep.subr.mxu0 0.0
      %4224 = vmatpush1.msra.mxu0 0.0
      %4225 = vmatprep.subr.mxu0 0.0
      %4226 = vmatpush1.msra.mxu0 0.0
      %4227 = vmatprep.subr.mxu0 0.0
      %4228 = vmatpush1.msra.mxu0 0.0
      %4229 = vmatprep.subr.mxu0 0.0
      %4230 = vmatpush1.msra.mxu0 0.0
      %4231 = vmatprep.subr.mxu0 0.0
      %4232 = vmatpush1.msra.mxu0 0.0
      %4233 = vmatprep.subr.mxu0 0.0
      %4234 = vmatpush1.msra.mxu0 0.0
      %4235 = vmatprep.subr.mxu0 0.0
      %4236 = vmatpush1.msra.mxu0 0.0
      %4237 = vmatprep.subr.mxu0 0.0
      %4238 = vmatpush1.msra.mxu0 0.0
      %4239 = vmatprep.subr.mxu0 0.0
      %4240 = vmatpush1.msra.mxu0 0.0
      %4241 = vmatprep.subr.mxu0 0.0
      %4242 = vmatpush1.msra.mxu0 0.0
      %4243 = vmatprep.subr.mxu0 0.0
      %4244 = vmatpush1.msra.mxu0 0.0
      %4245 = vmatprep.subr.mxu0 0.0
      %4246 = vmatpush1.msra.mxu0 0.0
      %4247 = vmatprep.subr.mxu0 0.0
      %4248 = vmatpush1.msra.mxu0 0.0
      %4249 = vmatprep.subr.mxu0 0.0
      %4250 = vmatpush1.msra.mxu0 0.0
      %4251 = vmatprep.subr.mxu0 0.0
      %4252 = vmatpush1.msra.mxu0 0.0
      %4253 = vmatprep.subr.mxu0 0.0
      %4254 = vmatpush1.msra.mxu0 0.0
      %4255 = vmatprep.subr.mxu0 0.0
      %4256 = vmatpush1.msra.mxu0 0.0
      %4257 = vmatprep.subr.mxu0 0.0
      %4258 = vmatpush1.msra.mxu0 0.0
      %4259 = vmatprep.subr.mxu0 0.0
      %4260 = vmatpush1.msra.mxu0 0.0
      %4261 = vmatprep.subr.mxu0 0.0
      %4262 = vmatpush1.msra.mxu0 0.0
      %4263 = vmatprep.subr.mxu0 0.0
      %4264 = vmatpush1.msra.mxu0 0.0
      %4265 = vmatprep.subr.mxu0 0.0
      %4266 = vmatpush1.msra.mxu0 0.0
      %4267 = vmatprep.subr.mxu0 0.0
      %4268 = vmatpush1.msra.mxu0 0.0
      %4269 = vmatprep.subr.mxu0 0.0
      %4270 = vmatpush1.msra.mxu0 0.0
      %4271 = vmatprep.subr.mxu0 0.0
      %4272 = vmatpush1.msra.mxu0 0.0
      %4273 = vmatprep.subr.mxu0 0.0
      %4274 = vmatpush1.msra.mxu0 0.0
      %4275 = vmatprep.mubr.f32.mxu0 0.0
      %4276 = vmatmul.mubr.f32.gmra.mrb[0].mxu0 %v4138
      %v4277 = vpop.f32.mrb[0].mxu0
      %v4278 = vadd.f32 0.0, %v4277
      %v4279 = vpop.f32.mrb[0].mxu0
      %v4280 = vadd.f32 0.0, %v4279
      %4281 = vdwg.mxu0
      %v4282 = vadd.f32 %v4104, %v4207
      %v4283 = vadd.f32 %v4105, %v4209
      %v4284 = vadd.f32 %v4106, %v4278
      %v4285 = vadd.f32 %v4107, %v4280
      %s4286 = scalar_lea.vmem %s7, 69
      %v4287 = vld [vmem:[%s4286] ss:$8 sm:$0xf]
      %v4289 = vlaneseq
      %v4290 = vshrl.u32 %v4289, 7
      %v4291 = vsub.s32 0, %v4290
      %v4292 = vrot.slane %v4287, %v4291
      %v4293 = vlaneseq
      %v4294 = vshrl.u32 %v4293, 7
      %v4295 = vsub.s32 1, %v4294
      %v4296 = vrot.slane %v4287, %v4295
      %v4297 = vlaneseq
      %v4298 = vshrl.u32 %v4297, 7
      %v4299 = vsub.s32 2, %v4298
      %v4300 = vrot.slane %v4287, %v4299
      %v4301 = vlaneseq
      %v4302 = vshrl.u32 %v4301, 7
      %v4303 = vsub.s32 3, %v4302
      %v4304 = vrot.slane %v4287, %v4303
      %v4309 = vmul.f32 %v911, %v4292
      %v4310 = vmul.f32 %v910, %v4296
      %v4311 = vmul.f32 %v909, %v4300
      %v4312 = vmul.f32 %v912, %v4304
      %s4313 = scalar_lea.vmem %s3, 168
      %v4314 = vld [vmem:[%s4313] sm:$0xff]
      %v4316 = vsel %vm418, %v4314, 0
      %4318 = vmatprep.subr.mxu0 %v4310
      %4319 = vmatpush1.msra.mxu0 %v4309
      %4320 = vmatprep.subr.mxu0 0.0
      %4321 = vmatpush1.msra.mxu0 0.0
      %4322 = vmatprep.subr.mxu0 0.0
      %4323 = vmatpush1.msra.mxu0 0.0
      %4324 = vmatprep.subr.mxu0 0.0
      %4325 = vmatpush1.msra.mxu0 0.0
      %4326 = vmatprep.subr.mxu0 0.0
      %4327 = vmatpush1.msra.mxu0 0.0
      %4328 = vmatprep.subr.mxu0 0.0
      %4329 = vmatpush1.msra.mxu0 0.0
      %4330 = vmatprep.subr.mxu0 0.0
      %4331 = vmatpush1.msra.mxu0 0.0
      %4332 = vmatprep.subr.mxu0 0.0
      %4333 = vmatpush1.msra.mxu0 0.0
      %4334 = vmatprep.subr.mxu0 0.0
      %4335 = vmatpush1.msra.mxu0 0.0
      %4336 = vmatprep.subr.mxu0 0.0
      %4337 = vmatpush1.msra.mxu0 0.0
      %4338 = vmatprep.subr.mxu0 0.0
      %4339 = vmatpush1.msra.mxu0 0.0
      %4340 = vmatprep.subr.mxu0 0.0
      %4341 = vmatpush1.msra.mxu0 0.0
      %4342 = vmatprep.subr.mxu0 0.0
      %4343 = vmatpush1.msra.mxu0 0.0
      %4344 = vmatprep.subr.mxu0 0.0
      %4345 = vmatpush1.msra.mxu0 0.0
      %4346 = vmatprep.subr.mxu0 0.0
      %4347 = vmatpush1.msra.mxu0 0.0
      %4348 = vmatprep.subr.mxu0 0.0
      %4349 = vmatpush1.msra.mxu0 0.0
      %4350 = vmatprep.subr.mxu0 0.0
      %4351 = vmatpush1.msra.mxu0 0.0
      %4352 = vmatprep.subr.mxu0 0.0
      %4353 = vmatpush1.msra.mxu0 0.0
      %4354 = vmatprep.subr.mxu0 0.0
      %4355 = vmatpush1.msra.mxu0 0.0
      %4356 = vmatprep.subr.mxu0 0.0
      %4357 = vmatpush1.msra.mxu0 0.0
      %4358 = vmatprep.subr.mxu0 0.0
      %4359 = vmatpush1.msra.mxu0 0.0
      %4360 = vmatprep.subr.mxu0 0.0
      %4361 = vmatpush1.msra.mxu0 0.0
      %4362 = vmatprep.subr.mxu0 0.0
      %4363 = vmatpush1.msra.mxu0 0.0
      %4364 = vmatprep.subr.mxu0 0.0
      %4365 = vmatpush1.msra.mxu0 0.0
      %4366 = vmatprep.subr.mxu0 0.0
      %4367 = vmatpush1.msra.mxu0 0.0
      %4368 = vmatprep.subr.mxu0 0.0
      %4369 = vmatpush1.msra.mxu0 0.0
      %4370 = vmatprep.subr.mxu0 0.0
      %4371 = vmatpush1.msra.mxu0 0.0
      %4372 = vmatprep.subr.mxu0 0.0
      %4373 = vmatpush1.msra.mxu0 0.0
      %4374 = vmatprep.subr.mxu0 0.0
      %4375 = vmatpush1.msra.mxu0 0.0
      %4376 = vmatprep.subr.mxu0 0.0
      %4377 = vmatpush1.msra.mxu0 0.0
      %4378 = vmatprep.subr.mxu0 0.0
      %4379 = vmatpush1.msra.mxu0 0.0
      %4380 = vmatprep.subr.mxu0 0.0
      %4381 = vmatpush1.msra.mxu0 0.0
      %4382 = vmatprep.mubr.f32.mxu0 0.0
      %4383 = vmatmul.mubr.f32.gmra.mrb[0].mxu0 %v4316
      %v4384 = vpop.f32.mrb[0].mxu0
      %v4385 = vadd.f32 0.0, %v4384
      %v4386 = vpop.f32.mrb[0].mxu0
      %v4387 = vadd.f32 0.0, %v4386
      %4388 = vdwg.mxu0
      %4389 = vmatprep.subr.mxu0 %v4312
      %4390 = vmatpush1.msra.mxu0 %v4311
      %4391 = vmatprep.subr.mxu0 0.0
      %4392 = vmatpush1.msra.mxu0 0.0
      %4393 = vmatprep.subr.mxu0 0.0
      %4394 = vmatpush1.msra.mxu0 0.0
      %4395 = vmatprep.subr.mxu0 0.0
      %4396 = vmatpush1.msra.mxu0 0.0
      %4397 = vmatprep.subr.mxu0 0.0
      %4398 = vmatpush1.msra.mxu0 0.0
      %4399 = vmatprep.subr.mxu0 0.0
      %4400 = vmatpush1.msra.mxu0 0.0
      %4401 = vmatprep.subr.mxu0 0.0
      %4402 = vmatpush1.msra.mxu0 0.0
      %4403 = vmatprep.subr.mxu0 0.0
      %4404 = vmatpush1.msra.mxu0 0.0
      %4405 = vmatprep.subr.mxu0 0.0
      %4406 = vmatpush1.msra.mxu0 0.0
      %4407 = vmatprep.subr.mxu0 0.0
      %4408 = vmatpush1.msra.mxu0 0.0
      %4409 = vmatprep.subr.mxu0 0.0
      %4410 = vmatpush1.msra.mxu0 0.0
      %4411 = vmatprep.subr.mxu0 0.0
      %4412 = vmatpush1.msra.mxu0 0.0
      %4413 = vmatprep.subr.mxu0 0.0
      %4414 = vmatpush1.msra.mxu0 0.0
      %4415 = vmatprep.subr.mxu0 0.0
      %4416 = vmatpush1.msra.mxu0 0.0
      %4417 = vmatprep.subr.mxu0 0.0
      %4418 = vmatpush1.msra.mxu0 0.0
      %4419 = vmatprep.subr.mxu0 0.0
      %4420 = vmatpush1.msra.mxu0 0.0
      %4421 = vmatprep.subr.mxu0 0.0
      %4422 = vmatpush1.msra.mxu0 0.0
      %4423 = vmatprep.subr.mxu0 0.0
      %4424 = vmatpush1.msra.mxu0 0.0
      %4425 = vmatprep.subr.mxu0 0.0
      %4426 = vmatpush1.msra.mxu0 0.0
      %4427 = vmatprep.subr.mxu0 0.0
      %4428 = vmatpush1.msra.mxu0 0.0
      %4429 = vmatprep.subr.mxu0 0.0
      %4430 = vmatpush1.msra.mxu0 0.0
      %4431 = vmatprep.subr.mxu0 0.0
      %4432 = vmatpush1.msra.mxu0 0.0
      %4433 = vmatprep.subr.mxu0 0.0
      %4434 = vmatpush1.msra.mxu0 0.0
      %4435 = vmatprep.subr.mxu0 0.0
      %4436 = vmatpush1.msra.mxu0 0.0
      %4437 = vmatprep.subr.mxu0 0.0
      %4438 = vmatpush1.msra.mxu0 0.0
      %4439 = vmatprep.subr.mxu0 0.0
      %4440 = vmatpush1.msra.mxu0 0.0
      %4441 = vmatprep.subr.mxu0 0.0
      %4442 = vmatpush1.msra.mxu0 0.0
      %4443 = vmatprep.subr.mxu0 0.0
      %4444 = vmatpush1.msra.mxu0 0.0
      %4445 = vmatprep.subr.mxu0 0.0
      %4446 = vmatpush1.msra.mxu0 0.0
      %4447 = vmatprep.subr.mxu0 0.0
      %4448 = vmatpush1.msra.mxu0 0.0
      %4449 = vmatprep.subr.mxu0 0.0
      %4450 = vmatpush1.msra.mxu0 0.0
      %4451 = vmatprep.subr.mxu0 0.0
      %4452 = vmatpush1.msra.mxu0 0.0
      %4453 = vmatprep.mubr.f32.mxu0 0.0
      %4454 = vmatmul.mubr.f32.gmra.mrb[0].mxu0 %v4316
      %v4455 = vpop.f32.mrb[0].mxu0
      %v4456 = vadd.f32 0.0, %v4455
      %v4457 = vpop.f32.mrb[0].mxu0
      %v4458 = vadd.f32 0.0, %v4457
      %4459 = vdwg.mxu0
      %v4460 = vadd.f32 %v4282, %v4385
      %v4461 = vadd.f32 %v4283, %v4387
      %v4462 = vadd.f32 %v4284, %v4456
      %v4463 = vadd.f32 %v4285, %v4458
      %s4464 = scalar_lea.vmem %s7, 70
      %v4465 = vld [vmem:[%s4464] ss:$8 sm:$0xf]
      %v4467 = vlaneseq
      %v4468 = vshrl.u32 %v4467, 7
      %v4469 = vsub.s32 0, %v4468
      %v4470 = vrot.slane %v4465, %v4469
      %v4471 = vlaneseq
      %v4472 = vshrl.u32 %v4471, 7
      %v4473 = vsub.s32 1, %v4472
      %v4474 = vrot.slane %v4465, %v4473
      %v4475 = vlaneseq
      %v4476 = vshrl.u32 %v4475, 7
      %v4477 = vsub.s32 2, %v4476
      %v4478 = vrot.slane %v4465, %v4477
      %v4479 = vlaneseq
      %v4480 = vshrl.u32 %v4479, 7
      %v4481 = vsub.s32 3, %v4480
      %v4482 = vrot.slane %v4465, %v4481
      %v4487 = vmul.f32 %v1102, %v4470
      %v4488 = vmul.f32 %v1101, %v4474
      %v4489 = vmul.f32 %v1100, %v4478
      %v4490 = vmul.f32 %v1103, %v4482
      %s4491 = scalar_lea.vmem %s3, 176
      %v4492 = vld [vmem:[%s4491] sm:$0xff]
      %v4494 = vsel %vm418, %v4492, 0
      %4496 = vmatprep.subr.mxu0 %v4488
      %4497 = vmatpush1.msra.mxu0 %v4487
      %4498 = vmatprep.subr.mxu0 0.0
      %4499 = vmatpush1.msra.mxu0 0.0
      %4500 = vmatprep.subr.mxu0 0.0
      %4501 = vmatpush1.msra.mxu0 0.0
      %4502 = vmatprep.subr.mxu0 0.0
      %4503 = vmatpush1.msra.mxu0 0.0
      %4504 = vmatprep.subr.mxu0 0.0
      %4505 = vmatpush1.msra.mxu0 0.0
      %4506 = vmatprep.subr.mxu0 0.0
      %4507 = vmatpush1.msra.mxu0 0.0
      %4508 = vmatprep.subr.mxu0 0.0
      %4509 = vmatpush1.msra.mxu0 0.0
      %4510 = vmatprep.subr.mxu0 0.0
      %4511 = vmatpush1.msra.mxu0 0.0
      %4512 = vmatprep.subr.mxu0 0.0
      %4513 = vmatpush1.msra.mxu0 0.0
      %4514 = vmatprep.subr.mxu0 0.0
      %4515 = vmatpush1.msra.mxu0 0.0
      %4516 = vmatprep.subr.mxu0 0.0
      %4517 = vmatpush1.msra.mxu0 0.0
      %4518 = vmatprep.subr.mxu0 0.0
      %4519 = vmatpush1.msra.mxu0 0.0
      %4520 = vmatprep.subr.mxu0 0.0
      %4521 = vmatpush1.msra.mxu0 0.0
      %4522 = vmatprep.subr.mxu0 0.0
      %4523 = vmatpush1.msra.mxu0 0.0
      %4524 = vmatprep.subr.mxu0 0.0
      %4525 = vmatpush1.msra.mxu0 0.0
      %4526 = vmatprep.subr.mxu0 0.0
      %4527 = vmatpush1.msra.mxu0 0.0
      %4528 = vmatprep.subr.mxu0 0.0
      %4529 = vmatpush1.msra.mxu0 0.0
      %4530 = vmatprep.subr.mxu0 0.0
      %4531 = vmatpush1.msra.mxu0 0.0
      %4532 = vmatprep.subr.mxu0 0.0
      %4533 = vmatpush1.msra.mxu0 0.0
      %4534 = vmatprep.subr.mxu0 0.0
      %4535 = vmatpush1.msra.mxu0 0.0
      %4536 = vmatprep.subr.mxu0 0.0
      %4537 = vmatpush1.msra.mxu0 0.0
      %4538 = vmatprep.subr.mxu0 0.0
      %4539 = vmatpush1.msra.mxu0 0.0
      %4540 = vmatprep.subr.mxu0 0.0
      %4541 = vmatpush1.msra.mxu0 0.0
      %4542 = vmatprep.subr.mxu0 0.0
      %4543 = vmatpush1.msra.mxu0 0.0
      %4544 = vmatprep.subr.mxu0 0.0
      %4545 = vmatpush1.msra.mxu0 0.0
      %4546 = vmatprep.subr.mxu0 0.0
      %4547 = vmatpush1.msra.mxu0 0.0
      %4548 = vmatprep.subr.mxu0 0.0
      %4549 = vmatpush1.msra.mxu0 0.0
      %4550 = vmatprep.subr.mxu0 0.0
      %4551 = vmatpush1.msra.mxu0 0.0
      %4552 = vmatprep.subr.mxu0 0.0
      %4553 = vmatpush1.msra.mxu0 0.0
      %4554 = vmatprep.subr.mxu0 0.0
      %4555 = vmatpush1.msra.mxu0 0.0
      %4556 = vmatprep.subr.mxu0 0.0
      %4557 = vmatpush1.msra.mxu0 0.0
      %4558 = vmatprep.subr.mxu0 0.0
      %4559 = vmatpush1.msra.mxu0 0.0
      %4560 = vmatprep.mubr.f32.mxu0 0.0
      %4561 = vmatmul.mubr.f32.gmra.mrb[0].mxu0 %v4494
      %v4562 = vpop.f32.mrb[0].mxu0
      %v4563 = vadd.f32 0.0, %v4562
      %v4564 = vpop.f32.mrb[0].mxu0
      %v4565 = vadd.f32 0.0, %v4564
      %4566 = vdwg.mxu0
      %4567 = vmatprep.subr.mxu0 %v4490
      %4568 = vmatpush1.msra.mxu0 %v4489
      %4569 = vmatprep.subr.mxu0 0.0
      %4570 = vmatpush1.msra.mxu0 0.0
      %4571 = vmatprep.subr.mxu0 0.0
      %4572 = vmatpush1.msra.mxu0 0.0
      %4573 = vmatprep.subr.mxu0 0.0
      %4574 = vmatpush1.msra.mxu0 0.0
      %4575 = vmatprep.subr.mxu0 0.0
      %4576 = vmatpush1.msra.mxu0 0.0
      %4577 = vmatprep.subr.mxu0 0.0
      %4578 = vmatpush1.msra.mxu0 0.0
      %4579 = vmatprep.subr.mxu0 0.0
      %4580 = vmatpush1.msra.mxu0 0.0
      %4581 = vmatprep.subr.mxu0 0.0
      %4582 = vmatpush1.msra.mxu0 0.0
      %4583 = vmatprep.subr.mxu0 0.0
      %4584 = vmatpush1.msra.mxu0 0.0
      %4585 = vmatprep.subr.mxu0 0.0
      %4586 = vmatpush1.msra.mxu0 0.0
      %4587 = vmatprep.subr.mxu0 0.0
      %4588 = vmatpush1.msra.mxu0 0.0
      %4589 = vmatprep.subr.mxu0 0.0
      %4590 = vmatpush1.msra.mxu0 0.0
      %4591 = vmatprep.subr.mxu0 0.0
      %4592 = vmatpush1.msra.mxu0 0.0
      %4593 = vmatprep.subr.mxu0 0.0
      %4594 = vmatpush1.msra.mxu0 0.0
      %4595 = vmatprep.subr.mxu0 0.0
      %4596 = vmatpush1.msra.mxu0 0.0
      %4597 = vmatprep.subr.mxu0 0.0
      %4598 = vmatpush1.msra.mxu0 0.0
      %4599 = vmatprep.subr.mxu0 0.0
      %4600 = vmatpush1.msra.mxu0 0.0
      %4601 = vmatprep.subr.mxu0 0.0
      %4602 = vmatpush1.msra.mxu0 0.0
      %4603 = vmatprep.subr.mxu0 0.0
      %4604 = vmatpush1.msra.mxu0 0.0
      %4605 = vmatprep.subr.mxu0 0.0
      %4606 = vmatpush1.msra.mxu0 0.0
      %4607 = vmatprep.subr.mxu0 0.0
      %4608 = vmatpush1.msra.mxu0 0.0
      %4609 = vmatprep.subr.mxu0 0.0
      %4610 = vmatpush1.msra.mxu0 0.0
      %4611 = vmatprep.subr.mxu0 0.0
      %4612 = vmatpush1.msra.mxu0 0.0
      %4613 = vmatprep.subr.mxu0 0.0
      %4614 = vmatpush1.msra.mxu0 0.0
      %4615 = vmatprep.subr.mxu0 0.0
      %4616 = vmatpush1.msra.mxu0 0.0
      %4617 = vmatprep.subr.mxu0 0.0
      %4618 = vmatpush1.msra.mxu0 0.0
      %4619 = vmatprep.subr.mxu0 0.0
      %4620 = vmatpush1.msra.mxu0 0.0
      %4621 = vmatprep.subr.mxu0 0.0
      %4622 = vmatpush1.msra.mxu0 0.0
      %4623 = vmatprep.subr.mxu0 0.0
      %4624 = vmatpush1.msra.mxu0 0.0
      %4625 = vmatprep.subr.mxu0 0.0
      %4626 = vmatpush1.msra.mxu0 0.0
      %4627 = vmatprep.subr.mxu0 0.0
      %4628 = vmatpush1.msra.mxu0 0.0
      %4629 = vmatprep.subr.mxu0 0.0
      %4630 = vmatpush1.msra.mxu0 0.0
      %4631 = vmatprep.mubr.f32.mxu0 0.0
      %4632 = vmatmul.mubr.f32.gmra.mrb[0].mxu0 %v4494
      %v4633 = vpop.f32.mrb[0].mxu0
      %v4634 = vadd.f32 0.0, %v4633
      %v4635 = vpop.f32.mrb[0].mxu0
      %v4636 = vadd.f32 0.0, %v4635
      %4637 = vdwg.mxu0
      %v4638 = vadd.f32 %v4460, %v4563
      %v4639 = vadd.f32 %v4461, %v4565
      %v4640 = vadd.f32 %v4462, %v4634
      %v4641 = vadd.f32 %v4463, %v4636
      %s4642 = scalar_lea.vmem %s7, 71
      %v4643 = vld [vmem:[%s4642] ss:$8 sm:$0xf]
      %v4645 = vlaneseq
      %v4646 = vshrl.u32 %v4645, 7
      %v4647 = vsub.s32 0, %v4646
      %v4648 = vrot.slane %v4643, %v4647
      %v4649 = vlaneseq
      %v4650 = vshrl.u32 %v4649, 7
      %v4651 = vsub.s32 1, %v4650
      %v4652 = vrot.slane %v4643, %v4651
      %v4653 = vlaneseq
      %v4654 = vshrl.u32 %v4653, 7
      %v4655 = vsub.s32 2, %v4654
      %v4656 = vrot.slane %v4643, %v4655
      %v4657 = vlaneseq
      %v4658 = vshrl.u32 %v4657, 7
      %v4659 = vsub.s32 3, %v4658
      %v4660 = vrot.slane %v4643, %v4659
      %v4665 = vmul.f32 %v1293, %v4648
      %v4666 = vmul.f32 %v1292, %v4652
      %v4667 = vmul.f32 %v1291, %v4656
      %v4668 = vmul.f32 %v1294, %v4660
      %s4669 = scalar_lea.vmem %s3, 184
      %v4670 = vld [vmem:[%s4669] sm:$0xff]
      %v4672 = vsel %vm418, %v4670, 0
      %4674 = vmatprep.subr.mxu0 %v4666
      %4675 = vmatpush1.msra.mxu0 %v4665
      %4676 = vmatprep.subr.mxu0 0.0
      %4677 = vmatpush1.msra.mxu0 0.0
      %4678 = vmatprep.subr.mxu0 0.0
      %4679 = vmatpush1.msra.mxu0 0.0
      %4680 = vmatprep.subr.mxu0 0.0
      %4681 = vmatpush1.msra.mxu0 0.0
      %4682 = vmatprep.subr.mxu0 0.0
      %4683 = vmatpush1.msra.mxu0 0.0
      %4684 = vmatprep.subr.mxu0 0.0
      %4685 = vmatpush1.msra.mxu0 0.0
      %4686 = vmatprep.subr.mxu0 0.0
      %4687 = vmatpush1.msra.mxu0 0.0
      %4688 = vmatprep.subr.mxu0 0.0
      %4689 = vmatpush1.msra.mxu0 0.0
      %4690 = vmatprep.subr.mxu0 0.0
      %4691 = vmatpush1.msra.mxu0 0.0
      %4692 = vmatprep.subr.mxu0 0.0
      %4693 = vmatpush1.msra.mxu0 0.0
      %4694 = vmatprep.subr.mxu0 0.0
      %4695 = vmatpush1.msra.mxu0 0.0
      %4696 = vmatprep.subr.mxu0 0.0
      %4697 = vmatpush1.msra.mxu0 0.0
      %4698 = vmatprep.subr.mxu0 0.0
      %4699 = vmatpush1.msra.mxu0 0.0
      %4700 = vmatprep.subr.mxu0 0.0
      %4701 = vmatpush1.msra.mxu0 0.0
      %4702 = vmatprep.subr.mxu0 0.0
      %4703 = vmatpush1.msra.mxu0 0.0
      %4704 = vmatprep.subr.mxu0 0.0
      %4705 = vmatpush1.msra.mxu0 0.0
      %4706 = vmatprep.subr.mxu0 0.0
      %4707 = vmatpush1.msra.mxu0 0.0
      %4708 = vmatprep.subr.mxu0 0.0
      %4709 = vmatpush1.msra.mxu0 0.0
      %4710 = vmatprep.subr.mxu0 0.0
      %4711 = vmatpush1.msra.mxu0 0.0
      %4712 = vmatprep.subr.mxu0 0.0
      %4713 = vmatpush1.msra.mxu0 0.0
      %4714 = vmatprep.subr.mxu0 0.0
      %4715 = vmatpush1.msra.mxu0 0.0
      %4716 = vmatprep.subr.mxu0 0.0
      %4717 = vmatpush1.msra.mxu0 0.0
      %4718 = vmatprep.subr.mxu0 0.0
      %4719 = vmatpush1.msra.mxu0 0.0
      %4720 = vmatprep.subr.mxu0 0.0
      %4721 = vmatpush1.msra.mxu0 0.0
      %4722 = vmatprep.subr.mxu0 0.0
      %4723 = vmatpush1.msra.mxu0 0.0
      %4724 = vmatprep.subr.mxu0 0.0
      %4725 = vmatpush1.msra.mxu0 0.0
      %4726 = vmatprep.subr.mxu0 0.0
      %4727 = vmatpush1.msra.mxu0 0.0
      %4728 = vmatprep.subr.mxu0 0.0
      %4729 = vmatpush1.msra.mxu0 0.0
      %4730 = vmatprep.subr.mxu0 0.0
      %4731 = vmatpush1.msra.mxu0 0.0
      %4732 = vmatprep.subr.mxu0 0.0
      %4733 = vmatpush1.msra.mxu0 0.0
      %4734 = vmatprep.subr.mxu0 0.0
      %4735 = vmatpush1.msra.mxu0 0.0
      %4736 = vmatprep.subr.mxu0 0.0
      %4737 = vmatpush1.msra.mxu0 0.0
      %4738 = vmatprep.mubr.f32.mxu0 0.0
      %4739 = vmatmul.mubr.f32.gmra.mrb[0].mxu0 %v4672
      %v4740 = vpop.f32.mrb[0].mxu0
      %v4741 = vadd.f32 0.0, %v4740
      %v4742 = vpop.f32.mrb[0].mxu0
      %v4743 = vadd.f32 0.0, %v4742
      %4744 = vdwg.mxu0
      %4745 = vmatprep.subr.mxu0 %v4668
      %4746 = vmatpush1.msra.mxu0 %v4667
      %4747 = vmatprep.subr.mxu0 0.0
      %4748 = vmatpush1.msra.mxu0 0.0
      %4749 = vmatprep.subr.mxu0 0.0
      %4750 = vmatpush1.msra.mxu0 0.0
      %4751 = vmatprep.subr.mxu0 0.0
      %4752 = vmatpush1.msra.mxu0 0.0
      %4753 = vmatprep.subr.mxu0 0.0
      %4754 = vmatpush1.msra.mxu0 0.0
      %4755 = vmatprep.subr.mxu0 0.0
      %4756 = vmatpush1.msra.mxu0 0.0
      %4757 = vmatprep.subr.mxu0 0.0
      %4758 = vmatpush1.msra.mxu0 0.0
      %4759 = vmatprep.subr.mxu0 0.0
      %4760 = vmatpush1.msra.mxu0 0.0
      %4761 = vmatprep.subr.mxu0 0.0
      %4762 = vmatpush1.msra.mxu0 0.0
      %4763 = vmatprep.subr.mxu0 0.0
      %4764 = vmatpush1.msra.mxu0 0.0
      %4765 = vmatprep.subr.mxu0 0.0
      %4766 = vmatpush1.msra.mxu0 0.0
      %4767 = vmatprep.subr.mxu0 0.0
      %4768 = vmatpush1.msra.mxu0 0.0
      %4769 = vmatprep.subr.mxu0 0.0
      %4770 = vmatpush1.msra.mxu0 0.0
      %4771 = vmatprep.subr.mxu0 0.0
      %4772 = vmatpush1.msra.mxu0 0.0
      %4773 = vmatprep.subr.mxu0 0.0
      %4774 = vmatpush1.msra.mxu0 0.0
      %4775 = vmatprep.subr.mxu0 0.0
      %4776 = vmatpush1.msra.mxu0 0.0
      %4777 = vmatprep.subr.mxu0 0.0
      %4778 = vmatpush1.msra.mxu0 0.0
      %4779 = vmatprep.subr.mxu0 0.0
      %4780 = vmatpush1.msra.mxu0 0.0
      %4781 = vmatprep.subr.mxu0 0.0
      %4782 = vmatpush1.msra.mxu0 0.0
      %4783 = vmatprep.subr.mxu0 0.0
      %4784 = vmatpush1.msra.mxu0 0.0
      %4785 = vmatprep.subr.mxu0 0.0
      %4786 = vmatpush1.msra.mxu0 0.0
      %4787 = vmatprep.subr.mxu0 0.0
      %4788 = vmatpush1.msra.mxu0 0.0
      %4789 = vmatprep.subr.mxu0 0.0
      %4790 = vmatpush1.msra.mxu0 0.0
      %4791 = vmatprep.subr.mxu0 0.0
      %4792 = vmatpush1.msra.mxu0 0.0
      %4793 = vmatprep.subr.mxu0 0.0
      %4794 = vmatpush1.msra.mxu0 0.0
      %4795 = vmatprep.subr.mxu0 0.0
      %4796 = vmatpush1.msra.mxu0 0.0
      %4797 = vmatprep.subr.mxu0 0.0
      %4798 = vmatpush1.msra.mxu0 0.0
      %4799 = vmatprep.subr.mxu0 0.0
      %4800 = vmatpush1.msra.mxu0 0.0
      %4801 = vmatprep.subr.mxu0 0.0
      %4802 = vmatpush1.msra.mxu0 0.0
      %4803 = vmatprep.subr.mxu0 0.0
      %4804 = vmatpush1.msra.mxu0 0.0
      %4805 = vmatprep.subr.mxu0 0.0
      %4806 = vmatpush1.msra.mxu0 0.0
      %4807 = vmatprep.subr.mxu0 0.0
      %4808 = vmatpush1.msra.mxu0 0.0
      %4809 = vmatprep.mubr.f32.mxu0 0.0
      %4810 = vmatmul.mubr.f32.gmra.mrb[0].mxu0 %v4672
      %v4811 = vpop.f32.mrb[0].mxu0
      %v4812 = vadd.f32 0.0, %v4811
      %v4813 = vpop.f32.mrb[0].mxu0
      %v4814 = vadd.f32 0.0, %v4813
      %4815 = vdwg.mxu0
      %v4816 = vadd.f32 %v4638, %v4741
      %v4817 = vadd.f32 %v4639, %v4743
      %v4818 = vadd.f32 %v4640, %v4812
      %v4819 = vadd.f32 %v4641, %v4814
      %s4820 = scalar_lea.vmem %s7, 96
      %v4821 = vld [vmem:[%s4820] ss:$8 sm:$0xf]
      %v4823 = vlaneseq
      %v4824 = vshrl.u32 %v4823, 7
      %v4825 = vsub.s32 0, %v4824
      %v4826 = vrot.slane %v4821, %v4825
      %v4827 = vlaneseq
      %v4828 = vshrl.u32 %v4827, 7
      %v4829 = vsub.s32 1, %v4828
      %v4830 = vrot.slane %v4821, %v4829
      %v4831 = vlaneseq
      %v4832 = vshrl.u32 %v4831, 7
      %v4833 = vsub.s32 2, %v4832
      %v4834 = vrot.slane %v4821, %v4833
      %v4835 = vlaneseq
      %v4836 = vshrl.u32 %v4835, 7
      %v4837 = vsub.s32 3, %v4836
      %v4838 = vrot.slane %v4821, %v4837
      %v4843 = vmul.f32 %v1484, %v4826
      %v4844 = vmul.f32 %v1483, %v4830
      %v4845 = vmul.f32 %v1482, %v4834
      %v4846 = vmul.f32 %v1485, %v4838
      %s4847 = scalar_lea.vmem %s3, 192
      %v4848 = vld [vmem:[%s4847] sm:$0xff]
      %v4850 = vsel %vm418, %v4848, 0
      %4852 = vmatprep.subr.mxu0 %v4844
      %4853 = vmatpush1.msra.mxu0 %v4843
      %4854 = vmatprep.subr.mxu0 0.0
      %4855 = vmatpush1.msra.mxu0 0.0
      %4856 = vmatprep.subr.mxu0 0.0
      %4857 = vmatpush1.msra.mxu0 0.0
      %4858 = vmatprep.subr.mxu0 0.0
      %4859 = vmatpush1.msra.mxu0 0.0
      %4860 = vmatprep.subr.mxu0 0.0
      %4861 = vmatpush1.msra.mxu0 0.0
      %4862 = vmatprep.subr.mxu0 0.0
      %4863 = vmatpush1.msra.mxu0 0.0
      %4864 = vmatprep.subr.mxu0 0.0
      %4865 = vmatpush1.msra.mxu0 0.0
      %4866 = vmatprep.subr.mxu0 0.0
      %4867 = vmatpush1.msra.mxu0 0.0
      %4868 = vmatprep.subr.mxu0 0.0
      %4869 = vmatpush1.msra.mxu0 0.0
      %4870 = vmatprep.subr.mxu0 0.0
      %4871 = vmatpush1.msra.mxu0 0.0
      %4872 = vmatprep.subr.mxu0 0.0
      %4873 = vmatpush1.msra.mxu0 0.0
      %4874 = vmatprep.subr.mxu0 0.0
      %4875 = vmatpush1.msra.mxu0 0.0
      %4876 = vmatprep.subr.mxu0 0.0
      %4877 = vmatpush1.msra.mxu0 0.0
      %4878 = vmatprep.subr.mxu0 0.0
      %4879 = vmatpush1.msra.mxu0 0.0
      %4880 = vmatprep.subr.mxu0 0.0
      %4881 = vmatpush1.msra.mxu0 0.0
      %4882 = vmatprep.subr.mxu0 0.0
      %4883 = vmatpush1.msra.mxu0 0.0
      %4884 = vmatprep.subr.mxu0 0.0
      %4885 = vmatpush1.msra.mxu0 0.0
      %4886 = vmatprep.subr.mxu0 0.0
      %4887 = vmatpush1.msra.mxu0 0.0
      %4888 = vmatprep.subr.mxu0 0.0
      %4889 = vmatpush1.msra.mxu0 0.0
      %4890 = vmatprep.subr.mxu0 0.0
      %4891 = vmatpush1.msra.mxu0 0.0
      %4892 = vmatprep.subr.mxu0 0.0
      %4893 = vmatpush1.msra.mxu0 0.0
      %4894 = vmatprep.subr.mxu0 0.0
      %4895 = vmatpush1.msra.mxu0 0.0
      %4896 = vmatprep.subr.mxu0 0.0
      %4897 = vmatpush1.msra.mxu0 0.0
      %4898 = vmatprep.subr.mxu0 0.0
      %4899 = vmatpush1.msra.mxu0 0.0
      %4900 = vmatprep.subr.mxu0 0.0
      %4901 = vmatpush1.msra.mxu0 0.0
      %4902 = vmatprep.subr.mxu0 0.0
      %4903 = vmatpush1.msra.mxu0 0.0
      %4904 = vmatprep.subr.mxu0 0.0
      %4905 = vmatpush1.msra.mxu0 0.0
      %4906 = vmatprep.subr.mxu0 0.0
      %4907 = vmatpush1.msra.mxu0 0.0
      %4908 = vmatprep.subr.mxu0 0.0
      %4909 = vmatpush1.msra.mxu0 0.0
      %4910 = vmatprep.subr.mxu0 0.0
      %4911 = vmatpush1.msra.mxu0 0.0
      %4912 = vmatprep.subr.mxu0 0.0
      %4913 = vmatpush1.msra.mxu0 0.0
      %4914 = vmatprep.subr.mxu0 0.0
      %4915 = vmatpush1.msra.mxu0 0.0
      %4916 = vmatprep.mubr.f32.mxu0 0.0
      %4917 = vmatmul.mubr.f32.gmra.mrb[0].mxu0 %v4850
      %v4918 = vpop.f32.mrb[0].mxu0
      %v4919 = vadd.f32 0.0, %v4918
      %v4920 = vpop.f32.mrb[0].mxu0
      %v4921 = vadd.f32 0.0, %v4920
      %4922 = vdwg.mxu0
      %4923 = vmatprep.subr.mxu0 %v4846
      %4924 = vmatpush1.msra.mxu0 %v4845
      %4925 = vmatprep.subr.mxu0 0.0
      %4926 = vmatpush1.msra.mxu0 0.0
      %4927 = vmatprep.subr.mxu0 0.0
      %4928 = vmatpush1.msra.mxu0 0.0
      %4929 = vmatprep.subr.mxu0 0.0
      %4930 = vmatpush1.msra.mxu0 0.0
      %4931 = vmatprep.subr.mxu0 0.0
      %4932 = vmatpush1.msra.mxu0 0.0
      %4933 = vmatprep.subr.mxu0 0.0
      %4934 = vmatpush1.msra.mxu0 0.0
      %4935 = vmatprep.subr.mxu0 0.0
      %4936 = vmatpush1.msra.mxu0 0.0
      %4937 = vmatprep.subr.mxu0 0.0
      %4938 = vmatpush1.msra.mxu0 0.0
      %4939 = vmatprep.subr.mxu0 0.0
      %4940 = vmatpush1.msra.mxu0 0.0
      %4941 = vmatprep.subr.mxu0 0.0
      %4942 = vmatpush1.msra.mxu0 0.0
      %4943 = vmatprep.subr.mxu0 0.0
      %4944 = vmatpush1.msra.mxu0 0.0
      %4945 = vmatprep.subr.mxu0 0.0
      %4946 = vmatpush1.msra.mxu0 0.0
      %4947 = vmatprep.subr.mxu0 0.0
      %4948 = vmatpush1.msra.mxu0 0.0
      %4949 = vmatprep.subr.mxu0 0.0
      %4950 = vmatpush1.msra.mxu0 0.0
      %4951 = vmatprep.subr.mxu0 0.0
      %4952 = vmatpush1.msra.mxu0 0.0
      %4953 = vmatprep.subr.mxu0 0.0
      %4954 = vmatpush1.msra.mxu0 0.0
      %4955 = vmatprep.subr.mxu0 0.0
      %4956 = vmatpush1.msra.mxu0 0.0
      %4957 = vmatprep.subr.mxu0 0.0
      %4958 = vmatpush1.msra.mxu0 0.0
      %4959 = vmatprep.subr.mxu0 0.0
      %4960 = vmatpush1.msra.mxu0 0.0
      %4961 = vmatprep.subr.mxu0 0.0
      %4962 = vmatpush1.msra.mxu0 0.0
      %4963 = vmatprep.subr.mxu0 0.0
      %4964 = vmatpush1.msra.mxu0 0.0
      %4965 = vmatprep.subr.mxu0 0.0
      %4966 = vmatpush1.msra.mxu0 0.0
      %4967 = vmatprep.subr.mxu0 0.0
      %4968 = vmatpush1.msra.mxu0 0.0
      %4969 = vmatprep.subr.mxu0 0.0
      %4970 = vmatpush1.msra.mxu0 0.0
      %4971 = vmatprep.subr.mxu0 0.0
      %4972 = vmatpush1.msra.mxu0 0.0
      %4973 = vmatprep.subr.mxu0 0.0
      %4974 = vmatpush1.msra.mxu0 0.0
      %4975 = vmatprep.subr.mxu0 0.0
      %4976 = vmatpush1.msra.mxu0 0.0
      %4977 = vmatprep.subr.mxu0 0.0
      %4978 = vmatpush1.msra.mxu0 0.0
      %4979 = vmatprep.subr.mxu0 0.0
      %4980 = vmatpush1.msra.mxu0 0.0
      %4981 = vmatprep.subr.mxu0 0.0
      %4982 = vmatpush1.msra.mxu0 0.0
      %4983 = vmatprep.subr.mxu0 0.0
      %4984 = vmatpush1.msra.mxu0 0.0
      %4985 = vmatprep.subr.mxu0 0.0
      %4986 = vmatpush1.msra.mxu0 0.0
      %4987 = vmatprep.mubr.f32.mxu0 0.0
      %4988 = vmatmul.mubr.f32.gmra.mrb[0].mxu0 %v4850
      %v4989 = vpop.f32.mrb[0].mxu0
      %v4990 = vadd.f32 0.0, %v4989
      %v4991 = vpop.f32.mrb[0].mxu0
      %v4992 = vadd.f32 0.0, %v4991
      %4993 = vdwg.mxu0
      %v4994 = vadd.f32 %v4816, %v4919
      %v4995 = vadd.f32 %v4817, %v4921
      %v4996 = vadd.f32 %v4818, %v4990
      %v4997 = vadd.f32 %v4819, %v4992
      %s4998 = scalar_lea.vmem %s7, 97
      %v4999 = vld [vmem:[%s4998] ss:$8 sm:$0xf]
      %v5001 = vlaneseq
      %v5002 = vshrl.u32 %v5001, 7
      %v5003 = vsub.s32 0, %v5002
      %v5004 = vrot.slane %v4999, %v5003
      %v5005 = vlaneseq
      %v5006 = vshrl.u32 %v5005, 7
      %v5007 = vsub.s32 1, %v5006
      %v5008 = vrot.slane %v4999, %v5007
      %v5009 = vlaneseq
      %v5010 = vshrl.u32 %v5009, 7
      %v5011 = vsub.s32 2, %v5010
      %v5012 = vrot.slane %v4999, %v5011
      %v5013 = vlaneseq
      %v5014 = vshrl.u32 %v5013, 7
      %v5015 = vsub.s32 3, %v5014
      %v5016 = vrot.slane %v4999, %v5015
      %v5021 = vmul.f32 %v1675, %v5004
      %v5022 = vmul.f32 %v1674, %v5008
      %v5023 = vmul.f32 %v1673, %v5012
      %v5024 = vmul.f32 %v1676, %v5016
      %s5025 = scalar_lea.vmem %s3, 200
      %v5026 = vld [vmem:[%s5025] sm:$0xff]
      %v5028 = vsel %vm418, %v5026, 0
      %5030 = vmatprep.subr.mxu0 %v5022
      %5031 = vmatpush1.msra.mxu0 %v5021
      %5032 = vmatprep.subr.mxu0 0.0
      %5033 = vmatpush1.msra.mxu0 0.0
      %5034 = vmatprep.subr.mxu0 0.0
      %5035 = vmatpush1.msra.mxu0 0.0
      %5036 = vmatprep.subr.mxu0 0.0
      %5037 = vmatpush1.msra.mxu0 0.0
      %5038 = vmatprep.subr.mxu0 0.0
      %5039 = vmatpush1.msra.mxu0 0.0
      %5040 = vmatprep.subr.mxu0 0.0
      %5041 = vmatpush1.msra.mxu0 0.0
      %5042 = vmatprep.subr.mxu0 0.0
      %5043 = vmatpush1.msra.mxu0 0.0
      %5044 = vmatprep.subr.mxu0 0.0
      %5045 = vmatpush1.msra.mxu0 0.0
      %5046 = vmatprep.subr.mxu0 0.0
      %5047 = vmatpush1.msra.mxu0 0.0
      %5048 = vmatprep.subr.mxu0 0.0
      %5049 = vmatpush1.msra.mxu0 0.0
      %5050 = vmatprep.subr.mxu0 0.0
      %5051 = vmatpush1.msra.mxu0 0.0
      %5052 = vmatprep.subr.mxu0 0.0
      %5053 = vmatpush1.msra.mxu0 0.0
      %5054 = vmatprep.subr.mxu0 0.0
      %5055 = vmatpush1.msra.mxu0 0.0
      %5056 = vmatprep.subr.mxu0 0.0
      %5057 = vmatpush1.msra.mxu0 0.0
      %5058 = vmatprep.subr.mxu0 0.0
      %5059 = vmatpush1.msra.mxu0 0.0
      %5060 = vmatprep.subr.mxu0 0.0
      %5061 = vmatpush1.msra.mxu0 0.0
      %5062 = vmatprep.subr.mxu0 0.0
      %5063 = vmatpush1.msra.mxu0 0.0
      %5064 = vmatprep.subr.mxu0 0.0
      %5065 = vmatpush1.msra.mxu0 0.0
      %5066 = vmatprep.subr.mxu0 0.0
      %5067 = vmatpush1.msra.mxu0 0.0
      %5068 = vmatprep.subr.mxu0 0.0
      %5069 = vmatpush1.msra.mxu0 0.0
      %5070 = vmatprep.subr.mxu0 0.0
      %5071 = vmatpush1.msra.mxu0 0.0
      %5072 = vmatprep.subr.mxu0 0.0
      %5073 = vmatpush1.msra.mxu0 0.0
      %5074 = vmatprep.subr.mxu0 0.0
      %5075 = vmatpush1.msra.mxu0 0.0
      %5076 = vmatprep.subr.mxu0 0.0
      %5077 = vmatpush1.msra.mxu0 0.0
      %5078 = vmatprep.subr.mxu0 0.0
      %5079 = vmatpush1.msra.mxu0 0.0
      %5080 = vmatprep.subr.mxu0 0.0
      %5081 = vmatpush1.msra.mxu0 0.0
      %5082 = vmatprep.subr.mxu0 0.0
      %5083 = vmatpush1.msra.mxu0 0.0
      %5084 = vmatprep.subr.mxu0 0.0
      %5085 = vmatpush1.msra.mxu0 0.0
      %5086 = vmatprep.subr.mxu0 0.0
      %5087 = vmatpush1.msra.mxu0 0.0
      %5088 = vmatprep.subr.mxu0 0.0
      %5089 = vmatpush1.msra.mxu0 0.0
      %5090 = vmatprep.subr.mxu0 0.0
      %5091 = vmatpush1.msra.mxu0 0.0
      %5092 = vmatprep.subr.mxu0 0.0
      %5093 = vmatpush1.msra.mxu0 0.0
      %5094 = vmatprep.mubr.f32.mxu0 0.0
      %5095 = vmatmul.mubr.f32.gmra.mrb[0].mxu0 %v5028
      %v5096 = vpop.f32.mrb[0].mxu0
      %v5097 = vadd.f32 0.0, %v5096
      %v5098 = vpop.f32.mrb[0].mxu0
      %v5099 = vadd.f32 0.0, %v5098
      %5100 = vdwg.mxu0
      %5101 = vmatprep.subr.mxu0 %v5024
      %5102 = vmatpush1.msra.mxu0 %v5023
      %5103 = vmatprep.subr.mxu0 0.0
      %5104 = vmatpush1.msra.mxu0 0.0
      %5105 = vmatprep.subr.mxu0 0.0
      %5106 = vmatpush1.msra.mxu0 0.0
      %5107 = vmatprep.subr.mxu0 0.0
      %5108 = vmatpush1.msra.mxu0 0.0
      %5109 = vmatprep.subr.mxu0 0.0
      %5110 = vmatpush1.msra.mxu0 0.0
      %5111 = vmatprep.subr.mxu0 0.0
      %5112 = vmatpush1.msra.mxu0 0.0
      %5113 = vmatprep.subr.mxu0 0.0
      %5114 = vmatpush1.msra.mxu0 0.0
      %5115 = vmatprep.subr.mxu0 0.0
      %5116 = vmatpush1.msra.mxu0 0.0
      %5117 = vmatprep.subr.mxu0 0.0
      %5118 = vmatpush1.msra.mxu0 0.0
      %5119 = vmatprep.subr.mxu0 0.0
      %5120 = vmatpush1.msra.mxu0 0.0
      %5121 = vmatprep.subr.mxu0 0.0
      %5122 = vmatpush1.msra.mxu0 0.0
      %5123 = vmatprep.subr.mxu0 0.0
      %5124 = vmatpush1.msra.mxu0 0.0
      %5125 = vmatprep.subr.mxu0 0.0
      %5126 = vmatpush1.msra.mxu0 0.0
      %5127 = vmatprep.subr.mxu0 0.0
      %5128 = vmatpush1.msra.mxu0 0.0
      %5129 = vmatprep.subr.mxu0 0.0
      %5130 = vmatpush1.msra.mxu0 0.0
      %5131 = vmatprep.subr.mxu0 0.0
      %5132 = vmatpush1.msra.mxu0 0.0
      %5133 = vmatprep.subr.mxu0 0.0
      %5134 = vmatpush1.msra.mxu0 0.0
      %5135 = vmatprep.subr.mxu0 0.0
      %5136 = vmatpush1.msra.mxu0 0.0
      %5137 = vmatprep.subr.mxu0 0.0
      %5138 = vmatpush1.msra.mxu0 0.0
      %5139 = vmatprep.subr.mxu0 0.0
      %5140 = vmatpush1.msra.mxu0 0.0
      %5141 = vmatprep.subr.mxu0 0.0
      %5142 = vmatpush1.msra.mxu0 0.0
      %5143 = vmatprep.subr.mxu0 0.0
      %5144 = vmatpush1.msra.mxu0 0.0
      %5145 = vmatprep.subr.mxu0 0.0
      %5146 = vmatpush1.msra.mxu0 0.0
      %5147 = vmatprep.subr.mxu0 0.0
      %5148 = vmatpush1.msra.mxu0 0.0
      %5149 = vmatprep.subr.mxu0 0.0
      %5150 = vmatpush1.msra.mxu0 0.0
      %5151 = vmatprep.subr.mxu0 0.0
      %5152 = vmatpush1.msra.mxu0 0.0
      %5153 = vmatprep.subr.mxu0 0.0
      %5154 = vmatpush1.msra.mxu0 0.0
      %5155 = vmatprep.subr.mxu0 0.0
      %5156 = vmatpush1.msra.mxu0 0.0
      %5157 = vmatprep.subr.mxu0 0.0
      %5158 = vmatpush1.msra.mxu0 0.0
      %5159 = vmatprep.subr.mxu0 0.0
      %5160 = vmatpush1.msra.mxu0 0.0
      %5161 = vmatprep.subr.mxu0 0.0
      %5162 = vmatpush1.msra.mxu0 0.0
      %5163 = vmatprep.subr.mxu0 0.0
      %5164 = vmatpush1.msra.mxu0 0.0
      %5165 = vmatprep.mubr.f32.mxu0 0.0
      %5166 = vmatmul.mubr.f32.gmra.mrb[0].mxu0 %v5028
      %v5167 = vpop.f32.mrb[0].mxu0
      %v5168 = vadd.f32 0.0, %v5167
      %v5169 = vpop.f32.mrb[0].mxu0
      %v5170 = vadd.f32 0.0, %v5169
      %5171 = vdwg.mxu0
      %v5172 = vadd.f32 %v4994, %v5097
      %v5173 = vadd.f32 %v4995, %v5099
      %v5174 = vadd.f32 %v4996, %v5168
      %v5175 = vadd.f32 %v4997, %v5170
      %s5176 = scalar_lea.vmem %s7, 98
      %v5177 = vld [vmem:[%s5176] ss:$8 sm:$0xf]
      %v5179 = vlaneseq
      %v5180 = vshrl.u32 %v5179, 7
      %v5181 = vsub.s32 0, %v5180
      %v5182 = vrot.slane %v5177, %v5181
      %v5183 = vlaneseq
      %v5184 = vshrl.u32 %v5183, 7
      %v5185 = vsub.s32 1, %v5184
      %v5186 = vrot.slane %v5177, %v5185
      %v5187 = vlaneseq
      %v5188 = vshrl.u32 %v5187, 7
      %v5189 = vsub.s32 2, %v5188
      %v5190 = vrot.slane %v5177, %v5189
      %v5191 = vlaneseq
      %v5192 = vshrl.u32 %v5191, 7
      %v5193 = vsub.s32 3, %v5192
      %v5194 = vrot.slane %v5177, %v5193
      %v5199 = vmul.f32 %v1866, %v5182
      %v5200 = vmul.f32 %v1865, %v5186
      %v5201 = vmul.f32 %v1864, %v5190
      %v5202 = vmul.f32 %v1867, %v5194
      %s5203 = scalar_lea.vmem %s3, 208
      %v5204 = vld [vmem:[%s5203] sm:$0xff]
      %v5206 = vsel %vm418, %v5204, 0
      %5208 = vmatprep.subr.mxu0 %v5200
      %5209 = vmatpush1.msra.mxu0 %v5199
      %5210 = vmatprep.subr.mxu0 0.0
      %5211 = vmatpush1.msra.mxu0 0.0
      %5212 = vmatprep.subr.mxu0 0.0
      %5213 = vmatpush1.msra.mxu0 0.0
      %5214 = vmatprep.subr.mxu0 0.0
      %5215 = vmatpush1.msra.mxu0 0.0
      %5216 = vmatprep.subr.mxu0 0.0
      %5217 = vmatpush1.msra.mxu0 0.0
      %5218 = vmatprep.subr.mxu0 0.0
      %5219 = vmatpush1.msra.mxu0 0.0
      %5220 = vmatprep.subr.mxu0 0.0
      %5221 = vmatpush1.msra.mxu0 0.0
      %5222 = vmatprep.subr.mxu0 0.0
      %5223 = vmatpush1.msra.mxu0 0.0
      %5224 = vmatprep.subr.mxu0 0.0
      %5225 = vmatpush1.msra.mxu0 0.0
      %5226 = vmatprep.subr.mxu0 0.0
      %5227 = vmatpush1.msra.mxu0 0.0
      %5228 = vmatprep.subr.mxu0 0.0
      %5229 = vmatpush1.msra.mxu0 0.0
      %5230 = vmatprep.subr.mxu0 0.0
      %5231 = vmatpush1.msra.mxu0 0.0
      %5232 = vmatprep.subr.mxu0 0.0
      %5233 = vmatpush1.msra.mxu0 0.0
      %5234 = vmatprep.subr.mxu0 0.0
      %5235 = vmatpush1.msra.mxu0 0.0
      %5236 = vmatprep.subr.mxu0 0.0
      %5237 = vmatpush1.msra.mxu0 0.0
      %5238 = vmatprep.subr.mxu0 0.0
      %5239 = vmatpush1.msra.mxu0 0.0
      %5240 = vmatprep.subr.mxu0 0.0
      %5241 = vmatpush1.msra.mxu0 0.0
      %5242 = vmatprep.subr.mxu0 0.0
      %5243 = vmatpush1.msra.mxu0 0.0
      %5244 = vmatprep.subr.mxu0 0.0
      %5245 = vmatpush1.msra.mxu0 0.0
      %5246 = vmatprep.subr.mxu0 0.0
      %5247 = vmatpush1.msra.mxu0 0.0
      %5248 = vmatprep.subr.mxu0 0.0
      %5249 = vmatpush1.msra.mxu0 0.0
      %5250 = vmatprep.subr.mxu0 0.0
      %5251 = vmatpush1.msra.mxu0 0.0
      %5252 = vmatprep.subr.mxu0 0.0
      %5253 = vmatpush1.msra.mxu0 0.0
      %5254 = vmatprep.subr.mxu0 0.0
      %5255 = vmatpush1.msra.mxu0 0.0
      %5256 = vmatprep.subr.mxu0 0.0
      %5257 = vmatpush1.msra.mxu0 0.0
      %5258 = vmatprep.subr.mxu0 0.0
      %5259 = vmatpush1.msra.mxu0 0.0
      %5260 = vmatprep.subr.mxu0 0.0
      %5261 = vmatpush1.msra.mxu0 0.0
      %5262 = vmatprep.subr.mxu0 0.0
      %5263 = vmatpush1.msra.mxu0 0.0
      %5264 = vmatprep.subr.mxu0 0.0
      %5265 = vmatpush1.msra.mxu0 0.0
      %5266 = vmatprep.subr.mxu0 0.0
      %5267 = vmatpush1.msra.mxu0 0.0
      %5268 = vmatprep.subr.mxu0 0.0
      %5269 = vmatpush1.msra.mxu0 0.0
      %5270 = vmatprep.subr.mxu0 0.0
      %5271 = vmatpush1.msra.mxu0 0.0
      %5272 = vmatprep.mubr.f32.mxu0 0.0
      %5273 = vmatmul.mubr.f32.gmra.mrb[0].mxu0 %v5206
      %v5274 = vpop.f32.mrb[0].mxu0
      %v5275 = vadd.f32 0.0, %v5274
      %v5276 = vpop.f32.mrb[0].mxu0
      %v5277 = vadd.f32 0.0, %v5276
      %5278 = vdwg.mxu0
      %5279 = vmatprep.subr.mxu0 %v5202
      %5280 = vmatpush1.msra.mxu0 %v5201
      %5281 = vmatprep.subr.mxu0 0.0
      %5282 = vmatpush1.msra.mxu0 0.0
      %5283 = vmatprep.subr.mxu0 0.0
      %5284 = vmatpush1.msra.mxu0 0.0
      %5285 = vmatprep.subr.mxu0 0.0
      %5286 = vmatpush1.msra.mxu0 0.0
      %5287 = vmatprep.subr.mxu0 0.0
      %5288 = vmatpush1.msra.mxu0 0.0
      %5289 = vmatprep.subr.mxu0 0.0
      %5290 = vmatpush1.msra.mxu0 0.0
      %5291 = vmatprep.subr.mxu0 0.0
      %5292 = vmatpush1.msra.mxu0 0.0
      %5293 = vmatprep.subr.mxu0 0.0
      %5294 = vmatpush1.msra.mxu0 0.0
      %5295 = vmatprep.subr.mxu0 0.0
      %5296 = vmatpush1.msra.mxu0 0.0
      %5297 = vmatprep.subr.mxu0 0.0
      %5298 = vmatpush1.msra.mxu0 0.0
      %5299 = vmatprep.subr.mxu0 0.0
      %5300 = vmatpush1.msra.mxu0 0.0
      %5301 = vmatprep.subr.mxu0 0.0
      %5302 = vmatpush1.msra.mxu0 0.0
      %5303 = vmatprep.subr.mxu0 0.0
      %5304 = vmatpush1.msra.mxu0 0.0
      %5305 = vmatprep.subr.mxu0 0.0
      %5306 = vmatpush1.msra.mxu0 0.0
      %5307 = vmatprep.subr.mxu0 0.0
      %5308 = vmatpush1.msra.mxu0 0.0
      %5309 = vmatprep.subr.mxu0 0.0
      %5310 = vmatpush1.msra.mxu0 0.0
      %5311 = vmatprep.subr.mxu0 0.0
      %5312 = vmatpush1.msra.mxu0 0.0
      %5313 = vmatprep.subr.mxu0 0.0
      %5314 = vmatpush1.msra.mxu0 0.0
      %5315 = vmatprep.subr.mxu0 0.0
      %5316 = vmatpush1.msra.mxu0 0.0
      %5317 = vmatprep.subr.mxu0 0.0
      %5318 = vmatpush1.msra.mxu0 0.0
      %5319 = vmatprep.subr.mxu0 0.0
      %5320 = vmatpush1.msra.mxu0 0.0
      %5321 = vmatprep.subr.mxu0 0.0
      %5322 = vmatpush1.msra.mxu0 0.0
      %5323 = vmatprep.subr.mxu0 0.0
      %5324 = vmatpush1.msra.mxu0 0.0
      %5325 = vmatprep.subr.mxu0 0.0
      %5326 = vmatpush1.msra.mxu0 0.0
      %5327 = vmatprep.subr.mxu0 0.0
      %5328 = vmatpush1.msra.mxu0 0.0
      %5329 = vmatprep.subr.mxu0 0.0
      %5330 = vmatpush1.msra.mxu0 0.0
      %5331 = vmatprep.subr.mxu0 0.0
      %5332 = vmatpush1.msra.mxu0 0.0
      %5333 = vmatprep.subr.mxu0 0.0
      %5334 = vmatpush1.msra.mxu0 0.0
      %5335 = vmatprep.subr.mxu0 0.0
      %5336 = vmatpush1.msra.mxu0 0.0
      %5337 = vmatprep.subr.mxu0 0.0
      %5338 = vmatpush1.msra.mxu0 0.0
      %5339 = vmatprep.subr.mxu0 0.0
      %5340 = vmatpush1.msra.mxu0 0.0
      %5341 = vmatprep.subr.mxu0 0.0
      %5342 = vmatpush1.msra.mxu0 0.0
      %5343 = vmatprep.mubr.f32.mxu0 0.0
      %5344 = vmatmul.mubr.f32.gmra.mrb[0].mxu0 %v5206
      %v5345 = vpop.f32.mrb[0].mxu0
      %v5346 = vadd.f32 0.0, %v5345
      %v5347 = vpop.f32.mrb[0].mxu0
      %v5348 = vadd.f32 0.0, %v5347
      %5349 = vdwg.mxu0
      %v5350 = vadd.f32 %v5172, %v5275
      %v5351 = vadd.f32 %v5173, %v5277
      %v5352 = vadd.f32 %v5174, %v5346
      %v5353 = vadd.f32 %v5175, %v5348
      %v5354 = vld [vmem:[%s4] sm:$0xff]
      %5356 = vset.pattern.permute.xlu0 0
      %5357 = vperm.xlu0 %5356, %v5354
      %v5358 = vpop.permute.xlu0 %5357
      %v5360 = vmul.f32 %v5350, %v5358
      %v5361 = vmul.f32 %v5351, %v5358
      %v5362 = vmul.f32 %v5352, %v5358
      %v5363 = vmul.f32 %v5353, %v5358
      %v5364 = vld [vmem:[%s5] sm:$0xff]
      %5366 = vset.pattern.permute.xlu0 0
      %5367 = vperm.xlu0 %5366, %v5364
      %v5368 = vpop.permute.xlu0 %5367
      %v5370 = vadd.f32 %v5360, %v5368
      %v5371 = vadd.f32 %v5361, %v5368
      %v5372 = vadd.f32 %v5362, %v5368
      %v5373 = vadd.f32 %v5363, %v5368
      %v5374 = vmax.f32 %v5370, 0.0
      %v5375 = vmax.f32 %v5371, 0.0
      %v5376 = vmax.f32 %v5372, 0.0
      %v5377 = vmax.f32 %v5373, 0.0
      %5378 = vrot.lane.b32.xlu0 %v5374, 73
      %v5379 = vpop.permute.xlu0 %5378
      %5380 = vrot.lane.b32.xlu0 %v5375, 73
      %v5381 = vpop.permute.xlu0 %5380
      %5382 = vrot.lane.b32.xlu0 %v5376, 73
      %v5383 = vpop.permute.xlu0 %5382
      %5384 = vrot.lane.b32.xlu0 %v5377, 73
      %v5385 = vpop.permute.xlu0 %5384
      %v5386 = vsel %vm344, %v5383, %v5385
      %v5387 = vsel %vm344, %v5381, %v5383
      %v5388 = vsel %vm344, %v5379, %v5381
      %v5389 = vsel %vm344, %v5385, %v5379
      %v5390 = vmul.f32 %v5389, %v354
      %v5391 = vmul.f32 %v5388, %v358
      %v5392 = vmul.f32 %v5387, %v362
      %v5393 = vmul.f32 %v5386, %v366
      %v5394 = vld [vmem:[%s6] sm:$0xff]
      %5395 = vrot.lane.b32.xlu0 %v5374, 72
      %v5396 = vpop.permute.xlu0 %5395
      %5397 = vrot.lane.b32.xlu0 %v5375, 72
      %v5398 = vpop.permute.xlu0 %5397
      %5399 = vrot.lane.b32.xlu0 %v5376, 72
      %v5400 = vpop.permute.xlu0 %5399
      %5401 = vrot.lane.b32.xlu0 %v5377, 72
      %v5402 = vpop.permute.xlu0 %5401
      %v5403 = vsel %vm384, %v5400, %v5402
      %v5404 = vsel %vm384, %v5398, %v5400
      %v5405 = vsel %vm384, %v5396, %v5398
      %v5406 = vsel %vm384, %v5402, %v5396
      %v5407 = vmul.f32 %v5406, %v395
      %v5408 = vmul.f32 %v5405, %v399
      %v5409 = vmul.f32 %v5404, %v403
      %v5410 = vmul.f32 %v5403, %v407
      %s5411 = scalar_lea.vmem %s6, 8
      %v5412 = vld [vmem:[%s5411] sm:$0xff]
      %v5414 = vsel %vm418, %v5412, 0
      %5416 = vmatprep.subr.mxu0 %v5408
      %5417 = vmatpush1.msra.mxu0 %v5407
      %5418 = vmatprep.subr.mxu0 0.0
      %5419 = vmatpush1.msra.mxu0 0.0
      %5420 = vmatprep.subr.mxu0 0.0
      %5421 = vmatpush1.msra.mxu0 0.0
      %5422 = vmatprep.subr.mxu0 0.0
      %5423 = vmatpush1.msra.mxu0 0.0
      %5424 = vmatprep.subr.mxu0 0.0
      %5425 = vmatpush1.msra.mxu0 0.0
      %5426 = vmatprep.subr.mxu0 0.0
      %5427 = vmatpush1.msra.mxu0 0.0
      %5428 = vmatprep.subr.mxu0 0.0
      %5429 = vmatpush1.msra.mxu0 0.0
      %5430 = vmatprep.subr.mxu0 0.0
      %5431 = vmatpush1.msra.mxu0 0.0
      %5432 = vmatprep.subr.mxu0 0.0
      %5433 = vmatpush1.msra.mxu0 0.0
      %5434 = vmatprep.subr.mxu0 0.0
      %5435 = vmatpush1.msra.mxu0 0.0
      %5436 = vmatprep.subr.mxu0 0.0
      %5437 = vmatpush1.msra.mxu0 0.0
      %5438 = vmatprep.subr.mxu0 0.0
      %5439 = vmatpush1.msra.mxu0 0.0
      %5440 = vmatprep.subr.mxu0 0.0
      %5441 = vmatpush1.msra.mxu0 0.0
      %5442 = vmatprep.subr.mxu0 0.0
      %5443 = vmatpush1.msra.mxu0 0.0
      %5444 = vmatprep.subr.mxu0 0.0
      %5445 = vmatpush1.msra.mxu0 0.0
      %5446 = vmatprep.subr.mxu0 0.0
      %5447 = vmatpush1.msra.mxu0 0.0
      %5448 = vmatprep.subr.mxu0 0.0
      %5449 = vmatpush1.msra.mxu0 0.0
      %5450 = vmatprep.subr.mxu0 0.0
      %5451 = vmatpush1.msra.mxu0 0.0
      %5452 = vmatprep.subr.mxu0 0.0
      %5453 = vmatpush1.msra.mxu0 0.0
      %5454 = vmatprep.subr.mxu0 0.0
      %5455 = vmatpush1.msra.mxu0 0.0
      %5456 = vmatprep.subr.mxu0 0.0
      %5457 = vmatpush1.msra.mxu0 0.0
      %5458 = vmatprep.subr.mxu0 0.0
      %5459 = vmatpush1.msra.mxu0 0.0
      %5460 = vmatprep.subr.mxu0 0.0
      %5461 = vmatpush1.msra.mxu0 0.0
      %5462 = vmatprep.subr.mxu0 0.0
      %5463 = vmatpush1.msra.mxu0 0.0
      %5464 = vmatprep.subr.mxu0 0.0
      %5465 = vmatpush1.msra.mxu0 0.0
      %5466 = vmatprep.subr.mxu0 0.0
      %5467 = vmatpush1.msra.mxu0 0.0
      %5468 = vmatprep.subr.mxu0 0.0
      %5469 = vmatpush1.msra.mxu0 0.0
      %5470 = vmatprep.subr.mxu0 0.0
      %5471 = vmatpush1.msra.mxu0 0.0
      %5472 = vmatprep.subr.mxu0 0.0
      %5473 = vmatpush1.msra.mxu0 0.0
      %5474 = vmatprep.subr.mxu0 0.0
      %5475 = vmatpush1.msra.mxu0 0.0
      %5476 = vmatprep.subr.mxu0 0.0
      %5477 = vmatpush1.msra.mxu0 0.0
      %5478 = vmatprep.subr.mxu0 0.0
      %5479 = vmatpush1.msra.mxu0 0.0
      %5480 = vmatprep.mubr.f32.mxu0 0.0
      %5481 = vmatmul.mubr.f32.gmra.mrb[0].mxu0 %v5414
      %v5482 = vpop.f32.mrb[0].mxu0
      %v5483 = vadd.f32 0.0, %v5482
      %v5484 = vpop.f32.mrb[0].mxu0
      %v5485 = vadd.f32 0.0, %v5484
      %5486 = vdwg.mxu0
      %5487 = vmatprep.subr.mxu0 %v5410
      %5488 = vmatpush1.msra.mxu0 %v5409
      %5489 = vmatprep.subr.mxu0 0.0
      %5490 = vmatpush1.msra.mxu0 0.0
      %5491 = vmatprep.subr.mxu0 0.0
      %5492 = vmatpush1.msra.mxu0 0.0
      %5493 = vmatprep.subr.mxu0 0.0
      %5494 = vmatpush1.msra.mxu0 0.0
      %5495 = vmatprep.subr.mxu0 0.0
      %5496 = vmatpush1.msra.mxu0 0.0
      %5497 = vmatprep.subr.mxu0 0.0
      %5498 = vmatpush1.msra.mxu0 0.0
      %5499 = vmatprep.subr.mxu0 0.0
      %5500 = vmatpush1.msra.mxu0 0.0
      %5501 = vmatprep.subr.mxu0 0.0
      %5502 = vmatpush1.msra.mxu0 0.0
      %5503 = vmatprep.subr.mxu0 0.0
      %5504 = vmatpush1.msra.mxu0 0.0
      %5505 = vmatprep.subr.mxu0 0.0
      %5506 = vmatpush1.msra.mxu0 0.0
      %5507 = vmatprep.subr.mxu0 0.0
      %5508 = vmatpush1.msra.mxu0 0.0
      %5509 = vmatprep.subr.mxu0 0.0
      %5510 = vmatpush1.msra.mxu0 0.0
      %5511 = vmatprep.subr.mxu0 0.0
      %5512 = vmatpush1.msra.mxu0 0.0
      %5513 = vmatprep.subr.mxu0 0.0
      %5514 = vmatpush1.msra.mxu0 0.0
      %5515 = vmatprep.subr.mxu0 0.0
      %5516 = vmatpush1.msra.mxu0 0.0
      %5517 = vmatprep.subr.mxu0 0.0
      %5518 = vmatpush1.msra.mxu0 0.0
      %5519 = vmatprep.subr.mxu0 0.0
      %5520 = vmatpush1.msra.mxu0 0.0
      %5521 = vmatprep.subr.mxu0 0.0
      %5522 = vmatpush1.msra.mxu0 0.0
      %5523 = vmatprep.subr.mxu0 0.0
      %5524 = vmatpush1.msra.mxu0 0.0
      %5525 = vmatprep.subr.mxu0 0.0
      %5526 = vmatpush1.msra.mxu0 0.0
      %5527 = vmatprep.subr.mxu0 0.0
      %5528 = vmatpush1.msra.mxu0 0.0
      %5529 = vmatprep.subr.mxu0 0.0
      %5530 = vmatpush1.msra.mxu0 0.0
      %5531 = vmatprep.subr.mxu0 0.0
      %5532 = vmatpush1.msra.mxu0 0.0
      %5533 = vmatprep.subr.mxu0 0.0
      %5534 = vmatpush1.msra.mxu0 0.0
      %5535 = vmatprep.subr.mxu0 0.0
      %5536 = vmatpush1.msra.mxu0 0.0
      %5537 = vmatprep.subr.mxu0 0.0
      %5538 = vmatpush1.msra.mxu0 0.0
      %5539 = vmatprep.subr.mxu0 0.0
      %5540 = vmatpush1.msra.mxu0 0.0
      %5541 = vmatprep.subr.mxu0 0.0
      %5542 = vmatpush1.msra.mxu0 0.0
      %5543 = vmatprep.subr.mxu0 0.0
      %5544 = vmatpush1.msra.mxu0 0.0
      %5545 = vmatprep.subr.mxu0 0.0
      %5546 = vmatpush1.msra.mxu0 0.0
      %5547 = vmatprep.subr.mxu0 0.0
      %5548 = vmatpush1.msra.mxu0 0.0
      %5549 = vmatprep.subr.mxu0 0.0
      %5550 = vmatpush1.msra.mxu0 0.0
      %5551 = vmatprep.mubr.f32.mxu0 0.0
      %5552 = vmatmul.mubr.f32.gmra.mrb[0].mxu0 %v5414
      %v5553 = vpop.f32.mrb[0].mxu0
      %v5554 = vadd.f32 0.0, %v5553
      %v5555 = vpop.f32.mrb[0].mxu0
      %v5556 = vadd.f32 0.0, %v5555
      %5557 = vdwg.mxu0
      %v5559 = vsel %vm418, %v5394, 0
      %5561 = vmatprep.subr.mxu0 %v5391
      %5562 = vmatpush1.msra.mxu0 %v5390
      %5563 = vmatprep.subr.mxu0 0.0
      %5564 = vmatpush1.msra.mxu0 0.0
      %5565 = vmatprep.subr.mxu0 0.0
      %5566 = vmatpush1.msra.mxu0 0.0
      %5567 = vmatprep.subr.mxu0 0.0
      %5568 = vmatpush1.msra.mxu0 0.0
      %5569 = vmatprep.subr.mxu0 0.0
      %5570 = vmatpush1.msra.mxu0 0.0
      %5571 = vmatprep.subr.mxu0 0.0
      %5572 = vmatpush1.msra.mxu0 0.0
      %5573 = vmatprep.subr.mxu0 0.0
      %5574 = vmatpush1.msra.mxu0 0.0
      %5575 = vmatprep.subr.mxu0 0.0
      %5576 = vmatpush1.msra.mxu0 0.0
      %5577 = vmatprep.subr.mxu0 0.0
      %5578 = vmatpush1.msra.mxu0 0.0
      %5579 = vmatprep.subr.mxu0 0.0
      %5580 = vmatpush1.msra.mxu0 0.0
      %5581 = vmatprep.subr.mxu0 0.0
      %5582 = vmatpush1.msra.mxu0 0.0
      %5583 = vmatprep.subr.mxu0 0.0
      %5584 = vmatpush1.msra.mxu0 0.0
      %5585 = vmatprep.subr.mxu0 0.0
      %5586 = vmatpush1.msra.mxu0 0.0
      %5587 = vmatprep.subr.mxu0 0.0
      %5588 = vmatpush1.msra.mxu0 0.0
      %5589 = vmatprep.subr.mxu0 0.0
      %5590 = vmatpush1.msra.mxu0 0.0
      %5591 = vmatprep.subr.mxu0 0.0
      %5592 = vmatpush1.msra.mxu0 0.0
      %5593 = vmatprep.subr.mxu0 0.0
      %5594 = vmatpush1.msra.mxu0 0.0
      %5595 = vmatprep.subr.mxu0 0.0
      %5596 = vmatpush1.msra.mxu0 0.0
      %5597 = vmatprep.subr.mxu0 0.0
      %5598 = vmatpush1.msra.mxu0 0.0
      %5599 = vmatprep.subr.mxu0 0.0
      %5600 = vmatpush1.msra.mxu0 0.0
      %5601 = vmatprep.subr.mxu0 0.0
      %5602 = vmatpush1.msra.mxu0 0.0
      %5603 = vmatprep.subr.mxu0 0.0
      %5604 = vmatpush1.msra.mxu0 0.0
      %5605 = vmatprep.subr.mxu0 0.0
      %5606 = vmatpush1.msra.mxu0 0.0
      %5607 = vmatprep.subr.mxu0 0.0
      %5608 = vmatpush1.msra.mxu0 0.0
      %5609 = vmatprep.subr.mxu0 0.0
      %5610 = vmatpush1.msra.mxu0 0.0
      %5611 = vmatprep.subr.mxu0 0.0
      %5612 = vmatpush1.msra.mxu0 0.0
      %5613 = vmatprep.subr.mxu0 0.0
      %5614 = vmatpush1.msra.mxu0 0.0
      %5615 = vmatprep.subr.mxu0 0.0
      %5616 = vmatpush1.msra.mxu0 0.0
      %5617 = vmatprep.subr.mxu0 0.0
      %5618 = vmatpush1.msra.mxu0 0.0
      %5619 = vmatprep.subr.mxu0 0.0
      %5620 = vmatpush1.msra.mxu0 0.0
      %5621 = vmatprep.subr.mxu0 0.0
      %5622 = vmatpush1.msra.mxu0 0.0
      %5623 = vmatprep.subr.mxu0 0.0
      %5624 = vmatpush1.msra.mxu0 0.0
      %5625 = vmatprep.mubr.f32.mxu0 0.0
      %5626 = vmatmul.mubr.f32.gmra.mrb[0].mxu0 %v5559
      %v5627 = vpop.f32.mrb[0].mxu0
      %v5628 = vadd.f32 %v5483, %v5627
      %v5629 = vpop.f32.mrb[0].mxu0
      %v5630 = vadd.f32 %v5485, %v5629
      %5631 = vdwg.mxu0
      %5632 = vmatprep.subr.mxu0 %v5393
      %5633 = vmatpush1.msra.mxu0 %v5392
      %5634 = vmatprep.subr.mxu0 0.0
      %5635 = vmatpush1.msra.mxu0 0.0
      %5636 = vmatprep.subr.mxu0 0.0
      %5637 = vmatpush1.msra.mxu0 0.0
      %5638 = vmatprep.subr.mxu0 0.0
      %5639 = vmatpush1.msra.mxu0 0.0
      %5640 = vmatprep.subr.mxu0 0.0
      %5641 = vmatpush1.msra.mxu0 0.0
      %5642 = vmatprep.subr.mxu0 0.0
      %5643 = vmatpush1.msra.mxu0 0.0
      %5644 = vmatprep.subr.mxu0 0.0
      %5645 = vmatpush1.msra.mxu0 0.0
      %5646 = vmatprep.subr.mxu0 0.0
      %5647 = vmatpush1.msra.mxu0 0.0
      %5648 = vmatprep.subr.mxu0 0.0
      %5649 = vmatpush1.msra.mxu0 0.0
      %5650 = vmatprep.subr.mxu0 0.0
      %5651 = vmatpush1.msra.mxu0 0.0
      %5652 = vmatprep.subr.mxu0 0.0
      %5653 = vmatpush1.msra.mxu0 0.0
      %5654 = vmatprep.subr.mxu0 0.0
      %5655 = vmatpush1.msra.mxu0 0.0
      %5656 = vmatprep.subr.mxu0 0.0
      %5657 = vmatpush1.msra.mxu0 0.0
      %5658 = vmatprep.subr.mxu0 0.0
      %5659 = vmatpush1.msra.mxu0 0.0
      %5660 = vmatprep.subr.mxu0 0.0
      %5661 = vmatpush1.msra.mxu0 0.0
      %5662 = vmatprep.subr.mxu0 0.0
      %5663 = vmatpush1.msra.mxu0 0.0
      %5664 = vmatprep.subr.mxu0 0.0
      %5665 = vmatpush1.msra.mxu0 0.0
      %5666 = vmatprep.subr.mxu0 0.0
      %5667 = vmatpush1.msra.mxu0 0.0
      %5668 = vmatprep.subr.mxu0 0.0
      %5669 = vmatpush1.msra.mxu0 0.0
      %5670 = vmatprep.subr.mxu0 0.0
      %5671 = vmatpush1.msra.mxu0 0.0
      %5672 = vmatprep.subr.mxu0 0.0
      %5673 = vmatpush1.msra.mxu0 0.0
      %5674 = vmatprep.subr.mxu0 0.0
      %5675 = vmatpush1.msra.mxu0 0.0
      %5676 = vmatprep.subr.mxu0 0.0
      %5677 = vmatpush1.msra.mxu0 0.0
      %5678 = vmatprep.subr.mxu0 0.0
      %5679 = vmatpush1.msra.mxu0 0.0
      %5680 = vmatprep.subr.mxu0 0.0
      %5681 = vmatpush1.msra.mxu0 0.0
      %5682 = vmatprep.subr.mxu0 0.0
      %5683 = vmatpush1.msra.mxu0 0.0
      %5684 = vmatprep.subr.mxu0 0.0
      %5685 = vmatpush1.msra.mxu0 0.0
      %5686 = vmatprep.subr.mxu0 0.0
      %5687 = vmatpush1.msra.mxu0 0.0
      %5688 = vmatprep.subr.mxu0 0.0
      %5689 = vmatpush1.msra.mxu0 0.0
      %5690 = vmatprep.subr.mxu0 0.0
      %5691 = vmatpush1.msra.mxu0 0.0
      %5692 = vmatprep.subr.mxu0 0.0
      %5693 = vmatpush1.msra.mxu0 0.0
      %5694 = vmatprep.subr.mxu0 0.0
      %5695 = vmatpush1.msra.mxu0 0.0
      %5696 = vmatprep.mubr.f32.mxu0 0.0
      %5697 = vmatmul.mubr.f32.gmra.mrb[0].mxu0 %v5559
      %v5698 = vpop.f32.mrb[0].mxu0
      %v5699 = vadd.f32 %v5554, %v5698
      %v5700 = vpop.f32.mrb[0].mxu0
      %v5701 = vadd.f32 %v5556, %v5700
      %5702 = vdwg.mxu0
      %5703 = vrot.lane.b32.xlu0 %v5374, 71
      %v5704 = vpop.permute.xlu0 %5703
      %5705 = vrot.lane.b32.xlu0 %v5375, 71
      %v5706 = vpop.permute.xlu0 %5705
      %5707 = vrot.lane.b32.xlu0 %v5376, 71
      %v5708 = vpop.permute.xlu0 %5707
      %5709 = vrot.lane.b32.xlu0 %v5377, 71
      %v5710 = vpop.permute.xlu0 %5709
      %v5711 = vsel %vm717, %v5708, %v5710
      %v5712 = vsel %vm717, %v5706, %v5708
      %v5713 = vsel %vm717, %v5704, %v5706
      %v5714 = vsel %vm717, %v5710, %v5704
      %v5715 = vmul.f32 %v5714, %v728
      %v5716 = vmul.f32 %v5713, %v732
      %v5717 = vmul.f32 %v5712, %v736
      %v5718 = vmul.f32 %v5711, %v740
      %s5719 = scalar_lea.vmem %s6, 16
      %v5720 = vld [vmem:[%s5719] sm:$0xff]
      %v5722 = vsel %vm418, %v5720, 0
      %5724 = vmatprep.subr.mxu0 %v5716
      %5725 = vmatpush1.msra.mxu0 %v5715
      %5726 = vmatprep.subr.mxu0 0.0
      %5727 = vmatpush1.msra.mxu0 0.0
      %5728 = vmatprep.subr.mxu0 0.0
      %5729 = vmatpush1.msra.mxu0 0.0
      %5730 = vmatprep.subr.mxu0 0.0
      %5731 = vmatpush1.msra.mxu0 0.0
      %5732 = vmatprep.subr.mxu0 0.0
      %5733 = vmatpush1.msra.mxu0 0.0
      %5734 = vmatprep.subr.mxu0 0.0
      %5735 = vmatpush1.msra.mxu0 0.0
      %5736 = vmatprep.subr.mxu0 0.0
      %5737 = vmatpush1.msra.mxu0 0.0
      %5738 = vmatprep.subr.mxu0 0.0
      %5739 = vmatpush1.msra.mxu0 0.0
      %5740 = vmatprep.subr.mxu0 0.0
      %5741 = vmatpush1.msra.mxu0 0.0
      %5742 = vmatprep.subr.mxu0 0.0
      %5743 = vmatpush1.msra.mxu0 0.0
      %5744 = vmatprep.subr.mxu0 0.0
      %5745 = vmatpush1.msra.mxu0 0.0
      %5746 = vmatprep.subr.mxu0 0.0
      %5747 = vmatpush1.msra.mxu0 0.0
      %5748 = vmatprep.subr.mxu0 0.0
      %5749 = vmatpush1.msra.mxu0 0.0
      %5750 = vmatprep.subr.mxu0 0.0
      %5751 = vmatpush1.msra.mxu0 0.0
      %5752 = vmatprep.subr.mxu0 0.0
      %5753 = vmatpush1.msra.mxu0 0.0
      %5754 = vmatprep.subr.mxu0 0.0
      %5755 = vmatpush1.msra.mxu0 0.0
      %5756 = vmatprep.subr.mxu0 0.0
      %5757 = vmatpush1.msra.mxu0 0.0
      %5758 = vmatprep.subr.mxu0 0.0
      %5759 = vmatpush1.msra.mxu0 0.0
      %5760 = vmatprep.subr.mxu0 0.0
      %5761 = vmatpush1.msra.mxu0 0.0
      %5762 = vmatprep.subr.mxu0 0.0
      %5763 = vmatpush1.msra.mxu0 0.0
      %5764 = vmatprep.subr.mxu0 0.0
      %5765 = vmatpush1.msra.mxu0 0.0
      %5766 = vmatprep.subr.mxu0 0.0
      %5767 = vmatpush1.msra.mxu0 0.0
      %5768 = vmatprep.subr.mxu0 0.0
      %5769 = vmatpush1.msra.mxu0 0.0
      %5770 = vmatprep.subr.mxu0 0.0
      %5771 = vmatpush1.msra.mxu0 0.0
      %5772 = vmatprep.subr.mxu0 0.0
      %5773 = vmatpush1.msra.mxu0 0.0
      %5774 = vmatprep.subr.mxu0 0.0
      %5775 = vmatpush1.msra.mxu0 0.0
      %5776 = vmatprep.subr.mxu0 0.0
      %5777 = vmatpush1.msra.mxu0 0.0
      %5778 = vmatprep.subr.mxu0 0.0
      %5779 = vmatpush1.msra.mxu0 0.0
      %5780 = vmatprep.subr.mxu0 0.0
      %5781 = vmatpush1.msra.mxu0 0.0
      %5782 = vmatprep.subr.mxu0 0.0
      %5783 = vmatpush1.msra.mxu0 0.0
      %5784 = vmatprep.subr.mxu0 0.0
      %5785 = vmatpush1.msra.mxu0 0.0
      %5786 = vmatprep.subr.mxu0 0.0
      %5787 = vmatpush1.msra.mxu0 0.0
      %5788 = vmatprep.mubr.f32.mxu0 0.0
      %5789 = vmatmul.mubr.f32.gmra.mrb[0].mxu0 %v5722
      %v5790 = vpop.f32.mrb[0].mxu0
      %v5791 = vadd.f32 0.0, %v5790
      %v5792 = vpop.f32.mrb[0].mxu0
      %v5793 = vadd.f32 0.0, %v5792
      %5794 = vdwg.mxu0
      %5795 = vmatprep.subr.mxu0 %v5718
      %5796 = vmatpush1.msra.mxu0 %v5717
      %5797 = vmatprep.subr.mxu0 0.0
      %5798 = vmatpush1.msra.mxu0 0.0
      %5799 = vmatprep.subr.mxu0 0.0
      %5800 = vmatpush1.msra.mxu0 0.0
      %5801 = vmatprep.subr.mxu0 0.0
      %5802 = vmatpush1.msra.mxu0 0.0
      %5803 = vmatprep.subr.mxu0 0.0
      %5804 = vmatpush1.msra.mxu0 0.0
      %5805 = vmatprep.subr.mxu0 0.0
      %5806 = vmatpush1.msra.mxu0 0.0
      %5807 = vmatprep.subr.mxu0 0.0
      %5808 = vmatpush1.msra.mxu0 0.0
      %5809 = vmatprep.subr.mxu0 0.0
      %5810 = vmatpush1.msra.mxu0 0.0
      %5811 = vmatprep.subr.mxu0 0.0
      %5812 = vmatpush1.msra.mxu0 0.0
      %5813 = vmatprep.subr.mxu0 0.0
      %5814 = vmatpush1.msra.mxu0 0.0
      %5815 = vmatprep.subr.mxu0 0.0
      %5816 = vmatpush1.msra.mxu0 0.0
      %5817 = vmatprep.subr.mxu0 0.0
      %5818 = vmatpush1.msra.mxu0 0.0
      %5819 = vmatprep.subr.mxu0 0.0
      %5820 = vmatpush1.msra.mxu0 0.0
      %5821 = vmatprep.subr.mxu0 0.0
      %5822 = vmatpush1.msra.mxu0 0.0
      %5823 = vmatprep.subr.mxu0 0.0
      %5824 = vmatpush1.msra.mxu0 0.0
      %5825 = vmatprep.subr.mxu0 0.0
      %5826 = vmatpush1.msra.mxu0 0.0
      %5827 = vmatprep.subr.mxu0 0.0
      %5828 = vmatpush1.msra.mxu0 0.0
      %5829 = vmatprep.subr.mxu0 0.0
      %5830 = vmatpush1.msra.mxu0 0.0
      %5831 = vmatprep.subr.mxu0 0.0
      %5832 = vmatpush1.msra.mxu0 0.0
      %5833 = vmatprep.subr.mxu0 0.0
      %5834 = vmatpush1.msra.mxu0 0.0
      %5835 = vmatprep.subr.mxu0 0.0
      %5836 = vmatpush1.msra.mxu0 0.0
      %5837 = vmatprep.subr.mxu0 0.0
      %5838 = vmatpush1.msra.mxu0 0.0
      %5839 = vmatprep.subr.mxu0 0.0
      %5840 = vmatpush1.msra.mxu0 0.0
      %5841 = vmatprep.subr.mxu0 0.0
      %5842 = vmatpush1.msra.mxu0 0.0
      %5843 = vmatprep.subr.mxu0 0.0
      %5844 = vmatpush1.msra.mxu0 0.0
      %5845 = vmatprep.subr.mxu0 0.0
      %5846 = vmatpush1.msra.mxu0 0.0
      %5847 = vmatprep.subr.mxu0 0.0
      %5848 = vmatpush1.msra.mxu0 0.0
      %5849 = vmatprep.subr.mxu0 0.0
      %5850 = vmatpush1.msra.mxu0 0.0
      %5851 = vmatprep.subr.mxu0 0.0
      %5852 = vmatpush1.msra.mxu0 0.0
      %5853 = vmatprep.subr.mxu0 0.0
      %5854 = vmatpush1.msra.mxu0 0.0
      %5855 = vmatprep.subr.mxu0 0.0
      %5856 = vmatpush1.msra.mxu0 0.0
      %5857 = vmatprep.subr.mxu0 0.0
      %5858 = vmatpush1.msra.mxu0 0.0
      %5859 = vmatprep.mubr.f32.mxu0 0.0
      %5860 = vmatmul.mubr.f32.gmra.mrb[0].mxu0 %v5722
      %v5861 = vpop.f32.mrb[0].mxu0
      %v5862 = vadd.f32 0.0, %v5861
      %v5863 = vpop.f32.mrb[0].mxu0
      %v5864 = vadd.f32 0.0, %v5863
      %5865 = vdwg.mxu0
      %v5866 = vadd.f32 %v5628, %v5791
      %v5867 = vadd.f32 %v5630, %v5793
      %v5868 = vadd.f32 %v5699, %v5862
      %v5869 = vadd.f32 %v5701, %v5864
      %5870 = vrot.lane.b32.xlu0 %v5374, 65
      %v5871 = vpop.permute.xlu0 %5870
      %5872 = vrot.lane.b32.xlu0 %v5375, 65
      %v5873 = vpop.permute.xlu0 %5872
      %5874 = vrot.lane.b32.xlu0 %v5376, 65
      %v5875 = vpop.permute.xlu0 %5874
      %5876 = vrot.lane.b32.xlu0 %v5377, 65
      %v5877 = vpop.permute.xlu0 %5876
      %v5878 = vsel %vm908, %v5875, %v5877
      %v5879 = vsel %vm908, %v5873, %v5875
      %v5880 = vsel %vm908, %v5871, %v5873
      %v5881 = vsel %vm908, %v5877, %v5871
      %v5882 = vmul.f32 %v5881, %v919
      %v5883 = vmul.f32 %v5880, %v923
      %v5884 = vmul.f32 %v5879, %v927
      %v5885 = vmul.f32 %v5878, %v931
      %s5886 = scalar_lea.vmem %s6, 24
      %v5887 = vld [vmem:[%s5886] sm:$0xff]
      %v5889 = vsel %vm418, %v5887, 0
      %5891 = vmatprep.subr.mxu0 %v5883
      %5892 = vmatpush1.msra.mxu0 %v5882
      %5893 = vmatprep.subr.mxu0 0.0
      %5894 = vmatpush1.msra.mxu0 0.0
      %5895 = vmatprep.subr.mxu0 0.0
      %5896 = vmatpush1.msra.mxu0 0.0
      %5897 = vmatprep.subr.mxu0 0.0
      %5898 = vmatpush1.msra.mxu0 0.0
      %5899 = vmatprep.subr.mxu0 0.0
      %5900 = vmatpush1.msra.mxu0 0.0
      %5901 = vmatprep.subr.mxu0 0.0
      %5902 = vmatpush1.msra.mxu0 0.0
      %5903 = vmatprep.subr.mxu0 0.0
      %5904 = vmatpush1.msra.mxu0 0.0
      %5905 = vmatprep.subr.mxu0 0.0
      %5906 = vmatpush1.msra.mxu0 0.0
      %5907 = vmatprep.subr.mxu0 0.0
      %5908 = vmatpush1.msra.mxu0 0.0
      %5909 = vmatprep.subr.mxu0 0.0
      %5910 = vmatpush1.msra.mxu0 0.0
      %5911 = vmatprep.subr.mxu0 0.0
      %5912 = vmatpush1.msra.mxu0 0.0
      %5913 = vmatprep.subr.mxu0 0.0
      %5914 = vmatpush1.msra.mxu0 0.0
      %5915 = vmatprep.subr.mxu0 0.0
      %5916 = vmatpush1.msra.mxu0 0.0
      %5917 = vmatprep.subr.mxu0 0.0
      %5918 = vmatpush1.msra.mxu0 0.0
      %5919 = vmatprep.subr.mxu0 0.0
      %5920 = vmatpush1.msra.mxu0 0.0
      %5921 = vmatprep.subr.mxu0 0.0
      %5922 = vmatpush1.msra.mxu0 0.0
      %5923 = vmatprep.subr.mxu0 0.0
      %5924 = vmatpush1.msra.mxu0 0.0
      %5925 = vmatprep.subr.mxu0 0.0
      %5926 = vmatpush1.msra.mxu0 0.0
      %5927 = vmatprep.subr.mxu0 0.0
      %5928 = vmatpush1.msra.mxu0 0.0
      %5929 = vmatprep.subr.mxu0 0.0
      %5930 = vmatpush1.msra.mxu0 0.0
      %5931 = vmatprep.subr.mxu0 0.0
      %5932 = vmatpush1.msra.mxu0 0.0
      %5933 = vmatprep.subr.mxu0 0.0
      %5934 = vmatpush1.msra.mxu0 0.0
      %5935 = vmatprep.subr.mxu0 0.0
      %5936 = vmatpush1.msra.mxu0 0.0
      %5937 = vmatprep.subr.mxu0 0.0
      %5938 = vmatpush1.msra.mxu0 0.0
      %5939 = vmatprep.subr.mxu0 0.0
      %5940 = vmatpush1.msra.mxu0 0.0
      %5941 = vmatprep.subr.mxu0 0.0
      %5942 = vmatpush1.msra.mxu0 0.0
      %5943 = vmatprep.subr.mxu0 0.0
      %5944 = vmatpush1.msra.mxu0 0.0
      %5945 = vmatprep.subr.mxu0 0.0
      %5946 = vmatpush1.msra.mxu0 0.0
      %5947 = vmatprep.subr.mxu0 0.0
      %5948 = vmatpush1.msra.mxu0 0.0
      %5949 = vmatprep.subr.mxu0 0.0
      %5950 = vmatpush1.msra.mxu0 0.0
      %5951 = vmatprep.subr.mxu0 0.0
      %5952 = vmatpush1.msra.mxu0 0.0
      %5953 = vmatprep.subr.mxu0 0.0
      %5954 = vmatpush1.msra.mxu0 0.0
      %5955 = vmatprep.mubr.f32.mxu0 0.0
      %5956 = vmatmul.mubr.f32.gmra.mrb[0].mxu0 %v5889
      %v5957 = vpop.f32.mrb[0].mxu0
      %v5958 = vadd.f32 0.0, %v5957
      %v5959 = vpop.f32.mrb[0].mxu0
      %v5960 = vadd.f32 0.0, %v5959
      %5961 = vdwg.mxu0
      %5962 = vmatprep.subr.mxu0 %v5885
      %5963 = vmatpush1.msra.mxu0 %v5884
      %5964 = vmatprep.subr.mxu0 0.0
      %5965 = vmatpush1.msra.mxu0 0.0
      %5966 = vmatprep.subr.mxu0 0.0
      %5967 = vmatpush1.msra.mxu0 0.0
      %5968 = vmatprep.subr.mxu0 0.0
      %5969 = vmatpush1.msra.mxu0 0.0
      %5970 = vmatprep.subr.mxu0 0.0
      %5971 = vmatpush1.msra.mxu0 0.0
      %5972 = vmatprep.subr.mxu0 0.0
      %5973 = vmatpush1.msra.mxu0 0.0
      %5974 = vmatprep.subr.mxu0 0.0
      %5975 = vmatpush1.msra.mxu0 0.0
      %5976 = vmatprep.subr.mxu0 0.0
      %5977 = vmatpush1.msra.mxu0 0.0
      %5978 = vmatprep.subr.mxu0 0.0
      %5979 = vmatpush1.msra.mxu0 0.0
      %5980 = vmatprep.subr.mxu0 0.0
      %5981 = vmatpush1.msra.mxu0 0.0
      %5982 = vmatprep.subr.mxu0 0.0
      %5983 = vmatpush1.msra.mxu0 0.0
      %5984 = vmatprep.subr.mxu0 0.0
      %5985 = vmatpush1.msra.mxu0 0.0
      %5986 = vmatprep.subr.mxu0 0.0
      %5987 = vmatpush1.msra.mxu0 0.0
      %5988 = vmatprep.subr.mxu0 0.0
      %5989 = vmatpush1.msra.mxu0 0.0
      %5990 = vmatprep.subr.mxu0 0.0
      %5991 = vmatpush1.msra.mxu0 0.0
      %5992 = vmatprep.subr.mxu0 0.0
      %5993 = vmatpush1.msra.mxu0 0.0
      %5994 = vmatprep.subr.mxu0 0.0
      %5995 = vmatpush1.msra.mxu0 0.0
      %5996 = vmatprep.subr.mxu0 0.0
      %5997 = vmatpush1.msra.mxu0 0.0
      %5998 = vmatprep.subr.mxu0 0.0
      %5999 = vmatpush1.msra.mxu0 0.0
      %6000 = vmatprep.subr.mxu0 0.0
      %6001 = vmatpush1.msra.mxu0 0.0
      %6002 = vmatprep.subr.mxu0 0.0
      %6003 = vmatpush1.msra.mxu0 0.0
      %6004 = vmatprep.subr.mxu0 0.0
      %6005 = vmatpush1.msra.mxu0 0.0
      %6006 = vmatprep.subr.mxu0 0.0
      %6007 = vmatpush1.msra.mxu0 0.0
      %6008 = vmatprep.subr.mxu0 0.0
      %6009 = vmatpush1.msra.mxu0 0.0
      %6010 = vmatprep.subr.mxu0 0.0
      %6011 = vmatpush1.msra.mxu0 0.0
      %6012 = vmatprep.subr.mxu0 0.0
      %6013 = vmatpush1.msra.mxu0 0.0
      %6014 = vmatprep.subr.mxu0 0.0
      %6015 = vmatpush1.msra.mxu0 0.0
      %6016 = vmatprep.subr.mxu0 0.0
      %6017 = vmatpush1.msra.mxu0 0.0
      %6018 = vmatprep.subr.mxu0 0.0
      %6019 = vmatpush1.msra.mxu0 0.0
      %6020 = vmatprep.subr.mxu0 0.0
      %6021 = vmatpush1.msra.mxu0 0.0
      %6022 = vmatprep.subr.mxu0 0.0
      %6023 = vmatpush1.msra.mxu0 0.0
      %6024 = vmatprep.subr.mxu0 0.0
      %6025 = vmatpush1.msra.mxu0 0.0
      %6026 = vmatprep.mubr.f32.mxu0 0.0
      %6027 = vmatmul.mubr.f32.gmra.mrb[0].mxu0 %v5889
      %v6028 = vpop.f32.mrb[0].mxu0
      %v6029 = vadd.f32 0.0, %v6028
      %v6030 = vpop.f32.mrb[0].mxu0
      %v6031 = vadd.f32 0.0, %v6030
      %6032 = vdwg.mxu0
      %v6033 = vadd.f32 %v5866, %v5958
      %v6034 = vadd.f32 %v5867, %v5960
      %v6035 = vadd.f32 %v5868, %v6029
      %v6036 = vadd.f32 %v5869, %v6031
      %6037 = vrot.lane.b32.xlu0 %v5374, 64
      %v6038 = vpop.permute.xlu0 %6037
      %6039 = vrot.lane.b32.xlu0 %v5375, 64
      %v6040 = vpop.permute.xlu0 %6039
      %6041 = vrot.lane.b32.xlu0 %v5376, 64
      %v6042 = vpop.permute.xlu0 %6041
      %6043 = vrot.lane.b32.xlu0 %v5377, 64
      %v6044 = vpop.permute.xlu0 %6043
      %v6045 = vsel %vm1099, %v6042, %v6044
      %v6046 = vsel %vm1099, %v6040, %v6042
      %v6047 = vsel %vm1099, %v6038, %v6040
      %v6048 = vsel %vm1099, %v6044, %v6038
      %v6049 = vmul.f32 %v6048, %v1110
      %v6050 = vmul.f32 %v6047, %v1114
      %v6051 = vmul.f32 %v6046, %v1118
      %v6052 = vmul.f32 %v6045, %v1122
      %s6053 = scalar_lea.vmem %s6, 32
      %v6054 = vld [vmem:[%s6053] sm:$0xff]
      %v6056 = vsel %vm418, %v6054, 0
      %6058 = vmatprep.subr.mxu0 %v6050
      %6059 = vmatpush1.msra.mxu0 %v6049
      %6060 = vmatprep.subr.mxu0 0.0
      %6061 = vmatpush1.msra.mxu0 0.0
      %6062 = vmatprep.subr.mxu0 0.0
      %6063 = vmatpush1.msra.mxu0 0.0
      %6064 = vmatprep.subr.mxu0 0.0
      %6065 = vmatpush1.msra.mxu0 0.0
      %6066 = vmatprep.subr.mxu0 0.0
      %6067 = vmatpush1.msra.mxu0 0.0
      %6068 = vmatprep.subr.mxu0 0.0
      %6069 = vmatpush1.msra.mxu0 0.0
      %6070 = vmatprep.subr.mxu0 0.0
      %6071 = vmatpush1.msra.mxu0 0.0
      %6072 = vmatprep.subr.mxu0 0.0
      %6073 = vmatpush1.msra.mxu0 0.0
      %6074 = vmatprep.subr.mxu0 0.0
      %6075 = vmatpush1.msra.mxu0 0.0
      %6076 = vmatprep.subr.mxu0 0.0
      %6077 = vmatpush1.msra.mxu0 0.0
      %6078 = vmatprep.subr.mxu0 0.0
      %6079 = vmatpush1.msra.mxu0 0.0
      %6080 = vmatprep.subr.mxu0 0.0
      %6081 = vmatpush1.msra.mxu0 0.0
      %6082 = vmatprep.subr.mxu0 0.0
      %6083 = vmatpush1.msra.mxu0 0.0
      %6084 = vmatprep.subr.mxu0 0.0
      %6085 = vmatpush1.msra.mxu0 0.0
      %6086 = vmatprep.subr.mxu0 0.0
      %6087 = vmatpush1.msra.mxu0 0.0
      %6088 = vmatprep.subr.mxu0 0.0
      %6089 = vmatpush1.msra.mxu0 0.0
      %6090 = vmatprep.subr.mxu0 0.0
      %6091 = vmatpush1.msra.mxu0 0.0
      %6092 = vmatprep.subr.mxu0 0.0
      %6093 = vmatpush1.msra.mxu0 0.0
      %6094 = vmatprep.subr.mxu0 0.0
      %6095 = vmatpush1.msra.mxu0 0.0
      %6096 = vmatprep.subr.mxu0 0.0
      %6097 = vmatpush1.msra.mxu0 0.0
      %6098 = vmatprep.subr.mxu0 0.0
      %6099 = vmatpush1.msra.mxu0 0.0
      %6100 = vmatprep.subr.mxu0 0.0
      %6101 = vmatpush1.msra.mxu0 0.0
      %6102 = vmatprep.subr.mxu0 0.0
      %6103 = vmatpush1.msra.mxu0 0.0
      %6104 = vmatprep.subr.mxu0 0.0
      %6105 = vmatpush1.msra.mxu0 0.0
      %6106 = vmatprep.subr.mxu0 0.0
      %6107 = vmatpush1.msra.mxu0 0.0
      %6108 = vmatprep.subr.mxu0 0.0
      %6109 = vmatpush1.msra.mxu0 0.0
      %6110 = vmatprep.subr.mxu0 0.0
      %6111 = vmatpush1.msra.mxu0 0.0
      %6112 = vmatprep.subr.mxu0 0.0
      %6113 = vmatpush1.msra.mxu0 0.0
      %6114 = vmatprep.subr.mxu0 0.0
      %6115 = vmatpush1.msra.mxu0 0.0
      %6116 = vmatprep.subr.mxu0 0.0
      %6117 = vmatpush1.msra.mxu0 0.0
      %6118 = vmatprep.subr.mxu0 0.0
      %6119 = vmatpush1.msra.mxu0 0.0
      %6120 = vmatprep.subr.mxu0 0.0
      %6121 = vmatpush1.msra.mxu0 0.0
      %6122 = vmatprep.mubr.f32.mxu0 0.0
      %6123 = vmatmul.mubr.f32.gmra.mrb[0].mxu0 %v6056
      %v6124 = vpop.f32.mrb[0].mxu0
      %v6125 = vadd.f32 0.0, %v6124
      %v6126 = vpop.f32.mrb[0].mxu0
      %v6127 = vadd.f32 0.0, %v6126
      %6128 = vdwg.mxu0
      %6129 = vmatprep.subr.mxu0 %v6052
      %6130 = vmatpush1.msra.mxu0 %v6051
      %6131 = vmatprep.subr.mxu0 0.0
      %6132 = vmatpush1.msra.mxu0 0.0
      %6133 = vmatprep.subr.mxu0 0.0
      %6134 = vmatpush1.msra.mxu0 0.0
      %6135 = vmatprep.subr.mxu0 0.0
      %6136 = vmatpush1.msra.mxu0 0.0
      %6137 = vmatprep.subr.mxu0 0.0
      %6138 = vmatpush1.msra.mxu0 0.0
      %6139 = vmatprep.subr.mxu0 0.0
      %6140 = vmatpush1.msra.mxu0 0.0
      %6141 = vmatprep.subr.mxu0 0.0
      %6142 = vmatpush1.msra.mxu0 0.0
      %6143 = vmatprep.subr.mxu0 0.0
      %6144 = vmatpush1.msra.mxu0 0.0
      %6145 = vmatprep.subr.mxu0 0.0
      %6146 = vmatpush1.msra.mxu0 0.0
      %6147 = vmatprep.subr.mxu0 0.0
      %6148 = vmatpush1.msra.mxu0 0.0
      %6149 = vmatprep.subr.mxu0 0.0
      %6150 = vmatpush1.msra.mxu0 0.0
      %6151 = vmatprep.subr.mxu0 0.0
      %6152 = vmatpush1.msra.mxu0 0.0
      %6153 = vmatprep.subr.mxu0 0.0
      %6154 = vmatpush1.msra.mxu0 0.0
      %6155 = vmatprep.subr.mxu0 0.0
      %6156 = vmatpush1.msra.mxu0 0.0
      %6157 = vmatprep.subr.mxu0 0.0
      %6158 = vmatpush1.msra.mxu0 0.0
      %6159 = vmatprep.subr.mxu0 0.0
      %6160 = vmatpush1.msra.mxu0 0.0
      %6161 = vmatprep.subr.mxu0 0.0
      %6162 = vmatpush1.msra.mxu0 0.0
      %6163 = vmatprep.subr.mxu0 0.0
      %6164 = vmatpush1.msra.mxu0 0.0
      %6165 = vmatprep.subr.mxu0 0.0
      %6166 = vmatpush1.msra.mxu0 0.0
      %6167 = vmatprep.subr.mxu0 0.0
      %6168 = vmatpush1.msra.mxu0 0.0
      %6169 = vmatprep.subr.mxu0 0.0
      %6170 = vmatpush1.msra.mxu0 0.0
      %6171 = vmatprep.subr.mxu0 0.0
      %6172 = vmatpush1.msra.mxu0 0.0
      %6173 = vmatprep.subr.mxu0 0.0
      %6174 = vmatpush1.msra.mxu0 0.0
      %6175 = vmatprep.subr.mxu0 0.0
      %6176 = vmatpush1.msra.mxu0 0.0
      %6177 = vmatprep.subr.mxu0 0.0
      %6178 = vmatpush1.msra.mxu0 0.0
      %6179 = vmatprep.subr.mxu0 0.0
      %6180 = vmatpush1.msra.mxu0 0.0
      %6181 = vmatprep.subr.mxu0 0.0
      %6182 = vmatpush1.msra.mxu0 0.0
      %6183 = vmatprep.subr.mxu0 0.0
      %6184 = vmatpush1.msra.mxu0 0.0
      %6185 = vmatprep.subr.mxu0 0.0
      %6186 = vmatpush1.msra.mxu0 0.0
      %6187 = vmatprep.subr.mxu0 0.0
      %6188 = vmatpush1.msra.mxu0 0.0
      %6189 = vmatprep.subr.mxu0 0.0
      %6190 = vmatpush1.msra.mxu0 0.0
      %6191 = vmatprep.subr.mxu0 0.0
      %6192 = vmatpush1.msra.mxu0 0.0
      %6193 = vmatprep.mubr.f32.mxu0 0.0
      %6194 = vmatmul.mubr.f32.gmra.mrb[0].mxu0 %v6056
      %v6195 = vpop.f32.mrb[0].mxu0
      %v6196 = vadd.f32 0.0, %v6195
      %v6197 = vpop.f32.mrb[0].mxu0
      %v6198 = vadd.f32 0.0, %v6197
      %6199 = vdwg.mxu0
      %v6200 = vadd.f32 %v6033, %v6125
      %v6201 = vadd.f32 %v6034, %v6127
      %v6202 = vadd.f32 %v6035, %v6196
      %v6203 = vadd.f32 %v6036, %v6198
      %6204 = vrot.lane.b32.xlu0 %v5374, 63
      %v6205 = vpop.permute.xlu0 %6204
      %6206 = vrot.lane.b32.xlu0 %v5375, 63
      %v6207 = vpop.permute.xlu0 %6206
      %6208 = vrot.lane.b32.xlu0 %v5376, 63
      %v6209 = vpop.permute.xlu0 %6208
      %6210 = vrot.lane.b32.xlu0 %v5377, 63
      %v6211 = vpop.permute.xlu0 %6210
      %v6212 = vsel %vm1290, %v6209, %v6211
      %v6213 = vsel %vm1290, %v6207, %v6209
      %v6214 = vsel %vm1290, %v6205, %v6207
      %v6215 = vsel %vm1290, %v6211, %v6205
      %v6216 = vmul.f32 %v6215, %v1301
      %v6217 = vmul.f32 %v6214, %v1305
      %v6218 = vmul.f32 %v6213, %v1309
      %v6219 = vmul.f32 %v6212, %v1313
      %s6220 = scalar_lea.vmem %s6, 40
      %v6221 = vld [vmem:[%s6220] sm:$0xff]
      %v6223 = vsel %vm418, %v6221, 0
      %6225 = vmatprep.subr.mxu0 %v6217
      %6226 = vmatpush1.msra.mxu0 %v6216
      %6227 = vmatprep.subr.mxu0 0.0
      %6228 = vmatpush1.msra.mxu0 0.0
      %6229 = vmatprep.subr.mxu0 0.0
      %6230 = vmatpush1.msra.mxu0 0.0
      %6231 = vmatprep.subr.mxu0 0.0
      %6232 = vmatpush1.msra.mxu0 0.0
      %6233 = vmatprep.subr.mxu0 0.0
      %6234 = vmatpush1.msra.mxu0 0.0
      %6235 = vmatprep.subr.mxu0 0.0
      %6236 = vmatpush1.msra.mxu0 0.0
      %6237 = vmatprep.subr.mxu0 0.0
      %6238 = vmatpush1.msra.mxu0 0.0
      %6239 = vmatprep.subr.mxu0 0.0
      %6240 = vmatpush1.msra.mxu0 0.0
      %6241 = vmatprep.subr.mxu0 0.0
      %6242 = vmatpush1.msra.mxu0 0.0
      %6243 = vmatprep.subr.mxu0 0.0
      %6244 = vmatpush1.msra.mxu0 0.0
      %6245 = vmatprep.subr.mxu0 0.0
      %6246 = vmatpush1.msra.mxu0 0.0
      %6247 = vmatprep.subr.mxu0 0.0
      %6248 = vmatpush1.msra.mxu0 0.0
      %6249 = vmatprep.subr.mxu0 0.0
      %6250 = vmatpush1.msra.mxu0 0.0
      %6251 = vmatprep.subr.mxu0 0.0
      %6252 = vmatpush1.msra.mxu0 0.0
      %6253 = vmatprep.subr.mxu0 0.0
      %6254 = vmatpush1.msra.mxu0 0.0
      %6255 = vmatprep.subr.mxu0 0.0
      %6256 = vmatpush1.msra.mxu0 0.0
      %6257 = vmatprep.subr.mxu0 0.0
      %6258 = vmatpush1.msra.mxu0 0.0
      %6259 = vmatprep.subr.mxu0 0.0
      %6260 = vmatpush1.msra.mxu0 0.0
      %6261 = vmatprep.subr.mxu0 0.0
      %6262 = vmatpush1.msra.mxu0 0.0
      %6263 = vmatprep.subr.mxu0 0.0
      %6264 = vmatpush1.msra.mxu0 0.0
      %6265 = vmatprep.subr.mxu0 0.0
      %6266 = vmatpush1.msra.mxu0 0.0
      %6267 = vmatprep.subr.mxu0 0.0
      %6268 = vmatpush1.msra.mxu0 0.0
      %6269 = vmatprep.subr.mxu0 0.0
      %6270 = vmatpush1.msra.mxu0 0.0
      %6271 = vmatprep.subr.mxu0 0.0
      %6272 = vmatpush1.msra.mxu0 0.0
      %6273 = vmatprep.subr.mxu0 0.0
      %6274 = vmatpush1.msra.mxu0 0.0
      %6275 = vmatprep.subr.mxu0 0.0
      %6276 = vmatpush1.msra.mxu0 0.0
      %6277 = vmatprep.subr.mxu0 0.0
      %6278 = vmatpush1.msra.mxu0 0.0
      %6279 = vmatprep.subr.mxu0 0.0
      %6280 = vmatpush1.msra.mxu0 0.0
      %6281 = vmatprep.subr.mxu0 0.0
      %6282 = vmatpush1.msra.mxu0 0.0
      %6283 = vmatprep.subr.mxu0 0.0
      %6284 = vmatpush1.msra.mxu0 0.0
      %6285 = vmatprep.subr.mxu0 0.0
      %6286 = vmatpush1.msra.mxu0 0.0
      %6287 = vmatprep.subr.mxu0 0.0
      %6288 = vmatpush1.msra.mxu0 0.0
      %6289 = vmatprep.mubr.f32.mxu0 0.0
      %6290 = vmatmul.mubr.f32.gmra.mrb[0].mxu0 %v6223
      %v6291 = vpop.f32.mrb[0].mxu0
      %v6292 = vadd.f32 0.0, %v6291
      %v6293 = vpop.f32.mrb[0].mxu0
      %v6294 = vadd.f32 0.0, %v6293
      %6295 = vdwg.mxu0
      %6296 = vmatprep.subr.mxu0 %v6219
      %6297 = vmatpush1.msra.mxu0 %v6218
      %6298 = vmatprep.subr.mxu0 0.0
      %6299 = vmatpush1.msra.mxu0 0.0
      %6300 = vmatprep.subr.mxu0 0.0
      %6301 = vmatpush1.msra.mxu0 0.0
      %6302 = vmatprep.subr.mxu0 0.0
      %6303 = vmatpush1.msra.mxu0 0.0
      %6304 = vmatprep.subr.mxu0 0.0
      %6305 = vmatpush1.msra.mxu0 0.0
      %6306 = vmatprep.subr.mxu0 0.0
      %6307 = vmatpush1.msra.mxu0 0.0
      %6308 = vmatprep.subr.mxu0 0.0
      %6309 = vmatpush1.msra.mxu0 0.0
      %6310 = vmatprep.subr.mxu0 0.0
      %6311 = vmatpush1.msra.mxu0 0.0
      %6312 = vmatprep.subr.mxu0 0.0
      %6313 = vmatpush1.msra.mxu0 0.0
      %6314 = vmatprep.subr.mxu0 0.0
      %6315 = vmatpush1.msra.mxu0 0.0
      %6316 = vmatprep.subr.mxu0 0.0
      %6317 = vmatpush1.msra.mxu0 0.0
      %6318 = vmatprep.subr.mxu0 0.0
      %6319 = vmatpush1.msra.mxu0 0.0
      %6320 = vmatprep.subr.mxu0 0.0
      %6321 = vmatpush1.msra.mxu0 0.0
      %6322 = vmatprep.subr.mxu0 0.0
      %6323 = vmatpush1.msra.mxu0 0.0
      %6324 = vmatprep.subr.mxu0 0.0
      %6325 = vmatpush1.msra.mxu0 0.0
      %6326 = vmatprep.subr.mxu0 0.0
      %6327 = vmatpush1.msra.mxu0 0.0
      %6328 = vmatprep.subr.mxu0 0.0
      %6329 = vmatpush1.msra.mxu0 0.0
      %6330 = vmatprep.subr.mxu0 0.0
      %6331 = vmatpush1.msra.mxu0 0.0
      %6332 = vmatprep.subr.mxu0 0.0
      %6333 = vmatpush1.msra.mxu0 0.0
      %6334 = vmatprep.subr.mxu0 0.0
      %6335 = vmatpush1.msra.mxu0 0.0
      %6336 = vmatprep.subr.mxu0 0.0
      %6337 = vmatpush1.msra.mxu0 0.0
      %6338 = vmatprep.subr.mxu0 0.0
      %6339 = vmatpush1.msra.mxu0 0.0
      %6340 = vmatprep.subr.mxu0 0.0
      %6341 = vmatpush1.msra.mxu0 0.0
      %6342 = vmatprep.subr.mxu0 0.0
      %6343 = vmatpush1.msra.mxu0 0.0
      %6344 = vmatprep.subr.mxu0 0.0
      %6345 = vmatpush1.msra.mxu0 0.0
      %6346 = vmatprep.subr.mxu0 0.0
      %6347 = vmatpush1.msra.mxu0 0.0
      %6348 = vmatprep.subr.mxu0 0.0
      %6349 = vmatpush1.msra.mxu0 0.0
      %6350 = vmatprep.subr.mxu0 0.0
      %6351 = vmatpush1.msra.mxu0 0.0
      %6352 = vmatprep.subr.mxu0 0.0
      %6353 = vmatpush1.msra.mxu0 0.0
      %6354 = vmatprep.subr.mxu0 0.0
      %6355 = vmatpush1.msra.mxu0 0.0
      %6356 = vmatprep.subr.mxu0 0.0
      %6357 = vmatpush1.msra.mxu0 0.0
      %6358 = vmatprep.subr.mxu0 0.0
      %6359 = vmatpush1.msra.mxu0 0.0
      %6360 = vmatprep.mubr.f32.mxu0 0.0
      %6361 = vmatmul.mubr.f32.gmra.mrb[0].mxu0 %v6223
      %v6362 = vpop.f32.mrb[0].mxu0
      %v6363 = vadd.f32 0.0, %v6362
      %v6364 = vpop.f32.mrb[0].mxu0
      %v6365 = vadd.f32 0.0, %v6364
      %6366 = vdwg.mxu0
      %v6367 = vadd.f32 %v6200, %v6292
      %v6368 = vadd.f32 %v6201, %v6294
      %v6369 = vadd.f32 %v6202, %v6363
      %v6370 = vadd.f32 %v6203, %v6365
      %6371 = vrot.lane.b32.xlu0 %v5374, 57
      %v6372 = vpop.permute.xlu0 %6371
      %6373 = vrot.lane.b32.xlu0 %v5375, 57
      %v6374 = vpop.permute.xlu0 %6373
      %6375 = vrot.lane.b32.xlu0 %v5376, 57
      %v6376 = vpop.permute.xlu0 %6375
      %6377 = vrot.lane.b32.xlu0 %v5377, 57
      %v6378 = vpop.permute.xlu0 %6377
      %v6379 = vsel %vm1481, %v6376, %v6378
      %v6380 = vsel %vm1481, %v6374, %v6376
      %v6381 = vsel %vm1481, %v6372, %v6374
      %v6382 = vsel %vm1481, %v6378, %v6372
      %v6383 = vmul.f32 %v6382, %v1492
      %v6384 = vmul.f32 %v6381, %v1496
      %v6385 = vmul.f32 %v6380, %v1500
      %v6386 = vmul.f32 %v6379, %v1504
      %s6387 = scalar_lea.vmem %s6, 48
      %v6388 = vld [vmem:[%s6387] sm:$0xff]
      %v6390 = vsel %vm418, %v6388, 0
      %6392 = vmatprep.subr.mxu0 %v6384
      %6393 = vmatpush1.msra.mxu0 %v6383
      %6394 = vmatprep.subr.mxu0 0.0
      %6395 = vmatpush1.msra.mxu0 0.0
      %6396 = vmatprep.subr.mxu0 0.0
      %6397 = vmatpush1.msra.mxu0 0.0
      %6398 = vmatprep.subr.mxu0 0.0
      %6399 = vmatpush1.msra.mxu0 0.0
      %6400 = vmatprep.subr.mxu0 0.0
      %6401 = vmatpush1.msra.mxu0 0.0
      %6402 = vmatprep.subr.mxu0 0.0
      %6403 = vmatpush1.msra.mxu0 0.0
      %6404 = vmatprep.subr.mxu0 0.0
      %6405 = vmatpush1.msra.mxu0 0.0
      %6406 = vmatprep.subr.mxu0 0.0
      %6407 = vmatpush1.msra.mxu0 0.0
      %6408 = vmatprep.subr.mxu0 0.0
      %6409 = vmatpush1.msra.mxu0 0.0
      %6410 = vmatprep.subr.mxu0 0.0
      %6411 = vmatpush1.msra.mxu0 0.0
      %6412 = vmatprep.subr.mxu0 0.0
      %6413 = vmatpush1.msra.mxu0 0.0
      %6414 = vmatprep.subr.mxu0 0.0
      %6415 = vmatpush1.msra.mxu0 0.0
      %6416 = vmatprep.subr.mxu0 0.0
      %6417 = vmatpush1.msra.mxu0 0.0
      %6418 = vmatprep.subr.mxu0 0.0
      %6419 = vmatpush1.msra.mxu0 0.0
      %6420 = vmatprep.subr.mxu0 0.0
      %6421 = vmatpush1.msra.mxu0 0.0
      %6422 = vmatprep.subr.mxu0 0.0
      %6423 = vmatpush1.msra.mxu0 0.0
      %6424 = vmatprep.subr.mxu0 0.0
      %6425 = vmatpush1.msra.mxu0 0.0
      %6426 = vmatprep.subr.mxu0 0.0
      %6427 = vmatpush1.msra.mxu0 0.0
      %6428 = vmatprep.subr.mxu0 0.0
      %6429 = vmatpush1.msra.mxu0 0.0
      %6430 = vmatprep.subr.mxu0 0.0
      %6431 = vmatpush1.msra.mxu0 0.0
      %6432 = vmatprep.subr.mxu0 0.0
      %6433 = vmatpush1.msra.mxu0 0.0
      %6434 = vmatprep.subr.mxu0 0.0
      %6435 = vmatpush1.msra.mxu0 0.0
      %6436 = vmatprep.subr.mxu0 0.0
      %6437 = vmatpush1.msra.mxu0 0.0
      %6438 = vmatprep.subr.mxu0 0.0
      %6439 = vmatpush1.msra.mxu0 0.0
      %6440 = vmatprep.subr.mxu0 0.0
      %6441 = vmatpush1.msra.mxu0 0.0
      %6442 = vmatprep.subr.mxu0 0.0
      %6443 = vmatpush1.msra.mxu0 0.0
      %6444 = vmatprep.subr.mxu0 0.0
      %6445 = vmatpush1.msra.mxu0 0.0
      %6446 = vmatprep.subr.mxu0 0.0
      %6447 = vmatpush1.msra.mxu0 0.0
      %6448 = vmatprep.subr.mxu0 0.0
      %6449 = vmatpush1.msra.mxu0 0.0
      %6450 = vmatprep.subr.mxu0 0.0
      %6451 = vmatpush1.msra.mxu0 0.0
      %6452 = vmatprep.subr.mxu0 0.0
      %6453 = vmatpush1.msra.mxu0 0.0
      %6454 = vmatprep.subr.mxu0 0.0
      %6455 = vmatpush1.msra.mxu0 0.0
      %6456 = vmatprep.mubr.f32.mxu0 0.0
      %6457 = vmatmul.mubr.f32.gmra.mrb[0].mxu0 %v6390
      %v6458 = vpop.f32.mrb[0].mxu0
      %v6459 = vadd.f32 0.0, %v6458
      %v6460 = vpop.f32.mrb[0].mxu0
      %v6461 = vadd.f32 0.0, %v6460
      %6462 = vdwg.mxu0
      %6463 = vmatprep.subr.mxu0 %v6386
      %6464 = vmatpush1.msra.mxu0 %v6385
      %6465 = vmatprep.subr.mxu0 0.0
      %6466 = vmatpush1.msra.mxu0 0.0
      %6467 = vmatprep.subr.mxu0 0.0
      %6468 = vmatpush1.msra.mxu0 0.0
      %6469 = vmatprep.subr.mxu0 0.0
      %6470 = vmatpush1.msra.mxu0 0.0
      %6471 = vmatprep.subr.mxu0 0.0
      %6472 = vmatpush1.msra.mxu0 0.0
      %6473 = vmatprep.subr.mxu0 0.0
      %6474 = vmatpush1.msra.mxu0 0.0
      %6475 = vmatprep.subr.mxu0 0.0
      %6476 = vmatpush1.msra.mxu0 0.0
      %6477 = vmatprep.subr.mxu0 0.0
      %6478 = vmatpush1.msra.mxu0 0.0
      %6479 = vmatprep.subr.mxu0 0.0
      %6480 = vmatpush1.msra.mxu0 0.0
      %6481 = vmatprep.subr.mxu0 0.0
      %6482 = vmatpush1.msra.mxu0 0.0
      %6483 = vmatprep.subr.mxu0 0.0
      %6484 = vmatpush1.msra.mxu0 0.0
      %6485 = vmatprep.subr.mxu0 0.0
      %6486 = vmatpush1.msra.mxu0 0.0
      %6487 = vmatprep.subr.mxu0 0.0
      %6488 = vmatpush1.msra.mxu0 0.0
      %6489 = vmatprep.subr.mxu0 0.0
      %6490 = vmatpush1.msra.mxu0 0.0
      %6491 = vmatprep.subr.mxu0 0.0
      %6492 = vmatpush1.msra.mxu0 0.0
      %6493 = vmatprep.subr.mxu0 0.0
      %6494 = vmatpush1.msra.mxu0 0.0
      %6495 = vmatprep.subr.mxu0 0.0
      %6496 = vmatpush1.msra.mxu0 0.0
      %6497 = vmatprep.subr.mxu0 0.0
      %6498 = vmatpush1.msra.mxu0 0.0
      %6499 = vmatprep.subr.mxu0 0.0
      %6500 = vmatpush1.msra.mxu0 0.0
      %6501 = vmatprep.subr.mxu0 0.0
      %6502 = vmatpush1.msra.mxu0 0.0
      %6503 = vmatprep.subr.mxu0 0.0
      %6504 = vmatpush1.msra.mxu0 0.0
      %6505 = vmatprep.subr.mxu0 0.0
      %6506 = vmatpush1.msra.mxu0 0.0
      %6507 = vmatprep.subr.mxu0 0.0
      %6508 = vmatpush1.msra.mxu0 0.0
      %6509 = vmatprep.subr.mxu0 0.0
      %6510 = vmatpush1.msra.mxu0 0.0
      %6511 = vmatprep.subr.mxu0 0.0
      %6512 = vmatpush1.msra.mxu0 0.0
      %6513 = vmatprep.subr.mxu0 0.0
      %6514 = vmatpush1.msra.mxu0 0.0
      %6515 = vmatprep.subr.mxu0 0.0
      %6516 = vmatpush1.msra.mxu0 0.0
      %6517 = vmatprep.subr.mxu0 0.0
      %6518 = vmatpush1.msra.mxu0 0.0
      %6519 = vmatprep.subr.mxu0 0.0
      %6520 = vmatpush1.msra.mxu0 0.0
      %6521 = vmatprep.subr.mxu0 0.0
      %6522 = vmatpush1.msra.mxu0 0.0
      %6523 = vmatprep.subr.mxu0 0.0
      %6524 = vmatpush1.msra.mxu0 0.0
      %6525 = vmatprep.subr.mxu0 0.0
      %6526 = vmatpush1.msra.mxu0 0.0
      %6527 = vmatprep.mubr.f32.mxu0 0.0
      %6528 = vmatmul.mubr.f32.gmra.mrb[0].mxu0 %v6390
      %v6529 = vpop.f32.mrb[0].mxu0
      %v6530 = vadd.f32 0.0, %v6529
      %v6531 = vpop.f32.mrb[0].mxu0
      %v6532 = vadd.f32 0.0, %v6531
      %6533 = vdwg.mxu0
      %v6534 = vadd.f32 %v6367, %v6459
      %v6535 = vadd.f32 %v6368, %v6461
      %v6536 = vadd.f32 %v6369, %v6530
      %v6537 = vadd.f32 %v6370, %v6532
      %6538 = vrot.lane.b32.xlu0 %v5374, 56
      %v6539 = vpop.permute.xlu0 %6538
      %6540 = vrot.lane.b32.xlu0 %v5375, 56
      %v6541 = vpop.permute.xlu0 %6540
      %6542 = vrot.lane.b32.xlu0 %v5376, 56
      %v6543 = vpop.permute.xlu0 %6542
      %6544 = vrot.lane.b32.xlu0 %v5377, 56
      %v6545 = vpop.permute.xlu0 %6544
      %v6546 = vsel %vm1672, %v6543, %v6545
      %v6547 = vsel %vm1672, %v6541, %v6543
      %v6548 = vsel %vm1672, %v6539, %v6541
      %v6549 = vsel %vm1672, %v6545, %v6539
      %v6550 = vmul.f32 %v6549, %v1683
      %v6551 = vmul.f32 %v6548, %v1687
      %v6552 = vmul.f32 %v6547, %v1691
      %v6553 = vmul.f32 %v6546, %v1695
      %s6554 = scalar_lea.vmem %s6, 56
      %v6555 = vld [vmem:[%s6554] sm:$0xff]
      %v6557 = vsel %vm418, %v6555, 0
      %6559 = vmatprep.subr.mxu0 %v6551
      %6560 = vmatpush1.msra.mxu0 %v6550
      %6561 = vmatprep.subr.mxu0 0.0
      %6562 = vmatpush1.msra.mxu0 0.0
      %6563 = vmatprep.subr.mxu0 0.0
      %6564 = vmatpush1.msra.mxu0 0.0
      %6565 = vmatprep.subr.mxu0 0.0
      %6566 = vmatpush1.msra.mxu0 0.0
      %6567 = vmatprep.subr.mxu0 0.0
      %6568 = vmatpush1.msra.mxu0 0.0
      %6569 = vmatprep.subr.mxu0 0.0
      %6570 = vmatpush1.msra.mxu0 0.0
      %6571 = vmatprep.subr.mxu0 0.0
      %6572 = vmatpush1.msra.mxu0 0.0
      %6573 = vmatprep.subr.mxu0 0.0
      %6574 = vmatpush1.msra.mxu0 0.0
      %6575 = vmatprep.subr.mxu0 0.0
      %6576 = vmatpush1.msra.mxu0 0.0
      %6577 = vmatprep.subr.mxu0 0.0
      %6578 = vmatpush1.msra.mxu0 0.0
      %6579 = vmatprep.subr.mxu0 0.0
      %6580 = vmatpush1.msra.mxu0 0.0
      %6581 = vmatprep.subr.mxu0 0.0
      %6582 = vmatpush1.msra.mxu0 0.0
      %6583 = vmatprep.subr.mxu0 0.0
      %6584 = vmatpush1.msra.mxu0 0.0
      %6585 = vmatprep.subr.mxu0 0.0
      %6586 = vmatpush1.msra.mxu0 0.0
      %6587 = vmatprep.subr.mxu0 0.0
      %6588 = vmatpush1.msra.mxu0 0.0
      %6589 = vmatprep.subr.mxu0 0.0
      %6590 = vmatpush1.msra.mxu0 0.0
      %6591 = vmatprep.subr.mxu0 0.0
      %6592 = vmatpush1.msra.mxu0 0.0
      %6593 = vmatprep.subr.mxu0 0.0
      %6594 = vmatpush1.msra.mxu0 0.0
      %6595 = vmatprep.subr.mxu0 0.0
      %6596 = vmatpush1.msra.mxu0 0.0
      %6597 = vmatprep.subr.mxu0 0.0
      %6598 = vmatpush1.msra.mxu0 0.0
      %6599 = vmatprep.subr.mxu0 0.0
      %6600 = vmatpush1.msra.mxu0 0.0
      %6601 = vmatprep.subr.mxu0 0.0
      %6602 = vmatpush1.msra.mxu0 0.0
      %6603 = vmatprep.subr.mxu0 0.0
      %6604 = vmatpush1.msra.mxu0 0.0
      %6605 = vmatprep.subr.mxu0 0.0
      %6606 = vmatpush1.msra.mxu0 0.0
      %6607 = vmatprep.subr.mxu0 0.0
      %6608 = vmatpush1.msra.mxu0 0.0
      %6609 = vmatprep.subr.mxu0 0.0
      %6610 = vmatpush1.msra.mxu0 0.0
      %6611 = vmatprep.subr.mxu0 0.0
      %6612 = vmatpush1.msra.mxu0 0.0
      %6613 = vmatprep.subr.mxu0 0.0
      %6614 = vmatpush1.msra.mxu0 0.0
      %6615 = vmatprep.subr.mxu0 0.0
      %6616 = vmatpush1.msra.mxu0 0.0
      %6617 = vmatprep.subr.mxu0 0.0
      %6618 = vmatpush1.msra.mxu0 0.0
      %6619 = vmatprep.subr.mxu0 0.0
      %6620 = vmatpush1.msra.mxu0 0.0
      %6621 = vmatprep.subr.mxu0 0.0
      %6622 = vmatpush1.msra.mxu0 0.0
      %6623 = vmatprep.mubr.f32.mxu0 0.0
      %6624 = vmatmul.mubr.f32.gmra.mrb[0].mxu0 %v6557
      %v6625 = vpop.f32.mrb[0].mxu0
      %v6626 = vadd.f32 0.0, %v6625
      %v6627 = vpop.f32.mrb[0].mxu0
      %v6628 = vadd.f32 0.0, %v6627
      %6629 = vdwg.mxu0
      %6630 = vmatprep.subr.mxu0 %v6553
      %6631 = vmatpush1.msra.mxu0 %v6552
      %6632 = vmatprep.subr.mxu0 0.0
      %6633 = vmatpush1.msra.mxu0 0.0
      %6634 = vmatprep.subr.mxu0 0.0
      %6635 = vmatpush1.msra.mxu0 0.0
      %6636 = vmatprep.subr.mxu0 0.0
      %6637 = vmatpush1.msra.mxu0 0.0
      %6638 = vmatprep.subr.mxu0 0.0
      %6639 = vmatpush1.msra.mxu0 0.0
      %6640 = vmatprep.subr.mxu0 0.0
      %6641 = vmatpush1.msra.mxu0 0.0
      %6642 = vmatprep.subr.mxu0 0.0
      %6643 = vmatpush1.msra.mxu0 0.0
      %6644 = vmatprep.subr.mxu0 0.0
      %6645 = vmatpush1.msra.mxu0 0.0
      %6646 = vmatprep.subr.mxu0 0.0
      %6647 = vmatpush1.msra.mxu0 0.0
      %6648 = vmatprep.subr.mxu0 0.0
      %6649 = vmatpush1.msra.mxu0 0.0
      %6650 = vmatprep.subr.mxu0 0.0
      %6651 = vmatpush1.msra.mxu0 0.0
      %6652 = vmatprep.subr.mxu0 0.0
      %6653 = vmatpush1.msra.mxu0 0.0
      %6654 = vmatprep.subr.mxu0 0.0
      %6655 = vmatpush1.msra.mxu0 0.0
      %6656 = vmatprep.subr.mxu0 0.0
      %6657 = vmatpush1.msra.mxu0 0.0
      %6658 = vmatprep.subr.mxu0 0.0
      %6659 = vmatpush1.msra.mxu0 0.0
      %6660 = vmatprep.subr.mxu0 0.0
      %6661 = vmatpush1.msra.mxu0 0.0
      %6662 = vmatprep.subr.mxu0 0.0
      %6663 = vmatpush1.msra.mxu0 0.0
      %6664 = vmatprep.subr.mxu0 0.0
      %6665 = vmatpush1.msra.mxu0 0.0
      %6666 = vmatprep.subr.mxu0 0.0
      %6667 = vmatpush1.msra.mxu0 0.0
      %6668 = vmatprep.subr.mxu0 0.0
      %6669 = vmatpush1.msra.mxu0 0.0
      %6670 = vmatprep.subr.mxu0 0.0
      %6671 = vmatpush1.msra.mxu0 0.0
      %6672 = vmatprep.subr.mxu0 0.0
      %6673 = vmatpush1.msra.mxu0 0.0
      %6674 = vmatprep.subr.mxu0 0.0
      %6675 = vmatpush1.msra.mxu0 0.0
      %6676 = vmatprep.subr.mxu0 0.0
      %6677 = vmatpush1.msra.mxu0 0.0
      %6678 = vmatprep.subr.mxu0 0.0
      %6679 = vmatpush1.msra.mxu0 0.0
      %6680 = vmatprep.subr.mxu0 0.0
      %6681 = vmatpush1.msra.mxu0 0.0
      %6682 = vmatprep.subr.mxu0 0.0
      %6683 = vmatpush1.msra.mxu0 0.0
      %6684 = vmatprep.subr.mxu0 0.0
      %6685 = vmatpush1.msra.mxu0 0.0
      %6686 = vmatprep.subr.mxu0 0.0
      %6687 = vmatpush1.msra.mxu0 0.0
      %6688 = vmatprep.subr.mxu0 0.0
      %6689 = vmatpush1.msra.mxu0 0.0
      %6690 = vmatprep.subr.mxu0 0.0
      %6691 = vmatpush1.msra.mxu0 0.0
      %6692 = vmatprep.subr.mxu0 0.0
      %6693 = vmatpush1.msra.mxu0 0.0
      %6694 = vmatprep.mubr.f32.mxu0 0.0
      %6695 = vmatmul.mubr.f32.gmra.mrb[0].mxu0 %v6557
      %v6696 = vpop.f32.mrb[0].mxu0
      %v6697 = vadd.f32 0.0, %v6696
      %v6698 = vpop.f32.mrb[0].mxu0
      %v6699 = vadd.f32 0.0, %v6698
      %6700 = vdwg.mxu0
      %v6701 = vadd.f32 %v6534, %v6626
      %v6702 = vadd.f32 %v6535, %v6628
      %v6703 = vadd.f32 %v6536, %v6697
      %v6704 = vadd.f32 %v6537, %v6699
      %6705 = vrot.lane.b32.xlu0 %v5374, 55
      %v6706 = vpop.permute.xlu0 %6705
      %6707 = vrot.lane.b32.xlu0 %v5375, 55
      %v6708 = vpop.permute.xlu0 %6707
      %6709 = vrot.lane.b32.xlu0 %v5376, 55
      %v6710 = vpop.permute.xlu0 %6709
      %6711 = vrot.lane.b32.xlu0 %v5377, 55
      %v6712 = vpop.permute.xlu0 %6711
      %v6713 = vsel %vm1863, %v6710, %v6712
      %v6714 = vsel %vm1863, %v6708, %v6710
      %v6715 = vsel %vm1863, %v6706, %v6708
      %v6716 = vsel %vm1863, %v6712, %v6706
      %v6717 = vmul.f32 %v6716, %v1874
      %v6718 = vmul.f32 %v6715, %v1878
      %v6719 = vmul.f32 %v6714, %v1882
      %v6720 = vmul.f32 %v6713, %v1886
      %s6721 = scalar_lea.vmem %s6, 64
      %v6722 = vld [vmem:[%s6721] sm:$0xff]
      %v6724 = vsel %vm418, %v6722, 0
      %6726 = vmatprep.subr.mxu0 %v6718
      %6727 = vmatpush1.msra.mxu0 %v6717
      %6728 = vmatprep.subr.mxu0 0.0
      %6729 = vmatpush1.msra.mxu0 0.0
      %6730 = vmatprep.subr.mxu0 0.0
      %6731 = vmatpush1.msra.mxu0 0.0
      %6732 = vmatprep.subr.mxu0 0.0
      %6733 = vmatpush1.msra.mxu0 0.0
      %6734 = vmatprep.subr.mxu0 0.0
      %6735 = vmatpush1.msra.mxu0 0.0
      %6736 = vmatprep.subr.mxu0 0.0
      %6737 = vmatpush1.msra.mxu0 0.0
      %6738 = vmatprep.subr.mxu0 0.0
      %6739 = vmatpush1.msra.mxu0 0.0
      %6740 = vmatprep.subr.mxu0 0.0
      %6741 = vmatpush1.msra.mxu0 0.0
      %6742 = vmatprep.subr.mxu0 0.0
      %6743 = vmatpush1.msra.mxu0 0.0
      %6744 = vmatprep.subr.mxu0 0.0
      %6745 = vmatpush1.msra.mxu0 0.0
      %6746 = vmatprep.subr.mxu0 0.0
      %6747 = vmatpush1.msra.mxu0 0.0
      %6748 = vmatprep.subr.mxu0 0.0
      %6749 = vmatpush1.msra.mxu0 0.0
      %6750 = vmatprep.subr.mxu0 0.0
      %6751 = vmatpush1.msra.mxu0 0.0
      %6752 = vmatprep.subr.mxu0 0.0
      %6753 = vmatpush1.msra.mxu0 0.0
      %6754 = vmatprep.subr.mxu0 0.0
      %6755 = vmatpush1.msra.mxu0 0.0
      %6756 = vmatprep.subr.mxu0 0.0
      %6757 = vmatpush1.msra.mxu0 0.0
      %6758 = vmatprep.subr.mxu0 0.0
      %6759 = vmatpush1.msra.mxu0 0.0
      %6760 = vmatprep.subr.mxu0 0.0
      %6761 = vmatpush1.msra.mxu0 0.0
      %6762 = vmatprep.subr.mxu0 0.0
      %6763 = vmatpush1.msra.mxu0 0.0
      %6764 = vmatprep.subr.mxu0 0.0
      %6765 = vmatpush1.msra.mxu0 0.0
      %6766 = vmatprep.subr.mxu0 0.0
      %6767 = vmatpush1.msra.mxu0 0.0
      %6768 = vmatprep.subr.mxu0 0.0
      %6769 = vmatpush1.msra.mxu0 0.0
      %6770 = vmatprep.subr.mxu0 0.0
      %6771 = vmatpush1.msra.mxu0 0.0
      %6772 = vmatprep.subr.mxu0 0.0
      %6773 = vmatpush1.msra.mxu0 0.0
      %6774 = vmatprep.subr.mxu0 0.0
      %6775 = vmatpush1.msra.mxu0 0.0
      %6776 = vmatprep.subr.mxu0 0.0
      %6777 = vmatpush1.msra.mxu0 0.0
      %6778 = vmatprep.subr.mxu0 0.0
      %6779 = vmatpush1.msra.mxu0 0.0
      %6780 = vmatprep.subr.mxu0 0.0
      %6781 = vmatpush1.msra.mxu0 0.0
      %6782 = vmatprep.subr.mxu0 0.0
      %6783 = vmatpush1.msra.mxu0 0.0
      %6784 = vmatprep.subr.mxu0 0.0
      %6785 = vmatpush1.msra.mxu0 0.0
      %6786 = vmatprep.subr.mxu0 0.0
      %6787 = vmatpush1.msra.mxu0 0.0
      %6788 = vmatprep.subr.mxu0 0.0
      %6789 = vmatpush1.msra.mxu0 0.0
      %6790 = vmatprep.mubr.f32.mxu0 0.0
      %6791 = vmatmul.mubr.f32.gmra.mrb[0].mxu0 %v6724
      %v6792 = vpop.f32.mrb[0].mxu0
      %v6793 = vadd.f32 0.0, %v6792
      %v6794 = vpop.f32.mrb[0].mxu0
      %v6795 = vadd.f32 0.0, %v6794
      %6796 = vdwg.mxu0
      %6797 = vmatprep.subr.mxu0 %v6720
      %6798 = vmatpush1.msra.mxu0 %v6719
      %6799 = vmatprep.subr.mxu0 0.0
      %6800 = vmatpush1.msra.mxu0 0.0
      %6801 = vmatprep.subr.mxu0 0.0
      %6802 = vmatpush1.msra.mxu0 0.0
      %6803 = vmatprep.subr.mxu0 0.0
      %6804 = vmatpush1.msra.mxu0 0.0
      %6805 = vmatprep.subr.mxu0 0.0
      %6806 = vmatpush1.msra.mxu0 0.0
      %6807 = vmatprep.subr.mxu0 0.0
      %6808 = vmatpush1.msra.mxu0 0.0
      %6809 = vmatprep.subr.mxu0 0.0
      %6810 = vmatpush1.msra.mxu0 0.0
      %6811 = vmatprep.subr.mxu0 0.0
      %6812 = vmatpush1.msra.mxu0 0.0
      %6813 = vmatprep.subr.mxu0 0.0
      %6814 = vmatpush1.msra.mxu0 0.0
      %6815 = vmatprep.subr.mxu0 0.0
      %6816 = vmatpush1.msra.mxu0 0.0
      %6817 = vmatprep.subr.mxu0 0.0
      %6818 = vmatpush1.msra.mxu0 0.0
      %6819 = vmatprep.subr.mxu0 0.0
      %6820 = vmatpush1.msra.mxu0 0.0
      %6821 = vmatprep.subr.mxu0 0.0
      %6822 = vmatpush1.msra.mxu0 0.0
      %6823 = vmatprep.subr.mxu0 0.0
      %6824 = vmatpush1.msra.mxu0 0.0
      %6825 = vmatprep.subr.mxu0 0.0
      %6826 = vmatpush1.msra.mxu0 0.0
      %6827 = vmatprep.subr.mxu0 0.0
      %6828 = vmatpush1.msra.mxu0 0.0
      %6829 = vmatprep.subr.mxu0 0.0
      %6830 = vmatpush1.msra.mxu0 0.0
      %6831 = vmatprep.subr.mxu0 0.0
      %6832 = vmatpush1.msra.mxu0 0.0
      %6833 = vmatprep.subr.mxu0 0.0
      %6834 = vmatpush1.msra.mxu0 0.0
      %6835 = vmatprep.subr.mxu0 0.0
      %6836 = vmatpush1.msra.mxu0 0.0
      %6837 = vmatprep.subr.mxu0 0.0
      %6838 = vmatpush1.msra.mxu0 0.0
      %6839 = vmatprep.subr.mxu0 0.0
      %6840 = vmatpush1.msra.mxu0 0.0
      %6841 = vmatprep.subr.mxu0 0.0
      %6842 = vmatpush1.msra.mxu0 0.0
      %6843 = vmatprep.subr.mxu0 0.0
      %6844 = vmatpush1.msra.mxu0 0.0
      %6845 = vmatprep.subr.mxu0 0.0
      %6846 = vmatpush1.msra.mxu0 0.0
      %6847 = vmatprep.subr.mxu0 0.0
      %6848 = vmatpush1.msra.mxu0 0.0
      %6849 = vmatprep.subr.mxu0 0.0
      %6850 = vmatpush1.msra.mxu0 0.0
      %6851 = vmatprep.subr.mxu0 0.0
      %6852 = vmatpush1.msra.mxu0 0.0
      %6853 = vmatprep.subr.mxu0 0.0
      %6854 = vmatpush1.msra.mxu0 0.0
      %6855 = vmatprep.subr.mxu0 0.0
      %6856 = vmatpush1.msra.mxu0 0.0
      %6857 = vmatprep.subr.mxu0 0.0
      %6858 = vmatpush1.msra.mxu0 0.0
      %6859 = vmatprep.subr.mxu0 0.0
      %6860 = vmatpush1.msra.mxu0 0.0
      %6861 = vmatprep.mubr.f32.mxu0 0.0
      %6862 = vmatmul.mubr.f32.gmra.mrb[0].mxu0 %v6724
      %v6863 = vpop.f32.mrb[0].mxu0
      %v6864 = vadd.f32 0.0, %v6863
      %v6865 = vpop.f32.mrb[0].mxu0
      %v6866 = vadd.f32 0.0, %v6865
      %6867 = vdwg.mxu0
      %v6868 = vadd.f32 %v6701, %v6793
      %v6869 = vadd.f32 %v6702, %v6795
      %v6870 = vadd.f32 %v6703, %v6864
      %v6871 = vadd.f32 %v6704, %v6866
      %6872 = vrot.lane.b32.xlu0 %v5374, 9
      %v6873 = vpop.permute.xlu0 %6872
      %6874 = vrot.lane.b32.xlu0 %v5375, 9
      %v6875 = vpop.permute.xlu0 %6874
      %6876 = vrot.lane.b32.xlu0 %v5376, 9
      %v6877 = vpop.permute.xlu0 %6876
      %6878 = vrot.lane.b32.xlu0 %v5377, 9
      %v6879 = vpop.permute.xlu0 %6878
      %v6880 = vsel %vm2054, %v6877, %v6879
      %v6881 = vsel %vm2054, %v6875, %v6877
      %v6882 = vsel %vm2054, %v6873, %v6875
      %v6883 = vsel %vm2054, %v6879, %v6873
      %v6884 = vmul.f32 %v6883, %v2065
      %v6885 = vmul.f32 %v6882, %v2069
      %v6886 = vmul.f32 %v6881, %v2073
      %v6887 = vmul.f32 %v6880, %v2077
      %s6888 = scalar_lea.vmem %s6, 72
      %v6889 = vld [vmem:[%s6888] sm:$0xff]
      %v6891 = vsel %vm418, %v6889, 0
      %6893 = vmatprep.subr.mxu0 %v6885
      %6894 = vmatpush1.msra.mxu0 %v6884
      %6895 = vmatprep.subr.mxu0 0.0
      %6896 = vmatpush1.msra.mxu0 0.0
      %6897 = vmatprep.subr.mxu0 0.0
      %6898 = vmatpush1.msra.mxu0 0.0
      %6899 = vmatprep.subr.mxu0 0.0
      %6900 = vmatpush1.msra.mxu0 0.0
      %6901 = vmatprep.subr.mxu0 0.0
      %6902 = vmatpush1.msra.mxu0 0.0
      %6903 = vmatprep.subr.mxu0 0.0
      %6904 = vmatpush1.msra.mxu0 0.0
      %6905 = vmatprep.subr.mxu0 0.0
      %6906 = vmatpush1.msra.mxu0 0.0
      %6907 = vmatprep.subr.mxu0 0.0
      %6908 = vmatpush1.msra.mxu0 0.0
      %6909 = vmatprep.subr.mxu0 0.0
      %6910 = vmatpush1.msra.mxu0 0.0
      %6911 = vmatprep.subr.mxu0 0.0
      %6912 = vmatpush1.msra.mxu0 0.0
      %6913 = vmatprep.subr.mxu0 0.0
      %6914 = vmatpush1.msra.mxu0 0.0
      %6915 = vmatprep.subr.mxu0 0.0
      %6916 = vmatpush1.msra.mxu0 0.0
      %6917 = vmatprep.subr.mxu0 0.0
      %6918 = vmatpush1.msra.mxu0 0.0
      %6919 = vmatprep.subr.mxu0 0.0
      %6920 = vmatpush1.msra.mxu0 0.0
      %6921 = vmatprep.subr.mxu0 0.0
      %6922 = vmatpush1.msra.mxu0 0.0
      %6923 = vmatprep.subr.mxu0 0.0
      %6924 = vmatpush1.msra.mxu0 0.0
      %6925 = vmatprep.subr.mxu0 0.0
      %6926 = vmatpush1.msra.mxu0 0.0
      %6927 = vmatprep.subr.mxu0 0.0
      %6928 = vmatpush1.msra.mxu0 0.0
      %6929 = vmatprep.subr.mxu0 0.0
      %6930 = vmatpush1.msra.mxu0 0.0
      %6931 = vmatprep.subr.mxu0 0.0
      %6932 = vmatpush1.msra.mxu0 0.0
      %6933 = vmatprep.subr.mxu0 0.0
      %6934 = vmatpush1.msra.mxu0 0.0
      %6935 = vmatprep.subr.mxu0 0.0
      %6936 = vmatpush1.msra.mxu0 0.0
      %6937 = vmatprep.subr.mxu0 0.0
      %6938 = vmatpush1.msra.mxu0 0.0
      %6939 = vmatprep.subr.mxu0 0.0
      %6940 = vmatpush1.msra.mxu0 0.0
      %6941 = vmatprep.subr.mxu0 0.0
      %6942 = vmatpush1.msra.mxu0 0.0
      %6943 = vmatprep.subr.mxu0 0.0
      %6944 = vmatpush1.msra.mxu0 0.0
      %6945 = vmatprep.subr.mxu0 0.0
      %6946 = vmatpush1.msra.mxu0 0.0
      %6947 = vmatprep.subr.mxu0 0.0
      %6948 = vmatpush1.msra.mxu0 0.0
      %6949 = vmatprep.subr.mxu0 0.0
      %6950 = vmatpush1.msra.mxu0 0.0
      %6951 = vmatprep.subr.mxu0 0.0
      %6952 = vmatpush1.msra.mxu0 0.0
      %6953 = vmatprep.subr.mxu0 0.0
      %6954 = vmatpush1.msra.mxu0 0.0
      %6955 = vmatprep.subr.mxu0 0.0
      %6956 = vmatpush1.msra.mxu0 0.0
      %6957 = vmatprep.mubr.f32.mxu0 0.0
      %6958 = vmatmul.mubr.f32.gmra.mrb[0].mxu0 %v6891
      %v6959 = vpop.f32.mrb[0].mxu0
      %v6960 = vadd.f32 0.0, %v6959
      %v6961 = vpop.f32.mrb[0].mxu0
      %v6962 = vadd.f32 0.0, %v6961
      %6963 = vdwg.mxu0
      %6964 = vmatprep.subr.mxu0 %v6887
      %6965 = vmatpush1.msra.mxu0 %v6886
      %6966 = vmatprep.subr.mxu0 0.0
      %6967 = vmatpush1.msra.mxu0 0.0
      %6968 = vmatprep.subr.mxu0 0.0
      %6969 = vmatpush1.msra.mxu0 0.0
      %6970 = vmatprep.subr.mxu0 0.0
      %6971 = vmatpush1.msra.mxu0 0.0
      %6972 = vmatprep.subr.mxu0 0.0
      %6973 = vmatpush1.msra.mxu0 0.0
      %6974 = vmatprep.subr.mxu0 0.0
      %6975 = vmatpush1.msra.mxu0 0.0
      %6976 = vmatprep.subr.mxu0 0.0
      %6977 = vmatpush1.msra.mxu0 0.0
      %6978 = vmatprep.subr.mxu0 0.0
      %6979 = vmatpush1.msra.mxu0 0.0
      %6980 = vmatprep.subr.mxu0 0.0
      %6981 = vmatpush1.msra.mxu0 0.0
      %6982 = vmatprep.subr.mxu0 0.0
      %6983 = vmatpush1.msra.mxu0 0.0
      %6984 = vmatprep.subr.mxu0 0.0
      %6985 = vmatpush1.msra.mxu0 0.0
      %6986 = vmatprep.subr.mxu0 0.0
      %6987 = vmatpush1.msra.mxu0 0.0
      %6988 = vmatprep.subr.mxu0 0.0
      %6989 = vmatpush1.msra.mxu0 0.0
      %6990 = vmatprep.subr.mxu0 0.0
      %6991 = vmatpush1.msra.mxu0 0.0
      %6992 = vmatprep.subr.mxu0 0.0
      %6993 = vmatpush1.msra.mxu0 0.0
      %6994 = vmatprep.subr.mxu0 0.0
      %6995 = vmatpush1.msra.mxu0 0.0
      %6996 = vmatprep.subr.mxu0 0.0
      %6997 = vmatpush1.msra.mxu0 0.0
      %6998 = vmatprep.subr.mxu0 0.0
      %6999 = vmatpush1.msra.mxu0 0.0
      %7000 = vmatprep.subr.mxu0 0.0
      %7001 = vmatpush1.msra.mxu0 0.0
      %7002 = vmatprep.subr.mxu0 0.0
      %7003 = vmatpush1.msra.mxu0 0.0
      %7004 = vmatprep.subr.mxu0 0.0
      %7005 = vmatpush1.msra.mxu0 0.0
      %7006 = vmatprep.subr.mxu0 0.0
      %7007 = vmatpush1.msra.mxu0 0.0
      %7008 = vmatprep.subr.mxu0 0.0
      %7009 = vmatpush1.msra.mxu0 0.0
      %7010 = vmatprep.subr.mxu0 0.0
      %7011 = vmatpush1.msra.mxu0 0.0
      %7012 = vmatprep.subr.mxu0 0.0
      %7013 = vmatpush1.msra.mxu0 0.0
      %7014 = vmatprep.subr.mxu0 0.0
      %7015 = vmatpush1.msra.mxu0 0.0
      %7016 = vmatprep.subr.mxu0 0.0
      %7017 = vmatpush1.msra.mxu0 0.0
      %7018 = vmatprep.subr.mxu0 0.0
      %7019 = vmatpush1.msra.mxu0 0.0
      %7020 = vmatprep.subr.mxu0 0.0
      %7021 = vmatpush1.msra.mxu0 0.0
      %7022 = vmatprep.subr.mxu0 0.0
      %7023 = vmatpush1.msra.mxu0 0.0
      %7024 = vmatprep.subr.mxu0 0.0
      %7025 = vmatpush1.msra.mxu0 0.0
      %7026 = vmatprep.subr.mxu0 0.0
      %7027 = vmatpush1.msra.mxu0 0.0
      %7028 = vmatprep.mubr.f32.mxu0 0.0
      %7029 = vmatmul.mubr.f32.gmra.mrb[0].mxu0 %v6891
      %v7030 = vpop.f32.mrb[0].mxu0
      %v7031 = vadd.f32 0.0, %v7030
      %v7032 = vpop.f32.mrb[0].mxu0
      %v7033 = vadd.f32 0.0, %v7032
      %7034 = vdwg.mxu0
      %v7035 = vadd.f32 %v6868, %v6960
      %v7036 = vadd.f32 %v6869, %v6962
      %v7037 = vadd.f32 %v6870, %v7031
      %v7038 = vadd.f32 %v6871, %v7033
      %7039 = vrot.lane.b32.xlu0 %v5374, 8
      %v7040 = vpop.permute.xlu0 %7039
      %7041 = vrot.lane.b32.xlu0 %v5375, 8
      %v7042 = vpop.permute.xlu0 %7041
      %7043 = vrot.lane.b32.xlu0 %v5376, 8
      %v7044 = vpop.permute.xlu0 %7043
      %7045 = vrot.lane.b32.xlu0 %v5377, 8
      %v7046 = vpop.permute.xlu0 %7045
      %v7047 = vsel %vm2245, %v7044, %v7046
      %v7048 = vsel %vm2245, %v7042, %v7044
      %v7049 = vsel %vm2245, %v7040, %v7042
      %v7050 = vsel %vm2245, %v7046, %v7040
      %v7051 = vmul.f32 %v7050, %v2256
      %v7052 = vmul.f32 %v7049, %v2260
      %v7053 = vmul.f32 %v7048, %v2264
      %v7054 = vmul.f32 %v7047, %v2268
      %s7055 = scalar_lea.vmem %s6, 80
      %v7056 = vld [vmem:[%s7055] sm:$0xff]
      %v7058 = vsel %vm418, %v7056, 0
      %7060 = vmatprep.subr.mxu0 %v7052
      %7061 = vmatpush1.msra.mxu0 %v7051
      %7062 = vmatprep.subr.mxu0 0.0
      %7063 = vmatpush1.msra.mxu0 0.0
      %7064 = vmatprep.subr.mxu0 0.0
      %7065 = vmatpush1.msra.mxu0 0.0
      %7066 = vmatprep.subr.mxu0 0.0
      %7067 = vmatpush1.msra.mxu0 0.0
      %7068 = vmatprep.subr.mxu0 0.0
      %7069 = vmatpush1.msra.mxu0 0.0
      %7070 = vmatprep.subr.mxu0 0.0
      %7071 = vmatpush1.msra.mxu0 0.0
      %7072 = vmatprep.subr.mxu0 0.0
      %7073 = vmatpush1.msra.mxu0 0.0
      %7074 = vmatprep.subr.mxu0 0.0
      %7075 = vmatpush1.msra.mxu0 0.0
      %7076 = vmatprep.subr.mxu0 0.0
      %7077 = vmatpush1.msra.mxu0 0.0
      %7078 = vmatprep.subr.mxu0 0.0
      %7079 = vmatpush1.msra.mxu0 0.0
      %7080 = vmatprep.subr.mxu0 0.0
      %7081 = vmatpush1.msra.mxu0 0.0
      %7082 = vmatprep.subr.mxu0 0.0
      %7083 = vmatpush1.msra.mxu0 0.0
      %7084 = vmatprep.subr.mxu0 0.0
      %7085 = vmatpush1.msra.mxu0 0.0
      %7086 = vmatprep.subr.mxu0 0.0
      %7087 = vmatpush1.msra.mxu0 0.0
      %7088 = vmatprep.subr.mxu0 0.0
      %7089 = vmatpush1.msra.mxu0 0.0
      %7090 = vmatprep.subr.mxu0 0.0
      %7091 = vmatpush1.msra.mxu0 0.0
      %7092 = vmatprep.subr.mxu0 0.0
      %7093 = vmatpush1.msra.mxu0 0.0
      %7094 = vmatprep.subr.mxu0 0.0
      %7095 = vmatpush1.msra.mxu0 0.0
      %7096 = vmatprep.subr.mxu0 0.0
      %7097 = vmatpush1.msra.mxu0 0.0
      %7098 = vmatprep.subr.mxu0 0.0
      %7099 = vmatpush1.msra.mxu0 0.0
      %7100 = vmatprep.subr.mxu0 0.0
      %7101 = vmatpush1.msra.mxu0 0.0
      %7102 = vmatprep.subr.mxu0 0.0
      %7103 = vmatpush1.msra.mxu0 0.0
      %7104 = vmatprep.subr.mxu0 0.0
      %7105 = vmatpush1.msra.mxu0 0.0
      %7106 = vmatprep.subr.mxu0 0.0
      %7107 = vmatpush1.msra.mxu0 0.0
      %7108 = vmatprep.subr.mxu0 0.0
      %7109 = vmatpush1.msra.mxu0 0.0
      %7110 = vmatprep.subr.mxu0 0.0
      %7111 = vmatpush1.msra.mxu0 0.0
      %7112 = vmatprep.subr.mxu0 0.0
      %7113 = vmatpush1.msra.mxu0 0.0
      %7114 = vmatprep.subr.mxu0 0.0
      %7115 = vmatpush1.msra.mxu0 0.0
      %7116 = vmatprep.subr.mxu0 0.0
      %7117 = vmatpush1.msra.mxu0 0.0
      %7118 = vmatprep.subr.mxu0 0.0
      %7119 = vmatpush1.msra.mxu0 0.0
      %7120 = vmatprep.subr.mxu0 0.0
      %7121 = vmatpush1.msra.mxu0 0.0
      %7122 = vmatprep.subr.mxu0 0.0
      %7123 = vmatpush1.msra.mxu0 0.0
      %7124 = vmatprep.mubr.f32.mxu0 0.0
      %7125 = vmatmul.mubr.f32.gmra.mrb[0].mxu0 %v7058
      %v7126 = vpop.f32.mrb[0].mxu0
      %v7127 = vadd.f32 0.0, %v7126
      %v7128 = vpop.f32.mrb[0].mxu0
      %v7129 = vadd.f32 0.0, %v7128
      %7130 = vdwg.mxu0
      %7131 = vmatprep.subr.mxu0 %v7054
      %7132 = vmatpush1.msra.mxu0 %v7053
      %7133 = vmatprep.subr.mxu0 0.0
      %7134 = vmatpush1.msra.mxu0 0.0
      %7135 = vmatprep.subr.mxu0 0.0
      %7136 = vmatpush1.msra.mxu0 0.0
      %7137 = vmatprep.subr.mxu0 0.0
      %7138 = vmatpush1.msra.mxu0 0.0
      %7139 = vmatprep.subr.mxu0 0.0
      %7140 = vmatpush1.msra.mxu0 0.0
      %7141 = vmatprep.subr.mxu0 0.0
      %7142 = vmatpush1.msra.mxu0 0.0
      %7143 = vmatprep.subr.mxu0 0.0
      %7144 = vmatpush1.msra.mxu0 0.0
      %7145 = vmatprep.subr.mxu0 0.0
      %7146 = vmatpush1.msra.mxu0 0.0
      %7147 = vmatprep.subr.mxu0 0.0
      %7148 = vmatpush1.msra.mxu0 0.0
      %7149 = vmatprep.subr.mxu0 0.0
      %7150 = vmatpush1.msra.mxu0 0.0
      %7151 = vmatprep.subr.mxu0 0.0
      %7152 = vmatpush1.msra.mxu0 0.0
      %7153 = vmatprep.subr.mxu0 0.0
      %7154 = vmatpush1.msra.mxu0 0.0
      %7155 = vmatprep.subr.mxu0 0.0
      %7156 = vmatpush1.msra.mxu0 0.0
      %7157 = vmatprep.subr.mxu0 0.0
      %7158 = vmatpush1.msra.mxu0 0.0
      %7159 = vmatprep.subr.mxu0 0.0
      %7160 = vmatpush1.msra.mxu0 0.0
      %7161 = vmatprep.subr.mxu0 0.0
      %7162 = vmatpush1.msra.mxu0 0.0
      %7163 = vmatprep.subr.mxu0 0.0
      %7164 = vmatpush1.msra.mxu0 0.0
      %7165 = vmatprep.subr.mxu0 0.0
      %7166 = vmatpush1.msra.mxu0 0.0
      %7167 = vmatprep.subr.mxu0 0.0
      %7168 = vmatpush1.msra.mxu0 0.0
      %7169 = vmatprep.subr.mxu0 0.0
      %7170 = vmatpush1.msra.mxu0 0.0
      %7171 = vmatprep.subr.mxu0 0.0
      %7172 = vmatpush1.msra.mxu0 0.0
      %7173 = vmatprep.subr.mxu0 0.0
      %7174 = vmatpush1.msra.mxu0 0.0
      %7175 = vmatprep.subr.mxu0 0.0
      %7176 = vmatpush1.msra.mxu0 0.0
      %7177 = vmatprep.subr.mxu0 0.0
      %7178 = vmatpush1.msra.mxu0 0.0
      %7179 = vmatprep.subr.mxu0 0.0
      %7180 = vmatpush1.msra.mxu0 0.0
      %7181 = vmatprep.subr.mxu0 0.0
      %7182 = vmatpush1.msra.mxu0 0.0
      %7183 = vmatprep.subr.mxu0 0.0
      %7184 = vmatpush1.msra.mxu0 0.0
      %7185 = vmatprep.subr.mxu0 0.0
      %7186 = vmatpush1.msra.mxu0 0.0
      %7187 = vmatprep.subr.mxu0 0.0
      %7188 = vmatpush1.msra.mxu0 0.0
      %7189 = vmatprep.subr.mxu0 0.0
      %7190 = vmatpush1.msra.mxu0 0.0
      %7191 = vmatprep.subr.mxu0 0.0
      %7192 = vmatpush1.msra.mxu0 0.0
      %7193 = vmatprep.subr.mxu0 0.0
      %7194 = vmatpush1.msra.mxu0 0.0
      %7195 = vmatprep.mubr.f32.mxu0 0.0
      %7196 = vmatmul.mubr.f32.gmra.mrb[0].mxu0 %v7058
      %v7197 = vpop.f32.mrb[0].mxu0
      %v7198 = vadd.f32 0.0, %v7197
      %v7199 = vpop.f32.mrb[0].mxu0
      %v7200 = vadd.f32 0.0, %v7199
      %7201 = vdwg.mxu0
      %v7202 = vadd.f32 %v7035, %v7127
      %v7203 = vadd.f32 %v7036, %v7129
      %v7204 = vadd.f32 %v7037, %v7198
      %v7205 = vadd.f32 %v7038, %v7200
      %7206 = vrot.lane.b32.xlu0 %v5374, 7
      %v7207 = vpop.permute.xlu0 %7206
      %7208 = vrot.lane.b32.xlu0 %v5375, 7
      %v7209 = vpop.permute.xlu0 %7208
      %7210 = vrot.lane.b32.xlu0 %v5376, 7
      %v7211 = vpop.permute.xlu0 %7210
      %7212 = vrot.lane.b32.xlu0 %v5377, 7
      %v7213 = vpop.permute.xlu0 %7212
      %v7214 = vsel %vm2436, %v7211, %v7213
      %v7215 = vsel %vm2436, %v7209, %v7211
      %v7216 = vsel %vm2436, %v7207, %v7209
      %v7217 = vsel %vm2436, %v7213, %v7207
      %v7218 = vmul.f32 %v7217, %v2447
      %v7219 = vmul.f32 %v7216, %v2451
      %v7220 = vmul.f32 %v7215, %v2455
      %v7221 = vmul.f32 %v7214, %v2459
      %s7222 = scalar_lea.vmem %s6, 88
      %v7223 = vld [vmem:[%s7222] sm:$0xff]
      %v7225 = vsel %vm418, %v7223, 0
      %7227 = vmatprep.subr.mxu0 %v7219
      %7228 = vmatpush1.msra.mxu0 %v7218
      %7229 = vmatprep.subr.mxu0 0.0
      %7230 = vmatpush1.msra.mxu0 0.0
      %7231 = vmatprep.subr.mxu0 0.0
      %7232 = vmatpush1.msra.mxu0 0.0
      %7233 = vmatprep.subr.mxu0 0.0
      %7234 = vmatpush1.msra.mxu0 0.0
      %7235 = vmatprep.subr.mxu0 0.0
      %7236 = vmatpush1.msra.mxu0 0.0
      %7237 = vmatprep.subr.mxu0 0.0
      %7238 = vmatpush1.msra.mxu0 0.0
      %7239 = vmatprep.subr.mxu0 0.0
      %7240 = vmatpush1.msra.mxu0 0.0
      %7241 = vmatprep.subr.mxu0 0.0
      %7242 = vmatpush1.msra.mxu0 0.0
      %7243 = vmatprep.subr.mxu0 0.0
      %7244 = vmatpush1.msra.mxu0 0.0
      %7245 = vmatprep.subr.mxu0 0.0
      %7246 = vmatpush1.msra.mxu0 0.0
      %7247 = vmatprep.subr.mxu0 0.0
      %7248 = vmatpush1.msra.mxu0 0.0
      %7249 = vmatprep.subr.mxu0 0.0
      %7250 = vmatpush1.msra.mxu0 0.0
      %7251 = vmatprep.subr.mxu0 0.0
      %7252 = vmatpush1.msra.mxu0 0.0
      %7253 = vmatprep.subr.mxu0 0.0
      %7254 = vmatpush1.msra.mxu0 0.0
      %7255 = vmatprep.subr.mxu0 0.0
      %7256 = vmatpush1.msra.mxu0 0.0
      %7257 = vmatprep.subr.mxu0 0.0
      %7258 = vmatpush1.msra.mxu0 0.0
      %7259 = vmatprep.subr.mxu0 0.0
      %7260 = vmatpush1.msra.mxu0 0.0
      %7261 = vmatprep.subr.mxu0 0.0
      %7262 = vmatpush1.msra.mxu0 0.0
      %7263 = vmatprep.subr.mxu0 0.0
      %7264 = vmatpush1.msra.mxu0 0.0
      %7265 = vmatprep.subr.mxu0 0.0
      %7266 = vmatpush1.msra.mxu0 0.0
      %7267 = vmatprep.subr.mxu0 0.0
      %7268 = vmatpush1.msra.mxu0 0.0
      %7269 = vmatprep.subr.mxu0 0.0
      %7270 = vmatpush1.msra.mxu0 0.0
      %7271 = vmatprep.subr.mxu0 0.0
      %7272 = vmatpush1.msra.mxu0 0.0
      %7273 = vmatprep.subr.mxu0 0.0
      %7274 = vmatpush1.msra.mxu0 0.0
      %7275 = vmatprep.subr.mxu0 0.0
      %7276 = vmatpush1.msra.mxu0 0.0
      %7277 = vmatprep.subr.mxu0 0.0
      %7278 = vmatpush1.msra.mxu0 0.0
      %7279 = vmatprep.subr.mxu0 0.0
      %7280 = vmatpush1.msra.mxu0 0.0
      %7281 = vmatprep.subr.mxu0 0.0
      %7282 = vmatpush1.msra.mxu0 0.0
      %7283 = vmatprep.subr.mxu0 0.0
      %7284 = vmatpush1.msra.mxu0 0.0
      %7285 = vmatprep.subr.mxu0 0.0
      %7286 = vmatpush1.msra.mxu0 0.0
      %7287 = vmatprep.subr.mxu0 0.0
      %7288 = vmatpush1.msra.mxu0 0.0
      %7289 = vmatprep.subr.mxu0 0.0
      %7290 = vmatpush1.msra.mxu0 0.0
      %7291 = vmatprep.mubr.f32.mxu0 0.0
      %7292 = vmatmul.mubr.f32.gmra.mrb[0].mxu0 %v7225
      %v7293 = vpop.f32.mrb[0].mxu0
      %v7294 = vadd.f32 0.0, %v7293
      %v7295 = vpop.f32.mrb[0].mxu0
      %v7296 = vadd.f32 0.0, %v7295
      %7297 = vdwg.mxu0
      %7298 = vmatprep.subr.mxu0 %v7221
      %7299 = vmatpush1.msra.mxu0 %v7220
      %7300 = vmatprep.subr.mxu0 0.0
      %7301 = vmatpush1.msra.mxu0 0.0
      %7302 = vmatprep.subr.mxu0 0.0
      %7303 = vmatpush1.msra.mxu0 0.0
      %7304 = vmatprep.subr.mxu0 0.0
      %7305 = vmatpush1.msra.mxu0 0.0
      %7306 = vmatprep.subr.mxu0 0.0
      %7307 = vmatpush1.msra.mxu0 0.0
      %7308 = vmatprep.subr.mxu0 0.0
      %7309 = vmatpush1.msra.mxu0 0.0
      %7310 = vmatprep.subr.mxu0 0.0
      %7311 = vmatpush1.msra.mxu0 0.0
      %7312 = vmatprep.subr.mxu0 0.0
      %7313 = vmatpush1.msra.mxu0 0.0
      %7314 = vmatprep.subr.mxu0 0.0
      %7315 = vmatpush1.msra.mxu0 0.0
      %7316 = vmatprep.subr.mxu0 0.0
      %7317 = vmatpush1.msra.mxu0 0.0
      %7318 = vmatprep.subr.mxu0 0.0
      %7319 = vmatpush1.msra.mxu0 0.0
      %7320 = vmatprep.subr.mxu0 0.0
      %7321 = vmatpush1.msra.mxu0 0.0
      %7322 = vmatprep.subr.mxu0 0.0
      %7323 = vmatpush1.msra.mxu0 0.0
      %7324 = vmatprep.subr.mxu0 0.0
      %7325 = vmatpush1.msra.mxu0 0.0
      %7326 = vmatprep.subr.mxu0 0.0
      %7327 = vmatpush1.msra.mxu0 0.0
      %7328 = vmatprep.subr.mxu0 0.0
      %7329 = vmatpush1.msra.mxu0 0.0
      %7330 = vmatprep.subr.mxu0 0.0
      %7331 = vmatpush1.msra.mxu0 0.0
      %7332 = vmatprep.subr.mxu0 0.0
      %7333 = vmatpush1.msra.mxu0 0.0
      %7334 = vmatprep.subr.mxu0 0.0
      %7335 = vmatpush1.msra.mxu0 0.0
      %7336 = vmatprep.subr.mxu0 0.0
      %7337 = vmatpush1.msra.mxu0 0.0
      %7338 = vmatprep.subr.mxu0 0.0
      %7339 = vmatpush1.msra.mxu0 0.0
      %7340 = vmatprep.subr.mxu0 0.0
      %7341 = vmatpush1.msra.mxu0 0.0
      %7342 = vmatprep.subr.mxu0 0.0
      %7343 = vmatpush1.msra.mxu0 0.0
      %7344 = vmatprep.subr.mxu0 0.0
      %7345 = vmatpush1.msra.mxu0 0.0
      %7346 = vmatprep.subr.mxu0 0.0
      %7347 = vmatpush1.msra.mxu0 0.0
      %7348 = vmatprep.subr.mxu0 0.0
      %7349 = vmatpush1.msra.mxu0 0.0
      %7350 = vmatprep.subr.mxu0 0.0
      %7351 = vmatpush1.msra.mxu0 0.0
      %7352 = vmatprep.subr.mxu0 0.0
      %7353 = vmatpush1.msra.mxu0 0.0
      %7354 = vmatprep.subr.mxu0 0.0
      %7355 = vmatpush1.msra.mxu0 0.0
      %7356 = vmatprep.subr.mxu0 0.0
      %7357 = vmatpush1.msra.mxu0 0.0
      %7358 = vmatprep.subr.mxu0 0.0
      %7359 = vmatpush1.msra.mxu0 0.0
      %7360 = vmatprep.subr.mxu0 0.0
      %7361 = vmatpush1.msra.mxu0 0.0
      %7362 = vmatprep.mubr.f32.mxu0 0.0
      %7363 = vmatmul.mubr.f32.gmra.mrb[0].mxu0 %v7225
      %v7364 = vpop.f32.mrb[0].mxu0
      %v7365 = vadd.f32 0.0, %v7364
      %v7366 = vpop.f32.mrb[0].mxu0
      %v7367 = vadd.f32 0.0, %v7366
      %7368 = vdwg.mxu0
      %v7369 = vadd.f32 %v7202, %v7294
      %v7370 = vadd.f32 %v7203, %v7296
      %v7371 = vadd.f32 %v7204, %v7365
      %v7372 = vadd.f32 %v7205, %v7367
      %7373 = vrot.lane.b32.xlu0 %v5374, 1
      %v7374 = vpop.permute.xlu0 %7373
      %7375 = vrot.lane.b32.xlu0 %v5375, 1
      %v7376 = vpop.permute.xlu0 %7375
      %7377 = vrot.lane.b32.xlu0 %v5376, 1
      %v7378 = vpop.permute.xlu0 %7377
      %7379 = vrot.lane.b32.xlu0 %v5377, 1
      %v7380 = vpop.permute.xlu0 %7379
      %v7381 = vsel %vm2627, %v7378, %v7380
      %v7382 = vsel %vm2627, %v7376, %v7378
      %v7383 = vsel %vm2627, %v7374, %v7376
      %v7384 = vsel %vm2627, %v7380, %v7374
      %v7385 = vmul.f32 %v7384, %v2638
      %v7386 = vmul.f32 %v7383, %v2642
      %v7387 = vmul.f32 %v7382, %v2646
      %v7388 = vmul.f32 %v7381, %v2650
      %s7389 = scalar_lea.vmem %s6, 96
      %v7390 = vld [vmem:[%s7389] sm:$0xff]
      %v7392 = vsel %vm418, %v7390, 0
      %7394 = vmatprep.subr.mxu0 %v7386
      %7395 = vmatpush1.msra.mxu0 %v7385
      %7396 = vmatprep.subr.mxu0 0.0
      %7397 = vmatpush1.msra.mxu0 0.0
      %7398 = vmatprep.subr.mxu0 0.0
      %7399 = vmatpush1.msra.mxu0 0.0
      %7400 = vmatprep.subr.mxu0 0.0
      %7401 = vmatpush1.msra.mxu0 0.0
      %7402 = vmatprep.subr.mxu0 0.0
      %7403 = vmatpush1.msra.mxu0 0.0
      %7404 = vmatprep.subr.mxu0 0.0
      %7405 = vmatpush1.msra.mxu0 0.0
      %7406 = vmatprep.subr.mxu0 0.0
      %7407 = vmatpush1.msra.mxu0 0.0
      %7408 = vmatprep.subr.mxu0 0.0
      %7409 = vmatpush1.msra.mxu0 0.0
      %7410 = vmatprep.subr.mxu0 0.0
      %7411 = vmatpush1.msra.mxu0 0.0
      %7412 = vmatprep.subr.mxu0 0.0
      %7413 = vmatpush1.msra.mxu0 0.0
      %7414 = vmatprep.subr.mxu0 0.0
      %7415 = vmatpush1.msra.mxu0 0.0
      %7416 = vmatprep.subr.mxu0 0.0
      %7417 = vmatpush1.msra.mxu0 0.0
      %7418 = vmatprep.subr.mxu0 0.0
      %7419 = vmatpush1.msra.mxu0 0.0
      %7420 = vmatprep.subr.mxu0 0.0
      %7421 = vmatpush1.msra.mxu0 0.0
      %7422 = vmatprep.subr.mxu0 0.0
      %7423 = vmatpush1.msra.mxu0 0.0
      %7424 = vmatprep.subr.mxu0 0.0
      %7425 = vmatpush1.msra.mxu0 0.0
      %7426 = vmatprep.subr.mxu0 0.0
      %7427 = vmatpush1.msra.mxu0 0.0
      %7428 = vmatprep.subr.mxu0 0.0
      %7429 = vmatpush1.msra.mxu0 0.0
      %7430 = vmatprep.subr.mxu0 0.0
      %7431 = vmatpush1.msra.mxu0 0.0
      %7432 = vmatprep.subr.mxu0 0.0
      %7433 = vmatpush1.msra.mxu0 0.0
      %7434 = vmatprep.subr.mxu0 0.0
      %7435 = vmatpush1.msra.mxu0 0.0
      %7436 = vmatprep.subr.mxu0 0.0
      %7437 = vmatpush1.msra.mxu0 0.0
      %7438 = vmatprep.subr.mxu0 0.0
      %7439 = vmatpush1.msra.mxu0 0.0
      %7440 = vmatprep.subr.mxu0 0.0
      %7441 = vmatpush1.msra.mxu0 0.0
      %7442 = vmatprep.subr.mxu0 0.0
      %7443 = vmatpush1.msra.mxu0 0.0
      %7444 = vmatprep.subr.mxu0 0.0
      %7445 = vmatpush1.msra.mxu0 0.0
      %7446 = vmatprep.subr.mxu0 0.0
      %7447 = vmatpush1.msra.mxu0 0.0
      %7448 = vmatprep.subr.mxu0 0.0
      %7449 = vmatpush1.msra.mxu0 0.0
      %7450 = vmatprep.subr.mxu0 0.0
      %7451 = vmatpush1.msra.mxu0 0.0
      %7452 = vmatprep.subr.mxu0 0.0
      %7453 = vmatpush1.msra.mxu0 0.0
      %7454 = vmatprep.subr.mxu0 0.0
      %7455 = vmatpush1.msra.mxu0 0.0
      %7456 = vmatprep.subr.mxu0 0.0
      %7457 = vmatpush1.msra.mxu0 0.0
      %7458 = vmatprep.mubr.f32.mxu0 0.0
      %7459 = vmatmul.mubr.f32.gmra.mrb[0].mxu0 %v7392
      %v7460 = vpop.f32.mrb[0].mxu0
      %v7461 = vadd.f32 0.0, %v7460
      %v7462 = vpop.f32.mrb[0].mxu0
      %v7463 = vadd.f32 0.0, %v7462
      %7464 = vdwg.mxu0
      %7465 = vmatprep.subr.mxu0 %v7388
      %7466 = vmatpush1.msra.mxu0 %v7387
      %7467 = vmatprep.subr.mxu0 0.0
      %7468 = vmatpush1.msra.mxu0 0.0
      %7469 = vmatprep.subr.mxu0 0.0
      %7470 = vmatpush1.msra.mxu0 0.0
      %7471 = vmatprep.subr.mxu0 0.0
      %7472 = vmatpush1.msra.mxu0 0.0
      %7473 = vmatprep.subr.mxu0 0.0
      %7474 = vmatpush1.msra.mxu0 0.0
      %7475 = vmatprep.subr.mxu0 0.0
      %7476 = vmatpush1.msra.mxu0 0.0
      %7477 = vmatprep.subr.mxu0 0.0
      %7478 = vmatpush1.msra.mxu0 0.0
      %7479 = vmatprep.subr.mxu0 0.0
      %7480 = vmatpush1.msra.mxu0 0.0
      %7481 = vmatprep.subr.mxu0 0.0
      %7482 = vmatpush1.msra.mxu0 0.0
      %7483 = vmatprep.subr.mxu0 0.0
      %7484 = vmatpush1.msra.mxu0 0.0
      %7485 = vmatprep.subr.mxu0 0.0
      %7486 = vmatpush1.msra.mxu0 0.0
      %7487 = vmatprep.subr.mxu0 0.0
      %7488 = vmatpush1.msra.mxu0 0.0
      %7489 = vmatprep.subr.mxu0 0.0
      %7490 = vmatpush1.msra.mxu0 0.0
      %7491 = vmatprep.subr.mxu0 0.0
      %7492 = vmatpush1.msra.mxu0 0.0
      %7493 = vmatprep.subr.mxu0 0.0
      %7494 = vmatpush1.msra.mxu0 0.0
      %7495 = vmatprep.subr.mxu0 0.0
      %7496 = vmatpush1.msra.mxu0 0.0
      %7497 = vmatprep.subr.mxu0 0.0
      %7498 = vmatpush1.msra.mxu0 0.0
      %7499 = vmatprep.subr.mxu0 0.0
      %7500 = vmatpush1.msra.mxu0 0.0
      %7501 = vmatprep.subr.mxu0 0.0
      %7502 = vmatpush1.msra.mxu0 0.0
      %7503 = vmatprep.subr.mxu0 0.0
      %7504 = vmatpush1.msra.mxu0 0.0
      %7505 = vmatprep.subr.mxu0 0.0
      %7506 = vmatpush1.msra.mxu0 0.0
      %7507 = vmatprep.subr.mxu0 0.0
      %7508 = vmatpush1.msra.mxu0 0.0
      %7509 = vmatprep.subr.mxu0 0.0
      %7510 = vmatpush1.msra.mxu0 0.0
      %7511 = vmatprep.subr.mxu0 0.0
      %7512 = vmatpush1.msra.mxu0 0.0
      %7513 = vmatprep.subr.mxu0 0.0
      %7514 = vmatpush1.msra.mxu0 0.0
      %7515 = vmatprep.subr.mxu0 0.0
      %7516 = vmatpush1.msra.mxu0 0.0
      %7517 = vmatprep.subr.mxu0 0.0
      %7518 = vmatpush1.msra.mxu0 0.0
      %7519 = vmatprep.subr.mxu0 0.0
      %7520 = vmatpush1.msra.mxu0 0.0
      %7521 = vmatprep.subr.mxu0 0.0
      %7522 = vmatpush1.msra.mxu0 0.0
      %7523 = vmatprep.subr.mxu0 0.0
      %7524 = vmatpush1.msra.mxu0 0.0
      %7525 = vmatprep.subr.mxu0 0.0
      %7526 = vmatpush1.msra.mxu0 0.0
      %7527 = vmatprep.subr.mxu0 0.0
      %7528 = vmatpush1.msra.mxu0 0.0
      %7529 = vmatprep.mubr.f32.mxu0 0.0
      %7530 = vmatmul.mubr.f32.gmra.mrb[0].mxu0 %v7392
      %v7531 = vpop.f32.mrb[0].mxu0
      %v7532 = vadd.f32 0.0, %v7531
      %v7533 = vpop.f32.mrb[0].mxu0
      %v7534 = vadd.f32 0.0, %v7533
      %7535 = vdwg.mxu0
      %v7536 = vadd.f32 %v7369, %v7461
      %v7537 = vadd.f32 %v7370, %v7463
      %v7538 = vadd.f32 %v7371, %v7532
      %v7539 = vadd.f32 %v7372, %v7534
      %v7540 = vmul.f32 %v5374, %v2816
      %v7541 = vmul.f32 %v5375, %v2820
      %v7542 = vmul.f32 %v5376, %v2824
      %v7543 = vmul.f32 %v5377, %v2828
      %s7544 = scalar_lea.vmem %s6, 104
      %v7545 = vld [vmem:[%s7544] sm:$0xff]
      %v7547 = vsel %vm418, %v7545, 0
      %7549 = vmatprep.subr.mxu0 %v7541
      %7550 = vmatpush1.msra.mxu0 %v7540
      %7551 = vmatprep.subr.mxu0 0.0
      %7552 = vmatpush1.msra.mxu0 0.0
      %7553 = vmatprep.subr.mxu0 0.0
      %7554 = vmatpush1.msra.mxu0 0.0
      %7555 = vmatprep.subr.mxu0 0.0
      %7556 = vmatpush1.msra.mxu0 0.0
      %7557 = vmatprep.subr.mxu0 0.0
      %7558 = vmatpush1.msra.mxu0 0.0
      %7559 = vmatprep.subr.mxu0 0.0
      %7560 = vmatpush1.msra.mxu0 0.0
      %7561 = vmatprep.subr.mxu0 0.0
      %7562 = vmatpush1.msra.mxu0 0.0
      %7563 = vmatprep.subr.mxu0 0.0
      %7564 = vmatpush1.msra.mxu0 0.0
      %7565 = vmatprep.subr.mxu0 0.0
      %7566 = vmatpush1.msra.mxu0 0.0
      %7567 = vmatprep.subr.mxu0 0.0
      %7568 = vmatpush1.msra.mxu0 0.0
      %7569 = vmatprep.subr.mxu0 0.0
      %7570 = vmatpush1.msra.mxu0 0.0
      %7571 = vmatprep.subr.mxu0 0.0
      %7572 = vmatpush1.msra.mxu0 0.0
      %7573 = vmatprep.subr.mxu0 0.0
      %7574 = vmatpush1.msra.mxu0 0.0
      %7575 = vmatprep.subr.mxu0 0.0
      %7576 = vmatpush1.msra.mxu0 0.0
      %7577 = vmatprep.subr.mxu0 0.0
      %7578 = vmatpush1.msra.mxu0 0.0
      %7579 = vmatprep.subr.mxu0 0.0
      %7580 = vmatpush1.msra.mxu0 0.0
      %7581 = vmatprep.subr.mxu0 0.0
      %7582 = vmatpush1.msra.mxu0 0.0
      %7583 = vmatprep.subr.mxu0 0.0
      %7584 = vmatpush1.msra.mxu0 0.0
      %7585 = vmatprep.subr.mxu0 0.0
      %7586 = vmatpush1.msra.mxu0 0.0
      %7587 = vmatprep.subr.mxu0 0.0
      %7588 = vmatpush1.msra.mxu0 0.0
      %7589 = vmatprep.subr.mxu0 0.0
      %7590 = vmatpush1.msra.mxu0 0.0
      %7591 = vmatprep.subr.mxu0 0.0
      %7592 = vmatpush1.msra.mxu0 0.0
      %7593 = vmatprep.subr.mxu0 0.0
      %7594 = vmatpush1.msra.mxu0 0.0
      %7595 = vmatprep.subr.mxu0 0.0
      %7596 = vmatpush1.msra.mxu0 0.0
      %7597 = vmatprep.subr.mxu0 0.0
      %7598 = vmatpush1.msra.mxu0 0.0
      %7599 = vmatprep.subr.mxu0 0.0
      %7600 = vmatpush1.msra.mxu0 0.0
      %7601 = vmatprep.subr.mxu0 0.0
      %7602 = vmatpush1.msra.mxu0 0.0
      %7603 = vmatprep.subr.mxu0 0.0
      %7604 = vmatpush1.msra.mxu0 0.0
      %7605 = vmatprep.subr.mxu0 0.0
      %7606 = vmatpush1.msra.mxu0 0.0
      %7607 = vmatprep.subr.mxu0 0.0
      %7608 = vmatpush1.msra.mxu0 0.0
      %7609 = vmatprep.subr.mxu0 0.0
      %7610 = vmatpush1.msra.mxu0 0.0
      %7611 = vmatprep.subr.mxu0 0.0
      %7612 = vmatpush1.msra.mxu0 0.0
      %7613 = vmatprep.mubr.f32.mxu0 0.0
      %7614 = vmatmul.mubr.f32.gmra.mrb[0].mxu0 %v7547
      %v7615 = vpop.f32.mrb[0].mxu0
      %v7616 = vadd.f32 0.0, %v7615
      %v7617 = vpop.f32.mrb[0].mxu0
      %v7618 = vadd.f32 0.0, %v7617
      %7619 = vdwg.mxu0
      %7620 = vmatprep.subr.mxu0 %v7543
      %7621 = vmatpush1.msra.mxu0 %v7542
      %7622 = vmatprep.subr.mxu0 0.0
      %7623 = vmatpush1.msra.mxu0 0.0
      %7624 = vmatprep.subr.mxu0 0.0
      %7625 = vmatpush1.msra.mxu0 0.0
      %7626 = vmatprep.subr.mxu0 0.0
      %7627 = vmatpush1.msra.mxu0 0.0
      %7628 = vmatprep.subr.mxu0 0.0
      %7629 = vmatpush1.msra.mxu0 0.0
      %7630 = vmatprep.subr.mxu0 0.0
      %7631 = vmatpush1.msra.mxu0 0.0
      %7632 = vmatprep.subr.mxu0 0.0
      %7633 = vmatpush1.msra.mxu0 0.0
      %7634 = vmatprep.subr.mxu0 0.0
      %7635 = vmatpush1.msra.mxu0 0.0
      %7636 = vmatprep.subr.mxu0 0.0
      %7637 = vmatpush1.msra.mxu0 0.0
      %7638 = vmatprep.subr.mxu0 0.0
      %7639 = vmatpush1.msra.mxu0 0.0
      %7640 = vmatprep.subr.mxu0 0.0
      %7641 = vmatpush1.msra.mxu0 0.0
      %7642 = vmatprep.subr.mxu0 0.0
      %7643 = vmatpush1.msra.mxu0 0.0
      %7644 = vmatprep.subr.mxu0 0.0
      %7645 = vmatpush1.msra.mxu0 0.0
      %7646 = vmatprep.subr.mxu0 0.0
      %7647 = vmatpush1.msra.mxu0 0.0
      %7648 = vmatprep.subr.mxu0 0.0
      %7649 = vmatpush1.msra.mxu0 0.0
      %7650 = vmatprep.subr.mxu0 0.0
      %7651 = vmatpush1.msra.mxu0 0.0
      %7652 = vmatprep.subr.mxu0 0.0
      %7653 = vmatpush1.msra.mxu0 0.0
      %7654 = vmatprep.subr.mxu0 0.0
      %7655 = vmatpush1.msra.mxu0 0.0
      %7656 = vmatprep.subr.mxu0 0.0
      %7657 = vmatpush1.msra.mxu0 0.0
      %7658 = vmatprep.subr.mxu0 0.0
      %7659 = vmatpush1.msra.mxu0 0.0
      %7660 = vmatprep.subr.mxu0 0.0
      %7661 = vmatpush1.msra.mxu0 0.0
      %7662 = vmatprep.subr.mxu0 0.0
      %7663 = vmatpush1.msra.mxu0 0.0
      %7664 = vmatprep.subr.mxu0 0.0
      %7665 = vmatpush1.msra.mxu0 0.0
      %7666 = vmatprep.subr.mxu0 0.0
      %7667 = vmatpush1.msra.mxu0 0.0
      %7668 = vmatprep.subr.mxu0 0.0
      %7669 = vmatpush1.msra.mxu0 0.0
      %7670 = vmatprep.subr.mxu0 0.0
      %7671 = vmatpush1.msra.mxu0 0.0
      %7672 = vmatprep.subr.mxu0 0.0
      %7673 = vmatpush1.msra.mxu0 0.0
      %7674 = vmatprep.subr.mxu0 0.0
      %7675 = vmatpush1.msra.mxu0 0.0
      %7676 = vmatprep.subr.mxu0 0.0
      %7677 = vmatpush1.msra.mxu0 0.0
      %7678 = vmatprep.subr.mxu0 0.0
      %7679 = vmatpush1.msra.mxu0 0.0
      %7680 = vmatprep.subr.mxu0 0.0
      %7681 = vmatpush1.msra.mxu0 0.0
      %7682 = vmatprep.subr.mxu0 0.0
      %7683 = vmatpush1.msra.mxu0 0.0
      %7684 = vmatprep.mubr.f32.mxu0 0.0
      %7685 = vmatmul.mubr.f32.gmra.mrb[0].mxu0 %v7547
      %v7686 = vpop.f32.mrb[0].mxu0
      %v7687 = vadd.f32 0.0, %v7686
      %v7688 = vpop.f32.mrb[0].mxu0
      %v7689 = vadd.f32 0.0, %v7688
      %7690 = vdwg.mxu0
      %v7691 = vadd.f32 %v7536, %v7616
      %v7692 = vadd.f32 %v7537, %v7618
      %v7693 = vadd.f32 %v7538, %v7687
      %v7694 = vadd.f32 %v7539, %v7689
      %7695 = vrot.lane.b32.xlu0 %v5374, 127
      %v7696 = vpop.permute.xlu0 %7695
      %7697 = vrot.lane.b32.xlu0 %v5375, 127
      %v7698 = vpop.permute.xlu0 %7697
      %7699 = vrot.lane.b32.xlu0 %v5376, 127
      %v7700 = vpop.permute.xlu0 %7699
      %7701 = vrot.lane.b32.xlu0 %v5377, 127
      %v7702 = vpop.permute.xlu0 %7701
      %v7703 = vsel %vm2996, %v7700, %v7702
      %v7704 = vsel %vm2996, %v7698, %v7700
      %v7705 = vsel %vm2996, %v7696, %v7698
      %v7706 = vsel %vm2996, %v7702, %v7696
      %v7707 = vmul.f32 %v7705, %v3007
      %v7708 = vmul.f32 %v7704, %v3011
      %v7709 = vmul.f32 %v7703, %v3015
      %v7710 = vmul.f32 %v7706, %v3019
      %s7711 = scalar_lea.vmem %s6, 112
      %v7712 = vld [vmem:[%s7711] sm:$0xff]
      %v7714 = vsel %vm418, %v7712, 0
      %7716 = vmatprep.subr.mxu0 %v7708
      %7717 = vmatpush1.msra.mxu0 %v7707
      %7718 = vmatprep.subr.mxu0 0.0
      %7719 = vmatpush1.msra.mxu0 0.0
      %7720 = vmatprep.subr.mxu0 0.0
      %7721 = vmatpush1.msra.mxu0 0.0
      %7722 = vmatprep.subr.mxu0 0.0
      %7723 = vmatpush1.msra.mxu0 0.0
      %7724 = vmatprep.subr.mxu0 0.0
      %7725 = vmatpush1.msra.mxu0 0.0
      %7726 = vmatprep.subr.mxu0 0.0
      %7727 = vmatpush1.msra.mxu0 0.0
      %7728 = vmatprep.subr.mxu0 0.0
      %7729 = vmatpush1.msra.mxu0 0.0
      %7730 = vmatprep.subr.mxu0 0.0
      %7731 = vmatpush1.msra.mxu0 0.0
      %7732 = vmatprep.subr.mxu0 0.0
      %7733 = vmatpush1.msra.mxu0 0.0
      %7734 = vmatprep.subr.mxu0 0.0
      %7735 = vmatpush1.msra.mxu0 0.0
      %7736 = vmatprep.subr.mxu0 0.0
      %7737 = vmatpush1.msra.mxu0 0.0
      %7738 = vmatprep.subr.mxu0 0.0
      %7739 = vmatpush1.msra.mxu0 0.0
      %7740 = vmatprep.subr.mxu0 0.0
      %7741 = vmatpush1.msra.mxu0 0.0
      %7742 = vmatprep.subr.mxu0 0.0
      %7743 = vmatpush1.msra.mxu0 0.0
      %7744 = vmatprep.subr.mxu0 0.0
      %7745 = vmatpush1.msra.mxu0 0.0
      %7746 = vmatprep.subr.mxu0 0.0
      %7747 = vmatpush1.msra.mxu0 0.0
      %7748 = vmatprep.subr.mxu0 0.0
      %7749 = vmatpush1.msra.mxu0 0.0
      %7750 = vmatprep.subr.mxu0 0.0
      %7751 = vmatpush1.msra.mxu0 0.0
      %7752 = vmatprep.subr.mxu0 0.0
      %7753 = vmatpush1.msra.mxu0 0.0
      %7754 = vmatprep.subr.mxu0 0.0
      %7755 = vmatpush1.msra.mxu0 0.0
      %7756 = vmatprep.subr.mxu0 0.0
      %7757 = vmatpush1.msra.mxu0 0.0
      %7758 = vmatprep.subr.mxu0 0.0
      %7759 = vmatpush1.msra.mxu0 0.0
      %7760 = vmatprep.subr.mxu0 0.0
      %7761 = vmatpush1.msra.mxu0 0.0
      %7762 = vmatprep.subr.mxu0 0.0
      %7763 = vmatpush1.msra.mxu0 0.0
      %7764 = vmatprep.subr.mxu0 0.0
      %7765 = vmatpush1.msra.mxu0 0.0
      %7766 = vmatprep.subr.mxu0 0.0
      %7767 = vmatpush1.msra.mxu0 0.0
      %7768 = vmatprep.subr.mxu0 0.0
      %7769 = vmatpush1.msra.mxu0 0.0
      %7770 = vmatprep.subr.mxu0 0.0
      %7771 = vmatpush1.msra.mxu0 0.0
      %7772 = vmatprep.subr.mxu0 0.0
      %7773 = vmatpush1.msra.mxu0 0.0
      %7774 = vmatprep.subr.mxu0 0.0
      %7775 = vmatpush1.msra.mxu0 0.0
      %7776 = vmatprep.subr.mxu0 0.0
      %7777 = vmatpush1.msra.mxu0 0.0
      %7778 = vmatprep.subr.mxu0 0.0
      %7779 = vmatpush1.msra.mxu0 0.0
      %7780 = vmatprep.mubr.f32.mxu0 0.0
      %7781 = vmatmul.mubr.f32.gmra.mrb[0].mxu0 %v7714
      %v7782 = vpop.f32.mrb[0].mxu0
      %v7783 = vadd.f32 0.0, %v7782
      %v7784 = vpop.f32.mrb[0].mxu0
      %v7785 = vadd.f32 0.0, %v7784
      %7786 = vdwg.mxu0
      %7787 = vmatprep.subr.mxu0 %v7710
      %7788 = vmatpush1.msra.mxu0 %v7709
      %7789 = vmatprep.subr.mxu0 0.0
      %7790 = vmatpush1.msra.mxu0 0.0
      %7791 = vmatprep.subr.mxu0 0.0
      %7792 = vmatpush1.msra.mxu0 0.0
      %7793 = vmatprep.subr.mxu0 0.0
      %7794 = vmatpush1.msra.mxu0 0.0
      %7795 = vmatprep.subr.mxu0 0.0
      %7796 = vmatpush1.msra.mxu0 0.0
      %7797 = vmatprep.subr.mxu0 0.0
      %7798 = vmatpush1.msra.mxu0 0.0
      %7799 = vmatprep.subr.mxu0 0.0
      %7800 = vmatpush1.msra.mxu0 0.0
      %7801 = vmatprep.subr.mxu0 0.0
      %7802 = vmatpush1.msra.mxu0 0.0
      %7803 = vmatprep.subr.mxu0 0.0
      %7804 = vmatpush1.msra.mxu0 0.0
      %7805 = vmatprep.subr.mxu0 0.0
      %7806 = vmatpush1.msra.mxu0 0.0
      %7807 = vmatprep.subr.mxu0 0.0
      %7808 = vmatpush1.msra.mxu0 0.0
      %7809 = vmatprep.subr.mxu0 0.0
      %7810 = vmatpush1.msra.mxu0 0.0
      %7811 = vmatprep.subr.mxu0 0.0
      %7812 = vmatpush1.msra.mxu0 0.0
      %7813 = vmatprep.subr.mxu0 0.0
      %7814 = vmatpush1.msra.mxu0 0.0
      %7815 = vmatprep.subr.mxu0 0.0
      %7816 = vmatpush1.msra.mxu0 0.0
      %7817 = vmatprep.subr.mxu0 0.0
      %7818 = vmatpush1.msra.mxu0 0.0
      %7819 = vmatprep.subr.mxu0 0.0
      %7820 = vmatpush1.msra.mxu0 0.0
      %7821 = vmatprep.subr.mxu0 0.0
      %7822 = vmatpush1.msra.mxu0 0.0
      %7823 = vmatprep.subr.mxu0 0.0
      %7824 = vmatpush1.msra.mxu0 0.0
      %7825 = vmatprep.subr.mxu0 0.0
      %7826 = vmatpush1.msra.mxu0 0.0
      %7827 = vmatprep.subr.mxu0 0.0
      %7828 = vmatpush1.msra.mxu0 0.0
      %7829 = vmatprep.subr.mxu0 0.0
      %7830 = vmatpush1.msra.mxu0 0.0
      %7831 = vmatprep.subr.mxu0 0.0
      %7832 = vmatpush1.msra.mxu0 0.0
      %7833 = vmatprep.subr.mxu0 0.0
      %7834 = vmatpush1.msra.mxu0 0.0
      %7835 = vmatprep.subr.mxu0 0.0
      %7836 = vmatpush1.msra.mxu0 0.0
      %7837 = vmatprep.subr.mxu0 0.0
      %7838 = vmatpush1.msra.mxu0 0.0
      %7839 = vmatprep.subr.mxu0 0.0
      %7840 = vmatpush1.msra.mxu0 0.0
      %7841 = vmatprep.subr.mxu0 0.0
      %7842 = vmatpush1.msra.mxu0 0.0
      %7843 = vmatprep.subr.mxu0 0.0
      %7844 = vmatpush1.msra.mxu0 0.0
      %7845 = vmatprep.subr.mxu0 0.0
      %7846 = vmatpush1.msra.mxu0 0.0
      %7847 = vmatprep.subr.mxu0 0.0
      %7848 = vmatpush1.msra.mxu0 0.0
      %7849 = vmatprep.subr.mxu0 0.0
      %7850 = vmatpush1.msra.mxu0 0.0
      %7851 = vmatprep.mubr.f32.mxu0 0.0
      %7852 = vmatmul.mubr.f32.gmra.mrb[0].mxu0 %v7714
      %v7853 = vpop.f32.mrb[0].mxu0
      %v7854 = vadd.f32 0.0, %v7853
      %v7855 = vpop.f32.mrb[0].mxu0
      %v7856 = vadd.f32 0.0, %v7855
      %7857 = vdwg.mxu0
      %v7858 = vadd.f32 %v7691, %v7783
      %v7859 = vadd.f32 %v7692, %v7785
      %v7860 = vadd.f32 %v7693, %v7854
      %v7861 = vadd.f32 %v7694, %v7856
      %7862 = vrot.lane.b32.xlu0 %v5374, 121
      %v7863 = vpop.permute.xlu0 %7862
      %7864 = vrot.lane.b32.xlu0 %v5375, 121
      %v7865 = vpop.permute.xlu0 %7864
      %7866 = vrot.lane.b32.xlu0 %v5376, 121
      %v7867 = vpop.permute.xlu0 %7866
      %7868 = vrot.lane.b32.xlu0 %v5377, 121
      %v7869 = vpop.permute.xlu0 %7868
      %v7870 = vsel %vm3187, %v7867, %v7869
      %v7871 = vsel %vm3187, %v7865, %v7867
      %v7872 = vsel %vm3187, %v7863, %v7865
      %v7873 = vsel %vm3187, %v7869, %v7863
      %v7874 = vmul.f32 %v7872, %v3198
      %v7875 = vmul.f32 %v7871, %v3202
      %v7876 = vmul.f32 %v7870, %v3206
      %v7877 = vmul.f32 %v7873, %v3210
      %s7878 = scalar_lea.vmem %s6, 120
      %v7879 = vld [vmem:[%s7878] sm:$0xff]
      %v7881 = vsel %vm418, %v7879, 0
      %7883 = vmatprep.subr.mxu0 %v7875
      %7884 = vmatpush1.msra.mxu0 %v7874
      %7885 = vmatprep.subr.mxu0 0.0
      %7886 = vmatpush1.msra.mxu0 0.0
      %7887 = vmatprep.subr.mxu0 0.0
      %7888 = vmatpush1.msra.mxu0 0.0
      %7889 = vmatprep.subr.mxu0 0.0
      %7890 = vmatpush1.msra.mxu0 0.0
      %7891 = vmatprep.subr.mxu0 0.0
      %7892 = vmatpush1.msra.mxu0 0.0
      %7893 = vmatprep.subr.mxu0 0.0
      %7894 = vmatpush1.msra.mxu0 0.0
      %7895 = vmatprep.subr.mxu0 0.0
      %7896 = vmatpush1.msra.mxu0 0.0
      %7897 = vmatprep.subr.mxu0 0.0
      %7898 = vmatpush1.msra.mxu0 0.0
      %7899 = vmatprep.subr.mxu0 0.0
      %7900 = vmatpush1.msra.mxu0 0.0
      %7901 = vmatprep.subr.mxu0 0.0
      %7902 = vmatpush1.msra.mxu0 0.0
      %7903 = vmatprep.subr.mxu0 0.0
      %7904 = vmatpush1.msra.mxu0 0.0
      %7905 = vmatprep.subr.mxu0 0.0
      %7906 = vmatpush1.msra.mxu0 0.0
      %7907 = vmatprep.subr.mxu0 0.0
      %7908 = vmatpush1.msra.mxu0 0.0
      %7909 = vmatprep.subr.mxu0 0.0
      %7910 = vmatpush1.msra.mxu0 0.0
      %7911 = vmatprep.subr.mxu0 0.0
      %7912 = vmatpush1.msra.mxu0 0.0
      %7913 = vmatprep.subr.mxu0 0.0
      %7914 = vmatpush1.msra.mxu0 0.0
      %7915 = vmatprep.subr.mxu0 0.0
      %7916 = vmatpush1.msra.mxu0 0.0
      %7917 = vmatprep.subr.mxu0 0.0
      %7918 = vmatpush1.msra.mxu0 0.0
      %7919 = vmatprep.subr.mxu0 0.0
      %7920 = vmatpush1.msra.mxu0 0.0
      %7921 = vmatprep.subr.mxu0 0.0
      %7922 = vmatpush1.msra.mxu0 0.0
      %7923 = vmatprep.subr.mxu0 0.0
      %7924 = vmatpush1.msra.mxu0 0.0
      %7925 = vmatprep.subr.mxu0 0.0
      %7926 = vmatpush1.msra.mxu0 0.0
      %7927 = vmatprep.subr.mxu0 0.0
      %7928 = vmatpush1.msra.mxu0 0.0
      %7929 = vmatprep.subr.mxu0 0.0
      %7930 = vmatpush1.msra.mxu0 0.0
      %7931 = vmatprep.subr.mxu0 0.0
      %7932 = vmatpush1.msra.mxu0 0.0
      %7933 = vmatprep.subr.mxu0 0.0
      %7934 = vmatpush1.msra.mxu0 0.0
      %7935 = vmatprep.subr.mxu0 0.0
      %7936 = vmatpush1.msra.mxu0 0.0
      %7937 = vmatprep.subr.mxu0 0.0
      %7938 = vmatpush1.msra.mxu0 0.0
      %7939 = vmatprep.subr.mxu0 0.0
      %7940 = vmatpush1.msra.mxu0 0.0
      %7941 = vmatprep.subr.mxu0 0.0
      %7942 = vmatpush1.msra.mxu0 0.0
      %7943 = vmatprep.subr.mxu0 0.0
      %7944 = vmatpush1.msra.mxu0 0.0
      %7945 = vmatprep.subr.mxu0 0.0
      %7946 = vmatpush1.msra.mxu0 0.0
      %7947 = vmatprep.mubr.f32.mxu0 0.0
      %7948 = vmatmul.mubr.f32.gmra.mrb[0].mxu0 %v7881
      %v7949 = vpop.f32.mrb[0].mxu0
      %v7950 = vadd.f32 0.0, %v7949
      %v7951 = vpop.f32.mrb[0].mxu0
      %v7952 = vadd.f32 0.0, %v7951
      %7953 = vdwg.mxu0
      %7954 = vmatprep.subr.mxu0 %v7877
      %7955 = vmatpush1.msra.mxu0 %v7876
      %7956 = vmatprep.subr.mxu0 0.0
      %7957 = vmatpush1.msra.mxu0 0.0
      %7958 = vmatprep.subr.mxu0 0.0
      %7959 = vmatpush1.msra.mxu0 0.0
      %7960 = vmatprep.subr.mxu0 0.0
      %7961 = vmatpush1.msra.mxu0 0.0
      %7962 = vmatprep.subr.mxu0 0.0
      %7963 = vmatpush1.msra.mxu0 0.0
      %7964 = vmatprep.subr.mxu0 0.0
      %7965 = vmatpush1.msra.mxu0 0.0
      %7966 = vmatprep.subr.mxu0 0.0
      %7967 = vmatpush1.msra.mxu0 0.0
      %7968 = vmatprep.subr.mxu0 0.0
      %7969 = vmatpush1.msra.mxu0 0.0
      %7970 = vmatprep.subr.mxu0 0.0
      %7971 = vmatpush1.msra.mxu0 0.0
      %7972 = vmatprep.subr.mxu0 0.0
      %7973 = vmatpush1.msra.mxu0 0.0
      %7974 = vmatprep.subr.mxu0 0.0
      %7975 = vmatpush1.msra.mxu0 0.0
      %7976 = vmatprep.subr.mxu0 0.0
      %7977 = vmatpush1.msra.mxu0 0.0
      %7978 = vmatprep.subr.mxu0 0.0
      %7979 = vmatpush1.msra.mxu0 0.0
      %7980 = vmatprep.subr.mxu0 0.0
      %7981 = vmatpush1.msra.mxu0 0.0
      %7982 = vmatprep.subr.mxu0 0.0
      %7983 = vmatpush1.msra.mxu0 0.0
      %7984 = vmatprep.subr.mxu0 0.0
      %7985 = vmatpush1.msra.mxu0 0.0
      %7986 = vmatprep.subr.mxu0 0.0
      %7987 = vmatpush1.msra.mxu0 0.0
      %7988 = vmatprep.subr.mxu0 0.0
      %7989 = vmatpush1.msra.mxu0 0.0
      %7990 = vmatprep.subr.mxu0 0.0
      %7991 = vmatpush1.msra.mxu0 0.0
      %7992 = vmatprep.subr.mxu0 0.0
      %7993 = vmatpush1.msra.mxu0 0.0
      %7994 = vmatprep.subr.mxu0 0.0
      %7995 = vmatpush1.msra.mxu0 0.0
      %7996 = vmatprep.subr.mxu0 0.0
      %7997 = vmatpush1.msra.mxu0 0.0
      %7998 = vmatprep.subr.mxu0 0.0
      %7999 = vmatpush1.msra.mxu0 0.0
      %8000 = vmatprep.subr.mxu0 0.0
      %8001 = vmatpush1.msra.mxu0 0.0
      %8002 = vmatprep.subr.mxu0 0.0
      %8003 = vmatpush1.msra.mxu0 0.0
      %8004 = vmatprep.subr.mxu0 0.0
      %8005 = vmatpush1.msra.mxu0 0.0
      %8006 = vmatprep.subr.mxu0 0.0
      %8007 = vmatpush1.msra.mxu0 0.0
      %8008 = vmatprep.subr.mxu0 0.0
      %8009 = vmatpush1.msra.mxu0 0.0
      %8010 = vmatprep.subr.mxu0 0.0
      %8011 = vmatpush1.msra.mxu0 0.0
      %8012 = vmatprep.subr.mxu0 0.0
      %8013 = vmatpush1.msra.mxu0 0.0
      %8014 = vmatprep.subr.mxu0 0.0
      %8015 = vmatpush1.msra.mxu0 0.0
      %8016 = vmatprep.subr.mxu0 0.0
      %8017 = vmatpush1.msra.mxu0 0.0
      %8018 = vmatprep.mubr.f32.mxu0 0.0
      %8019 = vmatmul.mubr.f32.gmra.mrb[0].mxu0 %v7881
      %v8020 = vpop.f32.mrb[0].mxu0
      %v8021 = vadd.f32 0.0, %v8020
      %v8022 = vpop.f32.mrb[0].mxu0
      %v8023 = vadd.f32 0.0, %v8022
      %8024 = vdwg.mxu0
      %v8025 = vadd.f32 %v7858, %v7950
      %v8026 = vadd.f32 %v7859, %v7952
      %v8027 = vadd.f32 %v7860, %v8021
      %v8028 = vadd.f32 %v7861, %v8023
      %8029 = vrot.lane.b32.xlu0 %v5374, 120
      %v8030 = vpop.permute.xlu0 %8029
      %8031 = vrot.lane.b32.xlu0 %v5375, 120
      %v8032 = vpop.permute.xlu0 %8031
      %8033 = vrot.lane.b32.xlu0 %v5376, 120
      %v8034 = vpop.permute.xlu0 %8033
      %8035 = vrot.lane.b32.xlu0 %v5377, 120
      %v8036 = vpop.permute.xlu0 %8035
      %v8037 = vsel %vm3378, %v8034, %v8036
      %v8038 = vsel %vm3378, %v8032, %v8034
      %v8039 = vsel %vm3378, %v8030, %v8032
      %v8040 = vsel %vm3378, %v8036, %v8030
      %v8041 = vmul.f32 %v8039, %v3389
      %v8042 = vmul.f32 %v8038, %v3393
      %v8043 = vmul.f32 %v8037, %v3397
      %v8044 = vmul.f32 %v8040, %v3401
      %s8045 = scalar_lea.vmem %s6, 128
      %v8046 = vld [vmem:[%s8045] sm:$0xff]
      %v8048 = vsel %vm418, %v8046, 0
      %8050 = vmatprep.subr.mxu0 %v8042
      %8051 = vmatpush1.msra.mxu0 %v8041
      %8052 = vmatprep.subr.mxu0 0.0
      %8053 = vmatpush1.msra.mxu0 0.0
      %8054 = vmatprep.subr.mxu0 0.0
      %8055 = vmatpush1.msra.mxu0 0.0
      %8056 = vmatprep.subr.mxu0 0.0
      %8057 = vmatpush1.msra.mxu0 0.0
      %8058 = vmatprep.subr.mxu0 0.0
      %8059 = vmatpush1.msra.mxu0 0.0
      %8060 = vmatprep.subr.mxu0 0.0
      %8061 = vmatpush1.msra.mxu0 0.0
      %8062 = vmatprep.subr.mxu0 0.0
      %8063 = vmatpush1.msra.mxu0 0.0
      %8064 = vmatprep.subr.mxu0 0.0
      %8065 = vmatpush1.msra.mxu0 0.0
      %8066 = vmatprep.subr.mxu0 0.0
      %8067 = vmatpush1.msra.mxu0 0.0
      %8068 = vmatprep.subr.mxu0 0.0
      %8069 = vmatpush1.msra.mxu0 0.0
      %8070 = vmatprep.subr.mxu0 0.0
      %8071 = vmatpush1.msra.mxu0 0.0
      %8072 = vmatprep.subr.mxu0 0.0
      %8073 = vmatpush1.msra.mxu0 0.0
      %8074 = vmatprep.subr.mxu0 0.0
      %8075 = vmatpush1.msra.mxu0 0.0
      %8076 = vmatprep.subr.mxu0 0.0
      %8077 = vmatpush1.msra.mxu0 0.0
      %8078 = vmatprep.subr.mxu0 0.0
      %8079 = vmatpush1.msra.mxu0 0.0
      %8080 = vmatprep.subr.mxu0 0.0
      %8081 = vmatpush1.msra.mxu0 0.0
      %8082 = vmatprep.subr.mxu0 0.0
      %8083 = vmatpush1.msra.mxu0 0.0
      %8084 = vmatprep.subr.mxu0 0.0
      %8085 = vmatpush1.msra.mxu0 0.0
      %8086 = vmatprep.subr.mxu0 0.0
      %8087 = vmatpush1.msra.mxu0 0.0
      %8088 = vmatprep.subr.mxu0 0.0
      %8089 = vmatpush1.msra.mxu0 0.0
      %8090 = vmatprep.subr.mxu0 0.0
      %8091 = vmatpush1.msra.mxu0 0.0
      %8092 = vmatprep.subr.mxu0 0.0
      %8093 = vmatpush1.msra.mxu0 0.0
      %8094 = vmatprep.subr.mxu0 0.0
      %8095 = vmatpush1.msra.mxu0 0.0
      %8096 = vmatprep.subr.mxu0 0.0
      %8097 = vmatpush1.msra.mxu0 0.0
      %8098 = vmatprep.subr.mxu0 0.0
      %8099 = vmatpush1.msra.mxu0 0.0
      %8100 = vmatprep.subr.mxu0 0.0
      %8101 = vmatpush1.msra.mxu0 0.0
      %8102 = vmatprep.subr.mxu0 0.0
      %8103 = vmatpush1.msra.mxu0 0.0
      %8104 = vmatprep.subr.mxu0 0.0
      %8105 = vmatpush1.msra.mxu0 0.0
      %8106 = vmatprep.subr.mxu0 0.0
      %8107 = vmatpush1.msra.mxu0 0.0
      %8108 = vmatprep.subr.mxu0 0.0
      %8109 = vmatpush1.msra.mxu0 0.0
      %8110 = vmatprep.subr.mxu0 0.0
      %8111 = vmatpush1.msra.mxu0 0.0
      %8112 = vmatprep.subr.mxu0 0.0
      %8113 = vmatpush1.msra.mxu0 0.0
      %8114 = vmatprep.mubr.f32.mxu0 0.0
      %8115 = vmatmul.mubr.f32.gmra.mrb[0].mxu0 %v8048
      %v8116 = vpop.f32.mrb[0].mxu0
      %v8117 = vadd.f32 0.0, %v8116
      %v8118 = vpop.f32.mrb[0].mxu0
      %v8119 = vadd.f32 0.0, %v8118
      %8120 = vdwg.mxu0
      %8121 = vmatprep.subr.mxu0 %v8044
      %8122 = vmatpush1.msra.mxu0 %v8043
      %8123 = vmatprep.subr.mxu0 0.0
      %8124 = vmatpush1.msra.mxu0 0.0
      %8125 = vmatprep.subr.mxu0 0.0
      %8126 = vmatpush1.msra.mxu0 0.0
      %8127 = vmatprep.subr.mxu0 0.0
      %8128 = vmatpush1.msra.mxu0 0.0
      %8129 = vmatprep.subr.mxu0 0.0
      %8130 = vmatpush1.msra.mxu0 0.0
      %8131 = vmatprep.subr.mxu0 0.0
      %8132 = vmatpush1.msra.mxu0 0.0
      %8133 = vmatprep.subr.mxu0 0.0
      %8134 = vmatpush1.msra.mxu0 0.0
      %8135 = vmatprep.subr.mxu0 0.0
      %8136 = vmatpush1.msra.mxu0 0.0
      %8137 = vmatprep.subr.mxu0 0.0
      %8138 = vmatpush1.msra.mxu0 0.0
      %8139 = vmatprep.subr.mxu0 0.0
      %8140 = vmatpush1.msra.mxu0 0.0
      %8141 = vmatprep.subr.mxu0 0.0
      %8142 = vmatpush1.msra.mxu0 0.0
      %8143 = vmatprep.subr.mxu0 0.0
      %8144 = vmatpush1.msra.mxu0 0.0
      %8145 = vmatprep.subr.mxu0 0.0
      %8146 = vmatpush1.msra.mxu0 0.0
      %8147 = vmatprep.subr.mxu0 0.0
      %8148 = vmatpush1.msra.mxu0 0.0
      %8149 = vmatprep.subr.mxu0 0.0
      %8150 = vmatpush1.msra.mxu0 0.0
      %8151 = vmatprep.subr.mxu0 0.0
      %8152 = vmatpush1.msra.mxu0 0.0
      %8153 = vmatprep.subr.mxu0 0.0
      %8154 = vmatpush1.msra.mxu0 0.0
      %8155 = vmatprep.subr.mxu0 0.0
      %8156 = vmatpush1.msra.mxu0 0.0
      %8157 = vmatprep.subr.mxu0 0.0
      %8158 = vmatpush1.msra.mxu0 0.0
      %8159 = vmatprep.subr.mxu0 0.0
      %8160 = vmatpush1.msra.mxu0 0.0
      %8161 = vmatprep.subr.mxu0 0.0
      %8162 = vmatpush1.msra.mxu0 0.0
      %8163 = vmatprep.subr.mxu0 0.0
      %8164 = vmatpush1.msra.mxu0 0.0
      %8165 = vmatprep.subr.mxu0 0.0
      %8166 = vmatpush1.msra.mxu0 0.0
      %8167 = vmatprep.subr.mxu0 0.0
      %8168 = vmatpush1.msra.mxu0 0.0
      %8169 = vmatprep.subr.mxu0 0.0
      %8170 = vmatpush1.msra.mxu0 0.0
      %8171 = vmatprep.subr.mxu0 0.0
      %8172 = vmatpush1.msra.mxu0 0.0
      %8173 = vmatprep.subr.mxu0 0.0
      %8174 = vmatpush1.msra.mxu0 0.0
      %8175 = vmatprep.subr.mxu0 0.0
      %8176 = vmatpush1.msra.mxu0 0.0
      %8177 = vmatprep.subr.mxu0 0.0
      %8178 = vmatpush1.msra.mxu0 0.0
      %8179 = vmatprep.subr.mxu0 0.0
      %8180 = vmatpush1.msra.mxu0 0.0
      %8181 = vmatprep.subr.mxu0 0.0
      %8182 = vmatpush1.msra.mxu0 0.0
      %8183 = vmatprep.subr.mxu0 0.0
      %8184 = vmatpush1.msra.mxu0 0.0
      %8185 = vmatprep.mubr.f32.mxu0 0.0
      %8186 = vmatmul.mubr.f32.gmra.mrb[0].mxu0 %v8048
      %v8187 = vpop.f32.mrb[0].mxu0
      %v8188 = vadd.f32 0.0, %v8187
      %v8189 = vpop.f32.mrb[0].mxu0
      %v8190 = vadd.f32 0.0, %v8189
      %8191 = vdwg.mxu0
      %v8192 = vadd.f32 %v8025, %v8117
      %v8193 = vadd.f32 %v8026, %v8119
      %v8194 = vadd.f32 %v8027, %v8188
      %v8195 = vadd.f32 %v8028, %v8190
      %8196 = vrot.lane.b32.xlu0 %v5374, 119
      %v8197 = vpop.permute.xlu0 %8196
      %8198 = vrot.lane.b32.xlu0 %v5375, 119
      %v8199 = vpop.permute.xlu0 %8198
      %8200 = vrot.lane.b32.xlu0 %v5376, 119
      %v8201 = vpop.permute.xlu0 %8200
      %8202 = vrot.lane.b32.xlu0 %v5377, 119
      %v8203 = vpop.permute.xlu0 %8202
      %v8204 = vsel %vm3569, %v8201, %v8203
      %v8205 = vsel %vm3569, %v8199, %v8201
      %v8206 = vsel %vm3569, %v8197, %v8199
      %v8207 = vsel %vm3569, %v8203, %v8197
      %v8208 = vmul.f32 %v8206, %v3580
      %v8209 = vmul.f32 %v8205, %v3584
      %v8210 = vmul.f32 %v8204, %v3588
      %v8211 = vmul.f32 %v8207, %v3592
      %s8212 = scalar_lea.vmem %s6, 136
      %v8213 = vld [vmem:[%s8212] sm:$0xff]
      %v8215 = vsel %vm418, %v8213, 0
      %8217 = vmatprep.subr.mxu0 %v8209
      %8218 = vmatpush1.msra.mxu0 %v8208
      %8219 = vmatprep.subr.mxu0 0.0
      %8220 = vmatpush1.msra.mxu0 0.0
      %8221 = vmatprep.subr.mxu0 0.0
      %8222 = vmatpush1.msra.mxu0 0.0
      %8223 = vmatprep.subr.mxu0 0.0
      %8224 = vmatpush1.msra.mxu0 0.0
      %8225 = vmatprep.subr.mxu0 0.0
      %8226 = vmatpush1.msra.mxu0 0.0
      %8227 = vmatprep.subr.mxu0 0.0
      %8228 = vmatpush1.msra.mxu0 0.0
      %8229 = vmatprep.subr.mxu0 0.0
      %8230 = vmatpush1.msra.mxu0 0.0
      %8231 = vmatprep.subr.mxu0 0.0
      %8232 = vmatpush1.msra.mxu0 0.0
      %8233 = vmatprep.subr.mxu0 0.0
      %8234 = vmatpush1.msra.mxu0 0.0
      %8235 = vmatprep.subr.mxu0 0.0
      %8236 = vmatpush1.msra.mxu0 0.0
      %8237 = vmatprep.subr.mxu0 0.0
      %8238 = vmatpush1.msra.mxu0 0.0
      %8239 = vmatprep.subr.mxu0 0.0
      %8240 = vmatpush1.msra.mxu0 0.0
      %8241 = vmatprep.subr.mxu0 0.0
      %8242 = vmatpush1.msra.mxu0 0.0
      %8243 = vmatprep.subr.mxu0 0.0
      %8244 = vmatpush1.msra.mxu0 0.0
      %8245 = vmatprep.subr.mxu0 0.0
      %8246 = vmatpush1.msra.mxu0 0.0
      %8247 = vmatprep.subr.mxu0 0.0
      %8248 = vmatpush1.msra.mxu0 0.0
      %8249 = vmatprep.subr.mxu0 0.0
      %8250 = vmatpush1.msra.mxu0 0.0
      %8251 = vmatprep.subr.mxu0 0.0
      %8252 = vmatpush1.msra.mxu0 0.0
      %8253 = vmatprep.subr.mxu0 0.0
      %8254 = vmatpush1.msra.mxu0 0.0
      %8255 = vmatprep.subr.mxu0 0.0
      %8256 = vmatpush1.msra.mxu0 0.0
      %8257 = vmatprep.subr.mxu0 0.0
      %8258 = vmatpush1.msra.mxu0 0.0
      %8259 = vmatprep.subr.mxu0 0.0
      %8260 = vmatpush1.msra.mxu0 0.0
      %8261 = vmatprep.subr.mxu0 0.0
      %8262 = vmatpush1.msra.mxu0 0.0
      %8263 = vmatprep.subr.mxu0 0.0
      %8264 = vmatpush1.msra.mxu0 0.0
      %8265 = vmatprep.subr.mxu0 0.0
      %8266 = vmatpush1.msra.mxu0 0.0
      %8267 = vmatprep.subr.mxu0 0.0
      %8268 = vmatpush1.msra.mxu0 0.0
      %8269 = vmatprep.subr.mxu0 0.0
      %8270 = vmatpush1.msra.mxu0 0.0
      %8271 = vmatprep.subr.mxu0 0.0
      %8272 = vmatpush1.msra.mxu0 0.0
      %8273 = vmatprep.subr.mxu0 0.0
      %8274 = vmatpush1.msra.mxu0 0.0
      %8275 = vmatprep.subr.mxu0 0.0
      %8276 = vmatpush1.msra.mxu0 0.0
      %8277 = vmatprep.subr.mxu0 0.0
      %8278 = vmatpush1.msra.mxu0 0.0
      %8279 = vmatprep.subr.mxu0 0.0
      %8280 = vmatpush1.msra.mxu0 0.0
      %8281 = vmatprep.mubr.f32.mxu0 0.0
      %8282 = vmatmul.mubr.f32.gmra.mrb[0].mxu0 %v8215
      %v8283 = vpop.f32.mrb[0].mxu0
      %v8284 = vadd.f32 0.0, %v8283
      %v8285 = vpop.f32.mrb[0].mxu0
      %v8286 = vadd.f32 0.0, %v8285
      %8287 = vdwg.mxu0
      %8288 = vmatprep.subr.mxu0 %v8211
      %8289 = vmatpush1.msra.mxu0 %v8210
      %8290 = vmatprep.subr.mxu0 0.0
      %8291 = vmatpush1.msra.mxu0 0.0
      %8292 = vmatprep.subr.mxu0 0.0
      %8293 = vmatpush1.msra.mxu0 0.0
      %8294 = vmatprep.subr.mxu0 0.0
      %8295 = vmatpush1.msra.mxu0 0.0
      %8296 = vmatprep.subr.mxu0 0.0
      %8297 = vmatpush1.msra.mxu0 0.0
      %8298 = vmatprep.subr.mxu0 0.0
      %8299 = vmatpush1.msra.mxu0 0.0
      %8300 = vmatprep.subr.mxu0 0.0
      %8301 = vmatpush1.msra.mxu0 0.0
      %8302 = vmatprep.subr.mxu0 0.0
      %8303 = vmatpush1.msra.mxu0 0.0
      %8304 = vmatprep.subr.mxu0 0.0
      %8305 = vmatpush1.msra.mxu0 0.0
      %8306 = vmatprep.subr.mxu0 0.0
      %8307 = vmatpush1.msra.mxu0 0.0
      %8308 = vmatprep.subr.mxu0 0.0
      %8309 = vmatpush1.msra.mxu0 0.0
      %8310 = vmatprep.subr.mxu0 0.0
      %8311 = vmatpush1.msra.mxu0 0.0
      %8312 = vmatprep.subr.mxu0 0.0
      %8313 = vmatpush1.msra.mxu0 0.0
      %8314 = vmatprep.subr.mxu0 0.0
      %8315 = vmatpush1.msra.mxu0 0.0
      %8316 = vmatprep.subr.mxu0 0.0
      %8317 = vmatpush1.msra.mxu0 0.0
      %8318 = vmatprep.subr.mxu0 0.0
      %8319 = vmatpush1.msra.mxu0 0.0
      %8320 = vmatprep.subr.mxu0 0.0
      %8321 = vmatpush1.msra.mxu0 0.0
      %8322 = vmatprep.subr.mxu0 0.0
      %8323 = vmatpush1.msra.mxu0 0.0
      %8324 = vmatprep.subr.mxu0 0.0
      %8325 = vmatpush1.msra.mxu0 0.0
      %8326 = vmatprep.subr.mxu0 0.0
      %8327 = vmatpush1.msra.mxu0 0.0
      %8328 = vmatprep.subr.mxu0 0.0
      %8329 = vmatpush1.msra.mxu0 0.0
      %8330 = vmatprep.subr.mxu0 0.0
      %8331 = vmatpush1.msra.mxu0 0.0
      %8332 = vmatprep.subr.mxu0 0.0
      %8333 = vmatpush1.msra.mxu0 0.0
      %8334 = vmatprep.subr.mxu0 0.0
      %8335 = vmatpush1.msra.mxu0 0.0
      %8336 = vmatprep.subr.mxu0 0.0
      %8337 = vmatpush1.msra.mxu0 0.0
      %8338 = vmatprep.subr.mxu0 0.0
      %8339 = vmatpush1.msra.mxu0 0.0
      %8340 = vmatprep.subr.mxu0 0.0
      %8341 = vmatpush1.msra.mxu0 0.0
      %8342 = vmatprep.subr.mxu0 0.0
      %8343 = vmatpush1.msra.mxu0 0.0
      %8344 = vmatprep.subr.mxu0 0.0
      %8345 = vmatpush1.msra.mxu0 0.0
      %8346 = vmatprep.subr.mxu0 0.0
      %8347 = vmatpush1.msra.mxu0 0.0
      %8348 = vmatprep.subr.mxu0 0.0
      %8349 = vmatpush1.msra.mxu0 0.0
      %8350 = vmatprep.subr.mxu0 0.0
      %8351 = vmatpush1.msra.mxu0 0.0
      %8352 = vmatprep.mubr.f32.mxu0 0.0
      %8353 = vmatmul.mubr.f32.gmra.mrb[0].mxu0 %v8215
      %v8354 = vpop.f32.mrb[0].mxu0
      %v8355 = vadd.f32 0.0, %v8354
      %v8356 = vpop.f32.mrb[0].mxu0
      %v8357 = vadd.f32 0.0, %v8356
      %8358 = vdwg.mxu0
      %v8359 = vadd.f32 %v8192, %v8284
      %v8360 = vadd.f32 %v8193, %v8286
      %v8361 = vadd.f32 %v8194, %v8355
      %v8362 = vadd.f32 %v8195, %v8357
      %v8363 = vmul.f32 %v5388, %v3758
      %v8364 = vmul.f32 %v5387, %v3762
      %v8365 = vmul.f32 %v5386, %v3766
      %v8366 = vmul.f32 %v5389, %v3770
      %s8367 = scalar_lea.vmem %s6, 144
      %v8368 = vld [vmem:[%s8367] sm:$0xff]
      %v8370 = vsel %vm418, %v8368, 0
      %8372 = vmatprep.subr.mxu0 %v8364
      %8373 = vmatpush1.msra.mxu0 %v8363
      %8374 = vmatprep.subr.mxu0 0.0
      %8375 = vmatpush1.msra.mxu0 0.0
      %8376 = vmatprep.subr.mxu0 0.0
      %8377 = vmatpush1.msra.mxu0 0.0
      %8378 = vmatprep.subr.mxu0 0.0
      %8379 = vmatpush1.msra.mxu0 0.0
      %8380 = vmatprep.subr.mxu0 0.0
      %8381 = vmatpush1.msra.mxu0 0.0
      %8382 = vmatprep.subr.mxu0 0.0
      %8383 = vmatpush1.msra.mxu0 0.0
      %8384 = vmatprep.subr.mxu0 0.0
      %8385 = vmatpush1.msra.mxu0 0.0
      %8386 = vmatprep.subr.mxu0 0.0
      %8387 = vmatpush1.msra.mxu0 0.0
      %8388 = vmatprep.subr.mxu0 0.0
      %8389 = vmatpush1.msra.mxu0 0.0
      %8390 = vmatprep.subr.mxu0 0.0
      %8391 = vmatpush1.msra.mxu0 0.0
      %8392 = vmatprep.subr.mxu0 0.0
      %8393 = vmatpush1.msra.mxu0 0.0
      %8394 = vmatprep.subr.mxu0 0.0
      %8395 = vmatpush1.msra.mxu0 0.0
      %8396 = vmatprep.subr.mxu0 0.0
      %8397 = vmatpush1.msra.mxu0 0.0
      %8398 = vmatprep.subr.mxu0 0.0
      %8399 = vmatpush1.msra.mxu0 0.0
      %8400 = vmatprep.subr.mxu0 0.0
      %8401 = vmatpush1.msra.mxu0 0.0
      %8402 = vmatprep.subr.mxu0 0.0
      %8403 = vmatpush1.msra.mxu0 0.0
      %8404 = vmatprep.subr.mxu0 0.0
      %8405 = vmatpush1.msra.mxu0 0.0
      %8406 = vmatprep.subr.mxu0 0.0
      %8407 = vmatpush1.msra.mxu0 0.0
      %8408 = vmatprep.subr.mxu0 0.0
      %8409 = vmatpush1.msra.mxu0 0.0
      %8410 = vmatprep.subr.mxu0 0.0
      %8411 = vmatpush1.msra.mxu0 0.0
      %8412 = vmatprep.subr.mxu0 0.0
      %8413 = vmatpush1.msra.mxu0 0.0
      %8414 = vmatprep.subr.mxu0 0.0
      %8415 = vmatpush1.msra.mxu0 0.0
      %8416 = vmatprep.subr.mxu0 0.0
      %8417 = vmatpush1.msra.mxu0 0.0
      %8418 = vmatprep.subr.mxu0 0.0
      %8419 = vmatpush1.msra.mxu0 0.0
      %8420 = vmatprep.subr.mxu0 0.0
      %8421 = vmatpush1.msra.mxu0 0.0
      %8422 = vmatprep.subr.mxu0 0.0
      %8423 = vmatpush1.msra.mxu0 0.0
      %8424 = vmatprep.subr.mxu0 0.0
      %8425 = vmatpush1.msra.mxu0 0.0
      %8426 = vmatprep.subr.mxu0 0.0
      %8427 = vmatpush1.msra.mxu0 0.0
      %8428 = vmatprep.subr.mxu0 0.0
      %8429 = vmatpush1.msra.mxu0 0.0
      %8430 = vmatprep.subr.mxu0 0.0
      %8431 = vmatpush1.msra.mxu0 0.0
      %8432 = vmatprep.subr.mxu0 0.0
      %8433 = vmatpush1.msra.mxu0 0.0
      %8434 = vmatprep.subr.mxu0 0.0
      %8435 = vmatpush1.msra.mxu0 0.0
      %8436 = vmatprep.mubr.f32.mxu0 0.0
      %8437 = vmatmul.mubr.f32.gmra.mrb[0].mxu0 %v8370
      %v8438 = vpop.f32.mrb[0].mxu0
      %v8439 = vadd.f32 0.0, %v8438
      %v8440 = vpop.f32.mrb[0].mxu0
      %v8441 = vadd.f32 0.0, %v8440
      %8442 = vdwg.mxu0
      %8443 = vmatprep.subr.mxu0 %v8366
      %8444 = vmatpush1.msra.mxu0 %v8365
      %8445 = vmatprep.subr.mxu0 0.0
      %8446 = vmatpush1.msra.mxu0 0.0
      %8447 = vmatprep.subr.mxu0 0.0
      %8448 = vmatpush1.msra.mxu0 0.0
      %8449 = vmatprep.subr.mxu0 0.0
      %8450 = vmatpush1.msra.mxu0 0.0
      %8451 = vmatprep.subr.mxu0 0.0
      %8452 = vmatpush1.msra.mxu0 0.0
      %8453 = vmatprep.subr.mxu0 0.0
      %8454 = vmatpush1.msra.mxu0 0.0
      %8455 = vmatprep.subr.mxu0 0.0
      %8456 = vmatpush1.msra.mxu0 0.0
      %8457 = vmatprep.subr.mxu0 0.0
      %8458 = vmatpush1.msra.mxu0 0.0
      %8459 = vmatprep.subr.mxu0 0.0
      %8460 = vmatpush1.msra.mxu0 0.0
      %8461 = vmatprep.subr.mxu0 0.0
      %8462 = vmatpush1.msra.mxu0 0.0
      %8463 = vmatprep.subr.mxu0 0.0
      %8464 = vmatpush1.msra.mxu0 0.0
      %8465 = vmatprep.subr.mxu0 0.0
      %8466 = vmatpush1.msra.mxu0 0.0
      %8467 = vmatprep.subr.mxu0 0.0
      %8468 = vmatpush1.msra.mxu0 0.0
      %8469 = vmatprep.subr.mxu0 0.0
      %8470 = vmatpush1.msra.mxu0 0.0
      %8471 = vmatprep.subr.mxu0 0.0
      %8472 = vmatpush1.msra.mxu0 0.0
      %8473 = vmatprep.subr.mxu0 0.0
      %8474 = vmatpush1.msra.mxu0 0.0
      %8475 = vmatprep.subr.mxu0 0.0
      %8476 = vmatpush1.msra.mxu0 0.0
      %8477 = vmatprep.subr.mxu0 0.0
      %8478 = vmatpush1.msra.mxu0 0.0
      %8479 = vmatprep.subr.mxu0 0.0
      %8480 = vmatpush1.msra.mxu0 0.0
      %8481 = vmatprep.subr.mxu0 0.0
      %8482 = vmatpush1.msra.mxu0 0.0
      %8483 = vmatprep.subr.mxu0 0.0
      %8484 = vmatpush1.msra.mxu0 0.0
      %8485 = vmatprep.subr.mxu0 0.0
      %8486 = vmatpush1.msra.mxu0 0.0
      %8487 = vmatprep.subr.mxu0 0.0
      %8488 = vmatpush1.msra.mxu0 0.0
      %8489 = vmatprep.subr.mxu0 0.0
      %8490 = vmatpush1.msra.mxu0 0.0
      %8491 = vmatprep.subr.mxu0 0.0
      %8492 = vmatpush1.msra.mxu0 0.0
      %8493 = vmatprep.subr.mxu0 0.0
      %8494 = vmatpush1.msra.mxu0 0.0
      %8495 = vmatprep.subr.mxu0 0.0
      %8496 = vmatpush1.msra.mxu0 0.0
      %8497 = vmatprep.subr.mxu0 0.0
      %8498 = vmatpush1.msra.mxu0 0.0
      %8499 = vmatprep.subr.mxu0 0.0
      %8500 = vmatpush1.msra.mxu0 0.0
      %8501 = vmatprep.subr.mxu0 0.0
      %8502 = vmatpush1.msra.mxu0 0.0
      %8503 = vmatprep.subr.mxu0 0.0
      %8504 = vmatpush1.msra.mxu0 0.0
      %8505 = vmatprep.subr.mxu0 0.0
      %8506 = vmatpush1.msra.mxu0 0.0
      %8507 = vmatprep.mubr.f32.mxu0 0.0
      %8508 = vmatmul.mubr.f32.gmra.mrb[0].mxu0 %v8370
      %v8509 = vpop.f32.mrb[0].mxu0
      %v8510 = vadd.f32 0.0, %v8509
      %v8511 = vpop.f32.mrb[0].mxu0
      %v8512 = vadd.f32 0.0, %v8511
      %8513 = vdwg.mxu0
      %v8514 = vadd.f32 %v8359, %v8439
      %v8515 = vadd.f32 %v8360, %v8441
      %v8516 = vadd.f32 %v8361, %v8510
      %v8517 = vadd.f32 %v8362, %v8512
      %v8518 = vmul.f32 %v5405, %v3936
      %v8519 = vmul.f32 %v5404, %v3940
      %v8520 = vmul.f32 %v5403, %v3944
      %v8521 = vmul.f32 %v5406, %v3948
      %s8522 = scalar_lea.vmem %s6, 152
      %v8523 = vld [vmem:[%s8522] sm:$0xff]
      %v8525 = vsel %vm418, %v8523, 0
      %8527 = vmatprep.subr.mxu0 %v8519
      %8528 = vmatpush1.msra.mxu0 %v8518
      %8529 = vmatprep.subr.mxu0 0.0
      %8530 = vmatpush1.msra.mxu0 0.0
      %8531 = vmatprep.subr.mxu0 0.0
      %8532 = vmatpush1.msra.mxu0 0.0
      %8533 = vmatprep.subr.mxu0 0.0
      %8534 = vmatpush1.msra.mxu0 0.0
      %8535 = vmatprep.subr.mxu0 0.0
      %8536 = vmatpush1.msra.mxu0 0.0
      %8537 = vmatprep.subr.mxu0 0.0
      %8538 = vmatpush1.msra.mxu0 0.0
      %8539 = vmatprep.subr.mxu0 0.0
      %8540 = vmatpush1.msra.mxu0 0.0
      %8541 = vmatprep.subr.mxu0 0.0
      %8542 = vmatpush1.msra.mxu0 0.0
      %8543 = vmatprep.subr.mxu0 0.0
      %8544 = vmatpush1.msra.mxu0 0.0
      %8545 = vmatprep.subr.mxu0 0.0
      %8546 = vmatpush1.msra.mxu0 0.0
      %8547 = vmatprep.subr.mxu0 0.0
      %8548 = vmatpush1.msra.mxu0 0.0
      %8549 = vmatprep.subr.mxu0 0.0
      %8550 = vmatpush1.msra.mxu0 0.0
      %8551 = vmatprep.subr.mxu0 0.0
      %8552 = vmatpush1.msra.mxu0 0.0
      %8553 = vmatprep.subr.mxu0 0.0
      %8554 = vmatpush1.msra.mxu0 0.0
      %8555 = vmatprep.subr.mxu0 0.0
      %8556 = vmatpush1.msra.mxu0 0.0
      %8557 = vmatprep.subr.mxu0 0.0
      %8558 = vmatpush1.msra.mxu0 0.0
      %8559 = vmatprep.subr.mxu0 0.0
      %8560 = vmatpush1.msra.mxu0 0.0
      %8561 = vmatprep.subr.mxu0 0.0
      %8562 = vmatpush1.msra.mxu0 0.0
      %8563 = vmatprep.subr.mxu0 0.0
      %8564 = vmatpush1.msra.mxu0 0.0
      %8565 = vmatprep.subr.mxu0 0.0
      %8566 = vmatpush1.msra.mxu0 0.0
      %8567 = vmatprep.subr.mxu0 0.0
      %8568 = vmatpush1.msra.mxu0 0.0
      %8569 = vmatprep.subr.mxu0 0.0
      %8570 = vmatpush1.msra.mxu0 0.0
      %8571 = vmatprep.subr.mxu0 0.0
      %8572 = vmatpush1.msra.mxu0 0.0
      %8573 = vmatprep.subr.mxu0 0.0
      %8574 = vmatpush1.msra.mxu0 0.0
      %8575 = vmatprep.subr.mxu0 0.0
      %8576 = vmatpush1.msra.mxu0 0.0
      %8577 = vmatprep.subr.mxu0 0.0
      %8578 = vmatpush1.msra.mxu0 0.0
      %8579 = vmatprep.subr.mxu0 0.0
      %8580 = vmatpush1.msra.mxu0 0.0
      %8581 = vmatprep.subr.mxu0 0.0
      %8582 = vmatpush1.msra.mxu0 0.0
      %8583 = vmatprep.subr.mxu0 0.0
      %8584 = vmatpush1.msra.mxu0 0.0
      %8585 = vmatprep.subr.mxu0 0.0
      %8586 = vmatpush1.msra.mxu0 0.0
      %8587 = vmatprep.subr.mxu0 0.0
      %8588 = vmatpush1.msra.mxu0 0.0
      %8589 = vmatprep.subr.mxu0 0.0
      %8590 = vmatpush1.msra.mxu0 0.0
      %8591 = vmatprep.mubr.f32.mxu0 0.0
      %8592 = vmatmul.mubr.f32.gmra.mrb[0].mxu0 %v8525
      %v8593 = vpop.f32.mrb[0].mxu0
      %v8594 = vadd.f32 0.0, %v8593
      %v8595 = vpop.f32.mrb[0].mxu0
      %v8596 = vadd.f32 0.0, %v8595
      %8597 = vdwg.mxu0
      %8598 = vmatprep.subr.mxu0 %v8521
      %8599 = vmatpush1.msra.mxu0 %v8520
      %8600 = vmatprep.subr.mxu0 0.0
      %8601 = vmatpush1.msra.mxu0 0.0
      %8602 = vmatprep.subr.mxu0 0.0
      %8603 = vmatpush1.msra.mxu0 0.0
      %8604 = vmatprep.subr.mxu0 0.0
      %8605 = vmatpush1.msra.mxu0 0.0
      %8606 = vmatprep.subr.mxu0 0.0
      %8607 = vmatpush1.msra.mxu0 0.0
      %8608 = vmatprep.subr.mxu0 0.0
      %8609 = vmatpush1.msra.mxu0 0.0
      %8610 = vmatprep.subr.mxu0 0.0
      %8611 = vmatpush1.msra.mxu0 0.0
      %8612 = vmatprep.subr.mxu0 0.0
      %8613 = vmatpush1.msra.mxu0 0.0
      %8614 = vmatprep.subr.mxu0 0.0
      %8615 = vmatpush1.msra.mxu0 0.0
      %8616 = vmatprep.subr.mxu0 0.0
      %8617 = vmatpush1.msra.mxu0 0.0
      %8618 = vmatprep.subr.mxu0 0.0
      %8619 = vmatpush1.msra.mxu0 0.0
      %8620 = vmatprep.subr.mxu0 0.0
      %8621 = vmatpush1.msra.mxu0 0.0
      %8622 = vmatprep.subr.mxu0 0.0
      %8623 = vmatpush1.msra.mxu0 0.0
      %8624 = vmatprep.subr.mxu0 0.0
      %8625 = vmatpush1.msra.mxu0 0.0
      %8626 = vmatprep.subr.mxu0 0.0
      %8627 = vmatpush1.msra.mxu0 0.0
      %8628 = vmatprep.subr.mxu0 0.0
      %8629 = vmatpush1.msra.mxu0 0.0
      %8630 = vmatprep.subr.mxu0 0.0
      %8631 = vmatpush1.msra.mxu0 0.0
      %8632 = vmatprep.subr.mxu0 0.0
      %8633 = vmatpush1.msra.mxu0 0.0
      %8634 = vmatprep.subr.mxu0 0.0
      %8635 = vmatpush1.msra.mxu0 0.0
      %8636 = vmatprep.subr.mxu0 0.0
      %8637 = vmatpush1.msra.mxu0 0.0
      %8638 = vmatprep.subr.mxu0 0.0
      %8639 = vmatpush1.msra.mxu0 0.0
      %8640 = vmatprep.subr.mxu0 0.0
      %8641 = vmatpush1.msra.mxu0 0.0
      %8642 = vmatprep.subr.mxu0 0.0
      %8643 = vmatpush1.msra.mxu0 0.0
      %8644 = vmatprep.subr.mxu0 0.0
      %8645 = vmatpush1.msra.mxu0 0.0
      %8646 = vmatprep.subr.mxu0 0.0
      %8647 = vmatpush1.msra.mxu0 0.0
      %8648 = vmatprep.subr.mxu0 0.0
      %8649 = vmatpush1.msra.mxu0 0.0
      %8650 = vmatprep.subr.mxu0 0.0
      %8651 = vmatpush1.msra.mxu0 0.0
      %8652 = vmatprep.subr.mxu0 0.0
      %8653 = vmatpush1.msra.mxu0 0.0
      %8654 = vmatprep.subr.mxu0 0.0
      %8655 = vmatpush1.msra.mxu0 0.0
      %8656 = vmatprep.subr.mxu0 0.0
      %8657 = vmatpush1.msra.mxu0 0.0
      %8658 = vmatprep.subr.mxu0 0.0
      %8659 = vmatpush1.msra.mxu0 0.0
      %8660 = vmatprep.subr.mxu0 0.0
      %8661 = vmatpush1.msra.mxu0 0.0
      %8662 = vmatprep.mubr.f32.mxu0 0.0
      %8663 = vmatmul.mubr.f32.gmra.mrb[0].mxu0 %v8525
      %v8664 = vpop.f32.mrb[0].mxu0
      %v8665 = vadd.f32 0.0, %v8664
      %v8666 = vpop.f32.mrb[0].mxu0
      %v8667 = vadd.f32 0.0, %v8666
      %8668 = vdwg.mxu0
      %v8669 = vadd.f32 %v8514, %v8594
      %v8670 = vadd.f32 %v8515, %v8596
      %v8671 = vadd.f32 %v8516, %v8665
      %v8672 = vadd.f32 %v8517, %v8667
      %v8673 = vmul.f32 %v5713, %v4114
      %v8674 = vmul.f32 %v5712, %v4118
      %v8675 = vmul.f32 %v5711, %v4122
      %v8676 = vmul.f32 %v5714, %v4126
      %s8677 = scalar_lea.vmem %s6, 160
      %v8678 = vld [vmem:[%s8677] sm:$0xff]
      %v8680 = vsel %vm418, %v8678, 0
      %8682 = vmatprep.subr.mxu0 %v8674
      %8683 = vmatpush1.msra.mxu0 %v8673
      %8684 = vmatprep.subr.mxu0 0.0
      %8685 = vmatpush1.msra.mxu0 0.0
      %8686 = vmatprep.subr.mxu0 0.0
      %8687 = vmatpush1.msra.mxu0 0.0
      %8688 = vmatprep.subr.mxu0 0.0
      %8689 = vmatpush1.msra.mxu0 0.0
      %8690 = vmatprep.subr.mxu0 0.0
      %8691 = vmatpush1.msra.mxu0 0.0
      %8692 = vmatprep.subr.mxu0 0.0
      %8693 = vmatpush1.msra.mxu0 0.0
      %8694 = vmatprep.subr.mxu0 0.0
      %8695 = vmatpush1.msra.mxu0 0.0
      %8696 = vmatprep.subr.mxu0 0.0
      %8697 = vmatpush1.msra.mxu0 0.0
      %8698 = vmatprep.subr.mxu0 0.0
      %8699 = vmatpush1.msra.mxu0 0.0
      %8700 = vmatprep.subr.mxu0 0.0
      %8701 = vmatpush1.msra.mxu0 0.0
      %8702 = vmatprep.subr.mxu0 0.0
      %8703 = vmatpush1.msra.mxu0 0.0
      %8704 = vmatprep.subr.mxu0 0.0
      %8705 = vmatpush1.msra.mxu0 0.0
      %8706 = vmatprep.subr.mxu0 0.0
      %8707 = vmatpush1.msra.mxu0 0.0
      %8708 = vmatprep.subr.mxu0 0.0
      %8709 = vmatpush1.msra.mxu0 0.0
      %8710 = vmatprep.subr.mxu0 0.0
      %8711 = vmatpush1.msra.mxu0 0.0
      %8712 = vmatprep.subr.mxu0 0.0
      %8713 = vmatpush1.msra.mxu0 0.0
      %8714 = vmatprep.subr.mxu0 0.0
      %8715 = vmatpush1.msra.mxu0 0.0
      %8716 = vmatprep.subr.mxu0 0.0
      %8717 = vmatpush1.msra.mxu0 0.0
      %8718 = vmatprep.subr.mxu0 0.0
      %8719 = vmatpush1.msra.mxu0 0.0
      %8720 = vmatprep.subr.mxu0 0.0
      %8721 = vmatpush1.msra.mxu0 0.0
      %8722 = vmatprep.subr.mxu0 0.0
      %8723 = vmatpush1.msra.mxu0 0.0
      %8724 = vmatprep.subr.mxu0 0.0
      %8725 = vmatpush1.msra.mxu0 0.0
      %8726 = vmatprep.subr.mxu0 0.0
      %8727 = vmatpush1.msra.mxu0 0.0
      %8728 = vmatprep.subr.mxu0 0.0
      %8729 = vmatpush1.msra.mxu0 0.0
      %8730 = vmatprep.subr.mxu0 0.0
      %8731 = vmatpush1.msra.mxu0 0.0
      %8732 = vmatprep.subr.mxu0 0.0
      %8733 = vmatpush1.msra.mxu0 0.0
      %8734 = vmatprep.subr.mxu0 0.0
      %8735 = vmatpush1.msra.mxu0 0.0
      %8736 = vmatprep.subr.mxu0 0.0
      %8737 = vmatpush1.msra.mxu0 0.0
      %8738 = vmatprep.subr.mxu0 0.0
      %8739 = vmatpush1.msra.mxu0 0.0
      %8740 = vmatprep.subr.mxu0 0.0
      %8741 = vmatpush1.msra.mxu0 0.0
      %8742 = vmatprep.subr.mxu0 0.0
      %8743 = vmatpush1.msra.mxu0 0.0
      %8744 = vmatprep.subr.mxu0 0.0
      %8745 = vmatpush1.msra.mxu0 0.0
      %8746 = vmatprep.mubr.f32.mxu0 0.0
      %8747 = vmatmul.mubr.f32.gmra.mrb[0].mxu0 %v8680
      %v8748 = vpop.f32.mrb[0].mxu0
      %v8749 = vadd.f32 0.0, %v8748
      %v8750 = vpop.f32.mrb[0].mxu0
      %v8751 = vadd.f32 0.0, %v8750
      %8752 = vdwg.mxu0
      %8753 = vmatprep.subr.mxu0 %v8676
      %8754 = vmatpush1.msra.mxu0 %v8675
      %8755 = vmatprep.subr.mxu0 0.0
      %8756 = vmatpush1.msra.mxu0 0.0
      %8757 = vmatprep.subr.mxu0 0.0
      %8758 = vmatpush1.msra.mxu0 0.0
      %8759 = vmatprep.subr.mxu0 0.0
      %8760 = vmatpush1.msra.mxu0 0.0
      %8761 = vmatprep.subr.mxu0 0.0
      %8762 = vmatpush1.msra.mxu0 0.0
      %8763 = vmatprep.subr.mxu0 0.0
      %8764 = vmatpush1.msra.mxu0 0.0
      %8765 = vmatprep.subr.mxu0 0.0
      %8766 = vmatpush1.msra.mxu0 0.0
      %8767 = vmatprep.subr.mxu0 0.0
      %8768 = vmatpush1.msra.mxu0 0.0
      %8769 = vmatprep.subr.mxu0 0.0
      %8770 = vmatpush1.msra.mxu0 0.0
      %8771 = vmatprep.subr.mxu0 0.0
      %8772 = vmatpush1.msra.mxu0 0.0
      %8773 = vmatprep.subr.mxu0 0.0
      %8774 = vmatpush1.msra.mxu0 0.0
      %8775 = vmatprep.subr.mxu0 0.0
      %8776 = vmatpush1.msra.mxu0 0.0
      %8777 = vmatprep.subr.mxu0 0.0
      %8778 = vmatpush1.msra.mxu0 0.0
      %8779 = vmatprep.subr.mxu0 0.0
      %8780 = vmatpush1.msra.mxu0 0.0
      %8781 = vmatprep.subr.mxu0 0.0
      %8782 = vmatpush1.msra.mxu0 0.0
      %8783 = vmatprep.subr.mxu0 0.0
      %8784 = vmatpush1.msra.mxu0 0.0
      %8785 = vmatprep.subr.mxu0 0.0
      %8786 = vmatpush1.msra.mxu0 0.0
      %8787 = vmatprep.subr.mxu0 0.0
      %8788 = vmatpush1.msra.mxu0 0.0
      %8789 = vmatprep.subr.mxu0 0.0
      %8790 = vmatpush1.msra.mxu0 0.0
      %8791 = vmatprep.subr.mxu0 0.0
      %8792 = vmatpush1.msra.mxu0 0.0
      %8793 = vmatprep.subr.mxu0 0.0
      %8794 = vmatpush1.msra.mxu0 0.0
      %8795 = vmatprep.subr.mxu0 0.0
      %8796 = vmatpush1.msra.mxu0 0.0
      %8797 = vmatprep.subr.mxu0 0.0
      %8798 = vmatpush1.msra.mxu0 0.0
      %8799 = vmatprep.subr.mxu0 0.0
      %8800 = vmatpush1.msra.mxu0 0.0
      %8801 = vmatprep.subr.mxu0 0.0
      %8802 = vmatpush1.msra.mxu0 0.0
      %8803 = vmatprep.subr.mxu0 0.0
      %8804 = vmatpush1.msra.mxu0 0.0
      %8805 = vmatprep.subr.mxu0 0.0
      %8806 = vmatpush1.msra.mxu0 0.0
      %8807 = vmatprep.subr.mxu0 0.0
      %8808 = vmatpush1.msra.mxu0 0.0
      %8809 = vmatprep.subr.mxu0 0.0
      %8810 = vmatpush1.msra.mxu0 0.0
      %8811 = vmatprep.subr.mxu0 0.0
      %8812 = vmatpush1.msra.mxu0 0.0
      %8813 = vmatprep.subr.mxu0 0.0
      %8814 = vmatpush1.msra.mxu0 0.0
      %8815 = vmatprep.subr.mxu0 0.0
      %8816 = vmatpush1.msra.mxu0 0.0
      %8817 = vmatprep.mubr.f32.mxu0 0.0
      %8818 = vmatmul.mubr.f32.gmra.mrb[0].mxu0 %v8680
      %v8819 = vpop.f32.mrb[0].mxu0
      %v8820 = vadd.f32 0.0, %v8819
      %v8821 = vpop.f32.mrb[0].mxu0
      %v8822 = vadd.f32 0.0, %v8821
      %8823 = vdwg.mxu0
      %v8824 = vadd.f32 %v8669, %v8749
      %v8825 = vadd.f32 %v8670, %v8751
      %v8826 = vadd.f32 %v8671, %v8820
      %v8827 = vadd.f32 %v8672, %v8822
      %v8828 = vmul.f32 %v5880, %v4292
      %v8829 = vmul.f32 %v5879, %v4296
      %v8830 = vmul.f32 %v5878, %v4300
      %v8831 = vmul.f32 %v5881, %v4304
      %s8832 = scalar_lea.vmem %s6, 168
      %v8833 = vld [vmem:[%s8832] sm:$0xff]
      %v8835 = vsel %vm418, %v8833, 0
      %8837 = vmatprep.subr.mxu0 %v8829
      %8838 = vmatpush1.msra.mxu0 %v8828
      %8839 = vmatprep.subr.mxu0 0.0
      %8840 = vmatpush1.msra.mxu0 0.0
      %8841 = vmatprep.subr.mxu0 0.0
      %8842 = vmatpush1.msra.mxu0 0.0
      %8843 = vmatprep.subr.mxu0 0.0
      %8844 = vmatpush1.msra.mxu0 0.0
      %8845 = vmatprep.subr.mxu0 0.0
      %8846 = vmatpush1.msra.mxu0 0.0
      %8847 = vmatprep.subr.mxu0 0.0
      %8848 = vmatpush1.msra.mxu0 0.0
      %8849 = vmatprep.subr.mxu0 0.0
      %8850 = vmatpush1.msra.mxu0 0.0
      %8851 = vmatprep.subr.mxu0 0.0
      %8852 = vmatpush1.msra.mxu0 0.0
      %8853 = vmatprep.subr.mxu0 0.0
      %8854 = vmatpush1.msra.mxu0 0.0
      %8855 = vmatprep.subr.mxu0 0.0
      %8856 = vmatpush1.msra.mxu0 0.0
      %8857 = vmatprep.subr.mxu0 0.0
      %8858 = vmatpush1.msra.mxu0 0.0
      %8859 = vmatprep.subr.mxu0 0.0
      %8860 = vmatpush1.msra.mxu0 0.0
      %8861 = vmatprep.subr.mxu0 0.0
      %8862 = vmatpush1.msra.mxu0 0.0
      %8863 = vmatprep.subr.mxu0 0.0
      %8864 = vmatpush1.msra.mxu0 0.0
      %8865 = vmatprep.subr.mxu0 0.0
      %8866 = vmatpush1.msra.mxu0 0.0
      %8867 = vmatprep.subr.mxu0 0.0
      %8868 = vmatpush1.msra.mxu0 0.0
      %8869 = vmatprep.subr.mxu0 0.0
      %8870 = vmatpush1.msra.mxu0 0.0
      %8871 = vmatprep.subr.mxu0 0.0
      %8872 = vmatpush1.msra.mxu0 0.0
      %8873 = vmatprep.subr.mxu0 0.0
      %8874 = vmatpush1.msra.mxu0 0.0
      %8875 = vmatprep.subr.mxu0 0.0
      %8876 = vmatpush1.msra.mxu0 0.0
      %8877 = vmatprep.subr.mxu0 0.0
      %8878 = vmatpush1.msra.mxu0 0.0
      %8879 = vmatprep.subr.mxu0 0.0
      %8880 = vmatpush1.msra.mxu0 0.0
      %8881 = vmatprep.subr.mxu0 0.0
      %8882 = vmatpush1.msra.mxu0 0.0
      %8883 = vmatprep.subr.mxu0 0.0
      %8884 = vmatpush1.msra.mxu0 0.0
      %8885 = vmatprep.subr.mxu0 0.0
      %8886 = vmatpush1.msra.mxu0 0.0
      %8887 = vmatprep.subr.mxu0 0.0
      %8888 = vmatpush1.msra.mxu0 0.0
      %8889 = vmatprep.subr.mxu0 0.0
      %8890 = vmatpush1.msra.mxu0 0.0
      %8891 = vmatprep.subr.mxu0 0.0
      %8892 = vmatpush1.msra.mxu0 0.0
      %8893 = vmatprep.subr.mxu0 0.0
      %8894 = vmatpush1.msra.mxu0 0.0
      %8895 = vmatprep.subr.mxu0 0.0
      %8896 = vmatpush1.msra.mxu0 0.0
      %8897 = vmatprep.subr.mxu0 0.0
      %8898 = vmatpush1.msra.mxu0 0.0
      %8899 = vmatprep.subr.mxu0 0.0
      %8900 = vmatpush1.msra.mxu0 0.0
      %8901 = vmatprep.mubr.f32.mxu0 0.0
      %8902 = vmatmul.mubr.f32.gmra.mrb[0].mxu0 %v8835
      %v8903 = vpop.f32.mrb[0].mxu0
      %v8904 = vadd.f32 0.0, %v8903
      %v8905 = vpop.f32.mrb[0].mxu0
      %v8906 = vadd.f32 0.0, %v8905
      %8907 = vdwg.mxu0
      %8908 = vmatprep.subr.mxu0 %v8831
      %8909 = vmatpush1.msra.mxu0 %v8830
      %8910 = vmatprep.subr.mxu0 0.0
      %8911 = vmatpush1.msra.mxu0 0.0
      %8912 = vmatprep.subr.mxu0 0.0
      %8913 = vmatpush1.msra.mxu0 0.0
      %8914 = vmatprep.subr.mxu0 0.0
      %8915 = vmatpush1.msra.mxu0 0.0
      %8916 = vmatprep.subr.mxu0 0.0
      %8917 = vmatpush1.msra.mxu0 0.0
      %8918 = vmatprep.subr.mxu0 0.0
      %8919 = vmatpush1.msra.mxu0 0.0
      %8920 = vmatprep.subr.mxu0 0.0
      %8921 = vmatpush1.msra.mxu0 0.0
      %8922 = vmatprep.subr.mxu0 0.0
      %8923 = vmatpush1.msra.mxu0 0.0
      %8924 = vmatprep.subr.mxu0 0.0
      %8925 = vmatpush1.msra.mxu0 0.0
      %8926 = vmatprep.subr.mxu0 0.0
      %8927 = vmatpush1.msra.mxu0 0.0
      %8928 = vmatprep.subr.mxu0 0.0
      %8929 = vmatpush1.msra.mxu0 0.0
      %8930 = vmatprep.subr.mxu0 0.0
      %8931 = vmatpush1.msra.mxu0 0.0
      %8932 = vmatprep.subr.mxu0 0.0
      %8933 = vmatpush1.msra.mxu0 0.0
      %8934 = vmatprep.subr.mxu0 0.0
      %8935 = vmatpush1.msra.mxu0 0.0
      %8936 = vmatprep.subr.mxu0 0.0
      %8937 = vmatpush1.msra.mxu0 0.0
      %8938 = vmatprep.subr.mxu0 0.0
      %8939 = vmatpush1.msra.mxu0 0.0
      %8940 = vmatprep.subr.mxu0 0.0
      %8941 = vmatpush1.msra.mxu0 0.0
      %8942 = vmatprep.subr.mxu0 0.0
      %8943 = vmatpush1.msra.mxu0 0.0
      %8944 = vmatprep.subr.mxu0 0.0
      %8945 = vmatpush1.msra.mxu0 0.0
      %8946 = vmatprep.subr.mxu0 0.0
      %8947 = vmatpush1.msra.mxu0 0.0
      %8948 = vmatprep.subr.mxu0 0.0
      %8949 = vmatpush1.msra.mxu0 0.0
      %8950 = vmatprep.subr.mxu0 0.0
      %8951 = vmatpush1.msra.mxu0 0.0
      %8952 = vmatprep.subr.mxu0 0.0
      %8953 = vmatpush1.msra.mxu0 0.0
      %8954 = vmatprep.subr.mxu0 0.0
      %8955 = vmatpush1.msra.mxu0 0.0
      %8956 = vmatprep.subr.mxu0 0.0
      %8957 = vmatpush1.msra.mxu0 0.0
      %8958 = vmatprep.subr.mxu0 0.0
      %8959 = vmatpush1.msra.mxu0 0.0
      %8960 = vmatprep.subr.mxu0 0.0
      %8961 = vmatpush1.msra.mxu0 0.0
      %8962 = vmatprep.subr.mxu0 0.0
      %8963 = vmatpush1.msra.mxu0 0.0
      %8964 = vmatprep.subr.mxu0 0.0
      %8965 = vmatpush1.msra.mxu0 0.0
      %8966 = vmatprep.subr.mxu0 0.0
      %8967 = vmatpush1.msra.mxu0 0.0
      %8968 = vmatprep.subr.mxu0 0.0
      %8969 = vmatpush1.msra.mxu0 0.0
      %8970 = vmatprep.subr.mxu0 0.0
      %8971 = vmatpush1.msra.mxu0 0.0
      %8972 = vmatprep.mubr.f32.mxu0 0.0
      %8973 = vmatmul.mubr.f32.gmra.mrb[0].mxu0 %v8835
      %v8974 = vpop.f32.mrb[0].mxu0
      %v8975 = vadd.f32 0.0, %v8974
      %v8976 = vpop.f32.mrb[0].mxu0
      %v8977 = vadd.f32 0.0, %v8976
      %8978 = vdwg.mxu0
      %v8979 = vadd.f32 %v8824, %v8904
      %v8980 = vadd.f32 %v8825, %v8906
      %v8981 = vadd.f32 %v8826, %v8975
      %v8982 = vadd.f32 %v8827, %v8977
      %v8983 = vmul.f32 %v6047, %v4470
      %v8984 = vmul.f32 %v6046, %v4474
      %v8985 = vmul.f32 %v6045, %v4478
      %v8986 = vmul.f32 %v6048, %v4482
      %s8987 = scalar_lea.vmem %s6, 176
      %v8988 = vld [vmem:[%s8987] sm:$0xff]
      %v8990 = vsel %vm418, %v8988, 0
      %8992 = vmatprep.subr.mxu0 %v8984
      %8993 = vmatpush1.msra.mxu0 %v8983
      %8994 = vmatprep.subr.mxu0 0.0
      %8995 = vmatpush1.msra.mxu0 0.0
      %8996 = vmatprep.subr.mxu0 0.0
      %8997 = vmatpush1.msra.mxu0 0.0
      %8998 = vmatprep.subr.mxu0 0.0
      %8999 = vmatpush1.msra.mxu0 0.0
      %9000 = vmatprep.subr.mxu0 0.0
      %9001 = vmatpush1.msra.mxu0 0.0
      %9002 = vmatprep.subr.mxu0 0.0
      %9003 = vmatpush1.msra.mxu0 0.0
      %9004 = vmatprep.subr.mxu0 0.0
      %9005 = vmatpush1.msra.mxu0 0.0
      %9006 = vmatprep.subr.mxu0 0.0
      %9007 = vmatpush1.msra.mxu0 0.0
      %9008 = vmatprep.subr.mxu0 0.0
      %9009 = vmatpush1.msra.mxu0 0.0
      %9010 = vmatprep.subr.mxu0 0.0
      %9011 = vmatpush1.msra.mxu0 0.0
      %9012 = vmatprep.subr.mxu0 0.0
      %9013 = vmatpush1.msra.mxu0 0.0
      %9014 = vmatprep.subr.mxu0 0.0
      %9015 = vmatpush1.msra.mxu0 0.0
      %9016 = vmatprep.subr.mxu0 0.0
      %9017 = vmatpush1.msra.mxu0 0.0
      %9018 = vmatprep.subr.mxu0 0.0
      %9019 = vmatpush1.msra.mxu0 0.0
      %9020 = vmatprep.subr.mxu0 0.0
      %9021 = vmatpush1.msra.mxu0 0.0
      %9022 = vmatprep.subr.mxu0 0.0
      %9023 = vmatpush1.msra.mxu0 0.0
      %9024 = vmatprep.subr.mxu0 0.0
      %9025 = vmatpush1.msra.mxu0 0.0
      %9026 = vmatprep.subr.mxu0 0.0
      %9027 = vmatpush1.msra.mxu0 0.0
      %9028 = vmatprep.subr.mxu0 0.0
      %9029 = vmatpush1.msra.mxu0 0.0
      %9030 = vmatprep.subr.mxu0 0.0
      %9031 = vmatpush1.msra.mxu0 0.0
      %9032 = vmatprep.subr.mxu0 0.0
      %9033 = vmatpush1.msra.mxu0 0.0
      %9034 = vmatprep.subr.mxu0 0.0
      %9035 = vmatpush1.msra.mxu0 0.0
      %9036 = vmatprep.subr.mxu0 0.0
      %9037 = vmatpush1.msra.mxu0 0.0
      %9038 = vmatprep.subr.mxu0 0.0
      %9039 = vmatpush1.msra.mxu0 0.0
      %9040 = vmatprep.subr.mxu0 0.0
      %9041 = vmatpush1.msra.mxu0 0.0
      %9042 = vmatprep.subr.mxu0 0.0
      %9043 = vmatpush1.msra.mxu0 0.0
      %9044 = vmatprep.subr.mxu0 0.0
      %9045 = vmatpush1.msra.mxu0 0.0
      %9046 = vmatprep.subr.mxu0 0.0
      %9047 = vmatpush1.msra.mxu0 0.0
      %9048 = vmatprep.subr.mxu0 0.0
      %9049 = vmatpush1.msra.mxu0 0.0
      %9050 = vmatprep.subr.mxu0 0.0
      %9051 = vmatpush1.msra.mxu0 0.0
      %9052 = vmatprep.subr.mxu0 0.0
      %9053 = vmatpush1.msra.mxu0 0.0
      %9054 = vmatprep.subr.mxu0 0.0
      %9055 = vmatpush1.msra.mxu0 0.0
      %9056 = vmatprep.mubr.f32.mxu0 0.0
      %9057 = vmatmul.mubr.f32.gmra.mrb[0].mxu0 %v8990
      %v9058 = vpop.f32.mrb[0].mxu0
      %v9059 = vadd.f32 0.0, %v9058
      %v9060 = vpop.f32.mrb[0].mxu0
      %v9061 = vadd.f32 0.0, %v9060
      %9062 = vdwg.mxu0
      %9063 = vmatprep.subr.mxu0 %v8986
      %9064 = vmatpush1.msra.mxu0 %v8985
      %9065 = vmatprep.subr.mxu0 0.0
      %9066 = vmatpush1.msra.mxu0 0.0
      %9067 = vmatprep.subr.mxu0 0.0
      %9068 = vmatpush1.msra.mxu0 0.0
      %9069 = vmatprep.subr.mxu0 0.0
      %9070 = vmatpush1.msra.mxu0 0.0
      %9071 = vmatprep.subr.mxu0 0.0
      %9072 = vmatpush1.msra.mxu0 0.0
      %9073 = vmatprep.subr.mxu0 0.0
      %9074 = vmatpush1.msra.mxu0 0.0
      %9075 = vmatprep.subr.mxu0 0.0
      %9076 = vmatpush1.msra.mxu0 0.0
      %9077 = vmatprep.subr.mxu0 0.0
      %9078 = vmatpush1.msra.mxu0 0.0
      %9079 = vmatprep.subr.mxu0 0.0
      %9080 = vmatpush1.msra.mxu0 0.0
      %9081 = vmatprep.subr.mxu0 0.0
      %9082 = vmatpush1.msra.mxu0 0.0
      %9083 = vmatprep.subr.mxu0 0.0
      %9084 = vmatpush1.msra.mxu0 0.0
      %9085 = vmatprep.subr.mxu0 0.0
      %9086 = vmatpush1.msra.mxu0 0.0
      %9087 = vmatprep.subr.mxu0 0.0
      %9088 = vmatpush1.msra.mxu0 0.0
      %9089 = vmatprep.subr.mxu0 0.0
      %9090 = vmatpush1.msra.mxu0 0.0
      %9091 = vmatprep.subr.mxu0 0.0
      %9092 = vmatpush1.msra.mxu0 0.0
      %9093 = vmatprep.subr.mxu0 0.0
      %9094 = vmatpush1.msra.mxu0 0.0
      %9095 = vmatprep.subr.mxu0 0.0
      %9096 = vmatpush1.msra.mxu0 0.0
      %9097 = vmatprep.subr.mxu0 0.0
      %9098 = vmatpush1.msra.mxu0 0.0
      %9099 = vmatprep.subr.mxu0 0.0
      %9100 = vmatpush1.msra.mxu0 0.0
      %9101 = vmatprep.subr.mxu0 0.0
      %9102 = vmatpush1.msra.mxu0 0.0
      %9103 = vmatprep.subr.mxu0 0.0
      %9104 = vmatpush1.msra.mxu0 0.0
      %9105 = vmatprep.subr.mxu0 0.0
      %9106 = vmatpush1.msra.mxu0 0.0
      %9107 = vmatprep.subr.mxu0 0.0
      %9108 = vmatpush1.msra.mxu0 0.0
      %9109 = vmatprep.subr.mxu0 0.0
      %9110 = vmatpush1.msra.mxu0 0.0
      %9111 = vmatprep.subr.mxu0 0.0
      %9112 = vmatpush1.msra.mxu0 0.0
      %9113 = vmatprep.subr.mxu0 0.0
      %9114 = vmatpush1.msra.mxu0 0.0
      %9115 = vmatprep.subr.mxu0 0.0
      %9116 = vmatpush1.msra.mxu0 0.0
      %9117 = vmatprep.subr.mxu0 0.0
      %9118 = vmatpush1.msra.mxu0 0.0
      %9119 = vmatprep.subr.mxu0 0.0
      %9120 = vmatpush1.msra.mxu0 0.0
      %9121 = vmatprep.subr.mxu0 0.0
      %9122 = vmatpush1.msra.mxu0 0.0
      %9123 = vmatprep.subr.mxu0 0.0
      %9124 = vmatpush1.msra.mxu0 0.0
      %9125 = vmatprep.subr.mxu0 0.0
      %9126 = vmatpush1.msra.mxu0 0.0
      %9127 = vmatprep.mubr.f32.mxu0 0.0
      %9128 = vmatmul.mubr.f32.gmra.mrb[0].mxu0 %v8990
      %v9129 = vpop.f32.mrb[0].mxu0
      %v9130 = vadd.f32 0.0, %v9129
      %v9131 = vpop.f32.mrb[0].mxu0
      %v9132 = vadd.f32 0.0, %v9131
      %9133 = vdwg.mxu0
      %v9134 = vadd.f32 %v8979, %v9059
      %v9135 = vadd.f32 %v8980, %v9061
      %v9136 = vadd.f32 %v8981, %v9130
      %v9137 = vadd.f32 %v8982, %v9132
      %v9138 = vmul.f32 %v6214, %v4648
      %v9139 = vmul.f32 %v6213, %v4652
      %v9140 = vmul.f32 %v6212, %v4656
      %v9141 = vmul.f32 %v6215, %v4660
      %s9142 = scalar_lea.vmem %s6, 184
      %v9143 = vld [vmem:[%s9142] sm:$0xff]
      %v9145 = vsel %vm418, %v9143, 0
      %9147 = vmatprep.subr.mxu0 %v9139
      %9148 = vmatpush1.msra.mxu0 %v9138
      %9149 = vmatprep.subr.mxu0 0.0
      %9150 = vmatpush1.msra.mxu0 0.0
      %9151 = vmatprep.subr.mxu0 0.0
      %9152 = vmatpush1.msra.mxu0 0.0
      %9153 = vmatprep.subr.mxu0 0.0
      %9154 = vmatpush1.msra.mxu0 0.0
      %9155 = vmatprep.subr.mxu0 0.0
      %9156 = vmatpush1.msra.mxu0 0.0
      %9157 = vmatprep.subr.mxu0 0.0
      %9158 = vmatpush1.msra.mxu0 0.0
      %9159 = vmatprep.subr.mxu0 0.0
      %9160 = vmatpush1.msra.mxu0 0.0
      %9161 = vmatprep.subr.mxu0 0.0
      %9162 = vmatpush1.msra.mxu0 0.0
      %9163 = vmatprep.subr.mxu0 0.0
      %9164 = vmatpush1.msra.mxu0 0.0
      %9165 = vmatprep.subr.mxu0 0.0
      %9166 = vmatpush1.msra.mxu0 0.0
      %9167 = vmatprep.subr.mxu0 0.0
      %9168 = vmatpush1.msra.mxu0 0.0
      %9169 = vmatprep.subr.mxu0 0.0
      %9170 = vmatpush1.msra.mxu0 0.0
      %9171 = vmatprep.subr.mxu0 0.0
      %9172 = vmatpush1.msra.mxu0 0.0
      %9173 = vmatprep.subr.mxu0 0.0
      %9174 = vmatpush1.msra.mxu0 0.0
      %9175 = vmatprep.subr.mxu0 0.0
      %9176 = vmatpush1.msra.mxu0 0.0
      %9177 = vmatprep.subr.mxu0 0.0
      %9178 = vmatpush1.msra.mxu0 0.0
      %9179 = vmatprep.subr.mxu0 0.0
      %9180 = vmatpush1.msra.mxu0 0.0
      %9181 = vmatprep.subr.mxu0 0.0
      %9182 = vmatpush1.msra.mxu0 0.0
      %9183 = vmatprep.subr.mxu0 0.0
      %9184 = vmatpush1.msra.mxu0 0.0
      %9185 = vmatprep.subr.mxu0 0.0
      %9186 = vmatpush1.msra.mxu0 0.0
      %9187 = vmatprep.subr.mxu0 0.0
      %9188 = vmatpush1.msra.mxu0 0.0
      %9189 = vmatprep.subr.mxu0 0.0
      %9190 = vmatpush1.msra.mxu0 0.0
      %9191 = vmatprep.subr.mxu0 0.0
      %9192 = vmatpush1.msra.mxu0 0.0
      %9193 = vmatprep.subr.mxu0 0.0
      %9194 = vmatpush1.msra.mxu0 0.0
      %9195 = vmatprep.subr.mxu0 0.0
      %9196 = vmatpush1.msra.mxu0 0.0
      %9197 = vmatprep.subr.mxu0 0.0
      %9198 = vmatpush1.msra.mxu0 0.0
      %9199 = vmatprep.subr.mxu0 0.0
      %9200 = vmatpush1.msra.mxu0 0.0
      %9201 = vmatprep.subr.mxu0 0.0
      %9202 = vmatpush1.msra.mxu0 0.0
      %9203 = vmatprep.subr.mxu0 0.0
      %9204 = vmatpush1.msra.mxu0 0.0
      %9205 = vmatprep.subr.mxu0 0.0
      %9206 = vmatpush1.msra.mxu0 0.0
      %9207 = vmatprep.subr.mxu0 0.0
      %9208 = vmatpush1.msra.mxu0 0.0
      %9209 = vmatprep.subr.mxu0 0.0
      %9210 = vmatpush1.msra.mxu0 0.0
      %9211 = vmatprep.mubr.f32.mxu0 0.0
      %9212 = vmatmul.mubr.f32.gmra.mrb[0].mxu0 %v9145
      %v9213 = vpop.f32.mrb[0].mxu0
      %v9214 = vadd.f32 0.0, %v9213
      %v9215 = vpop.f32.mrb[0].mxu0
      %v9216 = vadd.f32 0.0, %v9215
      %9217 = vdwg.mxu0
      %9218 = vmatprep.subr.mxu0 %v9141
      %9219 = vmatpush1.msra.mxu0 %v9140
      %9220 = vmatprep.subr.mxu0 0.0
      %9221 = vmatpush1.msra.mxu0 0.0
      %9222 = vmatprep.subr.mxu0 0.0
      %9223 = vmatpush1.msra.mxu0 0.0
      %9224 = vmatprep.subr.mxu0 0.0
      %9225 = vmatpush1.msra.mxu0 0.0
      %9226 = vmatprep.subr.mxu0 0.0
      %9227 = vmatpush1.msra.mxu0 0.0
      %9228 = vmatprep.subr.mxu0 0.0
      %9229 = vmatpush1.msra.mxu0 0.0
      %9230 = vmatprep.subr.mxu0 0.0
      %9231 = vmatpush1.msra.mxu0 0.0
      %9232 = vmatprep.subr.mxu0 0.0
      %9233 = vmatpush1.msra.mxu0 0.0
      %9234 = vmatprep.subr.mxu0 0.0
      %9235 = vmatpush1.msra.mxu0 0.0
      %9236 = vmatprep.subr.mxu0 0.0
      %9237 = vmatpush1.msra.mxu0 0.0
      %9238 = vmatprep.subr.mxu0 0.0
      %9239 = vmatpush1.msra.mxu0 0.0
      %9240 = vmatprep.subr.mxu0 0.0
      %9241 = vmatpush1.msra.mxu0 0.0
      %9242 = vmatprep.subr.mxu0 0.0
      %9243 = vmatpush1.msra.mxu0 0.0
      %9244 = vmatprep.subr.mxu0 0.0
      %9245 = vmatpush1.msra.mxu0 0.0
      %9246 = vmatprep.subr.mxu0 0.0
      %9247 = vmatpush1.msra.mxu0 0.0
      %9248 = vmatprep.subr.mxu0 0.0
      %9249 = vmatpush1.msra.mxu0 0.0
      %9250 = vmatprep.subr.mxu0 0.0
      %9251 = vmatpush1.msra.mxu0 0.0
      %9252 = vmatprep.subr.mxu0 0.0
      %9253 = vmatpush1.msra.mxu0 0.0
      %9254 = vmatprep.subr.mxu0 0.0
      %9255 = vmatpush1.msra.mxu0 0.0
      %9256 = vmatprep.subr.mxu0 0.0
      %9257 = vmatpush1.msra.mxu0 0.0
      %9258 = vmatprep.subr.mxu0 0.0
      %9259 = vmatpush1.msra.mxu0 0.0
      %9260 = vmatprep.subr.mxu0 0.0
      %9261 = vmatpush1.msra.mxu0 0.0
      %9262 = vmatprep.subr.mxu0 0.0
      %9263 = vmatpush1.msra.mxu0 0.0
      %9264 = vmatprep.subr.mxu0 0.0
      %9265 = vmatpush1.msra.mxu0 0.0
      %9266 = vmatprep.subr.mxu0 0.0
      %9267 = vmatpush1.msra.mxu0 0.0
      %9268 = vmatprep.subr.mxu0 0.0
      %9269 = vmatpush1.msra.mxu0 0.0
      %9270 = vmatprep.subr.mxu0 0.0
      %9271 = vmatpush1.msra.mxu0 0.0
      %9272 = vmatprep.subr.mxu0 0.0
      %9273 = vmatpush1.msra.mxu0 0.0
      %9274 = vmatprep.subr.mxu0 0.0
      %9275 = vmatpush1.msra.mxu0 0.0
      %9276 = vmatprep.subr.mxu0 0.0
      %9277 = vmatpush1.msra.mxu0 0.0
      %9278 = vmatprep.subr.mxu0 0.0
      %9279 = vmatpush1.msra.mxu0 0.0
      %9280 = vmatprep.subr.mxu0 0.0
      %9281 = vmatpush1.msra.mxu0 0.0
      %9282 = vmatprep.mubr.f32.mxu0 0.0
      %9283 = vmatmul.mubr.f32.gmra.mrb[0].mxu0 %v9145
      %v9284 = vpop.f32.mrb[0].mxu0
      %v9285 = vadd.f32 0.0, %v9284
      %v9286 = vpop.f32.mrb[0].mxu0
      %v9287 = vadd.f32 0.0, %v9286
      %9288 = vdwg.mxu0
      %v9289 = vadd.f32 %v9134, %v9214
      %v9290 = vadd.f32 %v9135, %v9216
      %v9291 = vadd.f32 %v9136, %v9285
      %v9292 = vadd.f32 %v9137, %v9287
      %v9293 = vmul.f32 %v6381, %v4826
      %v9294 = vmul.f32 %v6380, %v4830
      %v9295 = vmul.f32 %v6379, %v4834
      %v9296 = vmul.f32 %v6382, %v4838
      %s9297 = scalar_lea.vmem %s6, 192
      %v9298 = vld [vmem:[%s9297] sm:$0xff]
      %v9300 = vsel %vm418, %v9298, 0
      %9302 = vmatprep.subr.mxu0 %v9294
      %9303 = vmatpush1.msra.mxu0 %v9293
      %9304 = vmatprep.subr.mxu0 0.0
      %9305 = vmatpush1.msra.mxu0 0.0
      %9306 = vmatprep.subr.mxu0 0.0
      %9307 = vmatpush1.msra.mxu0 0.0
      %9308 = vmatprep.subr.mxu0 0.0
      %9309 = vmatpush1.msra.mxu0 0.0
      %9310 = vmatprep.subr.mxu0 0.0
      %9311 = vmatpush1.msra.mxu0 0.0
      %9312 = vmatprep.subr.mxu0 0.0
      %9313 = vmatpush1.msra.mxu0 0.0
      %9314 = vmatprep.subr.mxu0 0.0
      %9315 = vmatpush1.msra.mxu0 0.0
      %9316 = vmatprep.subr.mxu0 0.0
      %9317 = vmatpush1.msra.mxu0 0.0
      %9318 = vmatprep.subr.mxu0 0.0
      %9319 = vmatpush1.msra.mxu0 0.0
      %9320 = vmatprep.subr.mxu0 0.0
      %9321 = vmatpush1.msra.mxu0 0.0
      %9322 = vmatprep.subr.mxu0 0.0
      %9323 = vmatpush1.msra.mxu0 0.0
      %9324 = vmatprep.subr.mxu0 0.0
      %9325 = vmatpush1.msra.mxu0 0.0
      %9326 = vmatprep.subr.mxu0 0.0
      %9327 = vmatpush1.msra.mxu0 0.0
      %9328 = vmatprep.subr.mxu0 0.0
      %9329 = vmatpush1.msra.mxu0 0.0
      %9330 = vmatprep.subr.mxu0 0.0
      %9331 = vmatpush1.msra.mxu0 0.0
      %9332 = vmatprep.subr.mxu0 0.0
      %9333 = vmatpush1.msra.mxu0 0.0
      %9334 = vmatprep.subr.mxu0 0.0
      %9335 = vmatpush1.msra.mxu0 0.0
      %9336 = vmatprep.subr.mxu0 0.0
      %9337 = vmatpush1.msra.mxu0 0.0
      %9338 = vmatprep.subr.mxu0 0.0
      %9339 = vmatpush1.msra.mxu0 0.0
      %9340 = vmatprep.subr.mxu0 0.0
      %9341 = vmatpush1.msra.mxu0 0.0
      %9342 = vmatprep.subr.mxu0 0.0
      %9343 = vmatpush1.msra.mxu0 0.0
      %9344 = vmatprep.subr.mxu0 0.0
      %9345 = vmatpush1.msra.mxu0 0.0
      %9346 = vmatprep.subr.mxu0 0.0
      %9347 = vmatpush1.msra.mxu0 0.0
      %9348 = vmatprep.subr.mxu0 0.0
      %9349 = vmatpush1.msra.mxu0 0.0
      %9350 = vmatprep.subr.mxu0 0.0
      %9351 = vmatpush1.msra.mxu0 0.0
      %9352 = vmatprep.subr.mxu0 0.0
      %9353 = vmatpush1.msra.mxu0 0.0
      %9354 = vmatprep.subr.mxu0 0.0
      %9355 = vmatpush1.msra.mxu0 0.0
      %9356 = vmatprep.subr.mxu0 0.0
      %9357 = vmatpush1.msra.mxu0 0.0
      %9358 = vmatprep.subr.mxu0 0.0
      %9359 = vmatpush1.msra.mxu0 0.0
      %9360 = vmatprep.subr.mxu0 0.0
      %9361 = vmatpush1.msra.mxu0 0.0
      %9362 = vmatprep.subr.mxu0 0.0
      %9363 = vmatpush1.msra.mxu0 0.0
      %9364 = vmatprep.subr.mxu0 0.0
      %9365 = vmatpush1.msra.mxu0 0.0
      %9366 = vmatprep.mubr.f32.mxu0 0.0
      %9367 = vmatmul.mubr.f32.gmra.mrb[0].mxu0 %v9300
      %v9368 = vpop.f32.mrb[0].mxu0
      %v9369 = vadd.f32 0.0, %v9368
      %v9370 = vpop.f32.mrb[0].mxu0
      %v9371 = vadd.f32 0.0, %v9370
      %9372 = vdwg.mxu0
      %9373 = vmatprep.subr.mxu0 %v9296
      %9374 = vmatpush1.msra.mxu0 %v9295
      %9375 = vmatprep.subr.mxu0 0.0
      %9376 = vmatpush1.msra.mxu0 0.0
      %9377 = vmatprep.subr.mxu0 0.0
      %9378 = vmatpush1.msra.mxu0 0.0
      %9379 = vmatprep.subr.mxu0 0.0
      %9380 = vmatpush1.msra.mxu0 0.0
      %9381 = vmatprep.subr.mxu0 0.0
      %9382 = vmatpush1.msra.mxu0 0.0
      %9383 = vmatprep.subr.mxu0 0.0
      %9384 = vmatpush1.msra.mxu0 0.0
      %9385 = vmatprep.subr.mxu0 0.0
      %9386 = vmatpush1.msra.mxu0 0.0
      %9387 = vmatprep.subr.mxu0 0.0
      %9388 = vmatpush1.msra.mxu0 0.0
      %9389 = vmatprep.subr.mxu0 0.0
      %9390 = vmatpush1.msra.mxu0 0.0
      %9391 = vmatprep.subr.mxu0 0.0
      %9392 = vmatpush1.msra.mxu0 0.0
      %9393 = vmatprep.subr.mxu0 0.0
      %9394 = vmatpush1.msra.mxu0 0.0
      %9395 = vmatprep.subr.mxu0 0.0
      %9396 = vmatpush1.msra.mxu0 0.0
      %9397 = vmatprep.subr.mxu0 0.0
      %9398 = vmatpush1.msra.mxu0 0.0
      %9399 = vmatprep.subr.mxu0 0.0
      %9400 = vmatpush1.msra.mxu0 0.0
      %9401 = vmatprep.subr.mxu0 0.0
      %9402 = vmatpush1.msra.mxu0 0.0
      %9403 = vmatprep.subr.mxu0 0.0
      %9404 = vmatpush1.msra.mxu0 0.0
      %9405 = vmatprep.subr.mxu0 0.0
      %9406 = vmatpush1.msra.mxu0 0.0
      %9407 = vmatprep.subr.mxu0 0.0
      %9408 = vmatpush1.msra.mxu0 0.0
      %9409 = vmatprep.subr.mxu0 0.0
      %9410 = vmatpush1.msra.mxu0 0.0
      %9411 = vmatprep.subr.mxu0 0.0
      %9412 = vmatpush1.msra.mxu0 0.0
      %9413 = vmatprep.subr.mxu0 0.0
      %9414 = vmatpush1.msra.mxu0 0.0
      %9415 = vmatprep.subr.mxu0 0.0
      %9416 = vmatpush1.msra.mxu0 0.0
      %9417 = vmatprep.subr.mxu0 0.0
      %9418 = vmatpush1.msra.mxu0 0.0
      %9419 = vmatprep.subr.mxu0 0.0
      %9420 = vmatpush1.msra.mxu0 0.0
      %9421 = vmatprep.subr.mxu0 0.0
      %9422 = vmatpush1.msra.mxu0 0.0
      %9423 = vmatprep.subr.mxu0 0.0
      %9424 = vmatpush1.msra.mxu0 0.0
      %9425 = vmatprep.subr.mxu0 0.0
      %9426 = vmatpush1.msra.mxu0 0.0
      %9427 = vmatprep.subr.mxu0 0.0
      %9428 = vmatpush1.msra.mxu0 0.0
      %9429 = vmatprep.subr.mxu0 0.0
      %9430 = vmatpush1.msra.mxu0 0.0
      %9431 = vmatprep.subr.mxu0 0.0
      %9432 = vmatpush1.msra.mxu0 0.0
      %9433 = vmatprep.subr.mxu0 0.0
      %9434 = vmatpush1.msra.mxu0 0.0
      %9435 = vmatprep.subr.mxu0 0.0
      %9436 = vmatpush1.msra.mxu0 0.0
      %9437 = vmatprep.mubr.f32.mxu0 0.0
      %9438 = vmatmul.mubr.f32.gmra.mrb[0].mxu0 %v9300
      %v9439 = vpop.f32.mrb[0].mxu0
      %v9440 = vadd.f32 0.0, %v9439
      %v9441 = vpop.f32.mrb[0].mxu0
      %v9442 = vadd.f32 0.0, %v9441
      %9443 = vdwg.mxu0
      %v9444 = vadd.f32 %v9289, %v9369
      %v9445 = vadd.f32 %v9290, %v9371
      %v9446 = vadd.f32 %v9291, %v9440
      %v9447 = vadd.f32 %v9292, %v9442
      %v9448 = vmul.f32 %v6548, %v5004
      %v9449 = vmul.f32 %v6547, %v5008
      %v9450 = vmul.f32 %v6546, %v5012
      %v9451 = vmul.f32 %v6549, %v5016
      %s9452 = scalar_lea.vmem %s6, 200
      %v9453 = vld [vmem:[%s9452] sm:$0xff]
      %v9455 = vsel %vm418, %v9453, 0
      %9457 = vmatprep.subr.mxu0 %v9449
      %9458 = vmatpush1.msra.mxu0 %v9448
      %9459 = vmatprep.subr.mxu0 0.0
      %9460 = vmatpush1.msra.mxu0 0.0
      %9461 = vmatprep.subr.mxu0 0.0
      %9462 = vmatpush1.msra.mxu0 0.0
      %9463 = vmatprep.subr.mxu0 0.0
      %9464 = vmatpush1.msra.mxu0 0.0
      %9465 = vmatprep.subr.mxu0 0.0
      %9466 = vmatpush1.msra.mxu0 0.0
      %9467 = vmatprep.subr.mxu0 0.0
      %9468 = vmatpush1.msra.mxu0 0.0
      %9469 = vmatprep.subr.mxu0 0.0
      %9470 = vmatpush1.msra.mxu0 0.0
      %9471 = vmatprep.subr.mxu0 0.0
      %9472 = vmatpush1.msra.mxu0 0.0
      %9473 = vmatprep.subr.mxu0 0.0
      %9474 = vmatpush1.msra.mxu0 0.0
      %9475 = vmatprep.subr.mxu0 0.0
      %9476 = vmatpush1.msra.mxu0 0.0
      %9477 = vmatprep.subr.mxu0 0.0
      %9478 = vmatpush1.msra.mxu0 0.0
      %9479 = vmatprep.subr.mxu0 0.0
      %9480 = vmatpush1.msra.mxu0 0.0
      %9481 = vmatprep.subr.mxu0 0.0
      %9482 = vmatpush1.msra.mxu0 0.0
      %9483 = vmatprep.subr.mxu0 0.0
      %9484 = vmatpush1.msra.mxu0 0.0
      %9485 = vmatprep.subr.mxu0 0.0
      %9486 = vmatpush1.msra.mxu0 0.0
      %9487 = vmatprep.subr.mxu0 0.0
      %9488 = vmatpush1.msra.mxu0 0.0
      %9489 = vmatprep.subr.mxu0 0.0
      %9490 = vmatpush1.msra.mxu0 0.0
      %9491 = vmatprep.subr.mxu0 0.0
      %9492 = vmatpush1.msra.mxu0 0.0
      %9493 = vmatprep.subr.mxu0 0.0
      %9494 = vmatpush1.msra.mxu0 0.0
      %9495 = vmatprep.subr.mxu0 0.0
      %9496 = vmatpush1.msra.mxu0 0.0
      %9497 = vmatprep.subr.mxu0 0.0
      %9498 = vmatpush1.msra.mxu0 0.0
      %9499 = vmatprep.subr.mxu0 0.0
      %9500 = vmatpush1.msra.mxu0 0.0
      %9501 = vmatprep.subr.mxu0 0.0
      %9502 = vmatpush1.msra.mxu0 0.0
      %9503 = vmatprep.subr.mxu0 0.0
      %9504 = vmatpush1.msra.mxu0 0.0
      %9505 = vmatprep.subr.mxu0 0.0
      %9506 = vmatpush1.msra.mxu0 0.0
      %9507 = vmatprep.subr.mxu0 0.0
      %9508 = vmatpush1.msra.mxu0 0.0
      %9509 = vmatprep.subr.mxu0 0.0
      %9510 = vmatpush1.msra.mxu0 0.0
      %9511 = vmatprep.subr.mxu0 0.0
      %9512 = vmatpush1.msra.mxu0 0.0
      %9513 = vmatprep.subr.mxu0 0.0
      %9514 = vmatpush1.msra.mxu0 0.0
      %9515 = vmatprep.subr.mxu0 0.0
      %9516 = vmatpush1.msra.mxu0 0.0
      %9517 = vmatprep.subr.mxu0 0.0
      %9518 = vmatpush1.msra.mxu0 0.0
      %9519 = vmatprep.subr.mxu0 0.0
      %9520 = vmatpush1.msra.mxu0 0.0
      %9521 = vmatprep.mubr.f32.mxu0 0.0
      %9522 = vmatmul.mubr.f32.gmra.mrb[0].mxu0 %v9455
      %v9523 = vpop.f32.mrb[0].mxu0
      %v9524 = vadd.f32 0.0, %v9523
      %v9525 = vpop.f32.mrb[0].mxu0
      %v9526 = vadd.f32 0.0, %v9525
      %9527 = vdwg.mxu0
      %9528 = vmatprep.subr.mxu0 %v9451
      %9529 = vmatpush1.msra.mxu0 %v9450
      %9530 = vmatprep.subr.mxu0 0.0
      %9531 = vmatpush1.msra.mxu0 0.0
      %9532 = vmatprep.subr.mxu0 0.0
      %9533 = vmatpush1.msra.mxu0 0.0
      %9534 = vmatprep.subr.mxu0 0.0
      %9535 = vmatpush1.msra.mxu0 0.0
      %9536 = vmatprep.subr.mxu0 0.0
      %9537 = vmatpush1.msra.mxu0 0.0
      %9538 = vmatprep.subr.mxu0 0.0
      %9539 = vmatpush1.msra.mxu0 0.0
      %9540 = vmatprep.subr.mxu0 0.0
      %9541 = vmatpush1.msra.mxu0 0.0
      %9542 = vmatprep.subr.mxu0 0.0
      %9543 = vmatpush1.msra.mxu0 0.0
      %9544 = vmatprep.subr.mxu0 0.0
      %9545 = vmatpush1.msra.mxu0 0.0
      %9546 = vmatprep.subr.mxu0 0.0
      %9547 = vmatpush1.msra.mxu0 0.0
      %9548 = vmatprep.subr.mxu0 0.0
      %9549 = vmatpush1.msra.mxu0 0.0
      %9550 = vmatprep.subr.mxu0 0.0
      %9551 = vmatpush1.msra.mxu0 0.0
      %9552 = vmatprep.subr.mxu0 0.0
      %9553 = vmatpush1.msra.mxu0 0.0
      %9554 = vmatprep.subr.mxu0 0.0
      %9555 = vmatpush1.msra.mxu0 0.0
      %9556 = vmatprep.subr.mxu0 0.0
      %9557 = vmatpush1.msra.mxu0 0.0
      %9558 = vmatprep.subr.mxu0 0.0
      %9559 = vmatpush1.msra.mxu0 0.0
      %9560 = vmatprep.subr.mxu0 0.0
      %9561 = vmatpush1.msra.mxu0 0.0
      %9562 = vmatprep.subr.mxu0 0.0
      %9563 = vmatpush1.msra.mxu0 0.0
      %9564 = vmatprep.subr.mxu0 0.0
      %9565 = vmatpush1.msra.mxu0 0.0
      %9566 = vmatprep.subr.mxu0 0.0
      %9567 = vmatpush1.msra.mxu0 0.0
      %9568 = vmatprep.subr.mxu0 0.0
      %9569 = vmatpush1.msra.mxu0 0.0
      %9570 = vmatprep.subr.mxu0 0.0
      %9571 = vmatpush1.msra.mxu0 0.0
      %9572 = vmatprep.subr.mxu0 0.0
      %9573 = vmatpush1.msra.mxu0 0.0
      %9574 = vmatprep.subr.mxu0 0.0
      %9575 = vmatpush1.msra.mxu0 0.0
      %9576 = vmatprep.subr.mxu0 0.0
      %9577 = vmatpush1.msra.mxu0 0.0
      %9578 = vmatprep.subr.mxu0 0.0
      %9579 = vmatpush1.msra.mxu0 0.0
      %9580 = vmatprep.subr.mxu0 0.0
      %9581 = vmatpush1.msra.mxu0 0.0
      %9582 = vmatprep.subr.mxu0 0.0
      %9583 = vmatpush1.msra.mxu0 0.0
      %9584 = vmatprep.subr.mxu0 0.0
      %9585 = vmatpush1.msra.mxu0 0.0
      %9586 = vmatprep.subr.mxu0 0.0
      %9587 = vmatpush1.msra.mxu0 0.0
      %9588 = vmatprep.subr.mxu0 0.0
      %9589 = vmatpush1.msra.mxu0 0.0
      %9590 = vmatprep.subr.mxu0 0.0
      %9591 = vmatpush1.msra.mxu0 0.0
      %9592 = vmatprep.mubr.f32.mxu0 0.0
      %9593 = vmatmul.mubr.f32.gmra.mrb[0].mxu0 %v9455
      %v9594 = vpop.f32.mrb[0].mxu0
      %v9595 = vadd.f32 0.0, %v9594
      %v9596 = vpop.f32.mrb[0].mxu0
      %v9597 = vadd.f32 0.0, %v9596
      %9598 = vdwg.mxu0
      %v9599 = vadd.f32 %v9444, %v9524
      %v9600 = vadd.f32 %v9445, %v9526
      %v9601 = vadd.f32 %v9446, %v9595
      %v9602 = vadd.f32 %v9447, %v9597
      %v9603 = vmul.f32 %v6715, %v5182
      %v9604 = vmul.f32 %v6714, %v5186
      %v9605 = vmul.f32 %v6713, %v5190
      %v9606 = vmul.f32 %v6716, %v5194
      %s9607 = scalar_lea.vmem %s6, 208
      %v9608 = vld [vmem:[%s9607] sm:$0xff]
      %v9610 = vsel %vm418, %v9608, 0
      %9612 = vmatprep.subr.mxu0 %v9604
      %9613 = vmatpush1.msra.mxu0 %v9603
      %9614 = vmatprep.subr.mxu0 0.0
      %9615 = vmatpush1.msra.mxu0 0.0
      %9616 = vmatprep.subr.mxu0 0.0
      %9617 = vmatpush1.msra.mxu0 0.0
      %9618 = vmatprep.subr.mxu0 0.0
      %9619 = vmatpush1.msra.mxu0 0.0
      %9620 = vmatprep.subr.mxu0 0.0
      %9621 = vmatpush1.msra.mxu0 0.0
      %9622 = vmatprep.subr.mxu0 0.0
      %9623 = vmatpush1.msra.mxu0 0.0
      %9624 = vmatprep.subr.mxu0 0.0
      %9625 = vmatpush1.msra.mxu0 0.0
      %9626 = vmatprep.subr.mxu0 0.0
      %9627 = vmatpush1.msra.mxu0 0.0
      %9628 = vmatprep.subr.mxu0 0.0
      %9629 = vmatpush1.msra.mxu0 0.0
      %9630 = vmatprep.subr.mxu0 0.0
      %9631 = vmatpush1.msra.mxu0 0.0
      %9632 = vmatprep.subr.mxu0 0.0
      %9633 = vmatpush1.msra.mxu0 0.0
      %9634 = vmatprep.subr.mxu0 0.0
      %9635 = vmatpush1.msra.mxu0 0.0
      %9636 = vmatprep.subr.mxu0 0.0
      %9637 = vmatpush1.msra.mxu0 0.0
      %9638 = vmatprep.subr.mxu0 0.0
      %9639 = vmatpush1.msra.mxu0 0.0
      %9640 = vmatprep.subr.mxu0 0.0
      %9641 = vmatpush1.msra.mxu0 0.0
      %9642 = vmatprep.subr.mxu0 0.0
      %9643 = vmatpush1.msra.mxu0 0.0
      %9644 = vmatprep.subr.mxu0 0.0
      %9645 = vmatpush1.msra.mxu0 0.0
      %9646 = vmatprep.subr.mxu0 0.0
      %9647 = vmatpush1.msra.mxu0 0.0
      %9648 = vmatprep.subr.mxu0 0.0
      %9649 = vmatpush1.msra.mxu0 0.0
      %9650 = vmatprep.subr.mxu0 0.0
      %9651 = vmatpush1.msra.mxu0 0.0
      %9652 = vmatprep.subr.mxu0 0.0
      %9653 = vmatpush1.msra.mxu0 0.0
      %9654 = vmatprep.subr.mxu0 0.0
      %9655 = vmatpush1.msra.mxu0 0.0
      %9656 = vmatprep.subr.mxu0 0.0
      %9657 = vmatpush1.msra.mxu0 0.0
      %9658 = vmatprep.subr.mxu0 0.0
      %9659 = vmatpush1.msra.mxu0 0.0
      %9660 = vmatprep.subr.mxu0 0.0
      %9661 = vmatpush1.msra.mxu0 0.0
      %9662 = vmatprep.subr.mxu0 0.0
      %9663 = vmatpush1.msra.mxu0 0.0
      %9664 = vmatprep.subr.mxu0 0.0
      %9665 = vmatpush1.msra.mxu0 0.0
      %9666 = vmatprep.subr.mxu0 0.0
      %9667 = vmatpush1.msra.mxu0 0.0
      %9668 = vmatprep.subr.mxu0 0.0
      %9669 = vmatpush1.msra.mxu0 0.0
      %9670 = vmatprep.subr.mxu0 0.0
      %9671 = vmatpush1.msra.mxu0 0.0
      %9672 = vmatprep.subr.mxu0 0.0
      %9673 = vmatpush1.msra.mxu0 0.0
      %9674 = vmatprep.subr.mxu0 0.0
      %9675 = vmatpush1.msra.mxu0 0.0
      %9676 = vmatprep.mubr.f32.mxu0 0.0
      %9677 = vmatmul.mubr.f32.gmra.mrb[0].mxu0 %v9610
      %v9678 = vpop.f32.mrb[0].mxu0
      %v9679 = vadd.f32 0.0, %v9678
      %v9680 = vpop.f32.mrb[0].mxu0
      %v9681 = vadd.f32 0.0, %v9680
      %9682 = vdwg.mxu0
      %9683 = vmatprep.subr.mxu0 %v9606
      %9684 = vmatpush1.msra.mxu0 %v9605
      %9685 = vmatprep.subr.mxu0 0.0
      %9686 = vmatpush1.msra.mxu0 0.0
      %9687 = vmatprep.subr.mxu0 0.0
      %9688 = vmatpush1.msra.mxu0 0.0
      %9689 = vmatprep.subr.mxu0 0.0
      %9690 = vmatpush1.msra.mxu0 0.0
      %9691 = vmatprep.subr.mxu0 0.0
      %9692 = vmatpush1.msra.mxu0 0.0
      %9693 = vmatprep.subr.mxu0 0.0
      %9694 = vmatpush1.msra.mxu0 0.0
      %9695 = vmatprep.subr.mxu0 0.0
      %9696 = vmatpush1.msra.mxu0 0.0
      %9697 = vmatprep.subr.mxu0 0.0
      %9698 = vmatpush1.msra.mxu0 0.0
      %9699 = vmatprep.subr.mxu0 0.0
      %9700 = vmatpush1.msra.mxu0 0.0
      %9701 = vmatprep.subr.mxu0 0.0
      %9702 = vmatpush1.msra.mxu0 0.0
      %9703 = vmatprep.subr.mxu0 0.0
      %9704 = vmatpush1.msra.mxu0 0.0
      %9705 = vmatprep.subr.mxu0 0.0
      %9706 = vmatpush1.msra.mxu0 0.0
      %9707 = vmatprep.subr.mxu0 0.0
      %9708 = vmatpush1.msra.mxu0 0.0
      %9709 = vmatprep.subr.mxu0 0.0
      %9710 = vmatpush1.msra.mxu0 0.0
      %9711 = vmatprep.subr.mxu0 0.0
      %9712 = vmatpush1.msra.mxu0 0.0
      %9713 = vmatprep.subr.mxu0 0.0
      %9714 = vmatpush1.msra.mxu0 0.0
      %9715 = vmatprep.subr.mxu0 0.0
      %9716 = vmatpush1.msra.mxu0 0.0
      %9717 = vmatprep.subr.mxu0 0.0
      %9718 = vmatpush1.msra.mxu0 0.0
      %9719 = vmatprep.subr.mxu0 0.0
      %9720 = vmatpush1.msra.mxu0 0.0
      %9721 = vmatprep.subr.mxu0 0.0
      %9722 = vmatpush1.msra.mxu0 0.0
      %9723 = vmatprep.subr.mxu0 0.0
      %9724 = vmatpush1.msra.mxu0 0.0
      %9725 = vmatprep.subr.mxu0 0.0
      %9726 = vmatpush1.msra.mxu0 0.0
      %9727 = vmatprep.subr.mxu0 0.0
      %9728 = vmatpush1.msra.mxu0 0.0
      %9729 = vmatprep.subr.mxu0 0.0
      %9730 = vmatpush1.msra.mxu0 0.0
      %9731 = vmatprep.subr.mxu0 0.0
      %9732 = vmatpush1.msra.mxu0 0.0
      %9733 = vmatprep.subr.mxu0 0.0
      %9734 = vmatpush1.msra.mxu0 0.0
      %9735 = vmatprep.subr.mxu0 0.0
      %9736 = vmatpush1.msra.mxu0 0.0
      %9737 = vmatprep.subr.mxu0 0.0
      %9738 = vmatpush1.msra.mxu0 0.0
      %9739 = vmatprep.subr.mxu0 0.0
      %9740 = vmatpush1.msra.mxu0 0.0
      %9741 = vmatprep.subr.mxu0 0.0
      %9742 = vmatpush1.msra.mxu0 0.0
      %9743 = vmatprep.subr.mxu0 0.0
      %9744 = vmatpush1.msra.mxu0 0.0
      %9745 = vmatprep.subr.mxu0 0.0
      %9746 = vmatpush1.msra.mxu0 0.0
      %9747 = vmatprep.mubr.f32.mxu0 0.0
      %9748 = vmatmul.mubr.f32.gmra.mrb[0].mxu0 %v9610
      %v9749 = vpop.f32.mrb[0].mxu0
      %v9750 = vadd.f32 0.0, %v9749
      %v9751 = vpop.f32.mrb[0].mxu0
      %v9752 = vadd.f32 0.0, %v9751
      %9753 = vdwg.mxu0
      %v9754 = vadd.f32 %v9599, %v9679
      %v9755 = vadd.f32 %v9600, %v9681
      %v9756 = vadd.f32 %v9601, %v9750
      %v9757 = vadd.f32 %v9602, %v9752
      %v9758 = vadd.f32 %v9754, %v306
      %v9759 = vadd.f32 %v9755, %v307
      %v9760 = vadd.f32 %v9756, %v308
      %v9761 = vadd.f32 %v9757, %v309
      %9762 = vst [vmem:[%s305] sm:$0xff] %v9758
      %9763 = vst [vmem:[%s305 + $0x8] sm:$0xff] %v9759
      %9764 = vst [vmem:[%s305 + $0x10] sm:$0xff] %v9760
      %9765 = vst [vmem:[%s305 + $0x18] sm:$0xff] %v9761
      %p9766 = scmp.lt.s32.totalorder %s19, 1
      %s9767 = scalar_select %p9766, %s19, 1
      %s9768 = smul.addr %s9767, 4
      %s9769 = smul.addr %s9768, 8
      %s9770 = scalar_lea.vmem %s8, %s9769
      // Predicated region
      $region53: #{pre_act_basic_block.1} parent=51 // pred_check
        %p9771 = pneg %p210
      $region54: #{pre_act_basic_block.1} parent=51 // pred_check_branch
        %9773 = sbr.rel (%p9771) target = $region56
      $region55: #{pre_act_basic_block.1} parent=51 // pred_region
        _
      $region56: #{pre_act_basic_block.1} parent=51 // pred_fallthru
        _
    $region52: #{pre_act_basic_block.1} parent=5 // pred_fallthru
      _
    %p9774 = scmp.le.s32.totalorder 2, %s14
    // Predicated region
    $region57: #{pre_act_basic_block.1} parent=5 // pred_check
      %p9775 = pneg %p9774
    $region58: #{pre_act_basic_block.1} parent=5 // pred_check_branch
      %9777 = sbr.rel (%p9775) target = $region60
    $region59: #{pre_act_basic_block.1} parent=5 // pred_region
      %s9778 = ssub.s32 %s14, 2
      // Predicated region
      $region61: #{pre_act_basic_block.1} parent=59 // pred_check
        %p9779 = pneg %p216
      $region62: #{pre_act_basic_block.1} parent=59 // pred_check_branch
        %9781 = sbr.rel (%p9779) target = $region64
      $region63: #{pre_act_basic_block.1} parent=59 // pred_region
        %p9782 = scmp.lt.s32.totalorder %s20, 1
        %s9783 = scalar_select %p9782, %s20, 1
        %s9784 = smul.addr %s9783, 4
        %s9785 = smul.addr %s9784, 8
        %s9786 = scalar_lea.vmem %s8, %s9785
      $region64: #{pre_act_basic_block.1} parent=59 // pred_fallthru
        _
    $region60: #{pre_act_basic_block.1} parent=5 // pred_fallthru
      _
  $region6: #{pre_act_basic_block.1} parent=0 // loop_footer
    %s18 = sadd.s32 1, %s14
  $region7: #{pre_act_basic_block.1} parent=0 // loop_footer_branch
    %13 = sbr.rel target = $region3
  $region8: #{pre_act_basic_block.1} parent=0 // loop_exit
    _

</llo_original>
